<compile_context>
chip_gen: v7x
topology: tpu7x:2x2x1
jax: 0.10.0
libtpu: 0.0.40
codegen_flags: <defaults>
</compile_context>

<pallas_src>
import math
import functools

import jax
import jax.numpy as jnp
from jax import lax
from jax.experimental import pallas as pl
from jax.experimental.pallas import tpu as pltpu

# Model hyper-parameters (spec: TransformerEncoder(vocab_size, d_model=8,
# n_head=2, n_hid=8, n_layers=6), custom Pre-LN layer, dropout=0.0).
VOCAB = 16
D_MODEL = 8
N_HEAD = 2
N_HID = 8
N_LAYERS = 6
HEAD_DIM = D_MODEL // N_HEAD
LN_EPS = 1e-5
NEG_BIG = -1e30          # finite "-inf" for the key-padding mask


def _layer_norm(x, w, b):
    mu = jnp.mean(x, axis=-1, keepdims=True)
    var = jnp.mean((x - mu) ** 2, axis=-1, keepdims=True)
    return (x - mu) * lax.rsqrt(var + LN_EPS) * w + b


def _encoder_forward(x, mask_bias, layer_params, batch, seq, recip):
    """Shared math for the kernel body and the pure-JAX reference.

    x:         (batch*seq, D) float32
    mask_bias: (batch, 1, seq) float32, additive key-padding bias
               (NEG_BIG where the token is padding, 0 elsewhere)
    layer_params: list of per-layer parameter tuples, weights stored (in, out).
    recip: reciprocal implementation (EUP approx inside the kernel, exact in
           the reference).
    """
    for (ln1w, ln1b, ipw, ipb, opw, opb,
         ln2w, ln2b, l1w, l1b, l2w, l2b) in layer_params:
        # ---- Pre-LN multi-head self-attention (q = k = v-source = norm1(src));
        # the 1/sqrt(head_dim) q-scale is already folded into ipw/ipb. ----
        xn = _layer_norm(x, ln1w, ln1b)
        qkv = jnp.dot(xn, ipw, preferred_element_type=jnp.float32) + ipb
        qkv_b = qkv.reshape(batch, seq, 3 * D_MODEL)            # leading split only

        attn = opb                                              # out_proj bias
        for h in range(N_HEAD):                                 # static unroll (2)
            lo = h * HEAD_DIM
            q_h = qkv_b[:, :, lo:lo + HEAD_DIM]                           # (B,S,hd)
            k_h = qkv_b[:, :, D_MODEL + lo:D_MODEL + lo + HEAD_DIM]      # (B,S,hd)
            v_h = qkv_b[:, :, 2 * D_MODEL + lo:2 * D_MODEL + lo + HEAD_DIM]

            s = jnp.einsum('bqd,bkd->bqk', q_h, k_h,
                           preferred_element_type=jnp.float32) + mask_bias
            m = jnp.max(s, axis=-1, keepdims=True)
            e = jnp.exp(s - m)
            p = e * recip(jnp.sum(e, axis=-1, keepdims=True))
            o_h = jnp.einsum('bqk,bkd->bqd', p, v_h,
                             preferred_element_type=jnp.float32)          # (B,S,hd)
            # Per-head slice of the out-projection => no head concatenation.
            attn = attn + jnp.dot(o_h.reshape(batch * seq, HEAD_DIM),
                                  opw[lo:lo + HEAD_DIM, :],
                                  preferred_element_type=jnp.float32)
        x = x + attn                                            # dropout1 = identity (p=0)

        # ---- Pre-LN feed-forward ----
        xn2 = _layer_norm(x, ln2w, ln2b)
        h1 = jnp.maximum(
            jnp.dot(xn2, l1w, preferred_element_type=jnp.float32) + l1b, 0.0)
        x = x + jnp.dot(h1, l2w, preferred_element_type=jnp.float32) + l2b
    return x


def encoder_kernel(x_ref, bias_ref,
                   ln1w_ref, ln1b_ref, ipw_ref, ipb_ref, opw_ref, opb_ref,
                   ln2w_ref, ln2b_ref, l1w_ref, l1b_ref, l2w_ref, l2b_ref,
                   out_ref, *, batch, seq):
    param_refs = (ln1w_ref, ln1b_ref, ipw_ref, ipb_ref, opw_ref, opb_ref,
                  ln2w_ref, ln2b_ref, l1w_ref, l1b_ref, l2w_ref, l2b_ref)
    # Static unroll over layers; params are loaded from the stacked
    # (N_LAYERS, ...) VMEM-resident arrays with static indices.
    layer_params = [tuple(r[l] for r in param_refs) for l in range(N_LAYERS)]
    out_ref[...] = _encoder_forward(
        x_ref[...], bias_ref[...], layer_params, batch, seq,
        recip=lambda d: pl.reciprocal(d, approx=True))


def init_params(key):
    """Deterministic synthetic parameters.

    Note: PyTorch's _get_clones deep-copies one layer (identical inits); we use
    distinct deterministic inits per layer — forward semantics are unchanged.
    The 1/sqrt(head_dim) attention scale is folded into the q-columns of the
    in-projection here (one-time, mathematically identical transform).
    """
    kemb, *kl = jax.random.split(key, 1 + N_LAYERS)
    emb = 0.1 * jax.random.normal(kemb, (VOCAB, D_MODEL), jnp.float32)
    scale = 1.0 / math.sqrt(HEAD_DIM)

    def one_layer(k):
        k1, k2, k3, k4 = jax.random.split(k, 4)
        ipw = 0.1 * jax.random.normal(k1, (D_MODEL, 3 * D_MODEL))  # in_proj W^T
        ipb = jnp.zeros((1, 3 * D_MODEL), jnp.float32)
        ipw = ipw.at[:, :D_MODEL].multiply(scale)                  # fold q-scale
        ipb = ipb.at[:, :D_MODEL].multiply(scale)
        return (
            jnp.ones((1, D_MODEL), jnp.float32),                   # norm1 weight
            jnp.zeros((1, D_MODEL), jnp.float32),                  # norm1 bias
            ipw,
            ipb,
            0.1 * jax.random.normal(k2, (D_MODEL, D_MODEL)),       # out_proj W^T
            jnp.zeros((1, D_MODEL), jnp.float32),                  # out_proj bias
            jnp.ones((1, D_MODEL), jnp.float32),                   # norm2 weight
            jnp.zeros((1, D_MODEL), jnp.float32),                  # norm2 bias
            0.1 * jax.random.normal(k3, (D_MODEL, N_HID)),         # linear1 W^T
            jnp.zeros((1, N_HID), jnp.float32),                    # linear1 bias
            0.1 * jax.random.normal(k4, (N_HID, D_MODEL)),         # linear2 W^T
            jnp.zeros((1, D_MODEL), jnp.float32),                  # linear2 bias
        )

    layers = [one_layer(k) for k in kl]
    stacked = tuple(jnp.stack([layers[l][i] for l in range(N_LAYERS)])
                    for i in range(12))
    return emb, stacked


@jax.jit
def transformer_encoder(src, emb, stacked_params):
    """src: (L, B) int32, 0-padded.  Returns (L, B, D_MODEL) float32."""
    seq, batch = src.shape
    # Additive key-padding bias computed once in the wrapper (JAX glue).
    attn_bias = jnp.where(src == 0, NEG_BIG, 0.0).astype(jnp.float32)
    attn_bias = attn_bias.T.reshape(batch, 1, seq)                     # (B,1,L)
    # Embedding gather + sqrt(d_model) scale kept as JAX glue.
    x = jnp.take(emb, src, axis=0) * math.sqrt(D_MODEL)                # (L, B, D)
    x_flat = jnp.transpose(x, (1, 0, 2)).reshape(batch * seq, D_MODEL)

    vmem = pl.BlockSpec(memory_space=pltpu.MemorySpace.VMEM)
    out = pl.pallas_call(
        functools.partial(encoder_kernel, batch=batch, seq=seq),
        out_shape=jax.ShapeDtypeStruct((batch * seq, D_MODEL), jnp.float32),
        in_specs=[vmem] * (2 + len(stacked_params)),
        out_specs=vmem,
        input_output_aliases={0: 0},    # x is overwritten layer by layer
    )(x_flat, attn_bias, *stacked_params)
    return jnp.transpose(out.reshape(batch, seq, D_MODEL), (1, 0, 2))


def transformer_encoder_ref(src, emb, stacked_params):
    """Pure-JAX reference (same math, exact reciprocal, no Pallas)."""
    seq, batch = src.shape
    attn_bias = jnp.where(src == 0, NEG_BIG, 0.0).astype(jnp.float32)
    attn_bias = attn_bias.T.reshape(batch, 1, seq)
    x = jnp.take(emb, src, axis=0) * math.sqrt(D_MODEL)
    x_flat = jnp.transpose(x, (1, 0, 2)).reshape(batch * seq, D_MODEL)
    layer_params = [tuple(p[l] for p in stacked_params) for l in range(N_LAYERS)]
    out = _encoder_forward(x_flat, attn_bias, layer_params, batch, seq,
                           recip=lambda d: 1.0 / d)
    return jnp.transpose(out.reshape(batch, seq, D_MODEL), (1, 0, 2))


if __name__ == "__main__":
    key = jax.random.PRNGKey(0)
    kp, ks = jax.random.split(key)
    seq, batch = 8, 2

    emb, params = init_params(kp)
    src = jax.random.randint(ks, (seq, batch), 1, VOCAB, dtype=jnp.int32)
    src = src.at[6:, 1].set(0)     # trailing padding tokens in batch element 1

    out = jax.block_until_ready(transformer_encoder(src, emb, params))
    assert out.shape == (seq, batch, D_MODEL)
    assert bool(jnp.all(jnp.isfinite(out)))

    with jax.default_matmul_precision("float32"):
        ref = jax.block_until_ready(transformer_encoder_ref(src, emb, params))
    err = float(jnp.max(jnp.abs(out - ref)))
    # 1e-3 tolerance accounts for the EUP approx reciprocal in the kernel's
    # softmax (reference uses exact division); logic bugs would be >> 1e-2.
    assert jnp.allclose(out, ref, atol=1e-3, rtol=1e-3), err

    print("KERNEL_OK")
</pallas_src>

<mosaic_0001>
module attributes {stable_mosaic.version = 11 : i64} {
  func.func @encoder_kernel(%arg0: memref<16x8xf32, #tpu.memory_space<vmem>>, %arg1: memref<2x1x8xf32, #tpu.memory_space<vmem>>, %arg2: memref<6x1x8xf32, #tpu.memory_space<vmem>>, %arg3: memref<6x1x8xf32, #tpu.memory_space<vmem>>, %arg4: memref<6x8x24xf32, #tpu.memory_space<vmem>>, %arg5: memref<6x1x24xf32, #tpu.memory_space<vmem>>, %arg6: memref<6x8x8xf32, #tpu.memory_space<vmem>>, %arg7: memref<6x1x8xf32, #tpu.memory_space<vmem>>, %arg8: memref<6x1x8xf32, #tpu.memory_space<vmem>>, %arg9: memref<6x1x8xf32, #tpu.memory_space<vmem>>, %arg10: memref<6x8x8xf32, #tpu.memory_space<vmem>>, %arg11: memref<6x1x8xf32, #tpu.memory_space<vmem>>, %arg12: memref<6x8x8xf32, #tpu.memory_space<vmem>>, %arg13: memref<6x1x8xf32, #tpu.memory_space<vmem>>, %arg14: memref<16x8xf32, #tpu.memory_space<vmem>>) attributes {dimension_semantics = [], scalar_prefetch = 0 : i64, scratch_operands = 0 : i64, tpu.core_type = #tpu.core_type<tc>} {
    %c0 = arith.constant 0 : index
    %c0_0 = arith.constant 0 : index
    %c0_1 = arith.constant 0 : index
    %0 = vector.load %arg2[%c0, %c0_0, %c0_1] : memref<6x1x8xf32, #tpu.memory_space<vmem>>, vector<1x1x8xf32>
    %1 = vector.shape_cast %0 : vector<1x1x8xf32> to vector<1x8xf32>
    %c0_2 = arith.constant 0 : index
    %c0_3 = arith.constant 0 : index
    %c0_4 = arith.constant 0 : index
    %2 = vector.load %arg3[%c0_2, %c0_3, %c0_4] : memref<6x1x8xf32, #tpu.memory_space<vmem>>, vector<1x1x8xf32>
    %3 = vector.shape_cast %2 : vector<1x1x8xf32> to vector<1x8xf32>
    %c0_5 = arith.constant 0 : index
    %c0_6 = arith.constant 0 : index
    %c0_7 = arith.constant 0 : index
    %4 = vector.load %arg4[%c0_5, %c0_6, %c0_7] : memref<6x8x24xf32, #tpu.memory_space<vmem>>, vector<1x8x24xf32>
    %5 = vector.shape_cast %4 : vector<1x8x24xf32> to vector<8x24xf32>
    %c0_8 = arith.constant 0 : index
    %c0_9 = arith.constant 0 : index
    %c0_10 = arith.constant 0 : index
    %6 = vector.load %arg5[%c0_8, %c0_9, %c0_10] : memref<6x1x24xf32, #tpu.memory_space<vmem>>, vector<1x1x24xf32>
    %7 = vector.shape_cast %6 : vector<1x1x24xf32> to vector<1x24xf32>
    %c0_11 = arith.constant 0 : index
    %c0_12 = arith.constant 0 : index
    %c0_13 = arith.constant 0 : index
    %8 = vector.load %arg6[%c0_11, %c0_12, %c0_13] : memref<6x8x8xf32, #tpu.memory_space<vmem>>, vector<1x8x8xf32>
    %9 = vector.shape_cast %8 : vector<1x8x8xf32> to vector<8x8xf32>
    %c0_14 = arith.constant 0 : index
    %c0_15 = arith.constant 0 : index
    %c0_16 = arith.constant 0 : index
    %10 = vector.load %arg7[%c0_14, %c0_15, %c0_16] : memref<6x1x8xf32, #tpu.memory_space<vmem>>, vector<1x1x8xf32>
    %11 = vector.shape_cast %10 : vector<1x1x8xf32> to vector<1x8xf32>
    %c0_17 = arith.constant 0 : index
    %c0_18 = arith.constant 0 : index
    %c0_19 = arith.constant 0 : index
    %12 = vector.load %arg8[%c0_17, %c0_18, %c0_19] : memref<6x1x8xf32, #tpu.memory_space<vmem>>, vector<1x1x8xf32>
    %13 = vector.shape_cast %12 : vector<1x1x8xf32> to vector<1x8xf32>
    %c0_20 = arith.constant 0 : index
    %c0_21 = arith.constant 0 : index
    %c0_22 = arith.constant 0 : index
    %14 = vector.load %arg9[%c0_20, %c0_21, %c0_22] : memref<6x1x8xf32, #tpu.memory_space<vmem>>, vector<1x1x8xf32>
    %15 = vector.shape_cast %14 : vector<1x1x8xf32> to vector<1x8xf32>
    %c0_23 = arith.constant 0 : index
    %c0_24 = arith.constant 0 : index
    %c0_25 = arith.constant 0 : index
    %16 = vector.load %arg10[%c0_23, %c0_24, %c0_25] : memref<6x8x8xf32, #tpu.memory_space<vmem>>, vector<1x8x8xf32>
    %17 = vector.shape_cast %16 : vector<1x8x8xf32> to vector<8x8xf32>
    %c0_26 = arith.constant 0 : index
    %c0_27 = arith.constant 0 : index
    %c0_28 = arith.constant 0 : index
    %18 = vector.load %arg11[%c0_26, %c0_27, %c0_28] : memref<6x1x8xf32, #tpu.memory_space<vmem>>, vector<1x1x8xf32>
    %19 = vector.shape_cast %18 : vector<1x1x8xf32> to vector<1x8xf32>
    %c0_29 = arith.constant 0 : index
    %c0_30 = arith.constant 0 : index
    %c0_31 = arith.constant 0 : index
    %20 = vector.load %arg12[%c0_29, %c0_30, %c0_31] : memref<6x8x8xf32, #tpu.memory_space<vmem>>, vector<1x8x8xf32>
    %21 = vector.shape_cast %20 : vector<1x8x8xf32> to vector<8x8xf32>
    %c0_32 = arith.constant 0 : index
    %c0_33 = arith.constant 0 : index
    %c0_34 = arith.constant 0 : index
    %22 = vector.load %arg13[%c0_32, %c0_33, %c0_34] : memref<6x1x8xf32, #tpu.memory_space<vmem>>, vector<1x1x8xf32>
    %23 = vector.shape_cast %22 : vector<1x1x8xf32> to vector<1x8xf32>
    %c1 = arith.constant 1 : index
    %c0_35 = arith.constant 0 : index
    %c0_36 = arith.constant 0 : index
    %24 = vector.load %arg2[%c1, %c0_35, %c0_36] : memref<6x1x8xf32, #tpu.memory_space<vmem>>, vector<1x1x8xf32>
    %25 = vector.shape_cast %24 : vector<1x1x8xf32> to vector<1x8xf32>
    %c1_37 = arith.constant 1 : index
    %c0_38 = arith.constant 0 : index
    %c0_39 = arith.constant 0 : index
    %26 = vector.load %arg3[%c1_37, %c0_38, %c0_39] : memref<6x1x8xf32, #tpu.memory_space<vmem>>, vector<1x1x8xf32>
    %27 = vector.shape_cast %26 : vector<1x1x8xf32> to vector<1x8xf32>
    %c1_40 = arith.constant 1 : index
    %c0_41 = arith.constant 0 : index
    %c0_42 = arith.constant 0 : index
    %28 = vector.load %arg4[%c1_40, %c0_41, %c0_42] : memref<6x8x24xf32, #tpu.memory_space<vmem>>, vector<1x8x24xf32>
    %29 = vector.shape_cast %28 : vector<1x8x24xf32> to vector<8x24xf32>
    %c1_43 = arith.constant 1 : index
    %c0_44 = arith.constant 0 : index
    %c0_45 = arith.constant 0 : index
    %30 = vector.load %arg5[%c1_43, %c0_44, %c0_45] : memref<6x1x24xf32, #tpu.memory_space<vmem>>, vector<1x1x24xf32>
    %31 = vector.shape_cast %30 : vector<1x1x24xf32> to vector<1x24xf32>
    %c1_46 = arith.constant 1 : index
    %c0_47 = arith.constant 0 : index
    %c0_48 = arith.constant 0 : index
    %32 = vector.load %arg6[%c1_46, %c0_47, %c0_48] : memref<6x8x8xf32, #tpu.memory_space<vmem>>, vector<1x8x8xf32>
    %33 = vector.shape_cast %32 : vector<1x8x8xf32> to vector<8x8xf32>
    %c1_49 = arith.constant 1 : index
    %c0_50 = arith.constant 0 : index
    %c0_51 = arith.constant 0 : index
    %34 = vector.load %arg7[%c1_49, %c0_50, %c0_51] : memref<6x1x8xf32, #tpu.memory_space<vmem>>, vector<1x1x8xf32>
    %35 = vector.shape_cast %34 : vector<1x1x8xf32> to vector<1x8xf32>
    %c1_52 = arith.constant 1 : index
    %c0_53 = arith.constant 0 : index
    %c0_54 = arith.constant 0 : index
    %36 = vector.load %arg8[%c1_52, %c0_53, %c0_54] : memref<6x1x8xf32, #tpu.memory_space<vmem>>, vector<1x1x8xf32>
    %37 = vector.shape_cast %36 : vector<1x1x8xf32> to vector<1x8xf32>
    %c1_55 = arith.constant 1 : index
    %c0_56 = arith.constant 0 : index
    %c0_57 = arith.constant 0 : index
    %38 = vector.load %arg9[%c1_55, %c0_56, %c0_57] : memref<6x1x8xf32, #tpu.memory_space<vmem>>, vector<1x1x8xf32>
    %39 = vector.shape_cast %38 : vector<1x1x8xf32> to vector<1x8xf32>
    %c1_58 = arith.constant 1 : index
    %c0_59 = arith.constant 0 : index
    %c0_60 = arith.constant 0 : index
    %40 = vector.load %arg10[%c1_58, %c0_59, %c0_60] : memref<6x8x8xf32, #tpu.memory_space<vmem>>, vector<1x8x8xf32>
    %41 = vector.shape_cast %40 : vector<1x8x8xf32> to vector<8x8xf32>
    %c1_61 = arith.constant 1 : index
    %c0_62 = arith.constant 0 : index
    %c0_63 = arith.constant 0 : index
    %42 = vector.load %arg11[%c1_61, %c0_62, %c0_63] : memref<6x1x8xf32, #tpu.memory_space<vmem>>, vector<1x1x8xf32>
    %43 = vector.shape_cast %42 : vector<1x1x8xf32> to vector<1x8xf32>
    %c1_64 = arith.constant 1 : index
    %c0_65 = arith.constant 0 : index
    %c0_66 = arith.constant 0 : index
    %44 = vector.load %arg12[%c1_64, %c0_65, %c0_66] : memref<6x8x8xf32, #tpu.memory_space<vmem>>, vector<1x8x8xf32>
    %45 = vector.shape_cast %44 : vector<1x8x8xf32> to vector<8x8xf32>
    %c1_67 = arith.constant 1 : index
    %c0_68 = arith.constant 0 : index
    %c0_69 = arith.constant 0 : index
    %46 = vector.load %arg13[%c1_67, %c0_68, %c0_69] : memref<6x1x8xf32, #tpu.memory_space<vmem>>, vector<1x1x8xf32>
    %47 = vector.shape_cast %46 : vector<1x1x8xf32> to vector<1x8xf32>
    %c2 = arith.constant 2 : index
    %c0_70 = arith.constant 0 : index
    %c0_71 = arith.constant 0 : index
    %48 = vector.load %arg2[%c2, %c0_70, %c0_71] : memref<6x1x8xf32, #tpu.memory_space<vmem>>, vector<1x1x8xf32>
    %49 = vector.shape_cast %48 : vector<1x1x8xf32> to vector<1x8xf32>
    %c2_72 = arith.constant 2 : index
    %c0_73 = arith.constant 0 : index
    %c0_74 = arith.constant 0 : index
    %50 = vector.load %arg3[%c2_72, %c0_73, %c0_74] : memref<6x1x8xf32, #tpu.memory_space<vmem>>, vector<1x1x8xf32>
    %51 = vector.shape_cast %50 : vector<1x1x8xf32> to vector<1x8xf32>
    %c2_75 = arith.constant 2 : index
    %c0_76 = arith.constant 0 : index
    %c0_77 = arith.constant 0 : index
    %52 = vector.load %arg4[%c2_75, %c0_76, %c0_77] : memref<6x8x24xf32, #tpu.memory_space<vmem>>, vector<1x8x24xf32>
    %53 = vector.shape_cast %52 : vector<1x8x24xf32> to vector<8x24xf32>
    %c2_78 = arith.constant 2 : index
    %c0_79 = arith.constant 0 : index
    %c0_80 = arith.constant 0 : index
    %54 = vector.load %arg5[%c2_78, %c0_79, %c0_80] : memref<6x1x24xf32, #tpu.memory_space<vmem>>, vector<1x1x24xf32>
    %55 = vector.shape_cast %54 : vector<1x1x24xf32> to vector<1x24xf32>
    %c2_81 = arith.constant 2 : index
    %c0_82 = arith.constant 0 : index
    %c0_83 = arith.constant 0 : index
    %56 = vector.load %arg6[%c2_81, %c0_82, %c0_83] : memref<6x8x8xf32, #tpu.memory_space<vmem>>, vector<1x8x8xf32>
    %57 = vector.shape_cast %56 : vector<1x8x8xf32> to vector<8x8xf32>
    %c2_84 = arith.constant 2 : index
    %c0_85 = arith.constant 0 : index
    %c0_86 = arith.constant 0 : index
    %58 = vector.load %arg7[%c2_84, %c0_85, %c0_86] : memref<6x1x8xf32, #tpu.memory_space<vmem>>, vector<1x1x8xf32>
    %59 = vector.shape_cast %58 : vector<1x1x8xf32> to vector<1x8xf32>
    %c2_87 = arith.constant 2 : index
    %c0_88 = arith.constant 0 : index
    %c0_89 = arith.constant 0 : index
    %60 = vector.load %arg8[%c2_87, %c0_88, %c0_89] : memref<6x1x8xf32, #tpu.memory_space<vmem>>, vector<1x1x8xf32>
    %61 = vector.shape_cast %60 : vector<1x1x8xf32> to vector<1x8xf32>
    %c2_90 = arith.constant 2 : index
    %c0_91 = arith.constant 0 : index
    %c0_92 = arith.constant 0 : index
    %62 = vector.load %arg9[%c2_90, %c0_91, %c0_92] : memref<6x1x8xf32, #tpu.memory_space<vmem>>, vector<1x1x8xf32>
    %63 = vector.shape_cast %62 : vector<1x1x8xf32> to vector<1x8xf32>
    %c2_93 = arith.constant 2 : index
    %c0_94 = arith.constant 0 : index
    %c0_95 = arith.constant 0 : index
    %64 = vector.load %arg10[%c2_93, %c0_94, %c0_95] : memref<6x8x8xf32, #tpu.memory_space<vmem>>, vector<1x8x8xf32>
    %65 = vector.shape_cast %64 : vector<1x8x8xf32> to vector<8x8xf32>
    %c2_96 = arith.constant 2 : index
    %c0_97 = arith.constant 0 : index
    %c0_98 = arith.constant 0 : index
    %66 = vector.load %arg11[%c2_96, %c0_97, %c0_98] : memref<6x1x8xf32, #tpu.memory_space<vmem>>, vector<1x1x8xf32>
    %67 = vector.shape_cast %66 : vector<1x1x8xf32> to vector<1x8xf32>
    %c2_99 = arith.constant 2 : index
    %c0_100 = arith.constant 0 : index
    %c0_101 = arith.constant 0 : index
    %68 = vector.load %arg12[%c2_99, %c0_100, %c0_101] : memref<6x8x8xf32, #tpu.memory_space<vmem>>, vector<1x8x8xf32>
    %69 = vector.shape_cast %68 : vector<1x8x8xf32> to vector<8x8xf32>
    %c2_102 = arith.constant 2 : index
    %c0_103 = arith.constant 0 : index
    %c0_104 = arith.constant 0 : index
    %70 = vector.load %arg13[%c2_102, %c0_103, %c0_104] : memref<6x1x8xf32, #tpu.memory_space<vmem>>, vector<1x1x8xf32>
    %71 = vector.shape_cast %70 : vector<1x1x8xf32> to vector<1x8xf32>
    %c3 = arith.constant 3 : index
    %c0_105 = arith.constant 0 : index
    %c0_106 = arith.constant 0 : index
    %72 = vector.load %arg2[%c3, %c0_105, %c0_106] : memref<6x1x8xf32, #tpu.memory_space<vmem>>, vector<1x1x8xf32>
    %73 = vector.shape_cast %72 : vector<1x1x8xf32> to vector<1x8xf32>
    %c3_107 = arith.constant 3 : index
    %c0_108 = arith.constant 0 : index
    %c0_109 = arith.constant 0 : index
    %74 = vector.load %arg3[%c3_107, %c0_108, %c0_109] : memref<6x1x8xf32, #tpu.memory_space<vmem>>, vector<1x1x8xf32>
    %75 = vector.shape_cast %74 : vector<1x1x8xf32> to vector<1x8xf32>
    %c3_110 = arith.constant 3 : index
    %c0_111 = arith.constant 0 : index
    %c0_112 = arith.constant 0 : index
    %76 = vector.load %arg4[%c3_110, %c0_111, %c0_112] : memref<6x8x24xf32, #tpu.memory_space<vmem>>, vector<1x8x24xf32>
    %77 = vector.shape_cast %76 : vector<1x8x24xf32> to vector<8x24xf32>
    %c3_113 = arith.constant 3 : index
    %c0_114 = arith.constant 0 : index
    %c0_115 = arith.constant 0 : index
    %78 = vector.load %arg5[%c3_113, %c0_114, %c0_115] : memref<6x1x24xf32, #tpu.memory_space<vmem>>, vector<1x1x24xf32>
    %79 = vector.shape_cast %78 : vector<1x1x24xf32> to vector<1x24xf32>
    %c3_116 = arith.constant 3 : index
    %c0_117 = arith.constant 0 : index
    %c0_118 = arith.constant 0 : index
    %80 = vector.load %arg6[%c3_116, %c0_117, %c0_118] : memref<6x8x8xf32, #tpu.memory_space<vmem>>, vector<1x8x8xf32>
    %81 = vector.shape_cast %80 : vector<1x8x8xf32> to vector<8x8xf32>
    %c3_119 = arith.constant 3 : index
    %c0_120 = arith.constant 0 : index
    %c0_121 = arith.constant 0 : index
    %82 = vector.load %arg7[%c3_119, %c0_120, %c0_121] : memref<6x1x8xf32, #tpu.memory_space<vmem>>, vector<1x1x8xf32>
    %83 = vector.shape_cast %82 : vector<1x1x8xf32> to vector<1x8xf32>
    %c3_122 = arith.constant 3 : index
    %c0_123 = arith.constant 0 : index
    %c0_124 = arith.constant 0 : index
    %84 = vector.load %arg8[%c3_122, %c0_123, %c0_124] : memref<6x1x8xf32, #tpu.memory_space<vmem>>, vector<1x1x8xf32>
    %85 = vector.shape_cast %84 : vector<1x1x8xf32> to vector<1x8xf32>
    %c3_125 = arith.constant 3 : index
    %c0_126 = arith.constant 0 : index
    %c0_127 = arith.constant 0 : index
    %86 = vector.load %arg9[%c3_125, %c0_126, %c0_127] : memref<6x1x8xf32, #tpu.memory_space<vmem>>, vector<1x1x8xf32>
    %87 = vector.shape_cast %86 : vector<1x1x8xf32> to vector<1x8xf32>
    %c3_128 = arith.constant 3 : index
    %c0_129 = arith.constant 0 : index
    %c0_130 = arith.constant 0 : index
    %88 = vector.load %arg10[%c3_128, %c0_129, %c0_130] : memref<6x8x8xf32, #tpu.memory_space<vmem>>, vector<1x8x8xf32>
    %89 = vector.shape_cast %88 : vector<1x8x8xf32> to vector<8x8xf32>
    %c3_131 = arith.constant 3 : index
    %c0_132 = arith.constant 0 : index
    %c0_133 = arith.constant 0 : index
    %90 = vector.load %arg11[%c3_131, %c0_132, %c0_133] : memref<6x1x8xf32, #tpu.memory_space<vmem>>, vector<1x1x8xf32>
    %91 = vector.shape_cast %90 : vector<1x1x8xf32> to vector<1x8xf32>
    %c3_134 = arith.constant 3 : index
    %c0_135 = arith.constant 0 : index
    %c0_136 = arith.constant 0 : index
    %92 = vector.load %arg12[%c3_134, %c0_135, %c0_136] : memref<6x8x8xf32, #tpu.memory_space<vmem>>, vector<1x8x8xf32>
    %93 = vector.shape_cast %92 : vector<1x8x8xf32> to vector<8x8xf32>
    %c3_137 = arith.constant 3 : index
    %c0_138 = arith.constant 0 : index
    %c0_139 = arith.constant 0 : index
    %94 = vector.load %arg13[%c3_137, %c0_138, %c0_139] : memref<6x1x8xf32, #tpu.memory_space<vmem>>, vector<1x1x8xf32>
    %95 = vector.shape_cast %94 : vector<1x1x8xf32> to vector<1x8xf32>
    %c4 = arith.constant 4 : index
    %c0_140 = arith.constant 0 : index
    %c0_141 = arith.constant 0 : index
    %96 = vector.load %arg2[%c4, %c0_140, %c0_141] : memref<6x1x8xf32, #tpu.memory_space<vmem>>, vector<1x1x8xf32>
    %97 = vector.shape_cast %96 : vector<1x1x8xf32> to vector<1x8xf32>
    %c4_142 = arith.constant 4 : index
    %c0_143 = arith.constant 0 : index
    %c0_144 = arith.constant 0 : index
    %98 = vector.load %arg3[%c4_142, %c0_143, %c0_144] : memref<6x1x8xf32, #tpu.memory_space<vmem>>, vector<1x1x8xf32>
    %99 = vector.shape_cast %98 : vector<1x1x8xf32> to vector<1x8xf32>
    %c4_145 = arith.constant 4 : index
    %c0_146 = arith.constant 0 : index
    %c0_147 = arith.constant 0 : index
    %100 = vector.load %arg4[%c4_145, %c0_146, %c0_147] : memref<6x8x24xf32, #tpu.memory_space<vmem>>, vector<1x8x24xf32>
    %101 = vector.shape_cast %100 : vector<1x8x24xf32> to vector<8x24xf32>
    %c4_148 = arith.constant 4 : index
    %c0_149 = arith.constant 0 : index
    %c0_150 = arith.constant 0 : index
    %102 = vector.load %arg5[%c4_148, %c0_149, %c0_150] : memref<6x1x24xf32, #tpu.memory_space<vmem>>, vector<1x1x24xf32>
    %103 = vector.shape_cast %102 : vector<1x1x24xf32> to vector<1x24xf32>
    %c4_151 = arith.constant 4 : index
    %c0_152 = arith.constant 0 : index
    %c0_153 = arith.constant 0 : index
    %104 = vector.load %arg6[%c4_151, %c0_152, %c0_153] : memref<6x8x8xf32, #tpu.memory_space<vmem>>, vector<1x8x8xf32>
    %105 = vector.shape_cast %104 : vector<1x8x8xf32> to vector<8x8xf32>
    %c4_154 = arith.constant 4 : index
    %c0_155 = arith.constant 0 : index
    %c0_156 = arith.constant 0 : index
    %106 = vector.load %arg7[%c4_154, %c0_155, %c0_156] : memref<6x1x8xf32, #tpu.memory_space<vmem>>, vector<1x1x8xf32>
    %107 = vector.shape_cast %106 : vector<1x1x8xf32> to vector<1x8xf32>
    %c4_157 = arith.constant 4 : index
    %c0_158 = arith.constant 0 : index
    %c0_159 = arith.constant 0 : index
    %108 = vector.load %arg8[%c4_157, %c0_158, %c0_159] : memref<6x1x8xf32, #tpu.memory_space<vmem>>, vector<1x1x8xf32>
    %109 = vector.shape_cast %108 : vector<1x1x8xf32> to vector<1x8xf32>
    %c4_160 = arith.constant 4 : index
    %c0_161 = arith.constant 0 : index
    %c0_162 = arith.constant 0 : index
    %110 = vector.load %arg9[%c4_160, %c0_161, %c0_162] : memref<6x1x8xf32, #tpu.memory_space<vmem>>, vector<1x1x8xf32>
    %111 = vector.shape_cast %110 : vector<1x1x8xf32> to vector<1x8xf32>
    %c4_163 = arith.constant 4 : index
    %c0_164 = arith.constant 0 : index
    %c0_165 = arith.constant 0 : index
    %112 = vector.load %arg10[%c4_163, %c0_164, %c0_165] : memref<6x8x8xf32, #tpu.memory_space<vmem>>, vector<1x8x8xf32>
    %113 = vector.shape_cast %112 : vector<1x8x8xf32> to vector<8x8xf32>
    %c4_166 = arith.constant 4 : index
    %c0_167 = arith.constant 0 : index
    %c0_168 = arith.constant 0 : index
    %114 = vector.load %arg11[%c4_166, %c0_167, %c0_168] : memref<6x1x8xf32, #tpu.memory_space<vmem>>, vector<1x1x8xf32>
    %115 = vector.shape_cast %114 : vector<1x1x8xf32> to vector<1x8xf32>
    %c4_169 = arith.constant 4 : index
    %c0_170 = arith.constant 0 : index
    %c0_171 = arith.constant 0 : index
    %116 = vector.load %arg12[%c4_169, %c0_170, %c0_171] : memref<6x8x8xf32, #tpu.memory_space<vmem>>, vector<1x8x8xf32>
    %117 = vector.shape_cast %116 : vector<1x8x8xf32> to vector<8x8xf32>
    %c4_172 = arith.constant 4 : index
    %c0_173 = arith.constant 0 : index
    %c0_174 = arith.constant 0 : index
    %118 = vector.load %arg13[%c4_172, %c0_173, %c0_174] : memref<6x1x8xf32, #tpu.memory_space<vmem>>, vector<1x1x8xf32>
    %119 = vector.shape_cast %118 : vector<1x1x8xf32> to vector<1x8xf32>
    %c5 = arith.constant 5 : index
    %c0_175 = arith.constant 0 : index
    %c0_176 = arith.constant 0 : index
    %120 = vector.load %arg2[%c5, %c0_175, %c0_176] : memref<6x1x8xf32, #tpu.memory_space<vmem>>, vector<1x1x8xf32>
    %121 = vector.shape_cast %120 : vector<1x1x8xf32> to vector<1x8xf32>
    %c5_177 = arith.constant 5 : index
    %c0_178 = arith.constant 0 : index
    %c0_179 = arith.constant 0 : index
    %122 = vector.load %arg3[%c5_177, %c0_178, %c0_179] : memref<6x1x8xf32, #tpu.memory_space<vmem>>, vector<1x1x8xf32>
    %123 = vector.shape_cast %122 : vector<1x1x8xf32> to vector<1x8xf32>
    %c5_180 = arith.constant 5 : index
    %c0_181 = arith.constant 0 : index
    %c0_182 = arith.constant 0 : index
    %124 = vector.load %arg4[%c5_180, %c0_181, %c0_182] : memref<6x8x24xf32, #tpu.memory_space<vmem>>, vector<1x8x24xf32>
    %125 = vector.shape_cast %124 : vector<1x8x24xf32> to vector<8x24xf32>
    %c5_183 = arith.constant 5 : index
    %c0_184 = arith.constant 0 : index
    %c0_185 = arith.constant 0 : index
    %126 = vector.load %arg5[%c5_183, %c0_184, %c0_185] : memref<6x1x24xf32, #tpu.memory_space<vmem>>, vector<1x1x24xf32>
    %127 = vector.shape_cast %126 : vector<1x1x24xf32> to vector<1x24xf32>
    %c5_186 = arith.constant 5 : index
    %c0_187 = arith.constant 0 : index
    %c0_188 = arith.constant 0 : index
    %128 = vector.load %arg6[%c5_186, %c0_187, %c0_188] : memref<6x8x8xf32, #tpu.memory_space<vmem>>, vector<1x8x8xf32>
    %129 = vector.shape_cast %128 : vector<1x8x8xf32> to vector<8x8xf32>
    %c5_189 = arith.constant 5 : index
    %c0_190 = arith.constant 0 : index
    %c0_191 = arith.constant 0 : index
    %130 = vector.load %arg7[%c5_189, %c0_190, %c0_191] : memref<6x1x8xf32, #tpu.memory_space<vmem>>, vector<1x1x8xf32>
    %131 = vector.shape_cast %130 : vector<1x1x8xf32> to vector<1x8xf32>
    %c5_192 = arith.constant 5 : index
    %c0_193 = arith.constant 0 : index
    %c0_194 = arith.constant 0 : index
    %132 = vector.load %arg8[%c5_192, %c0_193, %c0_194] : memref<6x1x8xf32, #tpu.memory_space<vmem>>, vector<1x1x8xf32>
    %133 = vector.shape_cast %132 : vector<1x1x8xf32> to vector<1x8xf32>
    %c5_195 = arith.constant 5 : index
    %c0_196 = arith.constant 0 : index
    %c0_197 = arith.constant 0 : index
    %134 = vector.load %arg9[%c5_195, %c0_196, %c0_197] : memref<6x1x8xf32, #tpu.memory_space<vmem>>, vector<1x1x8xf32>
    %135 = vector.shape_cast %134 : vector<1x1x8xf32> to vector<1x8xf32>
    %c5_198 = arith.constant 5 : index
    %c0_199 = arith.constant 0 : index
    %c0_200 = arith.constant 0 : index
    %136 = vector.load %arg10[%c5_198, %c0_199, %c0_200] : memref<6x8x8xf32, #tpu.memory_space<vmem>>, vector<1x8x8xf32>
    %137 = vector.shape_cast %136 : vector<1x8x8xf32> to vector<8x8xf32>
    %c5_201 = arith.constant 5 : index
    %c0_202 = arith.constant 0 : index
    %c0_203 = arith.constant 0 : index
    %138 = vector.load %arg11[%c5_201, %c0_202, %c0_203] : memref<6x1x8xf32, #tpu.memory_space<vmem>>, vector<1x1x8xf32>
    %139 = vector.shape_cast %138 : vector<1x1x8xf32> to vector<1x8xf32>
    %c5_204 = arith.constant 5 : index
    %c0_205 = arith.constant 0 : index
    %c0_206 = arith.constant 0 : index
    %140 = vector.load %arg12[%c5_204, %c0_205, %c0_206] : memref<6x8x8xf32, #tpu.memory_space<vmem>>, vector<1x8x8xf32>
    %141 = vector.shape_cast %140 : vector<1x8x8xf32> to vector<8x8xf32>
    %c5_207 = arith.constant 5 : index
    %c0_208 = arith.constant 0 : index
    %c0_209 = arith.constant 0 : index
    %142 = vector.load %arg13[%c5_207, %c0_208, %c0_209] : memref<6x1x8xf32, #tpu.memory_space<vmem>>, vector<1x1x8xf32>
    %143 = vector.shape_cast %142 : vector<1x1x8xf32> to vector<1x8xf32>
    %c0_210 = arith.constant 0 : index
    %c0_211 = arith.constant 0 : index
    %144 = vector.load %arg0[%c0_210, %c0_211] : memref<16x8xf32, #tpu.memory_space<vmem>>, vector<16x8xf32>
    %c0_212 = arith.constant 0 : index
    %c0_213 = arith.constant 0 : index
    %c0_214 = arith.constant 0 : index
    %145 = vector.load %arg1[%c0_212, %c0_213, %c0_214] : memref<2x1x8xf32, #tpu.memory_space<vmem>>, vector<2x1x8xf32>
    %cst = arith.constant dense<0.000000e+00> : vector<16xf32>
    %146 = vector.multi_reduction <add>, %144, %cst [1] : vector<16x8xf32> to vector<16xf32>
    %147 = vector.shape_cast %146 : vector<16xf32> to vector<16x1xf32>
    %cst_215 = arith.constant 8.000000e+00 : f32
    %148 = vector.broadcast %cst_215 : f32 to vector<16x1xf32>
    %149 = arith.divf %147, %148 : vector<16x1xf32>
    %150 = vector.broadcast %149 : vector<16x1xf32> to vector<16x8xf32>
    %151 = arith.subf %144, %150 : vector<16x8xf32>
    %152 = arith.mulf %151, %151 : vector<16x8xf32>
    %cst_216 = arith.constant dense<0.000000e+00> : vector<16xf32>
    %153 = vector.multi_reduction <add>, %152, %cst_216 [1] : vector<16x8xf32> to vector<16xf32>
    %154 = vector.shape_cast %153 : vector<16xf32> to vector<16x1xf32>
    %cst_217 = arith.constant 8.000000e+00 : f32
    %155 = vector.broadcast %cst_217 : f32 to vector<16x1xf32>
    %156 = arith.divf %154, %155 : vector<16x1xf32>
    %157 = vector.broadcast %149 : vector<16x1xf32> to vector<16x8xf32>
    %158 = arith.subf %144, %157 : vector<16x8xf32>
    %cst_218 = arith.constant 9.99999974E-6 : f32
    %159 = vector.broadcast %cst_218 : f32 to vector<16x1xf32>
    %160 = arith.addf %156, %159 : vector<16x1xf32>
    %161 = math.rsqrt %160 : vector<16x1xf32>
    %162 = vector.broadcast %161 : vector<16x1xf32> to vector<16x8xf32>
    %163 = arith.mulf %158, %162 : vector<16x8xf32>
    %164 = vector.broadcast %1 : vector<1x8xf32> to vector<16x8xf32>
    %165 = arith.mulf %163, %164 : vector<16x8xf32>
    %166 = vector.broadcast %3 : vector<1x8xf32> to vector<16x8xf32>
    %167 = arith.addf %165, %166 : vector<16x8xf32>
    %cst_219 = arith.constant dense<0.000000e+00> : vector<16x24xf32>
    %168 = tpu.matmul %167, %5, %cst_219 {dimension_numbers = #tpu.dot_dimension_numbers<[1], [0], [0], [1], [0, 0, 1, 1], [], []>} : vector<16x8xf32>, vector<8x24xf32>, vector<16x24xf32> -> vector<16x24xf32>
    %169 = vector.broadcast %7 : vector<1x24xf32> to vector<16x24xf32>
    %170 = arith.addf %168, %169 : vector<16x24xf32>
    %171 = vector.shape_cast %170 : vector<16x24xf32> to vector<2x8x24xf32>
    %172 = vector.extract_strided_slice %171 {offsets = [0, 0, 0], sizes = [2, 8, 4], strides = [1, 1, 1]} : vector<2x8x24xf32> to vector<2x8x4xf32>
    %173 = vector.extract_strided_slice %171 {offsets = [0, 0, 8], sizes = [2, 8, 4], strides = [1, 1, 1]} : vector<2x8x24xf32> to vector<2x8x4xf32>
    %174 = vector.extract_strided_slice %171 {offsets = [0, 0, 16], sizes = [2, 8, 4], strides = [1, 1, 1]} : vector<2x8x24xf32> to vector<2x8x4xf32>
    "tpu.trace_start"() <{level = 10 : i32, message = "bqd,bkd->bqk"}> : () -> ()
    %cst_220 = arith.constant dense<0.000000e+00> : vector<2x8x8xf32>
    %175 = tpu.matmul %172, %173, %cst_220 {dimension_numbers = #tpu.dot_dimension_numbers<[2], [2], [1], [1], [0, 0, 0, 1, 1, 1], [0], [0]>} : vector<2x8x4xf32>, vector<2x8x4xf32>, vector<2x8x8xf32> -> vector<2x8x8xf32>
    "tpu.trace_stop"() : () -> ()
    %176 = vector.broadcast %145 : vector<2x1x8xf32> to vector<2x8x8xf32>
    %177 = arith.addf %175, %176 : vector<2x8x8xf32>
    %cst_221 = arith.constant dense<0xFF800000> : vector<2x8xf32>
    %178 = vector.multi_reduction <maximumf>, %177, %cst_221 [2] : vector<2x8x8xf32> to vector<2x8xf32>
    %179 = vector.shape_cast %178 : vector<2x8xf32> to vector<2x8x1xf32>
    %180 = vector.broadcast %179 : vector<2x8x1xf32> to vector<2x8x8xf32>
    %181 = arith.subf %177, %180 : vector<2x8x8xf32>
    %182 = math.exp %181 : vector<2x8x8xf32>
    %cst_222 = arith.constant dense<0.000000e+00> : vector<2x8xf32>
    %183 = vector.multi_reduction <add>, %182, %cst_222 [2] : vector<2x8x8xf32> to vector<2x8xf32>
    %184 = vector.shape_cast %183 : vector<2x8xf32> to vector<2x8x1xf32>
    %185 = tpu.reciprocal %184 {approx = true} : vector<2x8x1xf32> -> vector<2x8x1xf32>
    %186 = vector.broadcast %185 : vector<2x8x1xf32> to vector<2x8x8xf32>
    %187 = arith.mulf %182, %186 : vector<2x8x8xf32>
    "tpu.trace_start"() <{level = 10 : i32, message = "bqk,bkd->bqd"}> : () -> ()
    %cst_223 = arith.constant dense<0.000000e+00> : vector<2x8x4xf32>
    %188 = tpu.matmul %187, %174, %cst_223 {dimension_numbers = #tpu.dot_dimension_numbers<[2], [1], [1], [2], [0, 0, 0, 1, 1, 2], [0], [0]>} : vector<2x8x8xf32>, vector<2x8x4xf32>, vector<2x8x4xf32> -> vector<2x8x4xf32>
    "tpu.trace_stop"() : () -> ()
    %189 = vector.shape_cast %188 : vector<2x8x4xf32> to vector<16x4xf32>
    %190 = vector.extract_strided_slice %9 {offsets = [0, 0], sizes = [4, 8], strides = [1, 1]} : vector<8x8xf32> to vector<4x8xf32>
    %cst_224 = arith.constant dense<0.000000e+00> : vector<16x8xf32>
    %191 = tpu.matmul %189, %190, %cst_224 {dimension_numbers = #tpu.dot_dimension_numbers<[1], [0], [0], [1], [0, 0, 1, 1], [], []>} : vector<16x4xf32>, vector<4x8xf32>, vector<16x8xf32> -> vector<16x8xf32>
    %192 = vector.broadcast %11 : vector<1x8xf32> to vector<16x8xf32>
    %193 = arith.addf %192, %191 : vector<16x8xf32>
    %194 = vector.extract_strided_slice %171 {offsets = [0, 0, 4], sizes = [2, 8, 4], strides = [1, 1, 1]} : vector<2x8x24xf32> to vector<2x8x4xf32>
    %195 = vector.extract_strided_slice %171 {offsets = [0, 0, 12], sizes = [2, 8, 4], strides = [1, 1, 1]} : vector<2x8x24xf32> to vector<2x8x4xf32>
    %196 = vector.extract_strided_slice %171 {offsets = [0, 0, 20], sizes = [2, 8, 4], strides = [1, 1, 1]} : vector<2x8x24xf32> to vector<2x8x4xf32>
    "tpu.trace_start"() <{level = 10 : i32, message = "bqd,bkd->bqk"}> : () -> ()
    %cst_225 = arith.constant dense<0.000000e+00> : vector<2x8x8xf32>
    %197 = tpu.matmul %194, %195, %cst_225 {dimension_numbers = #tpu.dot_dimension_numbers<[2], [2], [1], [1], [0, 0, 0, 1, 1, 1], [0], [0]>} : vector<2x8x4xf32>, vector<2x8x4xf32>, vector<2x8x8xf32> -> vector<2x8x8xf32>
    "tpu.trace_stop"() : () -> ()
    %198 = vector.broadcast %145 : vector<2x1x8xf32> to vector<2x8x8xf32>
    %199 = arith.addf %197, %198 : vector<2x8x8xf32>
    %cst_226 = arith.constant dense<0xFF800000> : vector<2x8xf32>
    %200 = vector.multi_reduction <maximumf>, %199, %cst_226 [2] : vector<2x8x8xf32> to vector<2x8xf32>
    %201 = vector.shape_cast %200 : vector<2x8xf32> to vector<2x8x1xf32>
    %202 = vector.broadcast %201 : vector<2x8x1xf32> to vector<2x8x8xf32>
    %203 = arith.subf %199, %202 : vector<2x8x8xf32>
    %204 = math.exp %203 : vector<2x8x8xf32>
    %cst_227 = arith.constant dense<0.000000e+00> : vector<2x8xf32>
    %205 = vector.multi_reduction <add>, %204, %cst_227 [2] : vector<2x8x8xf32> to vector<2x8xf32>
    %206 = vector.shape_cast %205 : vector<2x8xf32> to vector<2x8x1xf32>
    %207 = tpu.reciprocal %206 {approx = true} : vector<2x8x1xf32> -> vector<2x8x1xf32>
    %208 = vector.broadcast %207 : vector<2x8x1xf32> to vector<2x8x8xf32>
    %209 = arith.mulf %204, %208 : vector<2x8x8xf32>
    "tpu.trace_start"() <{level = 10 : i32, message = "bqk,bkd->bqd"}> : () -> ()
    %cst_228 = arith.constant dense<0.000000e+00> : vector<2x8x4xf32>
    %210 = tpu.matmul %209, %196, %cst_228 {dimension_numbers = #tpu.dot_dimension_numbers<[2], [1], [1], [2], [0, 0, 0, 1, 1, 2], [0], [0]>} : vector<2x8x8xf32>, vector<2x8x4xf32>, vector<2x8x4xf32> -> vector<2x8x4xf32>
    "tpu.trace_stop"() : () -> ()
    %211 = vector.shape_cast %210 : vector<2x8x4xf32> to vector<16x4xf32>
    %212 = vector.extract_strided_slice %9 {offsets = [4, 0], sizes = [4, 8], strides = [1, 1]} : vector<8x8xf32> to vector<4x8xf32>
    %cst_229 = arith.constant dense<0.000000e+00> : vector<16x8xf32>
    %213 = tpu.matmul %211, %212, %cst_229 {dimension_numbers = #tpu.dot_dimension_numbers<[1], [0], [0], [1], [0, 0, 1, 1], [], []>} : vector<16x4xf32>, vector<4x8xf32>, vector<16x8xf32> -> vector<16x8xf32>
    %214 = arith.addf %193, %213 : vector<16x8xf32>
    %215 = arith.addf %144, %214 : vector<16x8xf32>
    %cst_230 = arith.constant dense<0.000000e+00> : vector<16xf32>
    %216 = vector.multi_reduction <add>, %215, %cst_230 [1] : vector<16x8xf32> to vector<16xf32>
    %217 = vector.shape_cast %216 : vector<16xf32> to vector<16x1xf32>
    %cst_231 = arith.constant 8.000000e+00 : f32
    %218 = vector.broadcast %cst_231 : f32 to vector<16x1xf32>
    %219 = arith.divf %217, %218 : vector<16x1xf32>
    %220 = vector.broadcast %219 : vector<16x1xf32> to vector<16x8xf32>
    %221 = arith.subf %215, %220 : vector<16x8xf32>
    %222 = arith.mulf %221, %221 : vector<16x8xf32>
    %cst_232 = arith.constant dense<0.000000e+00> : vector<16xf32>
    %223 = vector.multi_reduction <add>, %222, %cst_232 [1] : vector<16x8xf32> to vector<16xf32>
    %224 = vector.shape_cast %223 : vector<16xf32> to vector<16x1xf32>
    %cst_233 = arith.constant 8.000000e+00 : f32
    %225 = vector.broadcast %cst_233 : f32 to vector<16x1xf32>
    %226 = arith.divf %224, %225 : vector<16x1xf32>
    %227 = vector.broadcast %219 : vector<16x1xf32> to vector<16x8xf32>
    %228 = arith.subf %215, %227 : vector<16x8xf32>
    %cst_234 = arith.constant 9.99999974E-6 : f32
    %229 = vector.broadcast %cst_234 : f32 to vector<16x1xf32>
    %230 = arith.addf %226, %229 : vector<16x1xf32>
    %231 = math.rsqrt %230 : vector<16x1xf32>
    %232 = vector.broadcast %231 : vector<16x1xf32> to vector<16x8xf32>
    %233 = arith.mulf %228, %232 : vector<16x8xf32>
    %234 = vector.broadcast %13 : vector<1x8xf32> to vector<16x8xf32>
    %235 = arith.mulf %233, %234 : vector<16x8xf32>
    %236 = vector.broadcast %15 : vector<1x8xf32> to vector<16x8xf32>
    %237 = arith.addf %235, %236 : vector<16x8xf32>
    %cst_235 = arith.constant dense<0.000000e+00> : vector<16x8xf32>
    %238 = tpu.matmul %237, %17, %cst_235 {dimension_numbers = #tpu.dot_dimension_numbers<[1], [0], [0], [1], [0, 0, 1, 1], [], []>} : vector<16x8xf32>, vector<8x8xf32>, vector<16x8xf32> -> vector<16x8xf32>
    %239 = vector.broadcast %19 : vector<1x8xf32> to vector<16x8xf32>
    %240 = arith.addf %238, %239 : vector<16x8xf32>
    %cst_236 = arith.constant 0.000000e+00 : f32
    %241 = vector.broadcast %cst_236 : f32 to vector<16x8xf32>
    %242 = arith.maximumf %240, %241 : vector<16x8xf32>
    %cst_237 = arith.constant dense<0.000000e+00> : vector<16x8xf32>
    %243 = tpu.matmul %242, %21, %cst_237 {dimension_numbers = #tpu.dot_dimension_numbers<[1], [0], [0], [1], [0, 0, 1, 1], [], []>} : vector<16x8xf32>, vector<8x8xf32>, vector<16x8xf32> -> vector<16x8xf32>
    %244 = arith.addf %215, %243 : vector<16x8xf32>
    %245 = vector.broadcast %23 : vector<1x8xf32> to vector<16x8xf32>
    %246 = arith.addf %244, %245 : vector<16x8xf32>
    %cst_238 = arith.constant dense<0.000000e+00> : vector<16xf32>
    %247 = vector.multi_reduction <add>, %246, %cst_238 [1] : vector<16x8xf32> to vector<16xf32>
    %248 = vector.shape_cast %247 : vector<16xf32> to vector<16x1xf32>
    %cst_239 = arith.constant 8.000000e+00 : f32
    %249 = vector.broadcast %cst_239 : f32 to vector<16x1xf32>
    %250 = arith.divf %248, %249 : vector<16x1xf32>
    %251 = vector.broadcast %250 : vector<16x1xf32> to vector<16x8xf32>
    %252 = arith.subf %246, %251 : vector<16x8xf32>
    %253 = arith.mulf %252, %252 : vector<16x8xf32>
    %cst_240 = arith.constant dense<0.000000e+00> : vector<16xf32>
    %254 = vector.multi_reduction <add>, %253, %cst_240 [1] : vector<16x8xf32> to vector<16xf32>
    %255 = vector.shape_cast %254 : vector<16xf32> to vector<16x1xf32>
    %cst_241 = arith.constant 8.000000e+00 : f32
    %256 = vector.broadcast %cst_241 : f32 to vector<16x1xf32>
    %257 = arith.divf %255, %256 : vector<16x1xf32>
    %258 = vector.broadcast %250 : vector<16x1xf32> to vector<16x8xf32>
    %259 = arith.subf %246, %258 : vector<16x8xf32>
    %cst_242 = arith.constant 9.99999974E-6 : f32
    %260 = vector.broadcast %cst_242 : f32 to vector<16x1xf32>
    %261 = arith.addf %257, %260 : vector<16x1xf32>
    %262 = math.rsqrt %261 : vector<16x1xf32>
    %263 = vector.broadcast %262 : vector<16x1xf32> to vector<16x8xf32>
    %264 = arith.mulf %259, %263 : vector<16x8xf32>
    %265 = vector.broadcast %25 : vector<1x8xf32> to vector<16x8xf32>
    %266 = arith.mulf %264, %265 : vector<16x8xf32>
    %267 = vector.broadcast %27 : vector<1x8xf32> to vector<16x8xf32>
    %268 = arith.addf %266, %267 : vector<16x8xf32>
    %cst_243 = arith.constant dense<0.000000e+00> : vector<16x24xf32>
    %269 = tpu.matmul %268, %29, %cst_243 {dimension_numbers = #tpu.dot_dimension_numbers<[1], [0], [0], [1], [0, 0, 1, 1], [], []>} : vector<16x8xf32>, vector<8x24xf32>, vector<16x24xf32> -> vector<16x24xf32>
    %270 = vector.broadcast %31 : vector<1x24xf32> to vector<16x24xf32>
    %271 = arith.addf %269, %270 : vector<16x24xf32>
    %272 = vector.shape_cast %271 : vector<16x24xf32> to vector<2x8x24xf32>
    %273 = vector.extract_strided_slice %272 {offsets = [0, 0, 0], sizes = [2, 8, 4], strides = [1, 1, 1]} : vector<2x8x24xf32> to vector<2x8x4xf32>
    %274 = vector.extract_strided_slice %272 {offsets = [0, 0, 8], sizes = [2, 8, 4], strides = [1, 1, 1]} : vector<2x8x24xf32> to vector<2x8x4xf32>
    %275 = vector.extract_strided_slice %272 {offsets = [0, 0, 16], sizes = [2, 8, 4], strides = [1, 1, 1]} : vector<2x8x24xf32> to vector<2x8x4xf32>
    "tpu.trace_start"() <{level = 10 : i32, message = "bqd,bkd->bqk"}> : () -> ()
    %cst_244 = arith.constant dense<0.000000e+00> : vector<2x8x8xf32>
    %276 = tpu.matmul %273, %274, %cst_244 {dimension_numbers = #tpu.dot_dimension_numbers<[2], [2], [1], [1], [0, 0, 0, 1, 1, 1], [0], [0]>} : vector<2x8x4xf32>, vector<2x8x4xf32>, vector<2x8x8xf32> -> vector<2x8x8xf32>
    "tpu.trace_stop"() : () -> ()
    %277 = vector.broadcast %145 : vector<2x1x8xf32> to vector<2x8x8xf32>
    %278 = arith.addf %276, %277 : vector<2x8x8xf32>
    %cst_245 = arith.constant dense<0xFF800000> : vector<2x8xf32>
    %279 = vector.multi_reduction <maximumf>, %278, %cst_245 [2] : vector<2x8x8xf32> to vector<2x8xf32>
    %280 = vector.shape_cast %279 : vector<2x8xf32> to vector<2x8x1xf32>
    %281 = vector.broadcast %280 : vector<2x8x1xf32> to vector<2x8x8xf32>
    %282 = arith.subf %278, %281 : vector<2x8x8xf32>
    %283 = math.exp %282 : vector<2x8x8xf32>
    %cst_246 = arith.constant dense<0.000000e+00> : vector<2x8xf32>
    %284 = vector.multi_reduction <add>, %283, %cst_246 [2] : vector<2x8x8xf32> to vector<2x8xf32>
    %285 = vector.shape_cast %284 : vector<2x8xf32> to vector<2x8x1xf32>
    %286 = tpu.reciprocal %285 {approx = true} : vector<2x8x1xf32> -> vector<2x8x1xf32>
    %287 = vector.broadcast %286 : vector<2x8x1xf32> to vector<2x8x8xf32>
    %288 = arith.mulf %283, %287 : vector<2x8x8xf32>
    "tpu.trace_start"() <{level = 10 : i32, message = "bqk,bkd->bqd"}> : () -> ()
    %cst_247 = arith.constant dense<0.000000e+00> : vector<2x8x4xf32>
    %289 = tpu.matmul %288, %275, %cst_247 {dimension_numbers = #tpu.dot_dimension_numbers<[2], [1], [1], [2], [0, 0, 0, 1, 1, 2], [0], [0]>} : vector<2x8x8xf32>, vector<2x8x4xf32>, vector<2x8x4xf32> -> vector<2x8x4xf32>
    "tpu.trace_stop"() : () -> ()
    %290 = vector.shape_cast %289 : vector<2x8x4xf32> to vector<16x4xf32>
    %291 = vector.extract_strided_slice %33 {offsets = [0, 0], sizes = [4, 8], strides = [1, 1]} : vector<8x8xf32> to vector<4x8xf32>
    %cst_248 = arith.constant dense<0.000000e+00> : vector<16x8xf32>
    %292 = tpu.matmul %290, %291, %cst_248 {dimension_numbers = #tpu.dot_dimension_numbers<[1], [0], [0], [1], [0, 0, 1, 1], [], []>} : vector<16x4xf32>, vector<4x8xf32>, vector<16x8xf32> -> vector<16x8xf32>
    %293 = vector.broadcast %35 : vector<1x8xf32> to vector<16x8xf32>
    %294 = arith.addf %293, %292 : vector<16x8xf32>
    %295 = vector.extract_strided_slice %272 {offsets = [0, 0, 4], sizes = [2, 8, 4], strides = [1, 1, 1]} : vector<2x8x24xf32> to vector<2x8x4xf32>
    %296 = vector.extract_strided_slice %272 {offsets = [0, 0, 12], sizes = [2, 8, 4], strides = [1, 1, 1]} : vector<2x8x24xf32> to vector<2x8x4xf32>
    %297 = vector.extract_strided_slice %272 {offsets = [0, 0, 20], sizes = [2, 8, 4], strides = [1, 1, 1]} : vector<2x8x24xf32> to vector<2x8x4xf32>
    "tpu.trace_start"() <{level = 10 : i32, message = "bqd,bkd->bqk"}> : () -> ()
    %cst_249 = arith.constant dense<0.000000e+00> : vector<2x8x8xf32>
    %298 = tpu.matmul %295, %296, %cst_249 {dimension_numbers = #tpu.dot_dimension_numbers<[2], [2], [1], [1], [0, 0, 0, 1, 1, 1], [0], [0]>} : vector<2x8x4xf32>, vector<2x8x4xf32>, vector<2x8x8xf32> -> vector<2x8x8xf32>
    "tpu.trace_stop"() : () -> ()
    %299 = vector.broadcast %145 : vector<2x1x8xf32> to vector<2x8x8xf32>
    %300 = arith.addf %298, %299 : vector<2x8x8xf32>
    %cst_250 = arith.constant dense<0xFF800000> : vector<2x8xf32>
    %301 = vector.multi_reduction <maximumf>, %300, %cst_250 [2] : vector<2x8x8xf32> to vector<2x8xf32>
    %302 = vector.shape_cast %301 : vector<2x8xf32> to vector<2x8x1xf32>
    %303 = vector.broadcast %302 : vector<2x8x1xf32> to vector<2x8x8xf32>
    %304 = arith.subf %300, %303 : vector<2x8x8xf32>
    %305 = math.exp %304 : vector<2x8x8xf32>
    %cst_251 = arith.constant dense<0.000000e+00> : vector<2x8xf32>
    %306 = vector.multi_reduction <add>, %305, %cst_251 [2] : vector<2x8x8xf32> to vector<2x8xf32>
    %307 = vector.shape_cast %306 : vector<2x8xf32> to vector<2x8x1xf32>
    %308 = tpu.reciprocal %307 {approx = true} : vector<2x8x1xf32> -> vector<2x8x1xf32>
    %309 = vector.broadcast %308 : vector<2x8x1xf32> to vector<2x8x8xf32>
    %310 = arith.mulf %305, %309 : vector<2x8x8xf32>
    "tpu.trace_start"() <{level = 10 : i32, message = "bqk,bkd->bqd"}> : () -> ()
    %cst_252 = arith.constant dense<0.000000e+00> : vector<2x8x4xf32>
    %311 = tpu.matmul %310, %297, %cst_252 {dimension_numbers = #tpu.dot_dimension_numbers<[2], [1], [1], [2], [0, 0, 0, 1, 1, 2], [0], [0]>} : vector<2x8x8xf32>, vector<2x8x4xf32>, vector<2x8x4xf32> -> vector<2x8x4xf32>
    "tpu.trace_stop"() : () -> ()
    %312 = vector.shape_cast %311 : vector<2x8x4xf32> to vector<16x4xf32>
    %313 = vector.extract_strided_slice %33 {offsets = [4, 0], sizes = [4, 8], strides = [1, 1]} : vector<8x8xf32> to vector<4x8xf32>
    %cst_253 = arith.constant dense<0.000000e+00> : vector<16x8xf32>
    %314 = tpu.matmul %312, %313, %cst_253 {dimension_numbers = #tpu.dot_dimension_numbers<[1], [0], [0], [1], [0, 0, 1, 1], [], []>} : vector<16x4xf32>, vector<4x8xf32>, vector<16x8xf32> -> vector<16x8xf32>
    %315 = arith.addf %294, %314 : vector<16x8xf32>
    %316 = arith.addf %246, %315 : vector<16x8xf32>
    %cst_254 = arith.constant dense<0.000000e+00> : vector<16xf32>
    %317 = vector.multi_reduction <add>, %316, %cst_254 [1] : vector<16x8xf32> to vector<16xf32>
    %318 = vector.shape_cast %317 : vector<16xf32> to vector<16x1xf32>
    %cst_255 = arith.constant 8.000000e+00 : f32
    %319 = vector.broadcast %cst_255 : f32 to vector<16x1xf32>
    %320 = arith.divf %318, %319 : vector<16x1xf32>
    %321 = vector.broadcast %320 : vector<16x1xf32> to vector<16x8xf32>
    %322 = arith.subf %316, %321 : vector<16x8xf32>
    %323 = arith.mulf %322, %322 : vector<16x8xf32>
    %cst_256 = arith.constant dense<0.000000e+00> : vector<16xf32>
    %324 = vector.multi_reduction <add>, %323, %cst_256 [1] : vector<16x8xf32> to vector<16xf32>
    %325 = vector.shape_cast %324 : vector<16xf32> to vector<16x1xf32>
    %cst_257 = arith.constant 8.000000e+00 : f32
    %326 = vector.broadcast %cst_257 : f32 to vector<16x1xf32>
    %327 = arith.divf %325, %326 : vector<16x1xf32>
    %328 = vector.broadcast %320 : vector<16x1xf32> to vector<16x8xf32>
    %329 = arith.subf %316, %328 : vector<16x8xf32>
    %cst_258 = arith.constant 9.99999974E-6 : f32
    %330 = vector.broadcast %cst_258 : f32 to vector<16x1xf32>
    %331 = arith.addf %327, %330 : vector<16x1xf32>
    %332 = math.rsqrt %331 : vector<16x1xf32>
    %333 = vector.broadcast %332 : vector<16x1xf32> to vector<16x8xf32>
    %334 = arith.mulf %329, %333 : vector<16x8xf32>
    %335 = vector.broadcast %37 : vector<1x8xf32> to vector<16x8xf32>
    %336 = arith.mulf %334, %335 : vector<16x8xf32>
    %337 = vector.broadcast %39 : vector<1x8xf32> to vector<16x8xf32>
    %338 = arith.addf %336, %337 : vector<16x8xf32>
    %cst_259 = arith.constant dense<0.000000e+00> : vector<16x8xf32>
    %339 = tpu.matmul %338, %41, %cst_259 {dimension_numbers = #tpu.dot_dimension_numbers<[1], [0], [0], [1], [0, 0, 1, 1], [], []>} : vector<16x8xf32>, vector<8x8xf32>, vector<16x8xf32> -> vector<16x8xf32>
    %340 = vector.broadcast %43 : vector<1x8xf32> to vector<16x8xf32>
    %341 = arith.addf %339, %340 : vector<16x8xf32>
    %cst_260 = arith.constant 0.000000e+00 : f32
    %342 = vector.broadcast %cst_260 : f32 to vector<16x8xf32>
    %343 = arith.maximumf %341, %342 : vector<16x8xf32>
    %cst_261 = arith.constant dense<0.000000e+00> : vector<16x8xf32>
    %344 = tpu.matmul %343, %45, %cst_261 {dimension_numbers = #tpu.dot_dimension_numbers<[1], [0], [0], [1], [0, 0, 1, 1], [], []>} : vector<16x8xf32>, vector<8x8xf32>, vector<16x8xf32> -> vector<16x8xf32>
    %345 = arith.addf %316, %344 : vector<16x8xf32>
    %346 = vector.broadcast %47 : vector<1x8xf32> to vector<16x8xf32>
    %347 = arith.addf %345, %346 : vector<16x8xf32>
    %cst_262 = arith.constant dense<0.000000e+00> : vector<16xf32>
    %348 = vector.multi_reduction <add>, %347, %cst_262 [1] : vector<16x8xf32> to vector<16xf32>
    %349 = vector.shape_cast %348 : vector<16xf32> to vector<16x1xf32>
    %cst_263 = arith.constant 8.000000e+00 : f32
    %350 = vector.broadcast %cst_263 : f32 to vector<16x1xf32>
    %351 = arith.divf %349, %350 : vector<16x1xf32>
    %352 = vector.broadcast %351 : vector<16x1xf32> to vector<16x8xf32>
    %353 = arith.subf %347, %352 : vector<16x8xf32>
    %354 = arith.mulf %353, %353 : vector<16x8xf32>
    %cst_264 = arith.constant dense<0.000000e+00> : vector<16xf32>
    %355 = vector.multi_reduction <add>, %354, %cst_264 [1] : vector<16x8xf32> to vector<16xf32>
    %356 = vector.shape_cast %355 : vector<16xf32> to vector<16x1xf32>
    %cst_265 = arith.constant 8.000000e+00 : f32
    %357 = vector.broadcast %cst_265 : f32 to vector<16x1xf32>
    %358 = arith.divf %356, %357 : vector<16x1xf32>
    %359 = vector.broadcast %351 : vector<16x1xf32> to vector<16x8xf32>
    %360 = arith.subf %347, %359 : vector<16x8xf32>
    %cst_266 = arith.constant 9.99999974E-6 : f32
    %361 = vector.broadcast %cst_266 : f32 to vector<16x1xf32>
    %362 = arith.addf %358, %361 : vector<16x1xf32>
    %363 = math.rsqrt %362 : vector<16x1xf32>
    %364 = vector.broadcast %363 : vector<16x1xf32> to vector<16x8xf32>
    %365 = arith.mulf %360, %364 : vector<16x8xf32>
    %366 = vector.broadcast %49 : vector<1x8xf32> to vector<16x8xf32>
    %367 = arith.mulf %365, %366 : vector<16x8xf32>
    %368 = vector.broadcast %51 : vector<1x8xf32> to vector<16x8xf32>
    %369 = arith.addf %367, %368 : vector<16x8xf32>
    %cst_267 = arith.constant dense<0.000000e+00> : vector<16x24xf32>
    %370 = tpu.matmul %369, %53, %cst_267 {dimension_numbers = #tpu.dot_dimension_numbers<[1], [0], [0], [1], [0, 0, 1, 1], [], []>} : vector<16x8xf32>, vector<8x24xf32>, vector<16x24xf32> -> vector<16x24xf32>
    %371 = vector.broadcast %55 : vector<1x24xf32> to vector<16x24xf32>
    %372 = arith.addf %370, %371 : vector<16x24xf32>
    %373 = vector.shape_cast %372 : vector<16x24xf32> to vector<2x8x24xf32>
    %374 = vector.extract_strided_slice %373 {offsets = [0, 0, 0], sizes = [2, 8, 4], strides = [1, 1, 1]} : vector<2x8x24xf32> to vector<2x8x4xf32>
    %375 = vector.extract_strided_slice %373 {offsets = [0, 0, 8], sizes = [2, 8, 4], strides = [1, 1, 1]} : vector<2x8x24xf32> to vector<2x8x4xf32>
    %376 = vector.extract_strided_slice %373 {offsets = [0, 0, 16], sizes = [2, 8, 4], strides = [1, 1, 1]} : vector<2x8x24xf32> to vector<2x8x4xf32>
    "tpu.trace_start"() <{level = 10 : i32, message = "bqd,bkd->bqk"}> : () -> ()
    %cst_268 = arith.constant dense<0.000000e+00> : vector<2x8x8xf32>
    %377 = tpu.matmul %374, %375, %cst_268 {dimension_numbers = #tpu.dot_dimension_numbers<[2], [2], [1], [1], [0, 0, 0, 1, 1, 1], [0], [0]>} : vector<2x8x4xf32>, vector<2x8x4xf32>, vector<2x8x8xf32> -> vector<2x8x8xf32>
    "tpu.trace_stop"() : () -> ()
    %378 = vector.broadcast %145 : vector<2x1x8xf32> to vector<2x8x8xf32>
    %379 = arith.addf %377, %378 : vector<2x8x8xf32>
    %cst_269 = arith.constant dense<0xFF800000> : vector<2x8xf32>
    %380 = vector.multi_reduction <maximumf>, %379, %cst_269 [2] : vector<2x8x8xf32> to vector<2x8xf32>
    %381 = vector.shape_cast %380 : vector<2x8xf32> to vector<2x8x1xf32>
    %382 = vector.broadcast %381 : vector<2x8x1xf32> to vector<2x8x8xf32>
    %383 = arith.subf %379, %382 : vector<2x8x8xf32>
    %384 = math.exp %383 : vector<2x8x8xf32>
    %cst_270 = arith.constant dense<0.000000e+00> : vector<2x8xf32>
    %385 = vector.multi_reduction <add>, %384, %cst_270 [2] : vector<2x8x8xf32> to vector<2x8xf32>
    %386 = vector.shape_cast %385 : vector<2x8xf32> to vector<2x8x1xf32>
    %387 = tpu.reciprocal %386 {approx = true} : vector<2x8x1xf32> -> vector<2x8x1xf32>
    %388 = vector.broadcast %387 : vector<2x8x1xf32> to vector<2x8x8xf32>
    %389 = arith.mulf %384, %388 : vector<2x8x8xf32>
    "tpu.trace_start"() <{level = 10 : i32, message = "bqk,bkd->bqd"}> : () -> ()
    %cst_271 = arith.constant dense<0.000000e+00> : vector<2x8x4xf32>
    %390 = tpu.matmul %389, %376, %cst_271 {dimension_numbers = #tpu.dot_dimension_numbers<[2], [1], [1], [2], [0, 0, 0, 1, 1, 2], [0], [0]>} : vector<2x8x8xf32>, vector<2x8x4xf32>, vector<2x8x4xf32> -> vector<2x8x4xf32>
    "tpu.trace_stop"() : () -> ()
    %391 = vector.shape_cast %390 : vector<2x8x4xf32> to vector<16x4xf32>
    %392 = vector.extract_strided_slice %57 {offsets = [0, 0], sizes = [4, 8], strides = [1, 1]} : vector<8x8xf32> to vector<4x8xf32>
    %cst_272 = arith.constant dense<0.000000e+00> : vector<16x8xf32>
    %393 = tpu.matmul %391, %392, %cst_272 {dimension_numbers = #tpu.dot_dimension_numbers<[1], [0], [0], [1], [0, 0, 1, 1], [], []>} : vector<16x4xf32>, vector<4x8xf32>, vector<16x8xf32> -> vector<16x8xf32>
    %394 = vector.broadcast %59 : vector<1x8xf32> to vector<16x8xf32>
    %395 = arith.addf %394, %393 : vector<16x8xf32>
    %396 = vector.extract_strided_slice %373 {offsets = [0, 0, 4], sizes = [2, 8, 4], strides = [1, 1, 1]} : vector<2x8x24xf32> to vector<2x8x4xf32>
    %397 = vector.extract_strided_slice %373 {offsets = [0, 0, 12], sizes = [2, 8, 4], strides = [1, 1, 1]} : vector<2x8x24xf32> to vector<2x8x4xf32>
    %398 = vector.extract_strided_slice %373 {offsets = [0, 0, 20], sizes = [2, 8, 4], strides = [1, 1, 1]} : vector<2x8x24xf32> to vector<2x8x4xf32>
    "tpu.trace_start"() <{level = 10 : i32, message = "bqd,bkd->bqk"}> : () -> ()
    %cst_273 = arith.constant dense<0.000000e+00> : vector<2x8x8xf32>
    %399 = tpu.matmul %396, %397, %cst_273 {dimension_numbers = #tpu.dot_dimension_numbers<[2], [2], [1], [1], [0, 0, 0, 1, 1, 1], [0], [0]>} : vector<2x8x4xf32>, vector<2x8x4xf32>, vector<2x8x8xf32> -> vector<2x8x8xf32>
    "tpu.trace_stop"() : () -> ()
    %400 = vector.broadcast %145 : vector<2x1x8xf32> to vector<2x8x8xf32>
    %401 = arith.addf %399, %400 : vector<2x8x8xf32>
    %cst_274 = arith.constant dense<0xFF800000> : vector<2x8xf32>
    %402 = vector.multi_reduction <maximumf>, %401, %cst_274 [2] : vector<2x8x8xf32> to vector<2x8xf32>
    %403 = vector.shape_cast %402 : vector<2x8xf32> to vector<2x8x1xf32>
    %404 = vector.broadcast %403 : vector<2x8x1xf32> to vector<2x8x8xf32>
    %405 = arith.subf %401, %404 : vector<2x8x8xf32>
    %406 = math.exp %405 : vector<2x8x8xf32>
    %cst_275 = arith.constant dense<0.000000e+00> : vector<2x8xf32>
    %407 = vector.multi_reduction <add>, %406, %cst_275 [2] : vector<2x8x8xf32> to vector<2x8xf32>
    %408 = vector.shape_cast %407 : vector<2x8xf32> to vector<2x8x1xf32>
    %409 = tpu.reciprocal %408 {approx = true} : vector<2x8x1xf32> -> vector<2x8x1xf32>
    %410 = vector.broadcast %409 : vector<2x8x1xf32> to vector<2x8x8xf32>
    %411 = arith.mulf %406, %410 : vector<2x8x8xf32>
    "tpu.trace_start"() <{level = 10 : i32, message = "bqk,bkd->bqd"}> : () -> ()
    %cst_276 = arith.constant dense<0.000000e+00> : vector<2x8x4xf32>
    %412 = tpu.matmul %411, %398, %cst_276 {dimension_numbers = #tpu.dot_dimension_numbers<[2], [1], [1], [2], [0, 0, 0, 1, 1, 2], [0], [0]>} : vector<2x8x8xf32>, vector<2x8x4xf32>, vector<2x8x4xf32> -> vector<2x8x4xf32>
    "tpu.trace_stop"() : () -> ()
    %413 = vector.shape_cast %412 : vector<2x8x4xf32> to vector<16x4xf32>
    %414 = vector.extract_strided_slice %57 {offsets = [4, 0], sizes = [4, 8], strides = [1, 1]} : vector<8x8xf32> to vector<4x8xf32>
    %cst_277 = arith.constant dense<0.000000e+00> : vector<16x8xf32>
    %415 = tpu.matmul %413, %414, %cst_277 {dimension_numbers = #tpu.dot_dimension_numbers<[1], [0], [0], [1], [0, 0, 1, 1], [], []>} : vector<16x4xf32>, vector<4x8xf32>, vector<16x8xf32> -> vector<16x8xf32>
    %416 = arith.addf %395, %415 : vector<16x8xf32>
    %417 = arith.addf %347, %416 : vector<16x8xf32>
    %cst_278 = arith.constant dense<0.000000e+00> : vector<16xf32>
    %418 = vector.multi_reduction <add>, %417, %cst_278 [1] : vector<16x8xf32> to vector<16xf32>
    %419 = vector.shape_cast %418 : vector<16xf32> to vector<16x1xf32>
    %cst_279 = arith.constant 8.000000e+00 : f32
    %420 = vector.broadcast %cst_279 : f32 to vector<16x1xf32>
    %421 = arith.divf %419, %420 : vector<16x1xf32>
    %422 = vector.broadcast %421 : vector<16x1xf32> to vector<16x8xf32>
    %423 = arith.subf %417, %422 : vector<16x8xf32>
    %424 = arith.mulf %423, %423 : vector<16x8xf32>
    %cst_280 = arith.constant dense<0.000000e+00> : vector<16xf32>
    %425 = vector.multi_reduction <add>, %424, %cst_280 [1] : vector<16x8xf32> to vector<16xf32>
    %426 = vector.shape_cast %425 : vector<16xf32> to vector<16x1xf32>
    %cst_281 = arith.constant 8.000000e+00 : f32
    %427 = vector.broadcast %cst_281 : f32 to vector<16x1xf32>
    %428 = arith.divf %426, %427 : vector<16x1xf32>
    %429 = vector.broadcast %421 : vector<16x1xf32> to vector<16x8xf32>
    %430 = arith.subf %417, %429 : vector<16x8xf32>
    %cst_282 = arith.constant 9.99999974E-6 : f32
    %431 = vector.broadcast %cst_282 : f32 to vector<16x1xf32>
    %432 = arith.addf %428, %431 : vector<16x1xf32>
    %433 = math.rsqrt %432 : vector<16x1xf32>
    %434 = vector.broadcast %433 : vector<16x1xf32> to vector<16x8xf32>
    %435 = arith.mulf %430, %434 : vector<16x8xf32>
    %436 = vector.broadcast %61 : vector<1x8xf32> to vector<16x8xf32>
    %437 = arith.mulf %435, %436 : vector<16x8xf32>
    %438 = vector.broadcast %63 : vector<1x8xf32> to vector<16x8xf32>
    %439 = arith.addf %437, %438 : vector<16x8xf32>
    %cst_283 = arith.constant dense<0.000000e+00> : vector<16x8xf32>
    %440 = tpu.matmul %439, %65, %cst_283 {dimension_numbers = #tpu.dot_dimension_numbers<[1], [0], [0], [1], [0, 0, 1, 1], [], []>} : vector<16x8xf32>, vector<8x8xf32>, vector<16x8xf32> -> vector<16x8xf32>
    %441 = vector.broadcast %67 : vector<1x8xf32> to vector<16x8xf32>
    %442 = arith.addf %440, %441 : vector<16x8xf32>
    %cst_284 = arith.constant 0.000000e+00 : f32
    %443 = vector.broadcast %cst_284 : f32 to vector<16x8xf32>
    %444 = arith.maximumf %442, %443 : vector<16x8xf32>
    %cst_285 = arith.constant dense<0.000000e+00> : vector<16x8xf32>
    %445 = tpu.matmul %444, %69, %cst_285 {dimension_numbers = #tpu.dot_dimension_numbers<[1], [0], [0], [1], [0, 0, 1, 1], [], []>} : vector<16x8xf32>, vector<8x8xf32>, vector<16x8xf32> -> vector<16x8xf32>
    %446 = arith.addf %417, %445 : vector<16x8xf32>
    %447 = vector.broadcast %71 : vector<1x8xf32> to vector<16x8xf32>
    %448 = arith.addf %446, %447 : vector<16x8xf32>
    %cst_286 = arith.constant dense<0.000000e+00> : vector<16xf32>
    %449 = vector.multi_reduction <add>, %448, %cst_286 [1] : vector<16x8xf32> to vector<16xf32>
    %450 = vector.shape_cast %449 : vector<16xf32> to vector<16x1xf32>
    %cst_287 = arith.constant 8.000000e+00 : f32
    %451 = vector.broadcast %cst_287 : f32 to vector<16x1xf32>
    %452 = arith.divf %450, %451 : vector<16x1xf32>
    %453 = vector.broadcast %452 : vector<16x1xf32> to vector<16x8xf32>
    %454 = arith.subf %448, %453 : vector<16x8xf32>
    %455 = arith.mulf %454, %454 : vector<16x8xf32>
    %cst_288 = arith.constant dense<0.000000e+00> : vector<16xf32>
    %456 = vector.multi_reduction <add>, %455, %cst_288 [1] : vector<16x8xf32> to vector<16xf32>
    %457 = vector.shape_cast %456 : vector<16xf32> to vector<16x1xf32>
    %cst_289 = arith.constant 8.000000e+00 : f32
    %458 = vector.broadcast %cst_289 : f32 to vector<16x1xf32>
    %459 = arith.divf %457, %458 : vector<16x1xf32>
    %460 = vector.broadcast %452 : vector<16x1xf32> to vector<16x8xf32>
    %461 = arith.subf %448, %460 : vector<16x8xf32>
    %cst_290 = arith.constant 9.99999974E-6 : f32
    %462 = vector.broadcast %cst_290 : f32 to vector<16x1xf32>
    %463 = arith.addf %459, %462 : vector<16x1xf32>
    %464 = math.rsqrt %463 : vector<16x1xf32>
    %465 = vector.broadcast %464 : vector<16x1xf32> to vector<16x8xf32>
    %466 = arith.mulf %461, %465 : vector<16x8xf32>
    %467 = vector.broadcast %73 : vector<1x8xf32> to vector<16x8xf32>
    %468 = arith.mulf %466, %467 : vector<16x8xf32>
    %469 = vector.broadcast %75 : vector<1x8xf32> to vector<16x8xf32>
    %470 = arith.addf %468, %469 : vector<16x8xf32>
    %cst_291 = arith.constant dense<0.000000e+00> : vector<16x24xf32>
    %471 = tpu.matmul %470, %77, %cst_291 {dimension_numbers = #tpu.dot_dimension_numbers<[1], [0], [0], [1], [0, 0, 1, 1], [], []>} : vector<16x8xf32>, vector<8x24xf32>, vector<16x24xf32> -> vector<16x24xf32>
    %472 = vector.broadcast %79 : vector<1x24xf32> to vector<16x24xf32>
    %473 = arith.addf %471, %472 : vector<16x24xf32>
    %474 = vector.shape_cast %473 : vector<16x24xf32> to vector<2x8x24xf32>
    %475 = vector.extract_strided_slice %474 {offsets = [0, 0, 0], sizes = [2, 8, 4], strides = [1, 1, 1]} : vector<2x8x24xf32> to vector<2x8x4xf32>
    %476 = vector.extract_strided_slice %474 {offsets = [0, 0, 8], sizes = [2, 8, 4], strides = [1, 1, 1]} : vector<2x8x24xf32> to vector<2x8x4xf32>
    %477 = vector.extract_strided_slice %474 {offsets = [0, 0, 16], sizes = [2, 8, 4], strides = [1, 1, 1]} : vector<2x8x24xf32> to vector<2x8x4xf32>
    "tpu.trace_start"() <{level = 10 : i32, message = "bqd,bkd->bqk"}> : () -> ()
    %cst_292 = arith.constant dense<0.000000e+00> : vector<2x8x8xf32>
    %478 = tpu.matmul %475, %476, %cst_292 {dimension_numbers = #tpu.dot_dimension_numbers<[2], [2], [1], [1], [0, 0, 0, 1, 1, 1], [0], [0]>} : vector<2x8x4xf32>, vector<2x8x4xf32>, vector<2x8x8xf32> -> vector<2x8x8xf32>
    "tpu.trace_stop"() : () -> ()
    %479 = vector.broadcast %145 : vector<2x1x8xf32> to vector<2x8x8xf32>
    %480 = arith.addf %478, %479 : vector<2x8x8xf32>
    %cst_293 = arith.constant dense<0xFF800000> : vector<2x8xf32>
    %481 = vector.multi_reduction <maximumf>, %480, %cst_293 [2] : vector<2x8x8xf32> to vector<2x8xf32>
    %482 = vector.shape_cast %481 : vector<2x8xf32> to vector<2x8x1xf32>
    %483 = vector.broadcast %482 : vector<2x8x1xf32> to vector<2x8x8xf32>
    %484 = arith.subf %480, %483 : vector<2x8x8xf32>
    %485 = math.exp %484 : vector<2x8x8xf32>
    %cst_294 = arith.constant dense<0.000000e+00> : vector<2x8xf32>
    %486 = vector.multi_reduction <add>, %485, %cst_294 [2] : vector<2x8x8xf32> to vector<2x8xf32>
    %487 = vector.shape_cast %486 : vector<2x8xf32> to vector<2x8x1xf32>
    %488 = tpu.reciprocal %487 {approx = true} : vector<2x8x1xf32> -> vector<2x8x1xf32>
    %489 = vector.broadcast %488 : vector<2x8x1xf32> to vector<2x8x8xf32>
    %490 = arith.mulf %485, %489 : vector<2x8x8xf32>
    "tpu.trace_start"() <{level = 10 : i32, message = "bqk,bkd->bqd"}> : () -> ()
    %cst_295 = arith.constant dense<0.000000e+00> : vector<2x8x4xf32>
    %491 = tpu.matmul %490, %477, %cst_295 {dimension_numbers = #tpu.dot_dimension_numbers<[2], [1], [1], [2], [0, 0, 0, 1, 1, 2], [0], [0]>} : vector<2x8x8xf32>, vector<2x8x4xf32>, vector<2x8x4xf32> -> vector<2x8x4xf32>
    "tpu.trace_stop"() : () -> ()
    %492 = vector.shape_cast %491 : vector<2x8x4xf32> to vector<16x4xf32>
    %493 = vector.extract_strided_slice %81 {offsets = [0, 0], sizes = [4, 8], strides = [1, 1]} : vector<8x8xf32> to vector<4x8xf32>
    %cst_296 = arith.constant dense<0.000000e+00> : vector<16x8xf32>
    %494 = tpu.matmul %492, %493, %cst_296 {dimension_numbers = #tpu.dot_dimension_numbers<[1], [0], [0], [1], [0, 0, 1, 1], [], []>} : vector<16x4xf32>, vector<4x8xf32>, vector<16x8xf32> -> vector<16x8xf32>
    %495 = vector.broadcast %83 : vector<1x8xf32> to vector<16x8xf32>
    %496 = arith.addf %495, %494 : vector<16x8xf32>
    %497 = vector.extract_strided_slice %474 {offsets = [0, 0, 4], sizes = [2, 8, 4], strides = [1, 1, 1]} : vector<2x8x24xf32> to vector<2x8x4xf32>
    %498 = vector.extract_strided_slice %474 {offsets = [0, 0, 12], sizes = [2, 8, 4], strides = [1, 1, 1]} : vector<2x8x24xf32> to vector<2x8x4xf32>
    %499 = vector.extract_strided_slice %474 {offsets = [0, 0, 20], sizes = [2, 8, 4], strides = [1, 1, 1]} : vector<2x8x24xf32> to vector<2x8x4xf32>
    "tpu.trace_start"() <{level = 10 : i32, message = "bqd,bkd->bqk"}> : () -> ()
    %cst_297 = arith.constant dense<0.000000e+00> : vector<2x8x8xf32>
    %500 = tpu.matmul %497, %498, %cst_297 {dimension_numbers = #tpu.dot_dimension_numbers<[2], [2], [1], [1], [0, 0, 0, 1, 1, 1], [0], [0]>} : vector<2x8x4xf32>, vector<2x8x4xf32>, vector<2x8x8xf32> -> vector<2x8x8xf32>
    "tpu.trace_stop"() : () -> ()
    %501 = vector.broadcast %145 : vector<2x1x8xf32> to vector<2x8x8xf32>
    %502 = arith.addf %500, %501 : vector<2x8x8xf32>
    %cst_298 = arith.constant dense<0xFF800000> : vector<2x8xf32>
    %503 = vector.multi_reduction <maximumf>, %502, %cst_298 [2] : vector<2x8x8xf32> to vector<2x8xf32>
    %504 = vector.shape_cast %503 : vector<2x8xf32> to vector<2x8x1xf32>
    %505 = vector.broadcast %504 : vector<2x8x1xf32> to vector<2x8x8xf32>
    %506 = arith.subf %502, %505 : vector<2x8x8xf32>
    %507 = math.exp %506 : vector<2x8x8xf32>
    %cst_299 = arith.constant dense<0.000000e+00> : vector<2x8xf32>
    %508 = vector.multi_reduction <add>, %507, %cst_299 [2] : vector<2x8x8xf32> to vector<2x8xf32>
    %509 = vector.shape_cast %508 : vector<2x8xf32> to vector<2x8x1xf32>
    %510 = tpu.reciprocal %509 {approx = true} : vector<2x8x1xf32> -> vector<2x8x1xf32>
    %511 = vector.broadcast %510 : vector<2x8x1xf32> to vector<2x8x8xf32>
    %512 = arith.mulf %507, %511 : vector<2x8x8xf32>
    "tpu.trace_start"() <{level = 10 : i32, message = "bqk,bkd->bqd"}> : () -> ()
    %cst_300 = arith.constant dense<0.000000e+00> : vector<2x8x4xf32>
    %513 = tpu.matmul %512, %499, %cst_300 {dimension_numbers = #tpu.dot_dimension_numbers<[2], [1], [1], [2], [0, 0, 0, 1, 1, 2], [0], [0]>} : vector<2x8x8xf32>, vector<2x8x4xf32>, vector<2x8x4xf32> -> vector<2x8x4xf32>
    "tpu.trace_stop"() : () -> ()
    %514 = vector.shape_cast %513 : vector<2x8x4xf32> to vector<16x4xf32>
    %515 = vector.extract_strided_slice %81 {offsets = [4, 0], sizes = [4, 8], strides = [1, 1]} : vector<8x8xf32> to vector<4x8xf32>
    %cst_301 = arith.constant dense<0.000000e+00> : vector<16x8xf32>
    %516 = tpu.matmul %514, %515, %cst_301 {dimension_numbers = #tpu.dot_dimension_numbers<[1], [0], [0], [1], [0, 0, 1, 1], [], []>} : vector<16x4xf32>, vector<4x8xf32>, vector<16x8xf32> -> vector<16x8xf32>
    %517 = arith.addf %496, %516 : vector<16x8xf32>
    %518 = arith.addf %448, %517 : vector<16x8xf32>
    %cst_302 = arith.constant dense<0.000000e+00> : vector<16xf32>
    %519 = vector.multi_reduction <add>, %518, %cst_302 [1] : vector<16x8xf32> to vector<16xf32>
    %520 = vector.shape_cast %519 : vector<16xf32> to vector<16x1xf32>
    %cst_303 = arith.constant 8.000000e+00 : f32
    %521 = vector.broadcast %cst_303 : f32 to vector<16x1xf32>
    %522 = arith.divf %520, %521 : vector<16x1xf32>
    %523 = vector.broadcast %522 : vector<16x1xf32> to vector<16x8xf32>
    %524 = arith.subf %518, %523 : vector<16x8xf32>
    %525 = arith.mulf %524, %524 : vector<16x8xf32>
    %cst_304 = arith.constant dense<0.000000e+00> : vector<16xf32>
    %526 = vector.multi_reduction <add>, %525, %cst_304 [1] : vector<16x8xf32> to vector<16xf32>
    %527 = vector.shape_cast %526 : vector<16xf32> to vector<16x1xf32>
    %cst_305 = arith.constant 8.000000e+00 : f32
    %528 = vector.broadcast %cst_305 : f32 to vector<16x1xf32>
    %529 = arith.divf %527, %528 : vector<16x1xf32>
    %530 = vector.broadcast %522 : vector<16x1xf32> to vector<16x8xf32>
    %531 = arith.subf %518, %530 : vector<16x8xf32>
    %cst_306 = arith.constant 9.99999974E-6 : f32
    %532 = vector.broadcast %cst_306 : f32 to vector<16x1xf32>
    %533 = arith.addf %529, %532 : vector<16x1xf32>
    %534 = math.rsqrt %533 : vector<16x1xf32>
    %535 = vector.broadcast %534 : vector<16x1xf32> to vector<16x8xf32>
    %536 = arith.mulf %531, %535 : vector<16x8xf32>
    %537 = vector.broadcast %85 : vector<1x8xf32> to vector<16x8xf32>
    %538 = arith.mulf %536, %537 : vector<16x8xf32>
    %539 = vector.broadcast %87 : vector<1x8xf32> to vector<16x8xf32>
    %540 = arith.addf %538, %539 : vector<16x8xf32>
    %cst_307 = arith.constant dense<0.000000e+00> : vector<16x8xf32>
    %541 = tpu.matmul %540, %89, %cst_307 {dimension_numbers = #tpu.dot_dimension_numbers<[1], [0], [0], [1], [0, 0, 1, 1], [], []>} : vector<16x8xf32>, vector<8x8xf32>, vector<16x8xf32> -> vector<16x8xf32>
    %542 = vector.broadcast %91 : vector<1x8xf32> to vector<16x8xf32>
    %543 = arith.addf %541, %542 : vector<16x8xf32>
    %cst_308 = arith.constant 0.000000e+00 : f32
    %544 = vector.broadcast %cst_308 : f32 to vector<16x8xf32>
    %545 = arith.maximumf %543, %544 : vector<16x8xf32>
    %cst_309 = arith.constant dense<0.000000e+00> : vector<16x8xf32>
    %546 = tpu.matmul %545, %93, %cst_309 {dimension_numbers = #tpu.dot_dimension_numbers<[1], [0], [0], [1], [0, 0, 1, 1], [], []>} : vector<16x8xf32>, vector<8x8xf32>, vector<16x8xf32> -> vector<16x8xf32>
    %547 = arith.addf %518, %546 : vector<16x8xf32>
    %548 = vector.broadcast %95 : vector<1x8xf32> to vector<16x8xf32>
    %549 = arith.addf %547, %548 : vector<16x8xf32>
    %cst_310 = arith.constant dense<0.000000e+00> : vector<16xf32>
    %550 = vector.multi_reduction <add>, %549, %cst_310 [1] : vector<16x8xf32> to vector<16xf32>
    %551 = vector.shape_cast %550 : vector<16xf32> to vector<16x1xf32>
    %cst_311 = arith.constant 8.000000e+00 : f32
    %552 = vector.broadcast %cst_311 : f32 to vector<16x1xf32>
    %553 = arith.divf %551, %552 : vector<16x1xf32>
    %554 = vector.broadcast %553 : vector<16x1xf32> to vector<16x8xf32>
    %555 = arith.subf %549, %554 : vector<16x8xf32>
    %556 = arith.mulf %555, %555 : vector<16x8xf32>
    %cst_312 = arith.constant dense<0.000000e+00> : vector<16xf32>
    %557 = vector.multi_reduction <add>, %556, %cst_312 [1] : vector<16x8xf32> to vector<16xf32>
    %558 = vector.shape_cast %557 : vector<16xf32> to vector<16x1xf32>
    %cst_313 = arith.constant 8.000000e+00 : f32
    %559 = vector.broadcast %cst_313 : f32 to vector<16x1xf32>
    %560 = arith.divf %558, %559 : vector<16x1xf32>
    %561 = vector.broadcast %553 : vector<16x1xf32> to vector<16x8xf32>
    %562 = arith.subf %549, %561 : vector<16x8xf32>
    %cst_314 = arith.constant 9.99999974E-6 : f32
    %563 = vector.broadcast %cst_314 : f32 to vector<16x1xf32>
    %564 = arith.addf %560, %563 : vector<16x1xf32>
    %565 = math.rsqrt %564 : vector<16x1xf32>
    %566 = vector.broadcast %565 : vector<16x1xf32> to vector<16x8xf32>
    %567 = arith.mulf %562, %566 : vector<16x8xf32>
    %568 = vector.broadcast %97 : vector<1x8xf32> to vector<16x8xf32>
    %569 = arith.mulf %567, %568 : vector<16x8xf32>
    %570 = vector.broadcast %99 : vector<1x8xf32> to vector<16x8xf32>
    %571 = arith.addf %569, %570 : vector<16x8xf32>
    %cst_315 = arith.constant dense<0.000000e+00> : vector<16x24xf32>
    %572 = tpu.matmul %571, %101, %cst_315 {dimension_numbers = #tpu.dot_dimension_numbers<[1], [0], [0], [1], [0, 0, 1, 1], [], []>} : vector<16x8xf32>, vector<8x24xf32>, vector<16x24xf32> -> vector<16x24xf32>
    %573 = vector.broadcast %103 : vector<1x24xf32> to vector<16x24xf32>
    %574 = arith.addf %572, %573 : vector<16x24xf32>
    %575 = vector.shape_cast %574 : vector<16x24xf32> to vector<2x8x24xf32>
    %576 = vector.extract_strided_slice %575 {offsets = [0, 0, 0], sizes = [2, 8, 4], strides = [1, 1, 1]} : vector<2x8x24xf32> to vector<2x8x4xf32>
    %577 = vector.extract_strided_slice %575 {offsets = [0, 0, 8], sizes = [2, 8, 4], strides = [1, 1, 1]} : vector<2x8x24xf32> to vector<2x8x4xf32>
    %578 = vector.extract_strided_slice %575 {offsets = [0, 0, 16], sizes = [2, 8, 4], strides = [1, 1, 1]} : vector<2x8x24xf32> to vector<2x8x4xf32>
    "tpu.trace_start"() <{level = 10 : i32, message = "bqd,bkd->bqk"}> : () -> ()
    %cst_316 = arith.constant dense<0.000000e+00> : vector<2x8x8xf32>
    %579 = tpu.matmul %576, %577, %cst_316 {dimension_numbers = #tpu.dot_dimension_numbers<[2], [2], [1], [1], [0, 0, 0, 1, 1, 1], [0], [0]>} : vector<2x8x4xf32>, vector<2x8x4xf32>, vector<2x8x8xf32> -> vector<2x8x8xf32>
    "tpu.trace_stop"() : () -> ()
    %580 = vector.broadcast %145 : vector<2x1x8xf32> to vector<2x8x8xf32>
    %581 = arith.addf %579, %580 : vector<2x8x8xf32>
    %cst_317 = arith.constant dense<0xFF800000> : vector<2x8xf32>
    %582 = vector.multi_reduction <maximumf>, %581, %cst_317 [2] : vector<2x8x8xf32> to vector<2x8xf32>
    %583 = vector.shape_cast %582 : vector<2x8xf32> to vector<2x8x1xf32>
    %584 = vector.broadcast %583 : vector<2x8x1xf32> to vector<2x8x8xf32>
    %585 = arith.subf %581, %584 : vector<2x8x8xf32>
    %586 = math.exp %585 : vector<2x8x8xf32>
    %cst_318 = arith.constant dense<0.000000e+00> : vector<2x8xf32>
    %587 = vector.multi_reduction <add>, %586, %cst_318 [2] : vector<2x8x8xf32> to vector<2x8xf32>
    %588 = vector.shape_cast %587 : vector<2x8xf32> to vector<2x8x1xf32>
    %589 = tpu.reciprocal %588 {approx = true} : vector<2x8x1xf32> -> vector<2x8x1xf32>
    %590 = vector.broadcast %589 : vector<2x8x1xf32> to vector<2x8x8xf32>
    %591 = arith.mulf %586, %590 : vector<2x8x8xf32>
    "tpu.trace_start"() <{level = 10 : i32, message = "bqk,bkd->bqd"}> : () -> ()
    %cst_319 = arith.constant dense<0.000000e+00> : vector<2x8x4xf32>
    %592 = tpu.matmul %591, %578, %cst_319 {dimension_numbers = #tpu.dot_dimension_numbers<[2], [1], [1], [2], [0, 0, 0, 1, 1, 2], [0], [0]>} : vector<2x8x8xf32>, vector<2x8x4xf32>, vector<2x8x4xf32> -> vector<2x8x4xf32>
    "tpu.trace_stop"() : () -> ()
    %593 = vector.shape_cast %592 : vector<2x8x4xf32> to vector<16x4xf32>
    %594 = vector.extract_strided_slice %105 {offsets = [0, 0], sizes = [4, 8], strides = [1, 1]} : vector<8x8xf32> to vector<4x8xf32>
    %cst_320 = arith.constant dense<0.000000e+00> : vector<16x8xf32>
    %595 = tpu.matmul %593, %594, %cst_320 {dimension_numbers = #tpu.dot_dimension_numbers<[1], [0], [0], [1], [0, 0, 1, 1], [], []>} : vector<16x4xf32>, vector<4x8xf32>, vector<16x8xf32> -> vector<16x8xf32>
    %596 = vector.broadcast %107 : vector<1x8xf32> to vector<16x8xf32>
    %597 = arith.addf %596, %595 : vector<16x8xf32>
    %598 = vector.extract_strided_slice %575 {offsets = [0, 0, 4], sizes = [2, 8, 4], strides = [1, 1, 1]} : vector<2x8x24xf32> to vector<2x8x4xf32>
    %599 = vector.extract_strided_slice %575 {offsets = [0, 0, 12], sizes = [2, 8, 4], strides = [1, 1, 1]} : vector<2x8x24xf32> to vector<2x8x4xf32>
    %600 = vector.extract_strided_slice %575 {offsets = [0, 0, 20], sizes = [2, 8, 4], strides = [1, 1, 1]} : vector<2x8x24xf32> to vector<2x8x4xf32>
    "tpu.trace_start"() <{level = 10 : i32, message = "bqd,bkd->bqk"}> : () -> ()
    %cst_321 = arith.constant dense<0.000000e+00> : vector<2x8x8xf32>
    %601 = tpu.matmul %598, %599, %cst_321 {dimension_numbers = #tpu.dot_dimension_numbers<[2], [2], [1], [1], [0, 0, 0, 1, 1, 1], [0], [0]>} : vector<2x8x4xf32>, vector<2x8x4xf32>, vector<2x8x8xf32> -> vector<2x8x8xf32>
    "tpu.trace_stop"() : () -> ()
    %602 = vector.broadcast %145 : vector<2x1x8xf32> to vector<2x8x8xf32>
    %603 = arith.addf %601, %602 : vector<2x8x8xf32>
    %cst_322 = arith.constant dense<0xFF800000> : vector<2x8xf32>
    %604 = vector.multi_reduction <maximumf>, %603, %cst_322 [2] : vector<2x8x8xf32> to vector<2x8xf32>
    %605 = vector.shape_cast %604 : vector<2x8xf32> to vector<2x8x1xf32>
    %606 = vector.broadcast %605 : vector<2x8x1xf32> to vector<2x8x8xf32>
    %607 = arith.subf %603, %606 : vector<2x8x8xf32>
    %608 = math.exp %607 : vector<2x8x8xf32>
    %cst_323 = arith.constant dense<0.000000e+00> : vector<2x8xf32>
    %609 = vector.multi_reduction <add>, %608, %cst_323 [2] : vector<2x8x8xf32> to vector<2x8xf32>
    %610 = vector.shape_cast %609 : vector<2x8xf32> to vector<2x8x1xf32>
    %611 = tpu.reciprocal %610 {approx = true} : vector<2x8x1xf32> -> vector<2x8x1xf32>
    %612 = vector.broadcast %611 : vector<2x8x1xf32> to vector<2x8x8xf32>
    %613 = arith.mulf %608, %612 : vector<2x8x8xf32>
    "tpu.trace_start"() <{level = 10 : i32, message = "bqk,bkd->bqd"}> : () -> ()
    %cst_324 = arith.constant dense<0.000000e+00> : vector<2x8x4xf32>
    %614 = tpu.matmul %613, %600, %cst_324 {dimension_numbers = #tpu.dot_dimension_numbers<[2], [1], [1], [2], [0, 0, 0, 1, 1, 2], [0], [0]>} : vector<2x8x8xf32>, vector<2x8x4xf32>, vector<2x8x4xf32> -> vector<2x8x4xf32>
    "tpu.trace_stop"() : () -> ()
    %615 = vector.shape_cast %614 : vector<2x8x4xf32> to vector<16x4xf32>
    %616 = vector.extract_strided_slice %105 {offsets = [4, 0], sizes = [4, 8], strides = [1, 1]} : vector<8x8xf32> to vector<4x8xf32>
    %cst_325 = arith.constant dense<0.000000e+00> : vector<16x8xf32>
    %617 = tpu.matmul %615, %616, %cst_325 {dimension_numbers = #tpu.dot_dimension_numbers<[1], [0], [0], [1], [0, 0, 1, 1], [], []>} : vector<16x4xf32>, vector<4x8xf32>, vector<16x8xf32> -> vector<16x8xf32>
    %618 = arith.addf %597, %617 : vector<16x8xf32>
    %619 = arith.addf %549, %618 : vector<16x8xf32>
    %cst_326 = arith.constant dense<0.000000e+00> : vector<16xf32>
    %620 = vector.multi_reduction <add>, %619, %cst_326 [1] : vector<16x8xf32> to vector<16xf32>
    %621 = vector.shape_cast %620 : vector<16xf32> to vector<16x1xf32>
    %cst_327 = arith.constant 8.000000e+00 : f32
    %622 = vector.broadcast %cst_327 : f32 to vector<16x1xf32>
    %623 = arith.divf %621, %622 : vector<16x1xf32>
    %624 = vector.broadcast %623 : vector<16x1xf32> to vector<16x8xf32>
    %625 = arith.subf %619, %624 : vector<16x8xf32>
    %626 = arith.mulf %625, %625 : vector<16x8xf32>
    %cst_328 = arith.constant dense<0.000000e+00> : vector<16xf32>
    %627 = vector.multi_reduction <add>, %626, %cst_328 [1] : vector<16x8xf32> to vector<16xf32>
    %628 = vector.shape_cast %627 : vector<16xf32> to vector<16x1xf32>
    %cst_329 = arith.constant 8.000000e+00 : f32
    %629 = vector.broadcast %cst_329 : f32 to vector<16x1xf32>
    %630 = arith.divf %628, %629 : vector<16x1xf32>
    %631 = vector.broadcast %623 : vector<16x1xf32> to vector<16x8xf32>
    %632 = arith.subf %619, %631 : vector<16x8xf32>
    %cst_330 = arith.constant 9.99999974E-6 : f32
    %633 = vector.broadcast %cst_330 : f32 to vector<16x1xf32>
    %634 = arith.addf %630, %633 : vector<16x1xf32>
    %635 = math.rsqrt %634 : vector<16x1xf32>
    %636 = vector.broadcast %635 : vector<16x1xf32> to vector<16x8xf32>
    %637 = arith.mulf %632, %636 : vector<16x8xf32>
    %638 = vector.broadcast %109 : vector<1x8xf32> to vector<16x8xf32>
    %639 = arith.mulf %637, %638 : vector<16x8xf32>
    %640 = vector.broadcast %111 : vector<1x8xf32> to vector<16x8xf32>
    %641 = arith.addf %639, %640 : vector<16x8xf32>
    %cst_331 = arith.constant dense<0.000000e+00> : vector<16x8xf32>
    %642 = tpu.matmul %641, %113, %cst_331 {dimension_numbers = #tpu.dot_dimension_numbers<[1], [0], [0], [1], [0, 0, 1, 1], [], []>} : vector<16x8xf32>, vector<8x8xf32>, vector<16x8xf32> -> vector<16x8xf32>
    %643 = vector.broadcast %115 : vector<1x8xf32> to vector<16x8xf32>
    %644 = arith.addf %642, %643 : vector<16x8xf32>
    %cst_332 = arith.constant 0.000000e+00 : f32
    %645 = vector.broadcast %cst_332 : f32 to vector<16x8xf32>
    %646 = arith.maximumf %644, %645 : vector<16x8xf32>
    %cst_333 = arith.constant dense<0.000000e+00> : vector<16x8xf32>
    %647 = tpu.matmul %646, %117, %cst_333 {dimension_numbers = #tpu.dot_dimension_numbers<[1], [0], [0], [1], [0, 0, 1, 1], [], []>} : vector<16x8xf32>, vector<8x8xf32>, vector<16x8xf32> -> vector<16x8xf32>
    %648 = arith.addf %619, %647 : vector<16x8xf32>
    %649 = vector.broadcast %119 : vector<1x8xf32> to vector<16x8xf32>
    %650 = arith.addf %648, %649 : vector<16x8xf32>
    %cst_334 = arith.constant dense<0.000000e+00> : vector<16xf32>
    %651 = vector.multi_reduction <add>, %650, %cst_334 [1] : vector<16x8xf32> to vector<16xf32>
    %652 = vector.shape_cast %651 : vector<16xf32> to vector<16x1xf32>
    %cst_335 = arith.constant 8.000000e+00 : f32
    %653 = vector.broadcast %cst_335 : f32 to vector<16x1xf32>
    %654 = arith.divf %652, %653 : vector<16x1xf32>
    %655 = vector.broadcast %654 : vector<16x1xf32> to vector<16x8xf32>
    %656 = arith.subf %650, %655 : vector<16x8xf32>
    %657 = arith.mulf %656, %656 : vector<16x8xf32>
    %cst_336 = arith.constant dense<0.000000e+00> : vector<16xf32>
    %658 = vector.multi_reduction <add>, %657, %cst_336 [1] : vector<16x8xf32> to vector<16xf32>
    %659 = vector.shape_cast %658 : vector<16xf32> to vector<16x1xf32>
    %cst_337 = arith.constant 8.000000e+00 : f32
    %660 = vector.broadcast %cst_337 : f32 to vector<16x1xf32>
    %661 = arith.divf %659, %660 : vector<16x1xf32>
    %662 = vector.broadcast %654 : vector<16x1xf32> to vector<16x8xf32>
    %663 = arith.subf %650, %662 : vector<16x8xf32>
    %cst_338 = arith.constant 9.99999974E-6 : f32
    %664 = vector.broadcast %cst_338 : f32 to vector<16x1xf32>
    %665 = arith.addf %661, %664 : vector<16x1xf32>
    %666 = math.rsqrt %665 : vector<16x1xf32>
    %667 = vector.broadcast %666 : vector<16x1xf32> to vector<16x8xf32>
    %668 = arith.mulf %663, %667 : vector<16x8xf32>
    %669 = vector.broadcast %121 : vector<1x8xf32> to vector<16x8xf32>
    %670 = arith.mulf %668, %669 : vector<16x8xf32>
    %671 = vector.broadcast %123 : vector<1x8xf32> to vector<16x8xf32>
    %672 = arith.addf %670, %671 : vector<16x8xf32>
    %cst_339 = arith.constant dense<0.000000e+00> : vector<16x24xf32>
    %673 = tpu.matmul %672, %125, %cst_339 {dimension_numbers = #tpu.dot_dimension_numbers<[1], [0], [0], [1], [0, 0, 1, 1], [], []>} : vector<16x8xf32>, vector<8x24xf32>, vector<16x24xf32> -> vector<16x24xf32>
    %674 = vector.broadcast %127 : vector<1x24xf32> to vector<16x24xf32>
    %675 = arith.addf %673, %674 : vector<16x24xf32>
    %676 = vector.shape_cast %675 : vector<16x24xf32> to vector<2x8x24xf32>
    %677 = vector.extract_strided_slice %676 {offsets = [0, 0, 0], sizes = [2, 8, 4], strides = [1, 1, 1]} : vector<2x8x24xf32> to vector<2x8x4xf32>
    %678 = vector.extract_strided_slice %676 {offsets = [0, 0, 8], sizes = [2, 8, 4], strides = [1, 1, 1]} : vector<2x8x24xf32> to vector<2x8x4xf32>
    %679 = vector.extract_strided_slice %676 {offsets = [0, 0, 16], sizes = [2, 8, 4], strides = [1, 1, 1]} : vector<2x8x24xf32> to vector<2x8x4xf32>
    "tpu.trace_start"() <{level = 10 : i32, message = "bqd,bkd->bqk"}> : () -> ()
    %cst_340 = arith.constant dense<0.000000e+00> : vector<2x8x8xf32>
    %680 = tpu.matmul %677, %678, %cst_340 {dimension_numbers = #tpu.dot_dimension_numbers<[2], [2], [1], [1], [0, 0, 0, 1, 1, 1], [0], [0]>} : vector<2x8x4xf32>, vector<2x8x4xf32>, vector<2x8x8xf32> -> vector<2x8x8xf32>
    "tpu.trace_stop"() : () -> ()
    %681 = vector.broadcast %145 : vector<2x1x8xf32> to vector<2x8x8xf32>
    %682 = arith.addf %680, %681 : vector<2x8x8xf32>
    %cst_341 = arith.constant dense<0xFF800000> : vector<2x8xf32>
    %683 = vector.multi_reduction <maximumf>, %682, %cst_341 [2] : vector<2x8x8xf32> to vector<2x8xf32>
    %684 = vector.shape_cast %683 : vector<2x8xf32> to vector<2x8x1xf32>
    %685 = vector.broadcast %684 : vector<2x8x1xf32> to vector<2x8x8xf32>
    %686 = arith.subf %682, %685 : vector<2x8x8xf32>
    %687 = math.exp %686 : vector<2x8x8xf32>
    %cst_342 = arith.constant dense<0.000000e+00> : vector<2x8xf32>
    %688 = vector.multi_reduction <add>, %687, %cst_342 [2] : vector<2x8x8xf32> to vector<2x8xf32>
    %689 = vector.shape_cast %688 : vector<2x8xf32> to vector<2x8x1xf32>
    %690 = tpu.reciprocal %689 {approx = true} : vector<2x8x1xf32> -> vector<2x8x1xf32>
    %691 = vector.broadcast %690 : vector<2x8x1xf32> to vector<2x8x8xf32>
    %692 = arith.mulf %687, %691 : vector<2x8x8xf32>
    "tpu.trace_start"() <{level = 10 : i32, message = "bqk,bkd->bqd"}> : () -> ()
    %cst_343 = arith.constant dense<0.000000e+00> : vector<2x8x4xf32>
    %693 = tpu.matmul %692, %679, %cst_343 {dimension_numbers = #tpu.dot_dimension_numbers<[2], [1], [1], [2], [0, 0, 0, 1, 1, 2], [0], [0]>} : vector<2x8x8xf32>, vector<2x8x4xf32>, vector<2x8x4xf32> -> vector<2x8x4xf32>
    "tpu.trace_stop"() : () -> ()
    %694 = vector.shape_cast %693 : vector<2x8x4xf32> to vector<16x4xf32>
    %695 = vector.extract_strided_slice %129 {offsets = [0, 0], sizes = [4, 8], strides = [1, 1]} : vector<8x8xf32> to vector<4x8xf32>
    %cst_344 = arith.constant dense<0.000000e+00> : vector<16x8xf32>
    %696 = tpu.matmul %694, %695, %cst_344 {dimension_numbers = #tpu.dot_dimension_numbers<[1], [0], [0], [1], [0, 0, 1, 1], [], []>} : vector<16x4xf32>, vector<4x8xf32>, vector<16x8xf32> -> vector<16x8xf32>
    %697 = vector.broadcast %131 : vector<1x8xf32> to vector<16x8xf32>
    %698 = arith.addf %697, %696 : vector<16x8xf32>
    %699 = vector.extract_strided_slice %676 {offsets = [0, 0, 4], sizes = [2, 8, 4], strides = [1, 1, 1]} : vector<2x8x24xf32> to vector<2x8x4xf32>
    %700 = vector.extract_strided_slice %676 {offsets = [0, 0, 12], sizes = [2, 8, 4], strides = [1, 1, 1]} : vector<2x8x24xf32> to vector<2x8x4xf32>
    %701 = vector.extract_strided_slice %676 {offsets = [0, 0, 20], sizes = [2, 8, 4], strides = [1, 1, 1]} : vector<2x8x24xf32> to vector<2x8x4xf32>
    "tpu.trace_start"() <{level = 10 : i32, message = "bqd,bkd->bqk"}> : () -> ()
    %cst_345 = arith.constant dense<0.000000e+00> : vector<2x8x8xf32>
    %702 = tpu.matmul %699, %700, %cst_345 {dimension_numbers = #tpu.dot_dimension_numbers<[2], [2], [1], [1], [0, 0, 0, 1, 1, 1], [0], [0]>} : vector<2x8x4xf32>, vector<2x8x4xf32>, vector<2x8x8xf32> -> vector<2x8x8xf32>
    "tpu.trace_stop"() : () -> ()
    %703 = vector.broadcast %145 : vector<2x1x8xf32> to vector<2x8x8xf32>
    %704 = arith.addf %702, %703 : vector<2x8x8xf32>
    %cst_346 = arith.constant dense<0xFF800000> : vector<2x8xf32>
    %705 = vector.multi_reduction <maximumf>, %704, %cst_346 [2] : vector<2x8x8xf32> to vector<2x8xf32>
    %706 = vector.shape_cast %705 : vector<2x8xf32> to vector<2x8x1xf32>
    %707 = vector.broadcast %706 : vector<2x8x1xf32> to vector<2x8x8xf32>
    %708 = arith.subf %704, %707 : vector<2x8x8xf32>
    %709 = math.exp %708 : vector<2x8x8xf32>
    %cst_347 = arith.constant dense<0.000000e+00> : vector<2x8xf32>
    %710 = vector.multi_reduction <add>, %709, %cst_347 [2] : vector<2x8x8xf32> to vector<2x8xf32>
    %711 = vector.shape_cast %710 : vector<2x8xf32> to vector<2x8x1xf32>
    %712 = tpu.reciprocal %711 {approx = true} : vector<2x8x1xf32> -> vector<2x8x1xf32>
    %713 = vector.broadcast %712 : vector<2x8x1xf32> to vector<2x8x8xf32>
    %714 = arith.mulf %709, %713 : vector<2x8x8xf32>
    "tpu.trace_start"() <{level = 10 : i32, message = "bqk,bkd->bqd"}> : () -> ()
    %cst_348 = arith.constant dense<0.000000e+00> : vector<2x8x4xf32>
    %715 = tpu.matmul %714, %701, %cst_348 {dimension_numbers = #tpu.dot_dimension_numbers<[2], [1], [1], [2], [0, 0, 0, 1, 1, 2], [0], [0]>} : vector<2x8x8xf32>, vector<2x8x4xf32>, vector<2x8x4xf32> -> vector<2x8x4xf32>
    "tpu.trace_stop"() : () -> ()
    %716 = vector.shape_cast %715 : vector<2x8x4xf32> to vector<16x4xf32>
    %717 = vector.extract_strided_slice %129 {offsets = [4, 0], sizes = [4, 8], strides = [1, 1]} : vector<8x8xf32> to vector<4x8xf32>
    %cst_349 = arith.constant dense<0.000000e+00> : vector<16x8xf32>
    %718 = tpu.matmul %716, %717, %cst_349 {dimension_numbers = #tpu.dot_dimension_numbers<[1], [0], [0], [1], [0, 0, 1, 1], [], []>} : vector<16x4xf32>, vector<4x8xf32>, vector<16x8xf32> -> vector<16x8xf32>
    %719 = arith.addf %698, %718 : vector<16x8xf32>
    %720 = arith.addf %650, %719 : vector<16x8xf32>
    %cst_350 = arith.constant dense<0.000000e+00> : vector<16xf32>
    %721 = vector.multi_reduction <add>, %720, %cst_350 [1] : vector<16x8xf32> to vector<16xf32>
    %722 = vector.shape_cast %721 : vector<16xf32> to vector<16x1xf32>
    %cst_351 = arith.constant 8.000000e+00 : f32
    %723 = vector.broadcast %cst_351 : f32 to vector<16x1xf32>
    %724 = arith.divf %722, %723 : vector<16x1xf32>
    %725 = vector.broadcast %724 : vector<16x1xf32> to vector<16x8xf32>
    %726 = arith.subf %720, %725 : vector<16x8xf32>
    %727 = arith.mulf %726, %726 : vector<16x8xf32>
    %cst_352 = arith.constant dense<0.000000e+00> : vector<16xf32>
    %728 = vector.multi_reduction <add>, %727, %cst_352 [1] : vector<16x8xf32> to vector<16xf32>
    %729 = vector.shape_cast %728 : vector<16xf32> to vector<16x1xf32>
    %cst_353 = arith.constant 8.000000e+00 : f32
    %730 = vector.broadcast %cst_353 : f32 to vector<16x1xf32>
    %731 = arith.divf %729, %730 : vector<16x1xf32>
    %732 = vector.broadcast %724 : vector<16x1xf32> to vector<16x8xf32>
    %733 = arith.subf %720, %732 : vector<16x8xf32>
    %cst_354 = arith.constant 9.99999974E-6 : f32
    %734 = vector.broadcast %cst_354 : f32 to vector<16x1xf32>
    %735 = arith.addf %731, %734 : vector<16x1xf32>
    %736 = math.rsqrt %735 : vector<16x1xf32>
    %737 = vector.broadcast %736 : vector<16x1xf32> to vector<16x8xf32>
    %738 = arith.mulf %733, %737 : vector<16x8xf32>
    %739 = vector.broadcast %133 : vector<1x8xf32> to vector<16x8xf32>
    %740 = arith.mulf %738, %739 : vector<16x8xf32>
    %741 = vector.broadcast %135 : vector<1x8xf32> to vector<16x8xf32>
    %742 = arith.addf %740, %741 : vector<16x8xf32>
    %cst_355 = arith.constant dense<0.000000e+00> : vector<16x8xf32>
    %743 = tpu.matmul %742, %137, %cst_355 {dimension_numbers = #tpu.dot_dimension_numbers<[1], [0], [0], [1], [0, 0, 1, 1], [], []>} : vector<16x8xf32>, vector<8x8xf32>, vector<16x8xf32> -> vector<16x8xf32>
    %744 = vector.broadcast %139 : vector<1x8xf32> to vector<16x8xf32>
    %745 = arith.addf %743, %744 : vector<16x8xf32>
    %cst_356 = arith.constant 0.000000e+00 : f32
    %746 = vector.broadcast %cst_356 : f32 to vector<16x8xf32>
    %747 = arith.maximumf %745, %746 : vector<16x8xf32>
    %cst_357 = arith.constant dense<0.000000e+00> : vector<16x8xf32>
    %748 = tpu.matmul %747, %141, %cst_357 {dimension_numbers = #tpu.dot_dimension_numbers<[1], [0], [0], [1], [0, 0, 1, 1], [], []>} : vector<16x8xf32>, vector<8x8xf32>, vector<16x8xf32> -> vector<16x8xf32>
    %749 = arith.addf %720, %748 : vector<16x8xf32>
    %750 = vector.broadcast %143 : vector<1x8xf32> to vector<16x8xf32>
    %751 = arith.addf %749, %750 : vector<16x8xf32>
    %c0_358 = arith.constant 0 : index
    %c0_359 = arith.constant 0 : index
    %752 = vector.load %arg14[%c0_358, %c0_359] : memref<16x8xf32, #tpu.memory_space<vmem>>, vector<16x8xf32>
    tpu.vector_store %arg14[%c0_358, %c0_359], %751 {strides = array<i32>} : memref<16x8xf32, #tpu.memory_space<vmem>>, vector<16x8xf32>,
    return
  }
}

</mosaic_0001>

<llo_original>
// kernel: transformer_encoder.1
$region0: #{transformer_encoder.1}
  #allocation0 [shape = 'u32[]', space=smem, size = 0x4, offset = 0x4, fixed_abs, tag = 'smem constant byte address 0x4 - core index']
  #allocation1 [shape = 'u32[144,128]{1,0:T(1,128)}', space=vmem, size = 0x12000, scoped, tag = 'internal scratch']
  %s0 = inlined_call_operand.vmem [shape: f32[16,8], index: 0, kind: input, shape index: {}, may-alias: {0,14}]
  %s1 = inlined_call_operand.vmem [shape: f32[2,1,8], index: 1, kind: input, shape index: {}]
  %s2 = inlined_call_operand.vmem [shape: f32[6,1,8], index: 2, kind: input, shape index: {}]
  %s3 = inlined_call_operand.vmem [shape: f32[6,1,8], index: 3, kind: input, shape index: {}]
  %s4 = inlined_call_operand.vmem [shape: f32[6,8,24], index: 4, kind: input, shape index: {}]
  %s5 = inlined_call_operand.vmem [shape: f32[6,1,24], index: 5, kind: input, shape index: {}]
  %s6 = inlined_call_operand.vmem [shape: f32[6,8,8], index: 6, kind: input, shape index: {}]
  %s7 = inlined_call_operand.vmem [shape: f32[6,1,8], index: 7, kind: input, shape index: {}]
  %s8 = inlined_call_operand.vmem [shape: f32[6,1,8], index: 8, kind: input, shape index: {}]
  %s9 = inlined_call_operand.vmem [shape: f32[6,1,8], index: 9, kind: input, shape index: {}]
  %s10 = inlined_call_operand.vmem [shape: f32[6,8,8], index: 10, kind: input, shape index: {}]
  %s11 = inlined_call_operand.vmem [shape: f32[6,1,8], index: 11, kind: input, shape index: {}]
  %s12 = inlined_call_operand.vmem [shape: f32[6,8,8], index: 12, kind: input, shape index: {}]
  %s13 = inlined_call_operand.vmem [shape: f32[6,1,8], index: 13, kind: input, shape index: {}]
  %s14 = inlined_call_operand.vmem [shape: f32[16,8], index: 14, kind: output, shape index: {}, may-alias: {0,14}]
  %s15 = sld [smem:[#allocation0]]
  $region66: #{transformer_encoder.1} parent=0
    _
  %s17 = ssub.s32 1, %s15
  %s18 = scalar_select 0, %s17, %s15
  // Predicated region
  $region2: #{transformer_encoder.1} parent=0 // pred_check
    _
  $region3: #{transformer_encoder.1} parent=0 // pred_check_branch
    %20 = sbr.rel (0) target = $region5
  $region4: #{transformer_encoder.1} parent=0 // pred_region
    _
  $region5: #{transformer_encoder.1} parent=0 // pred_fallthru
    _
  // Predicated region
  $region6: #{transformer_encoder.1} parent=0 // pred_check
    _
  $region7: #{transformer_encoder.1} parent=0 // pred_check_branch
    %22 = sbr.rel (0) target = $region9
  $region8: #{transformer_encoder.1} parent=0 // pred_region
    _
  $region9: #{transformer_encoder.1} parent=0 // pred_fallthru
    _
  // Predicated region
  $region10: #{transformer_encoder.1} parent=0 // pred_check
    _
  $region11: #{transformer_encoder.1} parent=0 // pred_check_branch
    %24 = sbr.rel (0) target = $region13
  $region12: #{transformer_encoder.1} parent=0 // pred_region
    _
  $region13: #{transformer_encoder.1} parent=0 // pred_fallthru
    _
  // Predicated region
  $region14: #{transformer_encoder.1} parent=0 // pred_check
    _
  $region15: #{transformer_encoder.1} parent=0 // pred_check_branch
    %26 = sbr.rel (0) target = $region17
  $region16: #{transformer_encoder.1} parent=0 // pred_region
    _
  $region17: #{transformer_encoder.1} parent=0 // pred_fallthru
    _
  // Predicated region
  $region18: #{transformer_encoder.1} parent=0 // pred_check
    _
  $region19: #{transformer_encoder.1} parent=0 // pred_check_branch
    %28 = sbr.rel (0) target = $region21
  $region20: #{transformer_encoder.1} parent=0 // pred_region
    _
  $region21: #{transformer_encoder.1} parent=0 // pred_fallthru
    _
  // Predicated region
  $region22: #{transformer_encoder.1} parent=0 // pred_check
    _
  $region23: #{transformer_encoder.1} parent=0 // pred_check_branch
    %30 = sbr.rel (0) target = $region25
  $region24: #{transformer_encoder.1} parent=0 // pred_region
    _
  $region25: #{transformer_encoder.1} parent=0 // pred_fallthru
    _
  // Predicated region
  $region26: #{transformer_encoder.1} parent=0 // pred_check
    _
  $region27: #{transformer_encoder.1} parent=0 // pred_check_branch
    %32 = sbr.rel (0) target = $region29
  $region28: #{transformer_encoder.1} parent=0 // pred_region
    _
  $region29: #{transformer_encoder.1} parent=0 // pred_fallthru
    _
  // Predicated region
  $region30: #{transformer_encoder.1} parent=0 // pred_check
    _
  $region31: #{transformer_encoder.1} parent=0 // pred_check_branch
    %34 = sbr.rel (0) target = $region33
  $region32: #{transformer_encoder.1} parent=0 // pred_region
    _
  $region33: #{transformer_encoder.1} parent=0 // pred_fallthru
    _
  // Predicated region
  $region34: #{transformer_encoder.1} parent=0 // pred_check
    _
  $region35: #{transformer_encoder.1} parent=0 // pred_check_branch
    %36 = sbr.rel (0) target = $region37
  $region36: #{transformer_encoder.1} parent=0 // pred_region
    _
  $region37: #{transformer_encoder.1} parent=0 // pred_fallthru
    _
  // Predicated region
  $region38: #{transformer_encoder.1} parent=0 // pred_check
    _
  $region39: #{transformer_encoder.1} parent=0 // pred_check_branch
    %38 = sbr.rel (0) target = $region41
  $region40: #{transformer_encoder.1} parent=0 // pred_region
    _
  $region41: #{transformer_encoder.1} parent=0 // pred_fallthru
    _
  // Predicated region
  $region42: #{transformer_encoder.1} parent=0 // pred_check
    _
  $region43: #{transformer_encoder.1} parent=0 // pred_check_branch
    %40 = sbr.rel (0) target = $region45
  $region44: #{transformer_encoder.1} parent=0 // pred_region
    _
  $region45: #{transformer_encoder.1} parent=0 // pred_fallthru
    _
  // Predicated region
  $region46: #{transformer_encoder.1} parent=0 // pred_check
    _
  $region47: #{transformer_encoder.1} parent=0 // pred_check_branch
    %42 = sbr.rel (0) target = $region49
  $region48: #{transformer_encoder.1} parent=0 // pred_region
    _
  $region49: #{transformer_encoder.1} parent=0 // pred_fallthru
    _
  // Predicated region
  $region50: #{transformer_encoder.1} parent=0 // pred_check
    _
  $region51: #{transformer_encoder.1} parent=0 // pred_check_branch
    %44 = sbr.rel (0) target = $region53
  $region52: #{transformer_encoder.1} parent=0 // pred_region
    _
  $region53: #{transformer_encoder.1} parent=0 // pred_fallthru
    _
  // Predicated region
  $region54: #{transformer_encoder.1} parent=0 // pred_check
    _
  $region55: #{transformer_encoder.1} parent=0 // pred_check_branch
    %46 = sbr.rel (0) target = $region57
  $region56: #{transformer_encoder.1} parent=0 // pred_region
    _
  $region57: #{transformer_encoder.1} parent=0 // pred_fallthru
    _
  %v47 = vld [vmem:[%s2] sm:$0x1]
  %v48 = vld [vmem:[%s3] sm:$0x1]
  %v49 = vld [vmem:[%s4] sm:$0xff]
  %v50 = vld [vmem:[%s5] sm:$0x1]
  %v51 = vld [vmem:[%s6] sm:$0xff]
  %v52 = vld [vmem:[%s7] sm:$0x1]
  %v53 = vld [vmem:[%s8] sm:$0x1]
  %v54 = vld [vmem:[%s9] sm:$0x1]
  %v55 = vld [vmem:[%s10] sm:$0xff]
  %v56 = vld [vmem:[%s11] sm:$0x1]
  %v57 = vld [vmem:[%s12] sm:$0xff]
  %v58 = vld [vmem:[%s13] sm:$0x1]
  %s59 = scalar_lea.vmem %s2, 1
  %v60 = vld [vmem:[%s59] sm:$0x1]
  %s61 = scalar_lea.vmem %s3, 1
  %v62 = vld [vmem:[%s61] sm:$0x1]
  %s63 = scalar_lea.vmem %s4, 8
  %v64 = vld [vmem:[%s63] sm:$0xff]
  %s65 = scalar_lea.vmem %s5, 1
  %v66 = vld [vmem:[%s65] sm:$0x1]
  %s67 = scalar_lea.vmem %s6, 8
  %v68 = vld [vmem:[%s67] sm:$0xff]
  %s69 = scalar_lea.vmem %s7, 1
  %v70 = vld [vmem:[%s69] sm:$0x1]
  %s71 = scalar_lea.vmem %s8, 1
  %v72 = vld [vmem:[%s71] sm:$0x1]
  %s73 = scalar_lea.vmem %s9, 1
  %v74 = vld [vmem:[%s73] sm:$0x1]
  %s75 = scalar_lea.vmem %s10, 8
  %v76 = vld [vmem:[%s75] sm:$0xff]
  %s77 = scalar_lea.vmem %s11, 1
  %v78 = vld [vmem:[%s77] sm:$0x1]
  %s79 = scalar_lea.vmem %s12, 8
  %v80 = vld [vmem:[%s79] sm:$0xff]
  %s81 = scalar_lea.vmem %s13, 1
  %v82 = vld [vmem:[%s81] sm:$0x1]
  %s83 = scalar_lea.vmem %s2, 2
  %v84 = vld [vmem:[%s83] sm:$0x1]
  %s85 = scalar_lea.vmem %s3, 2
  %v86 = vld [vmem:[%s85] sm:$0x1]
  %s87 = scalar_lea.vmem %s4, 16
  %v88 = vld [vmem:[%s87] sm:$0xff]
  %s89 = scalar_lea.vmem %s5, 2
  %v90 = vld [vmem:[%s89] sm:$0x1]
  %s91 = scalar_lea.vmem %s6, 16
  %v92 = vld [vmem:[%s91] sm:$0xff]
  %s93 = scalar_lea.vmem %s7, 2
  %v94 = vld [vmem:[%s93] sm:$0x1]
  %s95 = scalar_lea.vmem %s8, 2
  %v96 = vld [vmem:[%s95] sm:$0x1]
  %s97 = scalar_lea.vmem %s9, 2
  %v98 = vld [vmem:[%s97] sm:$0x1]
  %s99 = scalar_lea.vmem %s10, 16
  %v100 = vld [vmem:[%s99] sm:$0xff]
  %s101 = scalar_lea.vmem %s11, 2
  %v102 = vld [vmem:[%s101] sm:$0x1]
  %s103 = scalar_lea.vmem %s12, 16
  %v104 = vld [vmem:[%s103] sm:$0xff]
  %s105 = scalar_lea.vmem %s13, 2
  %v106 = vld [vmem:[%s105] sm:$0x1]
  %s107 = scalar_lea.vmem %s2, 3
  %v108 = vld [vmem:[%s107] sm:$0x1]
  %s109 = scalar_lea.vmem %s3, 3
  %v110 = vld [vmem:[%s109] sm:$0x1]
  %s111 = scalar_lea.vmem %s4, 24
  %v112 = vld [vmem:[%s111] sm:$0xff]
  %s113 = scalar_lea.vmem %s5, 3
  %v114 = vld [vmem:[%s113] sm:$0x1]
  %s115 = scalar_lea.vmem %s6, 24
  %v116 = vld [vmem:[%s115] sm:$0xff]
  %s117 = scalar_lea.vmem %s7, 3
  %v118 = vld [vmem:[%s117] sm:$0x1]
  %s119 = scalar_lea.vmem %s8, 3
  %v120 = vld [vmem:[%s119] sm:$0x1]
  %s121 = scalar_lea.vmem %s9, 3
  %v122 = vld [vmem:[%s121] sm:$0x1]
  %s123 = scalar_lea.vmem %s10, 24
  %v124 = vld [vmem:[%s123] sm:$0xff]
  %s125 = scalar_lea.vmem %s11, 3
  %v126 = vld [vmem:[%s125] sm:$0x1]
  %s127 = scalar_lea.vmem %s12, 24
  %v128 = vld [vmem:[%s127] sm:$0xff]
  %s129 = scalar_lea.vmem %s13, 3
  %v130 = vld [vmem:[%s129] sm:$0x1]
  %s131 = scalar_lea.vmem %s2, 4
  %v132 = vld [vmem:[%s131] sm:$0x1]
  %s133 = scalar_lea.vmem %s3, 4
  %v134 = vld [vmem:[%s133] sm:$0x1]
  %s135 = scalar_lea.vmem %s4, 32
  %v136 = vld [vmem:[%s135] sm:$0xff]
  %s137 = scalar_lea.vmem %s5, 4
  %v138 = vld [vmem:[%s137] sm:$0x1]
  %s139 = scalar_lea.vmem %s6, 32
  %v140 = vld [vmem:[%s139] sm:$0xff]
  %s141 = scalar_lea.vmem %s7, 4
  %v142 = vld [vmem:[%s141] sm:$0x1]
  %s143 = scalar_lea.vmem %s8, 4
  %v144 = vld [vmem:[%s143] sm:$0x1]
  %s145 = scalar_lea.vmem %s9, 4
  %v146 = vld [vmem:[%s145] sm:$0x1]
  %s147 = scalar_lea.vmem %s10, 32
  %v148 = vld [vmem:[%s147] sm:$0xff]
  %s149 = scalar_lea.vmem %s11, 4
  %v150 = vld [vmem:[%s149] sm:$0x1]
  %s151 = scalar_lea.vmem %s12, 32
  %v152 = vld [vmem:[%s151] sm:$0xff]
  %s153 = scalar_lea.vmem %s13, 4
  %v154 = vld [vmem:[%s153] sm:$0x1]
  %s155 = scalar_lea.vmem %s2, 5
  %v156 = vld [vmem:[%s155] sm:$0x1]
  %s157 = scalar_lea.vmem %s3, 5
  %v158 = vld [vmem:[%s157] sm:$0x1]
  %s159 = scalar_lea.vmem %s4, 40
  %v160 = vld [vmem:[%s159] sm:$0xff]
  %s161 = scalar_lea.vmem %s5, 5
  %v162 = vld [vmem:[%s161] sm:$0x1]
  %s163 = scalar_lea.vmem %s6, 40
  %v164 = vld [vmem:[%s163] sm:$0xff]
  %s165 = scalar_lea.vmem %s7, 5
  %v166 = vld [vmem:[%s165] sm:$0x1]
  %s167 = scalar_lea.vmem %s8, 5
  %v168 = vld [vmem:[%s167] sm:$0x1]
  %s169 = scalar_lea.vmem %s9, 5
  %v170 = vld [vmem:[%s169] sm:$0x1]
  %s171 = scalar_lea.vmem %s10, 40
  %v172 = vld [vmem:[%s171] sm:$0xff]
  %s173 = scalar_lea.vmem %s11, 5
  %v174 = vld [vmem:[%s173] sm:$0x1]
  %s175 = scalar_lea.vmem %s12, 40
  %v176 = vld [vmem:[%s175] sm:$0xff]
  %s177 = scalar_lea.vmem %s13, 5
  %v178 = vld [vmem:[%s177] sm:$0x1]
  %v179 = vld [vmem:[%s0] sm:$0xff]
  %v180 = vld [vmem:[%s0 + $0x8] sm:$0xff]
  %v181 = vld [vmem:[%s1] sm:$0x1]
  %v182 = vld [vmem:[%s1 + $0x1] sm:$0x1]
  %vm183 = vcmask 64512
  %v184 = vsel %vm183, %v179, 0.0
  %185 = vadd.xlane.f32.xlu0 %v184
  %v186 = vpop.xlane.xlu0 %185
  %v187 = vsel %vm183, %v180, 0.0
  %188 = vadd.xlane.f32.xlu0 %v187
  %v189 = vpop.xlane.xlu0 %188
  %v190 = vrcp.pop 8.0
  %v191 = vmul.f32 %v186, %v190
  %v192 = vmul.f32 %v189, %v190
  %v193 = vsub.f32 %v179, %v191
  %v194 = vsub.f32 %v180, %v192
  %v195 = vmul.f32 %v193, %v193
  %v196 = vmul.f32 %v194, %v194
  %v197 = vsel %vm183, %v195, 0.0
  %198 = vadd.xlane.f32.xlu0 %v197
  %v199 = vpop.xlane.xlu0 %198
  %v200 = vsel %vm183, %v196, 0.0
  %201 = vadd.xlane.f32.xlu0 %v200
  %v202 = vpop.xlane.xlu0 %201
  %v203 = vmul.f32 %v199, %v190
  %v204 = vmul.f32 %v202, %v190
  %v205 = vadd.f32 %v203, 1e-05
  %v206 = vadd.f32 %v204, 1e-05
  %v207 = vrsqrt.pop %v205
  %v208 = vrsqrt.pop %v206
  %v209 = vmul.f32 %v193, %v207
  %v210 = vmul.f32 %v194, %v208
  %v212 = vlaneseq
  %v213 = vshrl.u32 %v212, 7
  %v214 = vsub.s32 0, %v213
  %v215 = vrot.slane %v47, %v214
  %v217 = vmul.f32 %v209, %v215
  %v218 = vmul.f32 %v210, %v215
  %v220 = vlaneseq
  %v221 = vshrl.u32 %v220, 7
  %v222 = vsub.s32 0, %v221
  %v223 = vrot.slane %v48, %v222
  %v225 = vadd.f32 %v217, %v223
  %v226 = vadd.f32 %v218, %v223
  %v228 = vlaneseq
  %v229 = vshrl.u32 %v228, 7
  %v230 = vsub.s32 0, %v229
  %v231 = vrot.slane %v50, %v230
  %v234 = vsel %vm183, %v225, 0
  %v237 = vsel %vm183, %v226, 0
  %239 = vmatprep.subr.mxu0 0.0
  %240 = vmatpush1.msra.mxu0 %v49
  %241 = vmatprep.subr.mxu0 0.0
  %242 = vmatpush1.msra.mxu0 0.0
  %243 = vmatprep.subr.mxu0 0.0
  %244 = vmatpush1.msra.mxu0 0.0
  %245 = vmatprep.subr.mxu0 0.0
  %246 = vmatpush1.msra.mxu0 0.0
  %247 = vmatprep.subr.mxu0 0.0
  %248 = vmatpush1.msra.mxu0 0.0
  %249 = vmatprep.subr.mxu0 0.0
  %250 = vmatpush1.msra.mxu0 0.0
  %251 = vmatprep.subr.mxu0 0.0
  %252 = vmatpush1.msra.mxu0 0.0
  %253 = vmatprep.subr.mxu0 0.0
  %254 = vmatpush1.msra.mxu0 0.0
  %255 = vmatprep.subr.mxu0 0.0
  %256 = vmatpush1.msra.mxu0 0.0
  %257 = vmatprep.subr.mxu0 0.0
  %258 = vmatpush1.msra.mxu0 0.0
  %259 = vmatprep.subr.mxu0 0.0
  %260 = vmatpush1.msra.mxu0 0.0
  %261 = vmatprep.subr.mxu0 0.0
  %262 = vmatpush1.msra.mxu0 0.0
  %263 = vmatprep.subr.mxu0 0.0
  %264 = vmatpush1.msra.mxu0 0.0
  %265 = vmatprep.subr.mxu0 0.0
  %266 = vmatpush1.msra.mxu0 0.0
  %267 = vmatprep.subr.mxu0 0.0
  %268 = vmatpush1.msra.mxu0 0.0
  %269 = vmatprep.subr.mxu0 0.0
  %270 = vmatpush1.msra.mxu0 0.0
  %271 = vmatprep.subr.mxu0 0.0
  %272 = vmatpush1.msra.mxu0 0.0
  %273 = vmatprep.subr.mxu0 0.0
  %274 = vmatpush1.msra.mxu0 0.0
  %275 = vmatprep.subr.mxu0 0.0
  %276 = vmatpush1.msra.mxu0 0.0
  %277 = vmatprep.subr.mxu0 0.0
  %278 = vmatpush1.msra.mxu0 0.0
  %279 = vmatprep.subr.mxu0 0.0
  %280 = vmatpush1.msra.mxu0 0.0
  %281 = vmatprep.subr.mxu0 0.0
  %282 = vmatpush1.msra.mxu0 0.0
  %283 = vmatprep.subr.mxu0 0.0
  %284 = vmatpush1.msra.mxu0 0.0
  %285 = vmatprep.subr.mxu0 0.0
  %286 = vmatpush1.msra.mxu0 0.0
  %287 = vmatprep.subr.mxu0 0.0
  %288 = vmatpush1.msra.mxu0 0.0
  %289 = vmatprep.subr.mxu0 0.0
  %290 = vmatpush1.msra.mxu0 0.0
  %291 = vmatprep.subr.mxu0 0.0
  %292 = vmatpush1.msra.mxu0 0.0
  %293 = vmatprep.subr.mxu0 0.0
  %294 = vmatpush1.msra.mxu0 0.0
  %295 = vmatprep.subr.mxu0 0.0
  %296 = vmatpush1.msra.mxu0 0.0
  %297 = vmatprep.subr.mxu0 0.0
  %298 = vmatpush1.msra.mxu0 0.0
  %299 = vmatprep.subr.mxu0 0.0
  %300 = vmatpush1.msra.mxu0 0.0
  %301 = vmatprep.subr.mxu0 0.0
  %302 = vmatpush1.msra.mxu0 0.0
  %303 = vmatprep.mubr.f32.mxu0 0.0
  %304 = vmatmul.mubr.f32.gmra.mrb[0].mxu0 %v234
  %v305 = vpop.f32.mrb[0].mxu0
  %v306 = vadd.f32 %v231, %v305
  %v307 = vpop.f32.mrb[0].mxu0
  %308 = vmatprep.mubr.f32.mxu0 0.0
  %309 = vmatmul.mubr.f32.gmra.mrb[0].mxu0 %v237
  %v310 = vpop.f32.mrb[0].mxu0
  %v311 = vadd.f32 %v231, %v310
  %v312 = vpop.f32.mrb[0].mxu0
  %313 = vdwg.mxu0
  %v316 = vlaneseq
  %v317 = vshrl.u32 %v316, 7
  %v318 = vsub.s32 0, %v317
  %v319 = vrot.slane %v181, %v318
  %v320 = vlaneseq
  %v321 = vshrl.u32 %v320, 7
  %v322 = vsub.s32 0, %v321
  %v323 = vrot.slane %v182, %v322
  %327 = vrot.lane.b32.xlu0 %v306, 120
  %v328 = vpop.permute.xlu0 %327
  %vm329 = vcmask 31744
  %v330 = vsel %vm329, %v306, 0
  %v332 = vsel %vm329, %v328, 0
  %334 = vmatprep.subr.mxu0 0.0
  %335 = vmatpush1.xpose.msra.mxu0 %v332
  %336 = vmatprep.subr.mxu0 0.0
  %337 = vmatpush1.xpose.msra.mxu0 0.0
  %338 = vmatprep.subr.mxu0 0.0
  %339 = vmatpush1.xpose.msra.mxu0 0.0
  %340 = vmatprep.subr.mxu0 0.0
  %341 = vmatpush1.xpose.msra.mxu0 0.0
  %342 = vmatprep.subr.mxu0 0.0
  %343 = vmatpush1.xpose.msra.mxu0 0.0
  %344 = vmatprep.subr.mxu0 0.0
  %345 = vmatpush1.xpose.msra.mxu0 0.0
  %346 = vmatprep.subr.mxu0 0.0
  %347 = vmatpush1.xpose.msra.mxu0 0.0
  %348 = vmatprep.subr.mxu0 0.0
  %349 = vmatpush1.xpose.msra.mxu0 0.0
  %350 = vmatprep.subr.mxu0 0.0
  %351 = vmatpush1.xpose.msra.mxu0 0.0
  %352 = vmatprep.subr.mxu0 0.0
  %353 = vmatpush1.xpose.msra.mxu0 0.0
  %354 = vmatprep.subr.mxu0 0.0
  %355 = vmatpush1.xpose.msra.mxu0 0.0
  %356 = vmatprep.subr.mxu0 0.0
  %357 = vmatpush1.xpose.msra.mxu0 0.0
  %358 = vmatprep.subr.mxu0 0.0
  %359 = vmatpush1.xpose.msra.mxu0 0.0
  %360 = vmatprep.subr.mxu0 0.0
  %361 = vmatpush1.xpose.msra.mxu0 0.0
  %362 = vmatprep.subr.mxu0 0.0
  %363 = vmatpush1.xpose.msra.mxu0 0.0
  %364 = vmatprep.subr.mxu0 0.0
  %365 = vmatpush1.xpose.msra.mxu0 0.0
  %366 = vmatprep.subr.mxu0 0.0
  %367 = vmatpush1.xpose.msra.mxu0 0.0
  %368 = vmatprep.subr.mxu0 0.0
  %369 = vmatpush1.xpose.msra.mxu0 0.0
  %370 = vmatprep.subr.mxu0 0.0
  %371 = vmatpush1.xpose.msra.mxu0 0.0
  %372 = vmatprep.subr.mxu0 0.0
  %373 = vmatpush1.xpose.msra.mxu0 0.0
  %374 = vmatprep.subr.mxu0 0.0
  %375 = vmatpush1.xpose.msra.mxu0 0.0
  %376 = vmatprep.subr.mxu0 0.0
  %377 = vmatpush1.xpose.msra.mxu0 0.0
  %378 = vmatprep.subr.mxu0 0.0
  %379 = vmatpush1.xpose.msra.mxu0 0.0
  %380 = vmatprep.subr.mxu0 0.0
  %381 = vmatpush1.xpose.msra.mxu0 0.0
  %382 = vmatprep.subr.mxu0 0.0
  %383 = vmatpush1.xpose.msra.mxu0 0.0
  %384 = vmatprep.subr.mxu0 0.0
  %385 = vmatpush1.xpose.msra.mxu0 0.0
  %386 = vmatprep.subr.mxu0 0.0
  %387 = vmatpush1.xpose.msra.mxu0 0.0
  %388 = vmatprep.subr.mxu0 0.0
  %389 = vmatpush1.xpose.msra.mxu0 0.0
  %390 = vmatprep.subr.mxu0 0.0
  %391 = vmatpush1.xpose.msra.mxu0 0.0
  %392 = vmatprep.subr.mxu0 0.0
  %393 = vmatpush1.xpose.msra.mxu0 0.0
  %394 = vmatprep.subr.mxu0 0.0
  %395 = vmatpush1.xpose.msra.mxu0 0.0
  %396 = vmatprep.subr.mxu0 0.0
  %397 = vmatpush1.xpose.msra.mxu0 0.0
  %398 = vmatprep.mubr.f32.mxu0 0.0
  %399 = vmatmul.mubr.f32.gmra.mrb[0].mxu0 %v330
  %v400 = vpop.f32.mrb[0].mxu0
  %v401 = vadd.f32 %v319, %v400
  %v402 = vpop.f32.mrb[0].mxu0
  %403 = vdwg.mxu0
  %405 = vrot.lane.b32.xlu0 %v311, 120
  %v406 = vpop.permute.xlu0 %405
  %v407 = vsel %vm329, %v311, 0
  %v409 = vsel %vm329, %v406, 0
  %411 = vmatprep.subr.mxu0 0.0
  %412 = vmatpush1.xpose.msra.mxu0 %v409
  %413 = vmatprep.subr.mxu0 0.0
  %414 = vmatpush1.xpose.msra.mxu0 0.0
  %415 = vmatprep.subr.mxu0 0.0
  %416 = vmatpush1.xpose.msra.mxu0 0.0
  %417 = vmatprep.subr.mxu0 0.0
  %418 = vmatpush1.xpose.msra.mxu0 0.0
  %419 = vmatprep.subr.mxu0 0.0
  %420 = vmatpush1.xpose.msra.mxu0 0.0
  %421 = vmatprep.subr.mxu0 0.0
  %422 = vmatpush1.xpose.msra.mxu0 0.0
  %423 = vmatprep.subr.mxu0 0.0
  %424 = vmatpush1.xpose.msra.mxu0 0.0
  %425 = vmatprep.subr.mxu0 0.0
  %426 = vmatpush1.xpose.msra.mxu0 0.0
  %427 = vmatprep.subr.mxu0 0.0
  %428 = vmatpush1.xpose.msra.mxu0 0.0
  %429 = vmatprep.subr.mxu0 0.0
  %430 = vmatpush1.xpose.msra.mxu0 0.0
  %431 = vmatprep.subr.mxu0 0.0
  %432 = vmatpush1.xpose.msra.mxu0 0.0
  %433 = vmatprep.subr.mxu0 0.0
  %434 = vmatpush1.xpose.msra.mxu0 0.0
  %435 = vmatprep.subr.mxu0 0.0
  %436 = vmatpush1.xpose.msra.mxu0 0.0
  %437 = vmatprep.subr.mxu0 0.0
  %438 = vmatpush1.xpose.msra.mxu0 0.0
  %439 = vmatprep.subr.mxu0 0.0
  %440 = vmatpush1.xpose.msra.mxu0 0.0
  %441 = vmatprep.subr.mxu0 0.0
  %442 = vmatpush1.xpose.msra.mxu0 0.0
  %443 = vmatprep.subr.mxu0 0.0
  %444 = vmatpush1.xpose.msra.mxu0 0.0
  %445 = vmatprep.subr.mxu0 0.0
  %446 = vmatpush1.xpose.msra.mxu0 0.0
  %447 = vmatprep.subr.mxu0 0.0
  %448 = vmatpush1.xpose.msra.mxu0 0.0
  %449 = vmatprep.subr.mxu0 0.0
  %450 = vmatpush1.xpose.msra.mxu0 0.0
  %451 = vmatprep.subr.mxu0 0.0
  %452 = vmatpush1.xpose.msra.mxu0 0.0
  %453 = vmatprep.subr.mxu0 0.0
  %454 = vmatpush1.xpose.msra.mxu0 0.0
  %455 = vmatprep.subr.mxu0 0.0
  %456 = vmatpush1.xpose.msra.mxu0 0.0
  %457 = vmatprep.subr.mxu0 0.0
  %458 = vmatpush1.xpose.msra.mxu0 0.0
  %459 = vmatprep.subr.mxu0 0.0
  %460 = vmatpush1.xpose.msra.mxu0 0.0
  %461 = vmatprep.subr.mxu0 0.0
  %462 = vmatpush1.xpose.msra.mxu0 0.0
  %463 = vmatprep.subr.mxu0 0.0
  %464 = vmatpush1.xpose.msra.mxu0 0.0
  %465 = vmatprep.subr.mxu0 0.0
  %466 = vmatpush1.xpose.msra.mxu0 0.0
  %467 = vmatprep.subr.mxu0 0.0
  %468 = vmatpush1.xpose.msra.mxu0 0.0
  %469 = vmatprep.subr.mxu0 0.0
  %470 = vmatpush1.xpose.msra.mxu0 0.0
  %471 = vmatprep.subr.mxu0 0.0
  %472 = vmatpush1.xpose.msra.mxu0 0.0
  %473 = vmatprep.subr.mxu0 0.0
  %474 = vmatpush1.xpose.msra.mxu0 0.0
  %475 = vmatprep.mubr.f32.mxu0 0.0
  %476 = vmatmul.mubr.f32.gmra.mrb[0].mxu0 %v407
  %v477 = vpop.f32.mrb[0].mxu0
  %v478 = vadd.f32 %v323, %v477
  %v479 = vpop.f32.mrb[0].mxu0
  %480 = vdwg.mxu0
  %v481 = vsel %vm183, %v401, -inf
  %482 = vmax.xlane.f32.xlu0 %v481
  %v483 = vpop.xlane.xlu0 %482
  %v484 = vsel %vm183, %v478, -inf
  %485 = vmax.xlane.f32.xlu0 %v484
  %v486 = vpop.xlane.xlu0 %485
  %v487 = vsub.f32 %v401, %v483
  %v488 = vsub.f32 %v478, %v486
  %v489 = vmul.f32 %v487, 1.442695
  %v490 = vpow.pop %v489
  %v491 = vmul.f32 %v488, 1.442695
  %v492 = vpow.pop %v491
  %v493 = vsel %vm183, %v490, 0.0
  %494 = vadd.xlane.f32.xlu0 %v493
  %v495 = vpop.xlane.xlu0 %494
  %v496 = vsel %vm183, %v492, 0.0
  %497 = vadd.xlane.f32.xlu0 %v496
  %v498 = vpop.xlane.xlu0 %497
  %v499 = vrcp.pop %v495
  %v500 = vrcp.pop %v498
  %v501 = vmul.f32 %v490, %v499
  %v502 = vmul.f32 %v492, %v500
  %503 = vrot.lane.b32.xlu0 %v306, 112
  %v504 = vpop.permute.xlu0 %503
  %v507 = vsel %vm183, %v501, 0
  %509 = vmatprep.subr.mxu0 0.0
  %510 = vmatpush1.msra.mxu0 %v504
  %511 = vmatprep.subr.mxu0 0.0
  %512 = vmatpush1.msra.mxu0 0.0
  %513 = vmatprep.subr.mxu0 0.0
  %514 = vmatpush1.msra.mxu0 0.0
  %515 = vmatprep.subr.mxu0 0.0
  %516 = vmatpush1.msra.mxu0 0.0
  %517 = vmatprep.subr.mxu0 0.0
  %518 = vmatpush1.msra.mxu0 0.0
  %519 = vmatprep.subr.mxu0 0.0
  %520 = vmatpush1.msra.mxu0 0.0
  %521 = vmatprep.subr.mxu0 0.0
  %522 = vmatpush1.msra.mxu0 0.0
  %523 = vmatprep.subr.mxu0 0.0
  %524 = vmatpush1.msra.mxu0 0.0
  %525 = vmatprep.subr.mxu0 0.0
  %526 = vmatpush1.msra.mxu0 0.0
  %527 = vmatprep.subr.mxu0 0.0
  %528 = vmatpush1.msra.mxu0 0.0
  %529 = vmatprep.subr.mxu0 0.0
  %530 = vmatpush1.msra.mxu0 0.0
  %531 = vmatprep.subr.mxu0 0.0
  %532 = vmatpush1.msra.mxu0 0.0
  %533 = vmatprep.subr.mxu0 0.0
  %534 = vmatpush1.msra.mxu0 0.0
  %535 = vmatprep.subr.mxu0 0.0
  %536 = vmatpush1.msra.mxu0 0.0
  %537 = vmatprep.subr.mxu0 0.0
  %538 = vmatpush1.msra.mxu0 0.0
  %539 = vmatprep.subr.mxu0 0.0
  %540 = vmatpush1.msra.mxu0 0.0
  %541 = vmatprep.subr.mxu0 0.0
  %542 = vmatpush1.msra.mxu0 0.0
  %543 = vmatprep.subr.mxu0 0.0
  %544 = vmatpush1.msra.mxu0 0.0
  %545 = vmatprep.subr.mxu0 0.0
  %546 = vmatpush1.msra.mxu0 0.0
  %547 = vmatprep.subr.mxu0 0.0
  %548 = vmatpush1.msra.mxu0 0.0
  %549 = vmatprep.subr.mxu0 0.0
  %550 = vmatpush1.msra.mxu0 0.0
  %551 = vmatprep.subr.mxu0 0.0
  %552 = vmatpush1.msra.mxu0 0.0
  %553 = vmatprep.subr.mxu0 0.0
  %554 = vmatpush1.msra.mxu0 0.0
  %555 = vmatprep.subr.mxu0 0.0
  %556 = vmatpush1.msra.mxu0 0.0
  %557 = vmatprep.subr.mxu0 0.0
  %558 = vmatpush1.msra.mxu0 0.0
  %559 = vmatprep.subr.mxu0 0.0
  %560 = vmatpush1.msra.mxu0 0.0
  %561 = vmatprep.subr.mxu0 0.0
  %562 = vmatpush1.msra.mxu0 0.0
  %563 = vmatprep.subr.mxu0 0.0
  %564 = vmatpush1.msra.mxu0 0.0
  %565 = vmatprep.subr.mxu0 0.0
  %566 = vmatpush1.msra.mxu0 0.0
  %567 = vmatprep.subr.mxu0 0.0
  %568 = vmatpush1.msra.mxu0 0.0
  %569 = vmatprep.subr.mxu0 0.0
  %570 = vmatpush1.msra.mxu0 0.0
  %571 = vmatprep.subr.mxu0 0.0
  %572 = vmatpush1.msra.mxu0 0.0
  %573 = vmatprep.mubr.f32.mxu0 0.0
  %574 = vmatmul.mubr.f32.gmra.mrb[0].mxu0 %v507
  %v575 = vpop.f32.mrb[0].mxu0
  %v576 = vadd.f32 0.0, %v575
  %v577 = vpop.f32.mrb[0].mxu0
  %578 = vdwg.mxu0
  %579 = vrot.lane.b32.xlu0 %v311, 112
  %v580 = vpop.permute.xlu0 %579
  %v583 = vsel %vm183, %v502, 0
  %585 = vmatprep.subr.mxu0 0.0
  %586 = vmatpush1.msra.mxu0 %v580
  %587 = vmatprep.subr.mxu0 0.0
  %588 = vmatpush1.msra.mxu0 0.0
  %589 = vmatprep.subr.mxu0 0.0
  %590 = vmatpush1.msra.mxu0 0.0
  %591 = vmatprep.subr.mxu0 0.0
  %592 = vmatpush1.msra.mxu0 0.0
  %593 = vmatprep.subr.mxu0 0.0
  %594 = vmatpush1.msra.mxu0 0.0
  %595 = vmatprep.subr.mxu0 0.0
  %596 = vmatpush1.msra.mxu0 0.0
  %597 = vmatprep.subr.mxu0 0.0
  %598 = vmatpush1.msra.mxu0 0.0
  %599 = vmatprep.subr.mxu0 0.0
  %600 = vmatpush1.msra.mxu0 0.0
  %601 = vmatprep.subr.mxu0 0.0
  %602 = vmatpush1.msra.mxu0 0.0
  %603 = vmatprep.subr.mxu0 0.0
  %604 = vmatpush1.msra.mxu0 0.0
  %605 = vmatprep.subr.mxu0 0.0
  %606 = vmatpush1.msra.mxu0 0.0
  %607 = vmatprep.subr.mxu0 0.0
  %608 = vmatpush1.msra.mxu0 0.0
  %609 = vmatprep.subr.mxu0 0.0
  %610 = vmatpush1.msra.mxu0 0.0
  %611 = vmatprep.subr.mxu0 0.0
  %612 = vmatpush1.msra.mxu0 0.0
  %613 = vmatprep.subr.mxu0 0.0
  %614 = vmatpush1.msra.mxu0 0.0
  %615 = vmatprep.subr.mxu0 0.0
  %616 = vmatpush1.msra.mxu0 0.0
  %617 = vmatprep.subr.mxu0 0.0
  %618 = vmatpush1.msra.mxu0 0.0
  %619 = vmatprep.subr.mxu0 0.0
  %620 = vmatpush1.msra.mxu0 0.0
  %621 = vmatprep.subr.mxu0 0.0
  %622 = vmatpush1.msra.mxu0 0.0
  %623 = vmatprep.subr.mxu0 0.0
  %624 = vmatpush1.msra.mxu0 0.0
  %625 = vmatprep.subr.mxu0 0.0
  %626 = vmatpush1.msra.mxu0 0.0
  %627 = vmatprep.subr.mxu0 0.0
  %628 = vmatpush1.msra.mxu0 0.0
  %629 = vmatprep.subr.mxu0 0.0
  %630 = vmatpush1.msra.mxu0 0.0
  %631 = vmatprep.subr.mxu0 0.0
  %632 = vmatpush1.msra.mxu0 0.0
  %633 = vmatprep.subr.mxu0 0.0
  %634 = vmatpush1.msra.mxu0 0.0
  %635 = vmatprep.subr.mxu0 0.0
  %636 = vmatpush1.msra.mxu0 0.0
  %637 = vmatprep.subr.mxu0 0.0
  %638 = vmatpush1.msra.mxu0 0.0
  %639 = vmatprep.subr.mxu0 0.0
  %640 = vmatpush1.msra.mxu0 0.0
  %641 = vmatprep.subr.mxu0 0.0
  %642 = vmatpush1.msra.mxu0 0.0
  %643 = vmatprep.subr.mxu0 0.0
  %644 = vmatpush1.msra.mxu0 0.0
  %645 = vmatprep.subr.mxu0 0.0
  %646 = vmatpush1.msra.mxu0 0.0
  %647 = vmatprep.subr.mxu0 0.0
  %648 = vmatpush1.msra.mxu0 0.0
  %649 = vmatprep.mubr.f32.mxu0 0.0
  %650 = vmatmul.mubr.f32.gmra.mrb[0].mxu0 %v583
  %v651 = vpop.f32.mrb[0].mxu0
  %v652 = vadd.f32 0.0, %v651
  %v653 = vpop.f32.mrb[0].mxu0
  %654 = vdwg.mxu0
  %v656 = vsel %vm329, %v576, 0
  %v659 = vsel %vm329, %v652, 0
  %vm661 = vcmask 1043456
  %v663 = vsel %vm661, %v51, 0
  %665 = vmatprep.subr.mxu0 0.0
  %666 = vmatpush1.msra.mxu0 %v663
  %667 = vmatprep.subr.mxu0 0.0
  %668 = vmatpush1.msra.mxu0 0.0
  %669 = vmatprep.subr.mxu0 0.0
  %670 = vmatpush1.msra.mxu0 0.0
  %671 = vmatprep.subr.mxu0 0.0
  %672 = vmatpush1.msra.mxu0 0.0
  %673 = vmatprep.subr.mxu0 0.0
  %674 = vmatpush1.msra.mxu0 0.0
  %675 = vmatprep.subr.mxu0 0.0
  %676 = vmatpush1.msra.mxu0 0.0
  %677 = vmatprep.subr.mxu0 0.0
  %678 = vmatpush1.msra.mxu0 0.0
  %679 = vmatprep.subr.mxu0 0.0
  %680 = vmatpush1.msra.mxu0 0.0
  %681 = vmatprep.subr.mxu0 0.0
  %682 = vmatpush1.msra.mxu0 0.0
  %683 = vmatprep.subr.mxu0 0.0
  %684 = vmatpush1.msra.mxu0 0.0
  %685 = vmatprep.subr.mxu0 0.0
  %686 = vmatpush1.msra.mxu0 0.0
  %687 = vmatprep.subr.mxu0 0.0
  %688 = vmatpush1.msra.mxu0 0.0
  %689 = vmatprep.subr.mxu0 0.0
  %690 = vmatpush1.msra.mxu0 0.0
  %691 = vmatprep.subr.mxu0 0.0
  %692 = vmatpush1.msra.mxu0 0.0
  %693 = vmatprep.subr.mxu0 0.0
  %694 = vmatpush1.msra.mxu0 0.0
  %695 = vmatprep.subr.mxu0 0.0
  %696 = vmatpush1.msra.mxu0 0.0
  %697 = vmatprep.subr.mxu0 0.0
  %698 = vmatpush1.msra.mxu0 0.0
  %699 = vmatprep.subr.mxu0 0.0
  %700 = vmatpush1.msra.mxu0 0.0
  %701 = vmatprep.subr.mxu0 0.0
  %702 = vmatpush1.msra.mxu0 0.0
  %703 = vmatprep.subr.mxu0 0.0
  %704 = vmatpush1.msra.mxu0 0.0
  %705 = vmatprep.subr.mxu0 0.0
  %706 = vmatpush1.msra.mxu0 0.0
  %707 = vmatprep.subr.mxu0 0.0
  %708 = vmatpush1.msra.mxu0 0.0
  %709 = vmatprep.subr.mxu0 0.0
  %710 = vmatpush1.msra.mxu0 0.0
  %711 = vmatprep.subr.mxu0 0.0
  %712 = vmatpush1.msra.mxu0 0.0
  %713 = vmatprep.subr.mxu0 0.0
  %714 = vmatpush1.msra.mxu0 0.0
  %715 = vmatprep.subr.mxu0 0.0
  %716 = vmatpush1.msra.mxu0 0.0
  %717 = vmatprep.subr.mxu0 0.0
  %718 = vmatpush1.msra.mxu0 0.0
  %719 = vmatprep.subr.mxu0 0.0
  %720 = vmatpush1.msra.mxu0 0.0
  %721 = vmatprep.subr.mxu0 0.0
  %722 = vmatpush1.msra.mxu0 0.0
  %723 = vmatprep.subr.mxu0 0.0
  %724 = vmatpush1.msra.mxu0 0.0
  %725 = vmatprep.subr.mxu0 0.0
  %726 = vmatpush1.msra.mxu0 0.0
  %727 = vmatprep.subr.mxu0 0.0
  %728 = vmatpush1.msra.mxu0 0.0
  %729 = vmatprep.mubr.f32.mxu0 0.0
  %730 = vmatmul.mubr.f32.gmra.mrb[0].mxu0 %v656
  %v731 = vpop.f32.mrb[0].mxu0
  %v732 = vadd.f32 0.0, %v731
  %v733 = vpop.f32.mrb[0].mxu0
  %734 = vmatprep.mubr.f32.mxu0 0.0
  %735 = vmatmul.mubr.f32.gmra.mrb[0].mxu0 %v659
  %v736 = vpop.f32.mrb[0].mxu0
  %v737 = vadd.f32 0.0, %v736
  %v738 = vpop.f32.mrb[0].mxu0
  %739 = vdwg.mxu0
  %v741 = vlaneseq
  %v742 = vshrl.u32 %v741, 7
  %v743 = vsub.s32 0, %v742
  %v744 = vrot.slane %v52, %v743
  %v746 = vadd.f32 %v744, %v732
  %v747 = vadd.f32 %v744, %v737
  %748 = vrot.lane.b32.xlu0 %v306, 124
  %v749 = vpop.permute.xlu0 %748
  %750 = vrot.lane.b32.xlu0 %v306, 116
  %v751 = vpop.permute.xlu0 %750
  %v752 = vsel %vm329, %v749, 0
  %v754 = vsel %vm329, %v751, 0
  %756 = vmatprep.subr.mxu0 0.0
  %757 = vmatpush1.xpose.msra.mxu0 %v754
  %758 = vmatprep.subr.mxu0 0.0
  %759 = vmatpush1.xpose.msra.mxu0 0.0
  %760 = vmatprep.subr.mxu0 0.0
  %761 = vmatpush1.xpose.msra.mxu0 0.0
  %762 = vmatprep.subr.mxu0 0.0
  %763 = vmatpush1.xpose.msra.mxu0 0.0
  %764 = vmatprep.subr.mxu0 0.0
  %765 = vmatpush1.xpose.msra.mxu0 0.0
  %766 = vmatprep.subr.mxu0 0.0
  %767 = vmatpush1.xpose.msra.mxu0 0.0
  %768 = vmatprep.subr.mxu0 0.0
  %769 = vmatpush1.xpose.msra.mxu0 0.0
  %770 = vmatprep.subr.mxu0 0.0
  %771 = vmatpush1.xpose.msra.mxu0 0.0
  %772 = vmatprep.subr.mxu0 0.0
  %773 = vmatpush1.xpose.msra.mxu0 0.0
  %774 = vmatprep.subr.mxu0 0.0
  %775 = vmatpush1.xpose.msra.mxu0 0.0
  %776 = vmatprep.subr.mxu0 0.0
  %777 = vmatpush1.xpose.msra.mxu0 0.0
  %778 = vmatprep.subr.mxu0 0.0
  %779 = vmatpush1.xpose.msra.mxu0 0.0
  %780 = vmatprep.subr.mxu0 0.0
  %781 = vmatpush1.xpose.msra.mxu0 0.0
  %782 = vmatprep.subr.mxu0 0.0
  %783 = vmatpush1.xpose.msra.mxu0 0.0
  %784 = vmatprep.subr.mxu0 0.0
  %785 = vmatpush1.xpose.msra.mxu0 0.0
  %786 = vmatprep.subr.mxu0 0.0
  %787 = vmatpush1.xpose.msra.mxu0 0.0
  %788 = vmatprep.subr.mxu0 0.0
  %789 = vmatpush1.xpose.msra.mxu0 0.0
  %790 = vmatprep.subr.mxu0 0.0
  %791 = vmatpush1.xpose.msra.mxu0 0.0
  %792 = vmatprep.subr.mxu0 0.0
  %793 = vmatpush1.xpose.msra.mxu0 0.0
  %794 = vmatprep.subr.mxu0 0.0
  %795 = vmatpush1.xpose.msra.mxu0 0.0
  %796 = vmatprep.subr.mxu0 0.0
  %797 = vmatpush1.xpose.msra.mxu0 0.0
  %798 = vmatprep.subr.mxu0 0.0
  %799 = vmatpush1.xpose.msra.mxu0 0.0
  %800 = vmatprep.subr.mxu0 0.0
  %801 = vmatpush1.xpose.msra.mxu0 0.0
  %802 = vmatprep.subr.mxu0 0.0
  %803 = vmatpush1.xpose.msra.mxu0 0.0
  %804 = vmatprep.subr.mxu0 0.0
  %805 = vmatpush1.xpose.msra.mxu0 0.0
  %806 = vmatprep.subr.mxu0 0.0
  %807 = vmatpush1.xpose.msra.mxu0 0.0
  %808 = vmatprep.subr.mxu0 0.0
  %809 = vmatpush1.xpose.msra.mxu0 0.0
  %810 = vmatprep.subr.mxu0 0.0
  %811 = vmatpush1.xpose.msra.mxu0 0.0
  %812 = vmatprep.subr.mxu0 0.0
  %813 = vmatpush1.xpose.msra.mxu0 0.0
  %814 = vmatprep.subr.mxu0 0.0
  %815 = vmatpush1.xpose.msra.mxu0 0.0
  %816 = vmatprep.subr.mxu0 0.0
  %817 = vmatpush1.xpose.msra.mxu0 0.0
  %818 = vmatprep.subr.mxu0 0.0
  %819 = vmatpush1.xpose.msra.mxu0 0.0
  %820 = vmatprep.mubr.f32.mxu0 0.0
  %821 = vmatmul.mubr.f32.gmra.mrb[0].mxu0 %v752
  %v822 = vpop.f32.mrb[0].mxu0
  %v823 = vadd.f32 %v319, %v822
  %v824 = vpop.f32.mrb[0].mxu0
  %825 = vdwg.mxu0
  %826 = vrot.lane.b32.xlu0 %v311, 124
  %v827 = vpop.permute.xlu0 %826
  %828 = vrot.lane.b32.xlu0 %v311, 116
  %v829 = vpop.permute.xlu0 %828
  %v830 = vsel %vm329, %v827, 0
  %v832 = vsel %vm329, %v829, 0
  %834 = vmatprep.subr.mxu0 0.0
  %835 = vmatpush1.xpose.msra.mxu0 %v832
  %836 = vmatprep.subr.mxu0 0.0
  %837 = vmatpush1.xpose.msra.mxu0 0.0
  %838 = vmatprep.subr.mxu0 0.0
  %839 = vmatpush1.xpose.msra.mxu0 0.0
  %840 = vmatprep.subr.mxu0 0.0
  %841 = vmatpush1.xpose.msra.mxu0 0.0
  %842 = vmatprep.subr.mxu0 0.0
  %843 = vmatpush1.xpose.msra.mxu0 0.0
  %844 = vmatprep.subr.mxu0 0.0
  %845 = vmatpush1.xpose.msra.mxu0 0.0
  %846 = vmatprep.subr.mxu0 0.0
  %847 = vmatpush1.xpose.msra.mxu0 0.0
  %848 = vmatprep.subr.mxu0 0.0
  %849 = vmatpush1.xpose.msra.mxu0 0.0
  %850 = vmatprep.subr.mxu0 0.0
  %851 = vmatpush1.xpose.msra.mxu0 0.0
  %852 = vmatprep.subr.mxu0 0.0
  %853 = vmatpush1.xpose.msra.mxu0 0.0
  %854 = vmatprep.subr.mxu0 0.0
  %855 = vmatpush1.xpose.msra.mxu0 0.0
  %856 = vmatprep.subr.mxu0 0.0
  %857 = vmatpush1.xpose.msra.mxu0 0.0
  %858 = vmatprep.subr.mxu0 0.0
  %859 = vmatpush1.xpose.msra.mxu0 0.0
  %860 = vmatprep.subr.mxu0 0.0
  %861 = vmatpush1.xpose.msra.mxu0 0.0
  %862 = vmatprep.subr.mxu0 0.0
  %863 = vmatpush1.xpose.msra.mxu0 0.0
  %864 = vmatprep.subr.mxu0 0.0
  %865 = vmatpush1.xpose.msra.mxu0 0.0
  %866 = vmatprep.subr.mxu0 0.0
  %867 = vmatpush1.xpose.msra.mxu0 0.0
  %868 = vmatprep.subr.mxu0 0.0
  %869 = vmatpush1.xpose.msra.mxu0 0.0
  %870 = vmatprep.subr.mxu0 0.0
  %871 = vmatpush1.xpose.msra.mxu0 0.0
  %872 = vmatprep.subr.mxu0 0.0
  %873 = vmatpush1.xpose.msra.mxu0 0.0
  %874 = vmatprep.subr.mxu0 0.0
  %875 = vmatpush1.xpose.msra.mxu0 0.0
  %876 = vmatprep.subr.mxu0 0.0
  %877 = vmatpush1.xpose.msra.mxu0 0.0
  %878 = vmatprep.subr.mxu0 0.0
  %879 = vmatpush1.xpose.msra.mxu0 0.0
  %880 = vmatprep.subr.mxu0 0.0
  %881 = vmatpush1.xpose.msra.mxu0 0.0
  %882 = vmatprep.subr.mxu0 0.0
  %883 = vmatpush1.xpose.msra.mxu0 0.0
  %884 = vmatprep.subr.mxu0 0.0
  %885 = vmatpush1.xpose.msra.mxu0 0.0
  %886 = vmatprep.subr.mxu0 0.0
  %887 = vmatpush1.xpose.msra.mxu0 0.0
  %888 = vmatprep.subr.mxu0 0.0
  %889 = vmatpush1.xpose.msra.mxu0 0.0
  %890 = vmatprep.subr.mxu0 0.0
  %891 = vmatpush1.xpose.msra.mxu0 0.0
  %892 = vmatprep.subr.mxu0 0.0
  %893 = vmatpush1.xpose.msra.mxu0 0.0
  %894 = vmatprep.subr.mxu0 0.0
  %895 = vmatpush1.xpose.msra.mxu0 0.0
  %896 = vmatprep.subr.mxu0 0.0
  %897 = vmatpush1.xpose.msra.mxu0 0.0
  %898 = vmatprep.mubr.f32.mxu0 0.0
  %899 = vmatmul.mubr.f32.gmra.mrb[0].mxu0 %v830
  %v900 = vpop.f32.mrb[0].mxu0
  %v901 = vadd.f32 %v323, %v900
  %v902 = vpop.f32.mrb[0].mxu0
  %903 = vdwg.mxu0
  %v904 = vsel %vm183, %v823, -inf
  %905 = vmax.xlane.f32.xlu0 %v904
  %v906 = vpop.xlane.xlu0 %905
  %v907 = vsel %vm183, %v901, -inf
  %908 = vmax.xlane.f32.xlu0 %v907
  %v909 = vpop.xlane.xlu0 %908
  %v910 = vsub.f32 %v823, %v906
  %v911 = vsub.f32 %v901, %v909
  %v912 = vmul.f32 %v910, 1.442695
  %v913 = vpow.pop %v912
  %v914 = vmul.f32 %v911, 1.442695
  %v915 = vpow.pop %v914
  %v916 = vsel %vm183, %v913, 0.0
  %917 = vadd.xlane.f32.xlu0 %v916
  %v918 = vpop.xlane.xlu0 %917
  %v919 = vsel %vm183, %v915, 0.0
  %920 = vadd.xlane.f32.xlu0 %v919
  %v921 = vpop.xlane.xlu0 %920
  %v922 = vrcp.pop %v918
  %v923 = vrcp.pop %v921
  %v924 = vmul.f32 %v913, %v922
  %v925 = vmul.f32 %v915, %v923
  %926 = vrot.lane.b32.xlu0 %v306, 108
  %v927 = vpop.permute.xlu0 %926
  %v930 = vsel %vm183, %v924, 0
  %932 = vmatprep.subr.mxu0 0.0
  %933 = vmatpush1.msra.mxu0 %v927
  %934 = vmatprep.subr.mxu0 0.0
  %935 = vmatpush1.msra.mxu0 0.0
  %936 = vmatprep.subr.mxu0 0.0
  %937 = vmatpush1.msra.mxu0 0.0
  %938 = vmatprep.subr.mxu0 0.0
  %939 = vmatpush1.msra.mxu0 0.0
  %940 = vmatprep.subr.mxu0 0.0
  %941 = vmatpush1.msra.mxu0 0.0
  %942 = vmatprep.subr.mxu0 0.0
  %943 = vmatpush1.msra.mxu0 0.0
  %944 = vmatprep.subr.mxu0 0.0
  %945 = vmatpush1.msra.mxu0 0.0
  %946 = vmatprep.subr.mxu0 0.0
  %947 = vmatpush1.msra.mxu0 0.0
  %948 = vmatprep.subr.mxu0 0.0
  %949 = vmatpush1.msra.mxu0 0.0
  %950 = vmatprep.subr.mxu0 0.0
  %951 = vmatpush1.msra.mxu0 0.0
  %952 = vmatprep.subr.mxu0 0.0
  %953 = vmatpush1.msra.mxu0 0.0
  %954 = vmatprep.subr.mxu0 0.0
  %955 = vmatpush1.msra.mxu0 0.0
  %956 = vmatprep.subr.mxu0 0.0
  %957 = vmatpush1.msra.mxu0 0.0
  %958 = vmatprep.subr.mxu0 0.0
  %959 = vmatpush1.msra.mxu0 0.0
  %960 = vmatprep.subr.mxu0 0.0
  %961 = vmatpush1.msra.mxu0 0.0
  %962 = vmatprep.subr.mxu0 0.0
  %963 = vmatpush1.msra.mxu0 0.0
  %964 = vmatprep.subr.mxu0 0.0
  %965 = vmatpush1.msra.mxu0 0.0
  %966 = vmatprep.subr.mxu0 0.0
  %967 = vmatpush1.msra.mxu0 0.0
  %968 = vmatprep.subr.mxu0 0.0
  %969 = vmatpush1.msra.mxu0 0.0
  %970 = vmatprep.subr.mxu0 0.0
  %971 = vmatpush1.msra.mxu0 0.0
  %972 = vmatprep.subr.mxu0 0.0
  %973 = vmatpush1.msra.mxu0 0.0
  %974 = vmatprep.subr.mxu0 0.0
  %975 = vmatpush1.msra.mxu0 0.0
  %976 = vmatprep.subr.mxu0 0.0
  %977 = vmatpush1.msra.mxu0 0.0
  %978 = vmatprep.subr.mxu0 0.0
  %979 = vmatpush1.msra.mxu0 0.0
  %980 = vmatprep.subr.mxu0 0.0
  %981 = vmatpush1.msra.mxu0 0.0
  %982 = vmatprep.subr.mxu0 0.0
  %983 = vmatpush1.msra.mxu0 0.0
  %984 = vmatprep.subr.mxu0 0.0
  %985 = vmatpush1.msra.mxu0 0.0
  %986 = vmatprep.subr.mxu0 0.0
  %987 = vmatpush1.msra.mxu0 0.0
  %988 = vmatprep.subr.mxu0 0.0
  %989 = vmatpush1.msra.mxu0 0.0
  %990 = vmatprep.subr.mxu0 0.0
  %991 = vmatpush1.msra.mxu0 0.0
  %992 = vmatprep.subr.mxu0 0.0
  %993 = vmatpush1.msra.mxu0 0.0
  %994 = vmatprep.subr.mxu0 0.0
  %995 = vmatpush1.msra.mxu0 0.0
  %996 = vmatprep.mubr.f32.mxu0 0.0
  %997 = vmatmul.mubr.f32.gmra.mrb[0].mxu0 %v930
  %v998 = vpop.f32.mrb[0].mxu0
  %v999 = vadd.f32 0.0, %v998
  %v1000 = vpop.f32.mrb[0].mxu0
  %1001 = vdwg.mxu0
  %1002 = vrot.lane.b32.xlu0 %v311, 108
  %v1003 = vpop.permute.xlu0 %1002
  %v1006 = vsel %vm183, %v925, 0
  %1008 = vmatprep.subr.mxu0 0.0
  %1009 = vmatpush1.msra.mxu0 %v1003
  %1010 = vmatprep.subr.mxu0 0.0
  %1011 = vmatpush1.msra.mxu0 0.0
  %1012 = vmatprep.subr.mxu0 0.0
  %1013 = vmatpush1.msra.mxu0 0.0
  %1014 = vmatprep.subr.mxu0 0.0
  %1015 = vmatpush1.msra.mxu0 0.0
  %1016 = vmatprep.subr.mxu0 0.0
  %1017 = vmatpush1.msra.mxu0 0.0
  %1018 = vmatprep.subr.mxu0 0.0
  %1019 = vmatpush1.msra.mxu0 0.0
  %1020 = vmatprep.subr.mxu0 0.0
  %1021 = vmatpush1.msra.mxu0 0.0
  %1022 = vmatprep.subr.mxu0 0.0
  %1023 = vmatpush1.msra.mxu0 0.0
  %1024 = vmatprep.subr.mxu0 0.0
  %1025 = vmatpush1.msra.mxu0 0.0
  %1026 = vmatprep.subr.mxu0 0.0
  %1027 = vmatpush1.msra.mxu0 0.0
  %1028 = vmatprep.subr.mxu0 0.0
  %1029 = vmatpush1.msra.mxu0 0.0
  %1030 = vmatprep.subr.mxu0 0.0
  %1031 = vmatpush1.msra.mxu0 0.0
  %1032 = vmatprep.subr.mxu0 0.0
  %1033 = vmatpush1.msra.mxu0 0.0
  %1034 = vmatprep.subr.mxu0 0.0
  %1035 = vmatpush1.msra.mxu0 0.0
  %1036 = vmatprep.subr.mxu0 0.0
  %1037 = vmatpush1.msra.mxu0 0.0
  %1038 = vmatprep.subr.mxu0 0.0
  %1039 = vmatpush1.msra.mxu0 0.0
  %1040 = vmatprep.subr.mxu0 0.0
  %1041 = vmatpush1.msra.mxu0 0.0
  %1042 = vmatprep.subr.mxu0 0.0
  %1043 = vmatpush1.msra.mxu0 0.0
  %1044 = vmatprep.subr.mxu0 0.0
  %1045 = vmatpush1.msra.mxu0 0.0
  %1046 = vmatprep.subr.mxu0 0.0
  %1047 = vmatpush1.msra.mxu0 0.0
  %1048 = vmatprep.subr.mxu0 0.0
  %1049 = vmatpush1.msra.mxu0 0.0
  %1050 = vmatprep.subr.mxu0 0.0
  %1051 = vmatpush1.msra.mxu0 0.0
  %1052 = vmatprep.subr.mxu0 0.0
  %1053 = vmatpush1.msra.mxu0 0.0
  %1054 = vmatprep.subr.mxu0 0.0
  %1055 = vmatpush1.msra.mxu0 0.0
  %1056 = vmatprep.subr.mxu0 0.0
  %1057 = vmatpush1.msra.mxu0 0.0
  %1058 = vmatprep.subr.mxu0 0.0
  %1059 = vmatpush1.msra.mxu0 0.0
  %1060 = vmatprep.subr.mxu0 0.0
  %1061 = vmatpush1.msra.mxu0 0.0
  %1062 = vmatprep.subr.mxu0 0.0
  %1063 = vmatpush1.msra.mxu0 0.0
  %1064 = vmatprep.subr.mxu0 0.0
  %1065 = vmatpush1.msra.mxu0 0.0
  %1066 = vmatprep.subr.mxu0 0.0
  %1067 = vmatpush1.msra.mxu0 0.0
  %1068 = vmatprep.subr.mxu0 0.0
  %1069 = vmatpush1.msra.mxu0 0.0
  %1070 = vmatprep.subr.mxu0 0.0
  %1071 = vmatpush1.msra.mxu0 0.0
  %1072 = vmatprep.mubr.f32.mxu0 0.0
  %1073 = vmatmul.mubr.f32.gmra.mrb[0].mxu0 %v1006
  %v1074 = vpop.f32.mrb[0].mxu0
  %v1075 = vadd.f32 0.0, %v1074
  %v1076 = vpop.f32.mrb[0].mxu0
  %1077 = vdwg.mxu0
  %v1078 = vrot.slane %v51, 4
  %v1080 = vsel %vm329, %v999, 0
  %v1083 = vsel %vm329, %v1075, 0
  %v1085 = vsel %vm661, %v1078, 0
  %1087 = vmatprep.subr.mxu0 0.0
  %1088 = vmatpush1.msra.mxu0 %v1085
  %1089 = vmatprep.subr.mxu0 0.0
  %1090 = vmatpush1.msra.mxu0 0.0
  %1091 = vmatprep.subr.mxu0 0.0
  %1092 = vmatpush1.msra.mxu0 0.0
  %1093 = vmatprep.subr.mxu0 0.0
  %1094 = vmatpush1.msra.mxu0 0.0
  %1095 = vmatprep.subr.mxu0 0.0
  %1096 = vmatpush1.msra.mxu0 0.0
  %1097 = vmatprep.subr.mxu0 0.0
  %1098 = vmatpush1.msra.mxu0 0.0
  %1099 = vmatprep.subr.mxu0 0.0
  %1100 = vmatpush1.msra.mxu0 0.0
  %1101 = vmatprep.subr.mxu0 0.0
  %1102 = vmatpush1.msra.mxu0 0.0
  %1103 = vmatprep.subr.mxu0 0.0
  %1104 = vmatpush1.msra.mxu0 0.0
  %1105 = vmatprep.subr.mxu0 0.0
  %1106 = vmatpush1.msra.mxu0 0.0
  %1107 = vmatprep.subr.mxu0 0.0
  %1108 = vmatpush1.msra.mxu0 0.0
  %1109 = vmatprep.subr.mxu0 0.0
  %1110 = vmatpush1.msra.mxu0 0.0
  %1111 = vmatprep.subr.mxu0 0.0
  %1112 = vmatpush1.msra.mxu0 0.0
  %1113 = vmatprep.subr.mxu0 0.0
  %1114 = vmatpush1.msra.mxu0 0.0
  %1115 = vmatprep.subr.mxu0 0.0
  %1116 = vmatpush1.msra.mxu0 0.0
  %1117 = vmatprep.subr.mxu0 0.0
  %1118 = vmatpush1.msra.mxu0 0.0
  %1119 = vmatprep.subr.mxu0 0.0
  %1120 = vmatpush1.msra.mxu0 0.0
  %1121 = vmatprep.subr.mxu0 0.0
  %1122 = vmatpush1.msra.mxu0 0.0
  %1123 = vmatprep.subr.mxu0 0.0
  %1124 = vmatpush1.msra.mxu0 0.0
  %1125 = vmatprep.subr.mxu0 0.0
  %1126 = vmatpush1.msra.mxu0 0.0
  %1127 = vmatprep.subr.mxu0 0.0
  %1128 = vmatpush1.msra.mxu0 0.0
  %1129 = vmatprep.subr.mxu0 0.0
  %1130 = vmatpush1.msra.mxu0 0.0
  %1131 = vmatprep.subr.mxu0 0.0
  %1132 = vmatpush1.msra.mxu0 0.0
  %1133 = vmatprep.subr.mxu0 0.0
  %1134 = vmatpush1.msra.mxu0 0.0
  %1135 = vmatprep.subr.mxu0 0.0
  %1136 = vmatpush1.msra.mxu0 0.0
  %1137 = vmatprep.subr.mxu0 0.0
  %1138 = vmatpush1.msra.mxu0 0.0
  %1139 = vmatprep.subr.mxu0 0.0
  %1140 = vmatpush1.msra.mxu0 0.0
  %1141 = vmatprep.subr.mxu0 0.0
  %1142 = vmatpush1.msra.mxu0 0.0
  %1143 = vmatprep.subr.mxu0 0.0
  %1144 = vmatpush1.msra.mxu0 0.0
  %1145 = vmatprep.subr.mxu0 0.0
  %1146 = vmatpush1.msra.mxu0 0.0
  %1147 = vmatprep.subr.mxu0 0.0
  %1148 = vmatpush1.msra.mxu0 0.0
  %1149 = vmatprep.subr.mxu0 0.0
  %1150 = vmatpush1.msra.mxu0 0.0
  %1151 = vmatprep.mubr.f32.mxu0 0.0
  %1152 = vmatmul.mubr.f32.gmra.mrb[0].mxu0 %v1080
  %v1153 = vpop.f32.mrb[0].mxu0
  %v1154 = vadd.f32 0.0, %v1153
  %v1155 = vpop.f32.mrb[0].mxu0
  %1156 = vmatprep.mubr.f32.mxu0 0.0
  %1157 = vmatmul.mubr.f32.gmra.mrb[0].mxu0 %v1083
  %v1158 = vpop.f32.mrb[0].mxu0
  %v1159 = vadd.f32 0.0, %v1158
  %v1160 = vpop.f32.mrb[0].mxu0
  %1161 = vdwg.mxu0
  %v1162 = vadd.f32 %v746, %v1154
  %v1163 = vadd.f32 %v747, %v1159
  %v1164 = vadd.f32 %v179, %v1162
  %v1165 = vadd.f32 %v180, %v1163
  %v1166 = vsel %vm183, %v1164, 0.0
  %1167 = vadd.xlane.f32.xlu0 %v1166
  %v1168 = vpop.xlane.xlu0 %1167
  %v1169 = vsel %vm183, %v1165, 0.0
  %1170 = vadd.xlane.f32.xlu0 %v1169
  %v1171 = vpop.xlane.xlu0 %1170
  %v1172 = vmul.f32 %v1168, %v190
  %v1173 = vmul.f32 %v1171, %v190
  %v1174 = vsub.f32 %v1164, %v1172
  %v1175 = vsub.f32 %v1165, %v1173
  %v1176 = vmul.f32 %v1174, %v1174
  %v1177 = vmul.f32 %v1175, %v1175
  %v1178 = vsel %vm183, %v1176, 0.0
  %1179 = vadd.xlane.f32.xlu0 %v1178
  %v1180 = vpop.xlane.xlu0 %1179
  %v1181 = vsel %vm183, %v1177, 0.0
  %1182 = vadd.xlane.f32.xlu0 %v1181
  %v1183 = vpop.xlane.xlu0 %1182
  %v1184 = vmul.f32 %v1180, %v190
  %v1185 = vmul.f32 %v1183, %v190
  %v1186 = vadd.f32 %v1184, 1e-05
  %v1187 = vadd.f32 %v1185, 1e-05
  %v1188 = vrsqrt.pop %v1186
  %v1189 = vrsqrt.pop %v1187
  %v1190 = vmul.f32 %v1174, %v1188
  %v1191 = vmul.f32 %v1175, %v1189
  %v1193 = vlaneseq
  %v1194 = vshrl.u32 %v1193, 7
  %v1195 = vsub.s32 0, %v1194
  %v1196 = vrot.slane %v53, %v1195
  %v1198 = vmul.f32 %v1190, %v1196
  %v1199 = vmul.f32 %v1191, %v1196
  %v1201 = vlaneseq
  %v1202 = vshrl.u32 %v1201, 7
  %v1203 = vsub.s32 0, %v1202
  %v1204 = vrot.slane %v54, %v1203
  %v1206 = vadd.f32 %v1198, %v1204
  %v1207 = vadd.f32 %v1199, %v1204
  %v1209 = vlaneseq
  %v1210 = vshrl.u32 %v1209, 7
  %v1211 = vsub.s32 0, %v1210
  %v1212 = vrot.slane %v56, %v1211
  %v1215 = vsel %vm183, %v1206, 0
  %v1218 = vsel %vm183, %v1207, 0
  %1220 = vmatprep.subr.mxu0 0.0
  %1221 = vmatpush1.msra.mxu0 %v55
  %1222 = vmatprep.subr.mxu0 0.0
  %1223 = vmatpush1.msra.mxu0 0.0
  %1224 = vmatprep.subr.mxu0 0.0
  %1225 = vmatpush1.msra.mxu0 0.0
  %1226 = vmatprep.subr.mxu0 0.0
  %1227 = vmatpush1.msra.mxu0 0.0
  %1228 = vmatprep.subr.mxu0 0.0
  %1229 = vmatpush1.msra.mxu0 0.0
  %1230 = vmatprep.subr.mxu0 0.0
  %1231 = vmatpush1.msra.mxu0 0.0
  %1232 = vmatprep.subr.mxu0 0.0
  %1233 = vmatpush1.msra.mxu0 0.0
  %1234 = vmatprep.subr.mxu0 0.0
  %1235 = vmatpush1.msra.mxu0 0.0
  %1236 = vmatprep.subr.mxu0 0.0
  %1237 = vmatpush1.msra.mxu0 0.0
  %1238 = vmatprep.subr.mxu0 0.0
  %1239 = vmatpush1.msra.mxu0 0.0
  %1240 = vmatprep.subr.mxu0 0.0
  %1241 = vmatpush1.msra.mxu0 0.0
  %1242 = vmatprep.subr.mxu0 0.0
  %1243 = vmatpush1.msra.mxu0 0.0
  %1244 = vmatprep.subr.mxu0 0.0
  %1245 = vmatpush1.msra.mxu0 0.0
  %1246 = vmatprep.subr.mxu0 0.0
  %1247 = vmatpush1.msra.mxu0 0.0
  %1248 = vmatprep.subr.mxu0 0.0
  %1249 = vmatpush1.msra.mxu0 0.0
  %1250 = vmatprep.subr.mxu0 0.0
  %1251 = vmatpush1.msra.mxu0 0.0
  %1252 = vmatprep.subr.mxu0 0.0
  %1253 = vmatpush1.msra.mxu0 0.0
  %1254 = vmatprep.subr.mxu0 0.0
  %1255 = vmatpush1.msra.mxu0 0.0
  %1256 = vmatprep.subr.mxu0 0.0
  %1257 = vmatpush1.msra.mxu0 0.0
  %1258 = vmatprep.subr.mxu0 0.0
  %1259 = vmatpush1.msra.mxu0 0.0
  %1260 = vmatprep.subr.mxu0 0.0
  %1261 = vmatpush1.msra.mxu0 0.0
  %1262 = vmatprep.subr.mxu0 0.0
  %1263 = vmatpush1.msra.mxu0 0.0
  %1264 = vmatprep.subr.mxu0 0.0
  %1265 = vmatpush1.msra.mxu0 0.0
  %1266 = vmatprep.subr.mxu0 0.0
  %1267 = vmatpush1.msra.mxu0 0.0
  %1268 = vmatprep.subr.mxu0 0.0
  %1269 = vmatpush1.msra.mxu0 0.0
  %1270 = vmatprep.subr.mxu0 0.0
  %1271 = vmatpush1.msra.mxu0 0.0
  %1272 = vmatprep.subr.mxu0 0.0
  %1273 = vmatpush1.msra.mxu0 0.0
  %1274 = vmatprep.subr.mxu0 0.0
  %1275 = vmatpush1.msra.mxu0 0.0
  %1276 = vmatprep.subr.mxu0 0.0
  %1277 = vmatpush1.msra.mxu0 0.0
  %1278 = vmatprep.subr.mxu0 0.0
  %1279 = vmatpush1.msra.mxu0 0.0
  %1280 = vmatprep.subr.mxu0 0.0
  %1281 = vmatpush1.msra.mxu0 0.0
  %1282 = vmatprep.subr.mxu0 0.0
  %1283 = vmatpush1.msra.mxu0 0.0
  %1284 = vmatprep.mubr.f32.mxu0 0.0
  %1285 = vmatmul.mubr.f32.gmra.mrb[0].mxu0 %v1215
  %v1286 = vpop.f32.mrb[0].mxu0
  %v1287 = vadd.f32 %v1212, %v1286
  %v1288 = vpop.f32.mrb[0].mxu0
  %1289 = vmatprep.mubr.f32.mxu0 0.0
  %1290 = vmatmul.mubr.f32.gmra.mrb[0].mxu0 %v1218
  %v1291 = vpop.f32.mrb[0].mxu0
  %v1292 = vadd.f32 %v1212, %v1291
  %v1293 = vpop.f32.mrb[0].mxu0
  %1294 = vdwg.mxu0
  %v1295 = vmax.f32 %v1287, 0.0
  %v1296 = vmax.f32 %v1292, 0.0
  %v1298 = vsel %vm183, %v1295, 0
  %v1301 = vsel %vm183, %v1296, 0
  %1303 = vmatprep.subr.mxu0 0.0
  %1304 = vmatpush1.msra.mxu0 %v57
  %1305 = vmatprep.subr.mxu0 0.0
  %1306 = vmatpush1.msra.mxu0 0.0
  %1307 = vmatprep.subr.mxu0 0.0
  %1308 = vmatpush1.msra.mxu0 0.0
  %1309 = vmatprep.subr.mxu0 0.0
  %1310 = vmatpush1.msra.mxu0 0.0
  %1311 = vmatprep.subr.mxu0 0.0
  %1312 = vmatpush1.msra.mxu0 0.0
  %1313 = vmatprep.subr.mxu0 0.0
  %1314 = vmatpush1.msra.mxu0 0.0
  %1315 = vmatprep.subr.mxu0 0.0
  %1316 = vmatpush1.msra.mxu0 0.0
  %1317 = vmatprep.subr.mxu0 0.0
  %1318 = vmatpush1.msra.mxu0 0.0
  %1319 = vmatprep.subr.mxu0 0.0
  %1320 = vmatpush1.msra.mxu0 0.0
  %1321 = vmatprep.subr.mxu0 0.0
  %1322 = vmatpush1.msra.mxu0 0.0
  %1323 = vmatprep.subr.mxu0 0.0
  %1324 = vmatpush1.msra.mxu0 0.0
  %1325 = vmatprep.subr.mxu0 0.0
  %1326 = vmatpush1.msra.mxu0 0.0
  %1327 = vmatprep.subr.mxu0 0.0
  %1328 = vmatpush1.msra.mxu0 0.0
  %1329 = vmatprep.subr.mxu0 0.0
  %1330 = vmatpush1.msra.mxu0 0.0
  %1331 = vmatprep.subr.mxu0 0.0
  %1332 = vmatpush1.msra.mxu0 0.0
  %1333 = vmatprep.subr.mxu0 0.0
  %1334 = vmatpush1.msra.mxu0 0.0
  %1335 = vmatprep.subr.mxu0 0.0
  %1336 = vmatpush1.msra.mxu0 0.0
  %1337 = vmatprep.subr.mxu0 0.0
  %1338 = vmatpush1.msra.mxu0 0.0
  %1339 = vmatprep.subr.mxu0 0.0
  %1340 = vmatpush1.msra.mxu0 0.0
  %1341 = vmatprep.subr.mxu0 0.0
  %1342 = vmatpush1.msra.mxu0 0.0
  %1343 = vmatprep.subr.mxu0 0.0
  %1344 = vmatpush1.msra.mxu0 0.0
  %1345 = vmatprep.subr.mxu0 0.0
  %1346 = vmatpush1.msra.mxu0 0.0
  %1347 = vmatprep.subr.mxu0 0.0
  %1348 = vmatpush1.msra.mxu0 0.0
  %1349 = vmatprep.subr.mxu0 0.0
  %1350 = vmatpush1.msra.mxu0 0.0
  %1351 = vmatprep.subr.mxu0 0.0
  %1352 = vmatpush1.msra.mxu0 0.0
  %1353 = vmatprep.subr.mxu0 0.0
  %1354 = vmatpush1.msra.mxu0 0.0
  %1355 = vmatprep.subr.mxu0 0.0
  %1356 = vmatpush1.msra.mxu0 0.0
  %1357 = vmatprep.subr.mxu0 0.0
  %1358 = vmatpush1.msra.mxu0 0.0
  %1359 = vmatprep.subr.mxu0 0.0
  %1360 = vmatpush1.msra.mxu0 0.0
  %1361 = vmatprep.subr.mxu0 0.0
  %1362 = vmatpush1.msra.mxu0 0.0
  %1363 = vmatprep.subr.mxu0 0.0
  %1364 = vmatpush1.msra.mxu0 0.0
  %1365 = vmatprep.subr.mxu0 0.0
  %1366 = vmatpush1.msra.mxu0 0.0
  %1367 = vmatprep.mubr.f32.mxu0 0.0
  %1368 = vmatmul.mubr.f32.gmra.mrb[0].mxu0 %v1298
  %v1369 = vpop.f32.mrb[0].mxu0
  %v1370 = vadd.f32 0.0, %v1369
  %v1371 = vpop.f32.mrb[0].mxu0
  %1372 = vmatprep.mubr.f32.mxu0 0.0
  %1373 = vmatmul.mubr.f32.gmra.mrb[0].mxu0 %v1301
  %v1374 = vpop.f32.mrb[0].mxu0
  %v1375 = vadd.f32 0.0, %v1374
  %v1376 = vpop.f32.mrb[0].mxu0
  %1377 = vdwg.mxu0
  %v1378 = vadd.f32 %v1164, %v1370
  %v1379 = vadd.f32 %v1165, %v1375
  %v1381 = vlaneseq
  %v1382 = vshrl.u32 %v1381, 7
  %v1383 = vsub.s32 0, %v1382
  %v1384 = vrot.slane %v58, %v1383
  %v1386 = vadd.f32 %v1378, %v1384
  %v1387 = vadd.f32 %v1379, %v1384
  %v1388 = vsel %vm183, %v1386, 0.0
  %1389 = vadd.xlane.f32.xlu0 %v1388
  %v1390 = vpop.xlane.xlu0 %1389
  %v1391 = vsel %vm183, %v1387, 0.0
  %1392 = vadd.xlane.f32.xlu0 %v1391
  %v1393 = vpop.xlane.xlu0 %1392
  %v1394 = vmul.f32 %v1390, %v190
  %v1395 = vmul.f32 %v1393, %v190
  %v1396 = vsub.f32 %v1386, %v1394
  %v1397 = vsub.f32 %v1387, %v1395
  %v1398 = vmul.f32 %v1396, %v1396
  %v1399 = vmul.f32 %v1397, %v1397
  %v1400 = vsel %vm183, %v1398, 0.0
  %1401 = vadd.xlane.f32.xlu0 %v1400
  %v1402 = vpop.xlane.xlu0 %1401
  %v1403 = vsel %vm183, %v1399, 0.0
  %1404 = vadd.xlane.f32.xlu0 %v1403
  %v1405 = vpop.xlane.xlu0 %1404
  %v1406 = vmul.f32 %v1402, %v190
  %v1407 = vmul.f32 %v1405, %v190
  %v1408 = vadd.f32 %v1406, 1e-05
  %v1409 = vadd.f32 %v1407, 1e-05
  %v1410 = vrsqrt.pop %v1408
  %v1411 = vrsqrt.pop %v1409
  %v1412 = vmul.f32 %v1396, %v1410
  %v1413 = vmul.f32 %v1397, %v1411
  %v1415 = vlaneseq
  %v1416 = vshrl.u32 %v1415, 7
  %v1417 = vsub.s32 0, %v1416
  %v1418 = vrot.slane %v60, %v1417
  %v1420 = vmul.f32 %v1412, %v1418
  %v1421 = vmul.f32 %v1413, %v1418
  %v1423 = vlaneseq
  %v1424 = vshrl.u32 %v1423, 7
  %v1425 = vsub.s32 0, %v1424
  %v1426 = vrot.slane %v62, %v1425
  %v1428 = vadd.f32 %v1420, %v1426
  %v1429 = vadd.f32 %v1421, %v1426
  %v1431 = vlaneseq
  %v1432 = vshrl.u32 %v1431, 7
  %v1433 = vsub.s32 0, %v1432
  %v1434 = vrot.slane %v66, %v1433
  %v1437 = vsel %vm183, %v1428, 0
  %v1440 = vsel %vm183, %v1429, 0
  %1442 = vmatprep.subr.mxu0 0.0
  %1443 = vmatpush1.msra.mxu0 %v64
  %1444 = vmatprep.subr.mxu0 0.0
  %1445 = vmatpush1.msra.mxu0 0.0
  %1446 = vmatprep.subr.mxu0 0.0
  %1447 = vmatpush1.msra.mxu0 0.0
  %1448 = vmatprep.subr.mxu0 0.0
  %1449 = vmatpush1.msra.mxu0 0.0
  %1450 = vmatprep.subr.mxu0 0.0
  %1451 = vmatpush1.msra.mxu0 0.0
  %1452 = vmatprep.subr.mxu0 0.0
  %1453 = vmatpush1.msra.mxu0 0.0
  %1454 = vmatprep.subr.mxu0 0.0
  %1455 = vmatpush1.msra.mxu0 0.0
  %1456 = vmatprep.subr.mxu0 0.0
  %1457 = vmatpush1.msra.mxu0 0.0
  %1458 = vmatprep.subr.mxu0 0.0
  %1459 = vmatpush1.msra.mxu0 0.0
  %1460 = vmatprep.subr.mxu0 0.0
  %1461 = vmatpush1.msra.mxu0 0.0
  %1462 = vmatprep.subr.mxu0 0.0
  %1463 = vmatpush1.msra.mxu0 0.0
  %1464 = vmatprep.subr.mxu0 0.0
  %1465 = vmatpush1.msra.mxu0 0.0
  %1466 = vmatprep.subr.mxu0 0.0
  %1467 = vmatpush1.msra.mxu0 0.0
  %1468 = vmatprep.subr.mxu0 0.0
  %1469 = vmatpush1.msra.mxu0 0.0
  %1470 = vmatprep.subr.mxu0 0.0
  %1471 = vmatpush1.msra.mxu0 0.0
  %1472 = vmatprep.subr.mxu0 0.0
  %1473 = vmatpush1.msra.mxu0 0.0
  %1474 = vmatprep.subr.mxu0 0.0
  %1475 = vmatpush1.msra.mxu0 0.0
  %1476 = vmatprep.subr.mxu0 0.0
  %1477 = vmatpush1.msra.mxu0 0.0
  %1478 = vmatprep.subr.mxu0 0.0
  %1479 = vmatpush1.msra.mxu0 0.0
  %1480 = vmatprep.subr.mxu0 0.0
  %1481 = vmatpush1.msra.mxu0 0.0
  %1482 = vmatprep.subr.mxu0 0.0
  %1483 = vmatpush1.msra.mxu0 0.0
  %1484 = vmatprep.subr.mxu0 0.0
  %1485 = vmatpush1.msra.mxu0 0.0
  %1486 = vmatprep.subr.mxu0 0.0
  %1487 = vmatpush1.msra.mxu0 0.0
  %1488 = vmatprep.subr.mxu0 0.0
  %1489 = vmatpush1.msra.mxu0 0.0
  %1490 = vmatprep.subr.mxu0 0.0
  %1491 = vmatpush1.msra.mxu0 0.0
  %1492 = vmatprep.subr.mxu0 0.0
  %1493 = vmatpush1.msra.mxu0 0.0
  %1494 = vmatprep.subr.mxu0 0.0
  %1495 = vmatpush1.msra.mxu0 0.0
  %1496 = vmatprep.subr.mxu0 0.0
  %1497 = vmatpush1.msra.mxu0 0.0
  %1498 = vmatprep.subr.mxu0 0.0
  %1499 = vmatpush1.msra.mxu0 0.0
  %1500 = vmatprep.subr.mxu0 0.0
  %1501 = vmatpush1.msra.mxu0 0.0
  %1502 = vmatprep.subr.mxu0 0.0
  %1503 = vmatpush1.msra.mxu0 0.0
  %1504 = vmatprep.subr.mxu0 0.0
  %1505 = vmatpush1.msra.mxu0 0.0
  %1506 = vmatprep.mubr.f32.mxu0 0.0
  %1507 = vmatmul.mubr.f32.gmra.mrb[0].mxu0 %v1437
  %v1508 = vpop.f32.mrb[0].mxu0
  %v1509 = vadd.f32 %v1434, %v1508
  %v1510 = vpop.f32.mrb[0].mxu0
  %1511 = vmatprep.mubr.f32.mxu0 0.0
  %1512 = vmatmul.mubr.f32.gmra.mrb[0].mxu0 %v1440
  %v1513 = vpop.f32.mrb[0].mxu0
  %v1514 = vadd.f32 %v1434, %v1513
  %v1515 = vpop.f32.mrb[0].mxu0
  %1516 = vdwg.mxu0
  %1518 = vrot.lane.b32.xlu0 %v1509, 120
  %v1519 = vpop.permute.xlu0 %1518
  %v1520 = vsel %vm329, %v1509, 0
  %v1522 = vsel %vm329, %v1519, 0
  %1524 = vmatprep.subr.mxu0 0.0
  %1525 = vmatpush1.xpose.msra.mxu0 %v1522
  %1526 = vmatprep.subr.mxu0 0.0
  %1527 = vmatpush1.xpose.msra.mxu0 0.0
  %1528 = vmatprep.subr.mxu0 0.0
  %1529 = vmatpush1.xpose.msra.mxu0 0.0
  %1530 = vmatprep.subr.mxu0 0.0
  %1531 = vmatpush1.xpose.msra.mxu0 0.0
  %1532 = vmatprep.subr.mxu0 0.0
  %1533 = vmatpush1.xpose.msra.mxu0 0.0
  %1534 = vmatprep.subr.mxu0 0.0
  %1535 = vmatpush1.xpose.msra.mxu0 0.0
  %1536 = vmatprep.subr.mxu0 0.0
  %1537 = vmatpush1.xpose.msra.mxu0 0.0
  %1538 = vmatprep.subr.mxu0 0.0
  %1539 = vmatpush1.xpose.msra.mxu0 0.0
  %1540 = vmatprep.subr.mxu0 0.0
  %1541 = vmatpush1.xpose.msra.mxu0 0.0
  %1542 = vmatprep.subr.mxu0 0.0
  %1543 = vmatpush1.xpose.msra.mxu0 0.0
  %1544 = vmatprep.subr.mxu0 0.0
  %1545 = vmatpush1.xpose.msra.mxu0 0.0
  %1546 = vmatprep.subr.mxu0 0.0
  %1547 = vmatpush1.xpose.msra.mxu0 0.0
  %1548 = vmatprep.subr.mxu0 0.0
  %1549 = vmatpush1.xpose.msra.mxu0 0.0
  %1550 = vmatprep.subr.mxu0 0.0
  %1551 = vmatpush1.xpose.msra.mxu0 0.0
  %1552 = vmatprep.subr.mxu0 0.0
  %1553 = vmatpush1.xpose.msra.mxu0 0.0
  %1554 = vmatprep.subr.mxu0 0.0
  %1555 = vmatpush1.xpose.msra.mxu0 0.0
  %1556 = vmatprep.subr.mxu0 0.0
  %1557 = vmatpush1.xpose.msra.mxu0 0.0
  %1558 = vmatprep.subr.mxu0 0.0
  %1559 = vmatpush1.xpose.msra.mxu0 0.0
  %1560 = vmatprep.subr.mxu0 0.0
  %1561 = vmatpush1.xpose.msra.mxu0 0.0
  %1562 = vmatprep.subr.mxu0 0.0
  %1563 = vmatpush1.xpose.msra.mxu0 0.0
  %1564 = vmatprep.subr.mxu0 0.0
  %1565 = vmatpush1.xpose.msra.mxu0 0.0
  %1566 = vmatprep.subr.mxu0 0.0
  %1567 = vmatpush1.xpose.msra.mxu0 0.0
  %1568 = vmatprep.subr.mxu0 0.0
  %1569 = vmatpush1.xpose.msra.mxu0 0.0
  %1570 = vmatprep.subr.mxu0 0.0
  %1571 = vmatpush1.xpose.msra.mxu0 0.0
  %1572 = vmatprep.subr.mxu0 0.0
  %1573 = vmatpush1.xpose.msra.mxu0 0.0
  %1574 = vmatprep.subr.mxu0 0.0
  %1575 = vmatpush1.xpose.msra.mxu0 0.0
  %1576 = vmatprep.subr.mxu0 0.0
  %1577 = vmatpush1.xpose.msra.mxu0 0.0
  %1578 = vmatprep.subr.mxu0 0.0
  %1579 = vmatpush1.xpose.msra.mxu0 0.0
  %1580 = vmatprep.subr.mxu0 0.0
  %1581 = vmatpush1.xpose.msra.mxu0 0.0
  %1582 = vmatprep.subr.mxu0 0.0
  %1583 = vmatpush1.xpose.msra.mxu0 0.0
  %1584 = vmatprep.subr.mxu0 0.0
  %1585 = vmatpush1.xpose.msra.mxu0 0.0
  %1586 = vmatprep.subr.mxu0 0.0
  %1587 = vmatpush1.xpose.msra.mxu0 0.0
  %1588 = vmatprep.mubr.f32.mxu0 0.0
  %1589 = vmatmul.mubr.f32.gmra.mrb[0].mxu0 %v1520
  %v1590 = vpop.f32.mrb[0].mxu0
  %v1591 = vadd.f32 %v319, %v1590
  %v1592 = vpop.f32.mrb[0].mxu0
  %1593 = vdwg.mxu0
  %1595 = vrot.lane.b32.xlu0 %v1514, 120
  %v1596 = vpop.permute.xlu0 %1595
  %v1597 = vsel %vm329, %v1514, 0
  %v1599 = vsel %vm329, %v1596, 0
  %1601 = vmatprep.subr.mxu0 0.0
  %1602 = vmatpush1.xpose.msra.mxu0 %v1599
  %1603 = vmatprep.subr.mxu0 0.0
  %1604 = vmatpush1.xpose.msra.mxu0 0.0
  %1605 = vmatprep.subr.mxu0 0.0
  %1606 = vmatpush1.xpose.msra.mxu0 0.0
  %1607 = vmatprep.subr.mxu0 0.0
  %1608 = vmatpush1.xpose.msra.mxu0 0.0
  %1609 = vmatprep.subr.mxu0 0.0
  %1610 = vmatpush1.xpose.msra.mxu0 0.0
  %1611 = vmatprep.subr.mxu0 0.0
  %1612 = vmatpush1.xpose.msra.mxu0 0.0
  %1613 = vmatprep.subr.mxu0 0.0
  %1614 = vmatpush1.xpose.msra.mxu0 0.0
  %1615 = vmatprep.subr.mxu0 0.0
  %1616 = vmatpush1.xpose.msra.mxu0 0.0
  %1617 = vmatprep.subr.mxu0 0.0
  %1618 = vmatpush1.xpose.msra.mxu0 0.0
  %1619 = vmatprep.subr.mxu0 0.0
  %1620 = vmatpush1.xpose.msra.mxu0 0.0
  %1621 = vmatprep.subr.mxu0 0.0
  %1622 = vmatpush1.xpose.msra.mxu0 0.0
  %1623 = vmatprep.subr.mxu0 0.0
  %1624 = vmatpush1.xpose.msra.mxu0 0.0
  %1625 = vmatprep.subr.mxu0 0.0
  %1626 = vmatpush1.xpose.msra.mxu0 0.0
  %1627 = vmatprep.subr.mxu0 0.0
  %1628 = vmatpush1.xpose.msra.mxu0 0.0
  %1629 = vmatprep.subr.mxu0 0.0
  %1630 = vmatpush1.xpose.msra.mxu0 0.0
  %1631 = vmatprep.subr.mxu0 0.0
  %1632 = vmatpush1.xpose.msra.mxu0 0.0
  %1633 = vmatprep.subr.mxu0 0.0
  %1634 = vmatpush1.xpose.msra.mxu0 0.0
  %1635 = vmatprep.subr.mxu0 0.0
  %1636 = vmatpush1.xpose.msra.mxu0 0.0
  %1637 = vmatprep.subr.mxu0 0.0
  %1638 = vmatpush1.xpose.msra.mxu0 0.0
  %1639 = vmatprep.subr.mxu0 0.0
  %1640 = vmatpush1.xpose.msra.mxu0 0.0
  %1641 = vmatprep.subr.mxu0 0.0
  %1642 = vmatpush1.xpose.msra.mxu0 0.0
  %1643 = vmatprep.subr.mxu0 0.0
  %1644 = vmatpush1.xpose.msra.mxu0 0.0
  %1645 = vmatprep.subr.mxu0 0.0
  %1646 = vmatpush1.xpose.msra.mxu0 0.0
  %1647 = vmatprep.subr.mxu0 0.0
  %1648 = vmatpush1.xpose.msra.mxu0 0.0
  %1649 = vmatprep.subr.mxu0 0.0
  %1650 = vmatpush1.xpose.msra.mxu0 0.0
  %1651 = vmatprep.subr.mxu0 0.0
  %1652 = vmatpush1.xpose.msra.mxu0 0.0
  %1653 = vmatprep.subr.mxu0 0.0
  %1654 = vmatpush1.xpose.msra.mxu0 0.0
  %1655 = vmatprep.subr.mxu0 0.0
  %1656 = vmatpush1.xpose.msra.mxu0 0.0
  %1657 = vmatprep.subr.mxu0 0.0
  %1658 = vmatpush1.xpose.msra.mxu0 0.0
  %1659 = vmatprep.subr.mxu0 0.0
  %1660 = vmatpush1.xpose.msra.mxu0 0.0
  %1661 = vmatprep.subr.mxu0 0.0
  %1662 = vmatpush1.xpose.msra.mxu0 0.0
  %1663 = vmatprep.subr.mxu0 0.0
  %1664 = vmatpush1.xpose.msra.mxu0 0.0
  %1665 = vmatprep.mubr.f32.mxu0 0.0
  %1666 = vmatmul.mubr.f32.gmra.mrb[0].mxu0 %v1597
  %v1667 = vpop.f32.mrb[0].mxu0
  %v1668 = vadd.f32 %v323, %v1667
  %v1669 = vpop.f32.mrb[0].mxu0
  %1670 = vdwg.mxu0
  %v1671 = vsel %vm183, %v1591, -inf
  %1672 = vmax.xlane.f32.xlu0 %v1671
  %v1673 = vpop.xlane.xlu0 %1672
  %v1674 = vsel %vm183, %v1668, -inf
  %1675 = vmax.xlane.f32.xlu0 %v1674
  %v1676 = vpop.xlane.xlu0 %1675
  %v1677 = vsub.f32 %v1591, %v1673
  %v1678 = vsub.f32 %v1668, %v1676
  %v1679 = vmul.f32 %v1677, 1.442695
  %v1680 = vpow.pop %v1679
  %v1681 = vmul.f32 %v1678, 1.442695
  %v1682 = vpow.pop %v1681
  %v1683 = vsel %vm183, %v1680, 0.0
  %1684 = vadd.xlane.f32.xlu0 %v1683
  %v1685 = vpop.xlane.xlu0 %1684
  %v1686 = vsel %vm183, %v1682, 0.0
  %1687 = vadd.xlane.f32.xlu0 %v1686
  %v1688 = vpop.xlane.xlu0 %1687
  %v1689 = vrcp.pop %v1685
  %v1690 = vrcp.pop %v1688
  %v1691 = vmul.f32 %v1680, %v1689
  %v1692 = vmul.f32 %v1682, %v1690
  %1693 = vrot.lane.b32.xlu0 %v1509, 112
  %v1694 = vpop.permute.xlu0 %1693
  %v1697 = vsel %vm183, %v1691, 0
  %1699 = vmatprep.subr.mxu0 0.0
  %1700 = vmatpush1.msra.mxu0 %v1694
  %1701 = vmatprep.subr.mxu0 0.0
  %1702 = vmatpush1.msra.mxu0 0.0
  %1703 = vmatprep.subr.mxu0 0.0
  %1704 = vmatpush1.msra.mxu0 0.0
  %1705 = vmatprep.subr.mxu0 0.0
  %1706 = vmatpush1.msra.mxu0 0.0
  %1707 = vmatprep.subr.mxu0 0.0
  %1708 = vmatpush1.msra.mxu0 0.0
  %1709 = vmatprep.subr.mxu0 0.0
  %1710 = vmatpush1.msra.mxu0 0.0
  %1711 = vmatprep.subr.mxu0 0.0
  %1712 = vmatpush1.msra.mxu0 0.0
  %1713 = vmatprep.subr.mxu0 0.0
  %1714 = vmatpush1.msra.mxu0 0.0
  %1715 = vmatprep.subr.mxu0 0.0
  %1716 = vmatpush1.msra.mxu0 0.0
  %1717 = vmatprep.subr.mxu0 0.0
  %1718 = vmatpush1.msra.mxu0 0.0
  %1719 = vmatprep.subr.mxu0 0.0
  %1720 = vmatpush1.msra.mxu0 0.0
  %1721 = vmatprep.subr.mxu0 0.0
  %1722 = vmatpush1.msra.mxu0 0.0
  %1723 = vmatprep.subr.mxu0 0.0
  %1724 = vmatpush1.msra.mxu0 0.0
  %1725 = vmatprep.subr.mxu0 0.0
  %1726 = vmatpush1.msra.mxu0 0.0
  %1727 = vmatprep.subr.mxu0 0.0
  %1728 = vmatpush1.msra.mxu0 0.0
  %1729 = vmatprep.subr.mxu0 0.0
  %1730 = vmatpush1.msra.mxu0 0.0
  %1731 = vmatprep.subr.mxu0 0.0
  %1732 = vmatpush1.msra.mxu0 0.0
  %1733 = vmatprep.subr.mxu0 0.0
  %1734 = vmatpush1.msra.mxu0 0.0
  %1735 = vmatprep.subr.mxu0 0.0
  %1736 = vmatpush1.msra.mxu0 0.0
  %1737 = vmatprep.subr.mxu0 0.0
  %1738 = vmatpush1.msra.mxu0 0.0
  %1739 = vmatprep.subr.mxu0 0.0
  %1740 = vmatpush1.msra.mxu0 0.0
  %1741 = vmatprep.subr.mxu0 0.0
  %1742 = vmatpush1.msra.mxu0 0.0
  %1743 = vmatprep.subr.mxu0 0.0
  %1744 = vmatpush1.msra.mxu0 0.0
  %1745 = vmatprep.subr.mxu0 0.0
  %1746 = vmatpush1.msra.mxu0 0.0
  %1747 = vmatprep.subr.mxu0 0.0
  %1748 = vmatpush1.msra.mxu0 0.0
  %1749 = vmatprep.subr.mxu0 0.0
  %1750 = vmatpush1.msra.mxu0 0.0
  %1751 = vmatprep.subr.mxu0 0.0
  %1752 = vmatpush1.msra.mxu0 0.0
  %1753 = vmatprep.subr.mxu0 0.0
  %1754 = vmatpush1.msra.mxu0 0.0
  %1755 = vmatprep.subr.mxu0 0.0
  %1756 = vmatpush1.msra.mxu0 0.0
  %1757 = vmatprep.subr.mxu0 0.0
  %1758 = vmatpush1.msra.mxu0 0.0
  %1759 = vmatprep.subr.mxu0 0.0
  %1760 = vmatpush1.msra.mxu0 0.0
  %1761 = vmatprep.subr.mxu0 0.0
  %1762 = vmatpush1.msra.mxu0 0.0
  %1763 = vmatprep.mubr.f32.mxu0 0.0
  %1764 = vmatmul.mubr.f32.gmra.mrb[0].mxu0 %v1697
  %v1765 = vpop.f32.mrb[0].mxu0
  %v1766 = vadd.f32 0.0, %v1765
  %v1767 = vpop.f32.mrb[0].mxu0
  %1768 = vdwg.mxu0
  %1769 = vrot.lane.b32.xlu0 %v1514, 112
  %v1770 = vpop.permute.xlu0 %1769
  %v1773 = vsel %vm183, %v1692, 0
  %1775 = vmatprep.subr.mxu0 0.0
  %1776 = vmatpush1.msra.mxu0 %v1770
  %1777 = vmatprep.subr.mxu0 0.0
  %1778 = vmatpush1.msra.mxu0 0.0
  %1779 = vmatprep.subr.mxu0 0.0
  %1780 = vmatpush1.msra.mxu0 0.0
  %1781 = vmatprep.subr.mxu0 0.0
  %1782 = vmatpush1.msra.mxu0 0.0
  %1783 = vmatprep.subr.mxu0 0.0
  %1784 = vmatpush1.msra.mxu0 0.0
  %1785 = vmatprep.subr.mxu0 0.0
  %1786 = vmatpush1.msra.mxu0 0.0
  %1787 = vmatprep.subr.mxu0 0.0
  %1788 = vmatpush1.msra.mxu0 0.0
  %1789 = vmatprep.subr.mxu0 0.0
  %1790 = vmatpush1.msra.mxu0 0.0
  %1791 = vmatprep.subr.mxu0 0.0
  %1792 = vmatpush1.msra.mxu0 0.0
  %1793 = vmatprep.subr.mxu0 0.0
  %1794 = vmatpush1.msra.mxu0 0.0
  %1795 = vmatprep.subr.mxu0 0.0
  %1796 = vmatpush1.msra.mxu0 0.0
  %1797 = vmatprep.subr.mxu0 0.0
  %1798 = vmatpush1.msra.mxu0 0.0
  %1799 = vmatprep.subr.mxu0 0.0
  %1800 = vmatpush1.msra.mxu0 0.0
  %1801 = vmatprep.subr.mxu0 0.0
  %1802 = vmatpush1.msra.mxu0 0.0
  %1803 = vmatprep.subr.mxu0 0.0
  %1804 = vmatpush1.msra.mxu0 0.0
  %1805 = vmatprep.subr.mxu0 0.0
  %1806 = vmatpush1.msra.mxu0 0.0
  %1807 = vmatprep.subr.mxu0 0.0
  %1808 = vmatpush1.msra.mxu0 0.0
  %1809 = vmatprep.subr.mxu0 0.0
  %1810 = vmatpush1.msra.mxu0 0.0
  %1811 = vmatprep.subr.mxu0 0.0
  %1812 = vmatpush1.msra.mxu0 0.0
  %1813 = vmatprep.subr.mxu0 0.0
  %1814 = vmatpush1.msra.mxu0 0.0
  %1815 = vmatprep.subr.mxu0 0.0
  %1816 = vmatpush1.msra.mxu0 0.0
  %1817 = vmatprep.subr.mxu0 0.0
  %1818 = vmatpush1.msra.mxu0 0.0
  %1819 = vmatprep.subr.mxu0 0.0
  %1820 = vmatpush1.msra.mxu0 0.0
  %1821 = vmatprep.subr.mxu0 0.0
  %1822 = vmatpush1.msra.mxu0 0.0
  %1823 = vmatprep.subr.mxu0 0.0
  %1824 = vmatpush1.msra.mxu0 0.0
  %1825 = vmatprep.subr.mxu0 0.0
  %1826 = vmatpush1.msra.mxu0 0.0
  %1827 = vmatprep.subr.mxu0 0.0
  %1828 = vmatpush1.msra.mxu0 0.0
  %1829 = vmatprep.subr.mxu0 0.0
  %1830 = vmatpush1.msra.mxu0 0.0
  %1831 = vmatprep.subr.mxu0 0.0
  %1832 = vmatpush1.msra.mxu0 0.0
  %1833 = vmatprep.subr.mxu0 0.0
  %1834 = vmatpush1.msra.mxu0 0.0
  %1835 = vmatprep.subr.mxu0 0.0
  %1836 = vmatpush1.msra.mxu0 0.0
  %1837 = vmatprep.subr.mxu0 0.0
  %1838 = vmatpush1.msra.mxu0 0.0
  %1839 = vmatprep.mubr.f32.mxu0 0.0
  %1840 = vmatmul.mubr.f32.gmra.mrb[0].mxu0 %v1773
  %v1841 = vpop.f32.mrb[0].mxu0
  %v1842 = vadd.f32 0.0, %v1841
  %v1843 = vpop.f32.mrb[0].mxu0
  %1844 = vdwg.mxu0
  %v1846 = vsel %vm329, %v1766, 0
  %v1849 = vsel %vm329, %v1842, 0
  %v1852 = vsel %vm661, %v68, 0
  %1854 = vmatprep.subr.mxu0 0.0
  %1855 = vmatpush1.msra.mxu0 %v1852
  %1856 = vmatprep.subr.mxu0 0.0
  %1857 = vmatpush1.msra.mxu0 0.0
  %1858 = vmatprep.subr.mxu0 0.0
  %1859 = vmatpush1.msra.mxu0 0.0
  %1860 = vmatprep.subr.mxu0 0.0
  %1861 = vmatpush1.msra.mxu0 0.0
  %1862 = vmatprep.subr.mxu0 0.0
  %1863 = vmatpush1.msra.mxu0 0.0
  %1864 = vmatprep.subr.mxu0 0.0
  %1865 = vmatpush1.msra.mxu0 0.0
  %1866 = vmatprep.subr.mxu0 0.0
  %1867 = vmatpush1.msra.mxu0 0.0
  %1868 = vmatprep.subr.mxu0 0.0
  %1869 = vmatpush1.msra.mxu0 0.0
  %1870 = vmatprep.subr.mxu0 0.0
  %1871 = vmatpush1.msra.mxu0 0.0
  %1872 = vmatprep.subr.mxu0 0.0
  %1873 = vmatpush1.msra.mxu0 0.0
  %1874 = vmatprep.subr.mxu0 0.0
  %1875 = vmatpush1.msra.mxu0 0.0
  %1876 = vmatprep.subr.mxu0 0.0
  %1877 = vmatpush1.msra.mxu0 0.0
  %1878 = vmatprep.subr.mxu0 0.0
  %1879 = vmatpush1.msra.mxu0 0.0
  %1880 = vmatprep.subr.mxu0 0.0
  %1881 = vmatpush1.msra.mxu0 0.0
  %1882 = vmatprep.subr.mxu0 0.0
  %1883 = vmatpush1.msra.mxu0 0.0
  %1884 = vmatprep.subr.mxu0 0.0
  %1885 = vmatpush1.msra.mxu0 0.0
  %1886 = vmatprep.subr.mxu0 0.0
  %1887 = vmatpush1.msra.mxu0 0.0
  %1888 = vmatprep.subr.mxu0 0.0
  %1889 = vmatpush1.msra.mxu0 0.0
  %1890 = vmatprep.subr.mxu0 0.0
  %1891 = vmatpush1.msra.mxu0 0.0
  %1892 = vmatprep.subr.mxu0 0.0
  %1893 = vmatpush1.msra.mxu0 0.0
  %1894 = vmatprep.subr.mxu0 0.0
  %1895 = vmatpush1.msra.mxu0 0.0
  %1896 = vmatprep.subr.mxu0 0.0
  %1897 = vmatpush1.msra.mxu0 0.0
  %1898 = vmatprep.subr.mxu0 0.0
  %1899 = vmatpush1.msra.mxu0 0.0
  %1900 = vmatprep.subr.mxu0 0.0
  %1901 = vmatpush1.msra.mxu0 0.0
  %1902 = vmatprep.subr.mxu0 0.0
  %1903 = vmatpush1.msra.mxu0 0.0
  %1904 = vmatprep.subr.mxu0 0.0
  %1905 = vmatpush1.msra.mxu0 0.0
  %1906 = vmatprep.subr.mxu0 0.0
  %1907 = vmatpush1.msra.mxu0 0.0
  %1908 = vmatprep.subr.mxu0 0.0
  %1909 = vmatpush1.msra.mxu0 0.0
  %1910 = vmatprep.subr.mxu0 0.0
  %1911 = vmatpush1.msra.mxu0 0.0
  %1912 = vmatprep.subr.mxu0 0.0
  %1913 = vmatpush1.msra.mxu0 0.0
  %1914 = vmatprep.subr.mxu0 0.0
  %1915 = vmatpush1.msra.mxu0 0.0
  %1916 = vmatprep.subr.mxu0 0.0
  %1917 = vmatpush1.msra.mxu0 0.0
  %1918 = vmatprep.mubr.f32.mxu0 0.0
  %1919 = vmatmul.mubr.f32.gmra.mrb[0].mxu0 %v1846
  %v1920 = vpop.f32.mrb[0].mxu0
  %v1921 = vadd.f32 0.0, %v1920
  %v1922 = vpop.f32.mrb[0].mxu0
  %1923 = vmatprep.mubr.f32.mxu0 0.0
  %1924 = vmatmul.mubr.f32.gmra.mrb[0].mxu0 %v1849
  %v1925 = vpop.f32.mrb[0].mxu0
  %v1926 = vadd.f32 0.0, %v1925
  %v1927 = vpop.f32.mrb[0].mxu0
  %1928 = vdwg.mxu0
  %v1930 = vlaneseq
  %v1931 = vshrl.u32 %v1930, 7
  %v1932 = vsub.s32 0, %v1931
  %v1933 = vrot.slane %v70, %v1932
  %v1935 = vadd.f32 %v1933, %v1921
  %v1936 = vadd.f32 %v1933, %v1926
  %1937 = vrot.lane.b32.xlu0 %v1509, 124
  %v1938 = vpop.permute.xlu0 %1937
  %1939 = vrot.lane.b32.xlu0 %v1509, 116
  %v1940 = vpop.permute.xlu0 %1939
  %v1941 = vsel %vm329, %v1938, 0
  %v1943 = vsel %vm329, %v1940, 0
  %1945 = vmatprep.subr.mxu0 0.0
  %1946 = vmatpush1.xpose.msra.mxu0 %v1943
  %1947 = vmatprep.subr.mxu0 0.0
  %1948 = vmatpush1.xpose.msra.mxu0 0.0
  %1949 = vmatprep.subr.mxu0 0.0
  %1950 = vmatpush1.xpose.msra.mxu0 0.0
  %1951 = vmatprep.subr.mxu0 0.0
  %1952 = vmatpush1.xpose.msra.mxu0 0.0
  %1953 = vmatprep.subr.mxu0 0.0
  %1954 = vmatpush1.xpose.msra.mxu0 0.0
  %1955 = vmatprep.subr.mxu0 0.0
  %1956 = vmatpush1.xpose.msra.mxu0 0.0
  %1957 = vmatprep.subr.mxu0 0.0
  %1958 = vmatpush1.xpose.msra.mxu0 0.0
  %1959 = vmatprep.subr.mxu0 0.0
  %1960 = vmatpush1.xpose.msra.mxu0 0.0
  %1961 = vmatprep.subr.mxu0 0.0
  %1962 = vmatpush1.xpose.msra.mxu0 0.0
  %1963 = vmatprep.subr.mxu0 0.0
  %1964 = vmatpush1.xpose.msra.mxu0 0.0
  %1965 = vmatprep.subr.mxu0 0.0
  %1966 = vmatpush1.xpose.msra.mxu0 0.0
  %1967 = vmatprep.subr.mxu0 0.0
  %1968 = vmatpush1.xpose.msra.mxu0 0.0
  %1969 = vmatprep.subr.mxu0 0.0
  %1970 = vmatpush1.xpose.msra.mxu0 0.0
  %1971 = vmatprep.subr.mxu0 0.0
  %1972 = vmatpush1.xpose.msra.mxu0 0.0
  %1973 = vmatprep.subr.mxu0 0.0
  %1974 = vmatpush1.xpose.msra.mxu0 0.0
  %1975 = vmatprep.subr.mxu0 0.0
  %1976 = vmatpush1.xpose.msra.mxu0 0.0
  %1977 = vmatprep.subr.mxu0 0.0
  %1978 = vmatpush1.xpose.msra.mxu0 0.0
  %1979 = vmatprep.subr.mxu0 0.0
  %1980 = vmatpush1.xpose.msra.mxu0 0.0
  %1981 = vmatprep.subr.mxu0 0.0
  %1982 = vmatpush1.xpose.msra.mxu0 0.0
  %1983 = vmatprep.subr.mxu0 0.0
  %1984 = vmatpush1.xpose.msra.mxu0 0.0
  %1985 = vmatprep.subr.mxu0 0.0
  %1986 = vmatpush1.xpose.msra.mxu0 0.0
  %1987 = vmatprep.subr.mxu0 0.0
  %1988 = vmatpush1.xpose.msra.mxu0 0.0
  %1989 = vmatprep.subr.mxu0 0.0
  %1990 = vmatpush1.xpose.msra.mxu0 0.0
  %1991 = vmatprep.subr.mxu0 0.0
  %1992 = vmatpush1.xpose.msra.mxu0 0.0
  %1993 = vmatprep.subr.mxu0 0.0
  %1994 = vmatpush1.xpose.msra.mxu0 0.0
  %1995 = vmatprep.subr.mxu0 0.0
  %1996 = vmatpush1.xpose.msra.mxu0 0.0
  %1997 = vmatprep.subr.mxu0 0.0
  %1998 = vmatpush1.xpose.msra.mxu0 0.0
  %1999 = vmatprep.subr.mxu0 0.0
  %2000 = vmatpush1.xpose.msra.mxu0 0.0
  %2001 = vmatprep.subr.mxu0 0.0
  %2002 = vmatpush1.xpose.msra.mxu0 0.0
  %2003 = vmatprep.subr.mxu0 0.0
  %2004 = vmatpush1.xpose.msra.mxu0 0.0
  %2005 = vmatprep.subr.mxu0 0.0
  %2006 = vmatpush1.xpose.msra.mxu0 0.0
  %2007 = vmatprep.subr.mxu0 0.0
  %2008 = vmatpush1.xpose.msra.mxu0 0.0
  %2009 = vmatprep.mubr.f32.mxu0 0.0
  %2010 = vmatmul.mubr.f32.gmra.mrb[0].mxu0 %v1941
  %v2011 = vpop.f32.mrb[0].mxu0
  %v2012 = vadd.f32 %v319, %v2011
  %v2013 = vpop.f32.mrb[0].mxu0
  %2014 = vdwg.mxu0
  %2015 = vrot.lane.b32.xlu0 %v1514, 124
  %v2016 = vpop.permute.xlu0 %2015
  %2017 = vrot.lane.b32.xlu0 %v1514, 116
  %v2018 = vpop.permute.xlu0 %2017
  %v2019 = vsel %vm329, %v2016, 0
  %v2021 = vsel %vm329, %v2018, 0
  %2023 = vmatprep.subr.mxu0 0.0
  %2024 = vmatpush1.xpose.msra.mxu0 %v2021
  %2025 = vmatprep.subr.mxu0 0.0
  %2026 = vmatpush1.xpose.msra.mxu0 0.0
  %2027 = vmatprep.subr.mxu0 0.0
  %2028 = vmatpush1.xpose.msra.mxu0 0.0
  %2029 = vmatprep.subr.mxu0 0.0
  %2030 = vmatpush1.xpose.msra.mxu0 0.0
  %2031 = vmatprep.subr.mxu0 0.0
  %2032 = vmatpush1.xpose.msra.mxu0 0.0
  %2033 = vmatprep.subr.mxu0 0.0
  %2034 = vmatpush1.xpose.msra.mxu0 0.0
  %2035 = vmatprep.subr.mxu0 0.0
  %2036 = vmatpush1.xpose.msra.mxu0 0.0
  %2037 = vmatprep.subr.mxu0 0.0
  %2038 = vmatpush1.xpose.msra.mxu0 0.0
  %2039 = vmatprep.subr.mxu0 0.0
  %2040 = vmatpush1.xpose.msra.mxu0 0.0
  %2041 = vmatprep.subr.mxu0 0.0
  %2042 = vmatpush1.xpose.msra.mxu0 0.0
  %2043 = vmatprep.subr.mxu0 0.0
  %2044 = vmatpush1.xpose.msra.mxu0 0.0
  %2045 = vmatprep.subr.mxu0 0.0
  %2046 = vmatpush1.xpose.msra.mxu0 0.0
  %2047 = vmatprep.subr.mxu0 0.0
  %2048 = vmatpush1.xpose.msra.mxu0 0.0
  %2049 = vmatprep.subr.mxu0 0.0
  %2050 = vmatpush1.xpose.msra.mxu0 0.0
  %2051 = vmatprep.subr.mxu0 0.0
  %2052 = vmatpush1.xpose.msra.mxu0 0.0
  %2053 = vmatprep.subr.mxu0 0.0
  %2054 = vmatpush1.xpose.msra.mxu0 0.0
  %2055 = vmatprep.subr.mxu0 0.0
  %2056 = vmatpush1.xpose.msra.mxu0 0.0
  %2057 = vmatprep.subr.mxu0 0.0
  %2058 = vmatpush1.xpose.msra.mxu0 0.0
  %2059 = vmatprep.subr.mxu0 0.0
  %2060 = vmatpush1.xpose.msra.mxu0 0.0
  %2061 = vmatprep.subr.mxu0 0.0
  %2062 = vmatpush1.xpose.msra.mxu0 0.0
  %2063 = vmatprep.subr.mxu0 0.0
  %2064 = vmatpush1.xpose.msra.mxu0 0.0
  %2065 = vmatprep.subr.mxu0 0.0
  %2066 = vmatpush1.xpose.msra.mxu0 0.0
  %2067 = vmatprep.subr.mxu0 0.0
  %2068 = vmatpush1.xpose.msra.mxu0 0.0
  %2069 = vmatprep.subr.mxu0 0.0
  %2070 = vmatpush1.xpose.msra.mxu0 0.0
  %2071 = vmatprep.subr.mxu0 0.0
  %2072 = vmatpush1.xpose.msra.mxu0 0.0
  %2073 = vmatprep.subr.mxu0 0.0
  %2074 = vmatpush1.xpose.msra.mxu0 0.0
  %2075 = vmatprep.subr.mxu0 0.0
  %2076 = vmatpush1.xpose.msra.mxu0 0.0
  %2077 = vmatprep.subr.mxu0 0.0
  %2078 = vmatpush1.xpose.msra.mxu0 0.0
  %2079 = vmatprep.subr.mxu0 0.0
  %2080 = vmatpush1.xpose.msra.mxu0 0.0
  %2081 = vmatprep.subr.mxu0 0.0
  %2082 = vmatpush1.xpose.msra.mxu0 0.0
  %2083 = vmatprep.subr.mxu0 0.0
  %2084 = vmatpush1.xpose.msra.mxu0 0.0
  %2085 = vmatprep.subr.mxu0 0.0
  %2086 = vmatpush1.xpose.msra.mxu0 0.0
  %2087 = vmatprep.mubr.f32.mxu0 0.0
  %2088 = vmatmul.mubr.f32.gmra.mrb[0].mxu0 %v2019
  %v2089 = vpop.f32.mrb[0].mxu0
  %v2090 = vadd.f32 %v323, %v2089
  %v2091 = vpop.f32.mrb[0].mxu0
  %2092 = vdwg.mxu0
  %v2093 = vsel %vm183, %v2012, -inf
  %2094 = vmax.xlane.f32.xlu0 %v2093
  %v2095 = vpop.xlane.xlu0 %2094
  %v2096 = vsel %vm183, %v2090, -inf
  %2097 = vmax.xlane.f32.xlu0 %v2096
  %v2098 = vpop.xlane.xlu0 %2097
  %v2099 = vsub.f32 %v2012, %v2095
  %v2100 = vsub.f32 %v2090, %v2098
  %v2101 = vmul.f32 %v2099, 1.442695
  %v2102 = vpow.pop %v2101
  %v2103 = vmul.f32 %v2100, 1.442695
  %v2104 = vpow.pop %v2103
  %v2105 = vsel %vm183, %v2102, 0.0
  %2106 = vadd.xlane.f32.xlu0 %v2105
  %v2107 = vpop.xlane.xlu0 %2106
  %v2108 = vsel %vm183, %v2104, 0.0
  %2109 = vadd.xlane.f32.xlu0 %v2108
  %v2110 = vpop.xlane.xlu0 %2109
  %v2111 = vrcp.pop %v2107
  %v2112 = vrcp.pop %v2110
  %v2113 = vmul.f32 %v2102, %v2111
  %v2114 = vmul.f32 %v2104, %v2112
  %2115 = vrot.lane.b32.xlu0 %v1509, 108
  %v2116 = vpop.permute.xlu0 %2115
  %v2119 = vsel %vm183, %v2113, 0
  %2121 = vmatprep.subr.mxu0 0.0
  %2122 = vmatpush1.msra.mxu0 %v2116
  %2123 = vmatprep.subr.mxu0 0.0
  %2124 = vmatpush1.msra.mxu0 0.0
  %2125 = vmatprep.subr.mxu0 0.0
  %2126 = vmatpush1.msra.mxu0 0.0
  %2127 = vmatprep.subr.mxu0 0.0
  %2128 = vmatpush1.msra.mxu0 0.0
  %2129 = vmatprep.subr.mxu0 0.0
  %2130 = vmatpush1.msra.mxu0 0.0
  %2131 = vmatprep.subr.mxu0 0.0
  %2132 = vmatpush1.msra.mxu0 0.0
  %2133 = vmatprep.subr.mxu0 0.0
  %2134 = vmatpush1.msra.mxu0 0.0
  %2135 = vmatprep.subr.mxu0 0.0
  %2136 = vmatpush1.msra.mxu0 0.0
  %2137 = vmatprep.subr.mxu0 0.0
  %2138 = vmatpush1.msra.mxu0 0.0
  %2139 = vmatprep.subr.mxu0 0.0
  %2140 = vmatpush1.msra.mxu0 0.0
  %2141 = vmatprep.subr.mxu0 0.0
  %2142 = vmatpush1.msra.mxu0 0.0
  %2143 = vmatprep.subr.mxu0 0.0
  %2144 = vmatpush1.msra.mxu0 0.0
  %2145 = vmatprep.subr.mxu0 0.0
  %2146 = vmatpush1.msra.mxu0 0.0
  %2147 = vmatprep.subr.mxu0 0.0
  %2148 = vmatpush1.msra.mxu0 0.0
  %2149 = vmatprep.subr.mxu0 0.0
  %2150 = vmatpush1.msra.mxu0 0.0
  %2151 = vmatprep.subr.mxu0 0.0
  %2152 = vmatpush1.msra.mxu0 0.0
  %2153 = vmatprep.subr.mxu0 0.0
  %2154 = vmatpush1.msra.mxu0 0.0
  %2155 = vmatprep.subr.mxu0 0.0
  %2156 = vmatpush1.msra.mxu0 0.0
  %2157 = vmatprep.subr.mxu0 0.0
  %2158 = vmatpush1.msra.mxu0 0.0
  %2159 = vmatprep.subr.mxu0 0.0
  %2160 = vmatpush1.msra.mxu0 0.0
  %2161 = vmatprep.subr.mxu0 0.0
  %2162 = vmatpush1.msra.mxu0 0.0
  %2163 = vmatprep.subr.mxu0 0.0
  %2164 = vmatpush1.msra.mxu0 0.0
  %2165 = vmatprep.subr.mxu0 0.0
  %2166 = vmatpush1.msra.mxu0 0.0
  %2167 = vmatprep.subr.mxu0 0.0
  %2168 = vmatpush1.msra.mxu0 0.0
  %2169 = vmatprep.subr.mxu0 0.0
  %2170 = vmatpush1.msra.mxu0 0.0
  %2171 = vmatprep.subr.mxu0 0.0
  %2172 = vmatpush1.msra.mxu0 0.0
  %2173 = vmatprep.subr.mxu0 0.0
  %2174 = vmatpush1.msra.mxu0 0.0
  %2175 = vmatprep.subr.mxu0 0.0
  %2176 = vmatpush1.msra.mxu0 0.0
  %2177 = vmatprep.subr.mxu0 0.0
  %2178 = vmatpush1.msra.mxu0 0.0
  %2179 = vmatprep.subr.mxu0 0.0
  %2180 = vmatpush1.msra.mxu0 0.0
  %2181 = vmatprep.subr.mxu0 0.0
  %2182 = vmatpush1.msra.mxu0 0.0
  %2183 = vmatprep.subr.mxu0 0.0
  %2184 = vmatpush1.msra.mxu0 0.0
  %2185 = vmatprep.mubr.f32.mxu0 0.0
  %2186 = vmatmul.mubr.f32.gmra.mrb[0].mxu0 %v2119
  %v2187 = vpop.f32.mrb[0].mxu0
  %v2188 = vadd.f32 0.0, %v2187
  %v2189 = vpop.f32.mrb[0].mxu0
  %2190 = vdwg.mxu0
  %2191 = vrot.lane.b32.xlu0 %v1514, 108
  %v2192 = vpop.permute.xlu0 %2191
  %v2195 = vsel %vm183, %v2114, 0
  %2197 = vmatprep.subr.mxu0 0.0
  %2198 = vmatpush1.msra.mxu0 %v2192
  %2199 = vmatprep.subr.mxu0 0.0
  %2200 = vmatpush1.msra.mxu0 0.0
  %2201 = vmatprep.subr.mxu0 0.0
  %2202 = vmatpush1.msra.mxu0 0.0
  %2203 = vmatprep.subr.mxu0 0.0
  %2204 = vmatpush1.msra.mxu0 0.0
  %2205 = vmatprep.subr.mxu0 0.0
  %2206 = vmatpush1.msra.mxu0 0.0
  %2207 = vmatprep.subr.mxu0 0.0
  %2208 = vmatpush1.msra.mxu0 0.0
  %2209 = vmatprep.subr.mxu0 0.0
  %2210 = vmatpush1.msra.mxu0 0.0
  %2211 = vmatprep.subr.mxu0 0.0
  %2212 = vmatpush1.msra.mxu0 0.0
  %2213 = vmatprep.subr.mxu0 0.0
  %2214 = vmatpush1.msra.mxu0 0.0
  %2215 = vmatprep.subr.mxu0 0.0
  %2216 = vmatpush1.msra.mxu0 0.0
  %2217 = vmatprep.subr.mxu0 0.0
  %2218 = vmatpush1.msra.mxu0 0.0
  %2219 = vmatprep.subr.mxu0 0.0
  %2220 = vmatpush1.msra.mxu0 0.0
  %2221 = vmatprep.subr.mxu0 0.0
  %2222 = vmatpush1.msra.mxu0 0.0
  %2223 = vmatprep.subr.mxu0 0.0
  %2224 = vmatpush1.msra.mxu0 0.0
  %2225 = vmatprep.subr.mxu0 0.0
  %2226 = vmatpush1.msra.mxu0 0.0
  %2227 = vmatprep.subr.mxu0 0.0
  %2228 = vmatpush1.msra.mxu0 0.0
  %2229 = vmatprep.subr.mxu0 0.0
  %2230 = vmatpush1.msra.mxu0 0.0
  %2231 = vmatprep.subr.mxu0 0.0
  %2232 = vmatpush1.msra.mxu0 0.0
  %2233 = vmatprep.subr.mxu0 0.0
  %2234 = vmatpush1.msra.mxu0 0.0
  %2235 = vmatprep.subr.mxu0 0.0
  %2236 = vmatpush1.msra.mxu0 0.0
  %2237 = vmatprep.subr.mxu0 0.0
  %2238 = vmatpush1.msra.mxu0 0.0
  %2239 = vmatprep.subr.mxu0 0.0
  %2240 = vmatpush1.msra.mxu0 0.0
  %2241 = vmatprep.subr.mxu0 0.0
  %2242 = vmatpush1.msra.mxu0 0.0
  %2243 = vmatprep.subr.mxu0 0.0
  %2244 = vmatpush1.msra.mxu0 0.0
  %2245 = vmatprep.subr.mxu0 0.0
  %2246 = vmatpush1.msra.mxu0 0.0
  %2247 = vmatprep.subr.mxu0 0.0
  %2248 = vmatpush1.msra.mxu0 0.0
  %2249 = vmatprep.subr.mxu0 0.0
  %2250 = vmatpush1.msra.mxu0 0.0
  %2251 = vmatprep.subr.mxu0 0.0
  %2252 = vmatpush1.msra.mxu0 0.0
  %2253 = vmatprep.subr.mxu0 0.0
  %2254 = vmatpush1.msra.mxu0 0.0
  %2255 = vmatprep.subr.mxu0 0.0
  %2256 = vmatpush1.msra.mxu0 0.0
  %2257 = vmatprep.subr.mxu0 0.0
  %2258 = vmatpush1.msra.mxu0 0.0
  %2259 = vmatprep.subr.mxu0 0.0
  %2260 = vmatpush1.msra.mxu0 0.0
  %2261 = vmatprep.mubr.f32.mxu0 0.0
  %2262 = vmatmul.mubr.f32.gmra.mrb[0].mxu0 %v2195
  %v2263 = vpop.f32.mrb[0].mxu0
  %v2264 = vadd.f32 0.0, %v2263
  %v2265 = vpop.f32.mrb[0].mxu0
  %2266 = vdwg.mxu0
  %v2267 = vrot.slane %v68, 4
  %v2269 = vsel %vm329, %v2188, 0
  %v2272 = vsel %vm329, %v2264, 0
  %v2274 = vsel %vm661, %v2267, 0
  %2276 = vmatprep.subr.mxu0 0.0
  %2277 = vmatpush1.msra.mxu0 %v2274
  %2278 = vmatprep.subr.mxu0 0.0
  %2279 = vmatpush1.msra.mxu0 0.0
  %2280 = vmatprep.subr.mxu0 0.0
  %2281 = vmatpush1.msra.mxu0 0.0
  %2282 = vmatprep.subr.mxu0 0.0
  %2283 = vmatpush1.msra.mxu0 0.0
  %2284 = vmatprep.subr.mxu0 0.0
  %2285 = vmatpush1.msra.mxu0 0.0
  %2286 = vmatprep.subr.mxu0 0.0
  %2287 = vmatpush1.msra.mxu0 0.0
  %2288 = vmatprep.subr.mxu0 0.0
  %2289 = vmatpush1.msra.mxu0 0.0
  %2290 = vmatprep.subr.mxu0 0.0
  %2291 = vmatpush1.msra.mxu0 0.0
  %2292 = vmatprep.subr.mxu0 0.0
  %2293 = vmatpush1.msra.mxu0 0.0
  %2294 = vmatprep.subr.mxu0 0.0
  %2295 = vmatpush1.msra.mxu0 0.0
  %2296 = vmatprep.subr.mxu0 0.0
  %2297 = vmatpush1.msra.mxu0 0.0
  %2298 = vmatprep.subr.mxu0 0.0
  %2299 = vmatpush1.msra.mxu0 0.0
  %2300 = vmatprep.subr.mxu0 0.0
  %2301 = vmatpush1.msra.mxu0 0.0
  %2302 = vmatprep.subr.mxu0 0.0
  %2303 = vmatpush1.msra.mxu0 0.0
  %2304 = vmatprep.subr.mxu0 0.0
  %2305 = vmatpush1.msra.mxu0 0.0
  %2306 = vmatprep.subr.mxu0 0.0
  %2307 = vmatpush1.msra.mxu0 0.0
  %2308 = vmatprep.subr.mxu0 0.0
  %2309 = vmatpush1.msra.mxu0 0.0
  %2310 = vmatprep.subr.mxu0 0.0
  %2311 = vmatpush1.msra.mxu0 0.0
  %2312 = vmatprep.subr.mxu0 0.0
  %2313 = vmatpush1.msra.mxu0 0.0
  %2314 = vmatprep.subr.mxu0 0.0
  %2315 = vmatpush1.msra.mxu0 0.0
  %2316 = vmatprep.subr.mxu0 0.0
  %2317 = vmatpush1.msra.mxu0 0.0
  %2318 = vmatprep.subr.mxu0 0.0
  %2319 = vmatpush1.msra.mxu0 0.0
  %2320 = vmatprep.subr.mxu0 0.0
  %2321 = vmatpush1.msra.mxu0 0.0
  %2322 = vmatprep.subr.mxu0 0.0
  %2323 = vmatpush1.msra.mxu0 0.0
  %2324 = vmatprep.subr.mxu0 0.0
  %2325 = vmatpush1.msra.mxu0 0.0
  %2326 = vmatprep.subr.mxu0 0.0
  %2327 = vmatpush1.msra.mxu0 0.0
  %2328 = vmatprep.subr.mxu0 0.0
  %2329 = vmatpush1.msra.mxu0 0.0
  %2330 = vmatprep.subr.mxu0 0.0
  %2331 = vmatpush1.msra.mxu0 0.0
  %2332 = vmatprep.subr.mxu0 0.0
  %2333 = vmatpush1.msra.mxu0 0.0
  %2334 = vmatprep.subr.mxu0 0.0
  %2335 = vmatpush1.msra.mxu0 0.0
  %2336 = vmatprep.subr.mxu0 0.0
  %2337 = vmatpush1.msra.mxu0 0.0
  %2338 = vmatprep.subr.mxu0 0.0
  %2339 = vmatpush1.msra.mxu0 0.0
  %2340 = vmatprep.mubr.f32.mxu0 0.0
  %2341 = vmatmul.mubr.f32.gmra.mrb[0].mxu0 %v2269
  %v2342 = vpop.f32.mrb[0].mxu0
  %v2343 = vadd.f32 0.0, %v2342
  %v2344 = vpop.f32.mrb[0].mxu0
  %2345 = vmatprep.mubr.f32.mxu0 0.0
  %2346 = vmatmul.mubr.f32.gmra.mrb[0].mxu0 %v2272
  %v2347 = vpop.f32.mrb[0].mxu0
  %v2348 = vadd.f32 0.0, %v2347
  %v2349 = vpop.f32.mrb[0].mxu0
  %2350 = vdwg.mxu0
  %v2351 = vadd.f32 %v1935, %v2343
  %v2352 = vadd.f32 %v1936, %v2348
  %v2353 = vadd.f32 %v1386, %v2351
  %v2354 = vadd.f32 %v1387, %v2352
  %v2355 = vsel %vm183, %v2353, 0.0
  %2356 = vadd.xlane.f32.xlu0 %v2355
  %v2357 = vpop.xlane.xlu0 %2356
  %v2358 = vsel %vm183, %v2354, 0.0
  %2359 = vadd.xlane.f32.xlu0 %v2358
  %v2360 = vpop.xlane.xlu0 %2359
  %v2361 = vmul.f32 %v2357, %v190
  %v2362 = vmul.f32 %v2360, %v190
  %v2363 = vsub.f32 %v2353, %v2361
  %v2364 = vsub.f32 %v2354, %v2362
  %v2365 = vmul.f32 %v2363, %v2363
  %v2366 = vmul.f32 %v2364, %v2364
  %v2367 = vsel %vm183, %v2365, 0.0
  %2368 = vadd.xlane.f32.xlu0 %v2367
  %v2369 = vpop.xlane.xlu0 %2368
  %v2370 = vsel %vm183, %v2366, 0.0
  %2371 = vadd.xlane.f32.xlu0 %v2370
  %v2372 = vpop.xlane.xlu0 %2371
  %v2373 = vmul.f32 %v2369, %v190
  %v2374 = vmul.f32 %v2372, %v190
  %v2375 = vadd.f32 %v2373, 1e-05
  %v2376 = vadd.f32 %v2374, 1e-05
  %v2377 = vrsqrt.pop %v2375
  %v2378 = vrsqrt.pop %v2376
  %v2379 = vmul.f32 %v2363, %v2377
  %v2380 = vmul.f32 %v2364, %v2378
  %v2382 = vlaneseq
  %v2383 = vshrl.u32 %v2382, 7
  %v2384 = vsub.s32 0, %v2383
  %v2385 = vrot.slane %v72, %v2384
  %v2387 = vmul.f32 %v2379, %v2385
  %v2388 = vmul.f32 %v2380, %v2385
  %v2390 = vlaneseq
  %v2391 = vshrl.u32 %v2390, 7
  %v2392 = vsub.s32 0, %v2391
  %v2393 = vrot.slane %v74, %v2392
  %v2395 = vadd.f32 %v2387, %v2393
  %v2396 = vadd.f32 %v2388, %v2393
  %v2398 = vlaneseq
  %v2399 = vshrl.u32 %v2398, 7
  %v2400 = vsub.s32 0, %v2399
  %v2401 = vrot.slane %v78, %v2400
  %v2404 = vsel %vm183, %v2395, 0
  %v2407 = vsel %vm183, %v2396, 0
  %2409 = vmatprep.subr.mxu0 0.0
  %2410 = vmatpush1.msra.mxu0 %v76
  %2411 = vmatprep.subr.mxu0 0.0
  %2412 = vmatpush1.msra.mxu0 0.0
  %2413 = vmatprep.subr.mxu0 0.0
  %2414 = vmatpush1.msra.mxu0 0.0
  %2415 = vmatprep.subr.mxu0 0.0
  %2416 = vmatpush1.msra.mxu0 0.0
  %2417 = vmatprep.subr.mxu0 0.0
  %2418 = vmatpush1.msra.mxu0 0.0
  %2419 = vmatprep.subr.mxu0 0.0
  %2420 = vmatpush1.msra.mxu0 0.0
  %2421 = vmatprep.subr.mxu0 0.0
  %2422 = vmatpush1.msra.mxu0 0.0
  %2423 = vmatprep.subr.mxu0 0.0
  %2424 = vmatpush1.msra.mxu0 0.0
  %2425 = vmatprep.subr.mxu0 0.0
  %2426 = vmatpush1.msra.mxu0 0.0
  %2427 = vmatprep.subr.mxu0 0.0
  %2428 = vmatpush1.msra.mxu0 0.0
  %2429 = vmatprep.subr.mxu0 0.0
  %2430 = vmatpush1.msra.mxu0 0.0
  %2431 = vmatprep.subr.mxu0 0.0
  %2432 = vmatpush1.msra.mxu0 0.0
  %2433 = vmatprep.subr.mxu0 0.0
  %2434 = vmatpush1.msra.mxu0 0.0
  %2435 = vmatprep.subr.mxu0 0.0
  %2436 = vmatpush1.msra.mxu0 0.0
  %2437 = vmatprep.subr.mxu0 0.0
  %2438 = vmatpush1.msra.mxu0 0.0
  %2439 = vmatprep.subr.mxu0 0.0
  %2440 = vmatpush1.msra.mxu0 0.0
  %2441 = vmatprep.subr.mxu0 0.0
  %2442 = vmatpush1.msra.mxu0 0.0
  %2443 = vmatprep.subr.mxu0 0.0
  %2444 = vmatpush1.msra.mxu0 0.0
  %2445 = vmatprep.subr.mxu0 0.0
  %2446 = vmatpush1.msra.mxu0 0.0
  %2447 = vmatprep.subr.mxu0 0.0
  %2448 = vmatpush1.msra.mxu0 0.0
  %2449 = vmatprep.subr.mxu0 0.0
  %2450 = vmatpush1.msra.mxu0 0.0
  %2451 = vmatprep.subr.mxu0 0.0
  %2452 = vmatpush1.msra.mxu0 0.0
  %2453 = vmatprep.subr.mxu0 0.0
  %2454 = vmatpush1.msra.mxu0 0.0
  %2455 = vmatprep.subr.mxu0 0.0
  %2456 = vmatpush1.msra.mxu0 0.0
  %2457 = vmatprep.subr.mxu0 0.0
  %2458 = vmatpush1.msra.mxu0 0.0
  %2459 = vmatprep.subr.mxu0 0.0
  %2460 = vmatpush1.msra.mxu0 0.0
  %2461 = vmatprep.subr.mxu0 0.0
  %2462 = vmatpush1.msra.mxu0 0.0
  %2463 = vmatprep.subr.mxu0 0.0
  %2464 = vmatpush1.msra.mxu0 0.0
  %2465 = vmatprep.subr.mxu0 0.0
  %2466 = vmatpush1.msra.mxu0 0.0
  %2467 = vmatprep.subr.mxu0 0.0
  %2468 = vmatpush1.msra.mxu0 0.0
  %2469 = vmatprep.subr.mxu0 0.0
  %2470 = vmatpush1.msra.mxu0 0.0
  %2471 = vmatprep.subr.mxu0 0.0
  %2472 = vmatpush1.msra.mxu0 0.0
  %2473 = vmatprep.mubr.f32.mxu0 0.0
  %2474 = vmatmul.mubr.f32.gmra.mrb[0].mxu0 %v2404
  %v2475 = vpop.f32.mrb[0].mxu0
  %v2476 = vadd.f32 %v2401, %v2475
  %v2477 = vpop.f32.mrb[0].mxu0
  %2478 = vmatprep.mubr.f32.mxu0 0.0
  %2479 = vmatmul.mubr.f32.gmra.mrb[0].mxu0 %v2407
  %v2480 = vpop.f32.mrb[0].mxu0
  %v2481 = vadd.f32 %v2401, %v2480
  %v2482 = vpop.f32.mrb[0].mxu0
  %2483 = vdwg.mxu0
  %v2484 = vmax.f32 %v2476, 0.0
  %v2485 = vmax.f32 %v2481, 0.0
  %v2487 = vsel %vm183, %v2484, 0
  %v2490 = vsel %vm183, %v2485, 0
  %2492 = vmatprep.subr.mxu0 0.0
  %2493 = vmatpush1.msra.mxu0 %v80
  %2494 = vmatprep.subr.mxu0 0.0
  %2495 = vmatpush1.msra.mxu0 0.0
  %2496 = vmatprep.subr.mxu0 0.0
  %2497 = vmatpush1.msra.mxu0 0.0
  %2498 = vmatprep.subr.mxu0 0.0
  %2499 = vmatpush1.msra.mxu0 0.0
  %2500 = vmatprep.subr.mxu0 0.0
  %2501 = vmatpush1.msra.mxu0 0.0
  %2502 = vmatprep.subr.mxu0 0.0
  %2503 = vmatpush1.msra.mxu0 0.0
  %2504 = vmatprep.subr.mxu0 0.0
  %2505 = vmatpush1.msra.mxu0 0.0
  %2506 = vmatprep.subr.mxu0 0.0
  %2507 = vmatpush1.msra.mxu0 0.0
  %2508 = vmatprep.subr.mxu0 0.0
  %2509 = vmatpush1.msra.mxu0 0.0
  %2510 = vmatprep.subr.mxu0 0.0
  %2511 = vmatpush1.msra.mxu0 0.0
  %2512 = vmatprep.subr.mxu0 0.0
  %2513 = vmatpush1.msra.mxu0 0.0
  %2514 = vmatprep.subr.mxu0 0.0
  %2515 = vmatpush1.msra.mxu0 0.0
  %2516 = vmatprep.subr.mxu0 0.0
  %2517 = vmatpush1.msra.mxu0 0.0
  %2518 = vmatprep.subr.mxu0 0.0
  %2519 = vmatpush1.msra.mxu0 0.0
  %2520 = vmatprep.subr.mxu0 0.0
  %2521 = vmatpush1.msra.mxu0 0.0
  %2522 = vmatprep.subr.mxu0 0.0
  %2523 = vmatpush1.msra.mxu0 0.0
  %2524 = vmatprep.subr.mxu0 0.0
  %2525 = vmatpush1.msra.mxu0 0.0
  %2526 = vmatprep.subr.mxu0 0.0
  %2527 = vmatpush1.msra.mxu0 0.0
  %2528 = vmatprep.subr.mxu0 0.0
  %2529 = vmatpush1.msra.mxu0 0.0
  %2530 = vmatprep.subr.mxu0 0.0
  %2531 = vmatpush1.msra.mxu0 0.0
  %2532 = vmatprep.subr.mxu0 0.0
  %2533 = vmatpush1.msra.mxu0 0.0
  %2534 = vmatprep.subr.mxu0 0.0
  %2535 = vmatpush1.msra.mxu0 0.0
  %2536 = vmatprep.subr.mxu0 0.0
  %2537 = vmatpush1.msra.mxu0 0.0
  %2538 = vmatprep.subr.mxu0 0.0
  %2539 = vmatpush1.msra.mxu0 0.0
  %2540 = vmatprep.subr.mxu0 0.0
  %2541 = vmatpush1.msra.mxu0 0.0
  %2542 = vmatprep.subr.mxu0 0.0
  %2543 = vmatpush1.msra.mxu0 0.0
  %2544 = vmatprep.subr.mxu0 0.0
  %2545 = vmatpush1.msra.mxu0 0.0
  %2546 = vmatprep.subr.mxu0 0.0
  %2547 = vmatpush1.msra.mxu0 0.0
  %2548 = vmatprep.subr.mxu0 0.0
  %2549 = vmatpush1.msra.mxu0 0.0
  %2550 = vmatprep.subr.mxu0 0.0
  %2551 = vmatpush1.msra.mxu0 0.0
  %2552 = vmatprep.subr.mxu0 0.0
  %2553 = vmatpush1.msra.mxu0 0.0
  %2554 = vmatprep.subr.mxu0 0.0
  %2555 = vmatpush1.msra.mxu0 0.0
  %2556 = vmatprep.mubr.f32.mxu0 0.0
  %2557 = vmatmul.mubr.f32.gmra.mrb[0].mxu0 %v2487
  %v2558 = vpop.f32.mrb[0].mxu0
  %v2559 = vadd.f32 0.0, %v2558
  %v2560 = vpop.f32.mrb[0].mxu0
  %2561 = vmatprep.mubr.f32.mxu0 0.0
  %2562 = vmatmul.mubr.f32.gmra.mrb[0].mxu0 %v2490
  %v2563 = vpop.f32.mrb[0].mxu0
  %v2564 = vadd.f32 0.0, %v2563
  %v2565 = vpop.f32.mrb[0].mxu0
  %2566 = vdwg.mxu0
  %v2567 = vadd.f32 %v2353, %v2559
  %v2568 = vadd.f32 %v2354, %v2564
  %v2570 = vlaneseq
  %v2571 = vshrl.u32 %v2570, 7
  %v2572 = vsub.s32 0, %v2571
  %v2573 = vrot.slane %v82, %v2572
  %v2575 = vadd.f32 %v2567, %v2573
  %v2576 = vadd.f32 %v2568, %v2573
  %v2577 = vsel %vm183, %v2575, 0.0
  %2578 = vadd.xlane.f32.xlu0 %v2577
  %v2579 = vpop.xlane.xlu0 %2578
  %v2580 = vsel %vm183, %v2576, 0.0
  %2581 = vadd.xlane.f32.xlu0 %v2580
  %v2582 = vpop.xlane.xlu0 %2581
  %v2583 = vmul.f32 %v2579, %v190
  %v2584 = vmul.f32 %v2582, %v190
  %v2585 = vsub.f32 %v2575, %v2583
  %v2586 = vsub.f32 %v2576, %v2584
  %v2587 = vmul.f32 %v2585, %v2585
  %v2588 = vmul.f32 %v2586, %v2586
  %v2589 = vsel %vm183, %v2587, 0.0
  %2590 = vadd.xlane.f32.xlu0 %v2589
  %v2591 = vpop.xlane.xlu0 %2590
  %v2592 = vsel %vm183, %v2588, 0.0
  %2593 = vadd.xlane.f32.xlu0 %v2592
  %v2594 = vpop.xlane.xlu0 %2593
  %v2595 = vmul.f32 %v2591, %v190
  %v2596 = vmul.f32 %v2594, %v190
  %v2597 = vadd.f32 %v2595, 1e-05
  %v2598 = vadd.f32 %v2596, 1e-05
  %v2599 = vrsqrt.pop %v2597
  %v2600 = vrsqrt.pop %v2598
  %v2601 = vmul.f32 %v2585, %v2599
  %v2602 = vmul.f32 %v2586, %v2600
  %v2604 = vlaneseq
  %v2605 = vshrl.u32 %v2604, 7
  %v2606 = vsub.s32 0, %v2605
  %v2607 = vrot.slane %v84, %v2606
  %v2609 = vmul.f32 %v2601, %v2607
  %v2610 = vmul.f32 %v2602, %v2607
  %v2612 = vlaneseq
  %v2613 = vshrl.u32 %v2612, 7
  %v2614 = vsub.s32 0, %v2613
  %v2615 = vrot.slane %v86, %v2614
  %v2617 = vadd.f32 %v2609, %v2615
  %v2618 = vadd.f32 %v2610, %v2615
  %v2620 = vlaneseq
  %v2621 = vshrl.u32 %v2620, 7
  %v2622 = vsub.s32 0, %v2621
  %v2623 = vrot.slane %v90, %v2622
  %v2626 = vsel %vm183, %v2617, 0
  %v2629 = vsel %vm183, %v2618, 0
  %2631 = vmatprep.subr.mxu0 0.0
  %2632 = vmatpush1.msra.mxu0 %v88
  %2633 = vmatprep.subr.mxu0 0.0
  %2634 = vmatpush1.msra.mxu0 0.0
  %2635 = vmatprep.subr.mxu0 0.0
  %2636 = vmatpush1.msra.mxu0 0.0
  %2637 = vmatprep.subr.mxu0 0.0
  %2638 = vmatpush1.msra.mxu0 0.0
  %2639 = vmatprep.subr.mxu0 0.0
  %2640 = vmatpush1.msra.mxu0 0.0
  %2641 = vmatprep.subr.mxu0 0.0
  %2642 = vmatpush1.msra.mxu0 0.0
  %2643 = vmatprep.subr.mxu0 0.0
  %2644 = vmatpush1.msra.mxu0 0.0
  %2645 = vmatprep.subr.mxu0 0.0
  %2646 = vmatpush1.msra.mxu0 0.0
  %2647 = vmatprep.subr.mxu0 0.0
  %2648 = vmatpush1.msra.mxu0 0.0
  %2649 = vmatprep.subr.mxu0 0.0
  %2650 = vmatpush1.msra.mxu0 0.0
  %2651 = vmatprep.subr.mxu0 0.0
  %2652 = vmatpush1.msra.mxu0 0.0
  %2653 = vmatprep.subr.mxu0 0.0
  %2654 = vmatpush1.msra.mxu0 0.0
  %2655 = vmatprep.subr.mxu0 0.0
  %2656 = vmatpush1.msra.mxu0 0.0
  %2657 = vmatprep.subr.mxu0 0.0
  %2658 = vmatpush1.msra.mxu0 0.0
  %2659 = vmatprep.subr.mxu0 0.0
  %2660 = vmatpush1.msra.mxu0 0.0
  %2661 = vmatprep.subr.mxu0 0.0
  %2662 = vmatpush1.msra.mxu0 0.0
  %2663 = vmatprep.subr.mxu0 0.0
  %2664 = vmatpush1.msra.mxu0 0.0
  %2665 = vmatprep.subr.mxu0 0.0
  %2666 = vmatpush1.msra.mxu0 0.0
  %2667 = vmatprep.subr.mxu0 0.0
  %2668 = vmatpush1.msra.mxu0 0.0
  %2669 = vmatprep.subr.mxu0 0.0
  %2670 = vmatpush1.msra.mxu0 0.0
  %2671 = vmatprep.subr.mxu0 0.0
  %2672 = vmatpush1.msra.mxu0 0.0
  %2673 = vmatprep.subr.mxu0 0.0
  %2674 = vmatpush1.msra.mxu0 0.0
  %2675 = vmatprep.subr.mxu0 0.0
  %2676 = vmatpush1.msra.mxu0 0.0
  %2677 = vmatprep.subr.mxu0 0.0
  %2678 = vmatpush1.msra.mxu0 0.0
  %2679 = vmatprep.subr.mxu0 0.0
  %2680 = vmatpush1.msra.mxu0 0.0
  %2681 = vmatprep.subr.mxu0 0.0
  %2682 = vmatpush1.msra.mxu0 0.0
  %2683 = vmatprep.subr.mxu0 0.0
  %2684 = vmatpush1.msra.mxu0 0.0
  %2685 = vmatprep.subr.mxu0 0.0
  %2686 = vmatpush1.msra.mxu0 0.0
  %2687 = vmatprep.subr.mxu0 0.0
  %2688 = vmatpush1.msra.mxu0 0.0
  %2689 = vmatprep.subr.mxu0 0.0
  %2690 = vmatpush1.msra.mxu0 0.0
  %2691 = vmatprep.subr.mxu0 0.0
  %2692 = vmatpush1.msra.mxu0 0.0
  %2693 = vmatprep.subr.mxu0 0.0
  %2694 = vmatpush1.msra.mxu0 0.0
  %2695 = vmatprep.mubr.f32.mxu0 0.0
  %2696 = vmatmul.mubr.f32.gmra.mrb[0].mxu0 %v2626
  %v2697 = vpop.f32.mrb[0].mxu0
  %v2698 = vadd.f32 %v2623, %v2697
  %v2699 = vpop.f32.mrb[0].mxu0
  %2700 = vmatprep.mubr.f32.mxu0 0.0
  %2701 = vmatmul.mubr.f32.gmra.mrb[0].mxu0 %v2629
  %v2702 = vpop.f32.mrb[0].mxu0
  %v2703 = vadd.f32 %v2623, %v2702
  %v2704 = vpop.f32.mrb[0].mxu0
  %2705 = vdwg.mxu0
  %2707 = vrot.lane.b32.xlu0 %v2698, 120
  %v2708 = vpop.permute.xlu0 %2707
  %v2709 = vsel %vm329, %v2698, 0
  %v2711 = vsel %vm329, %v2708, 0
  %2713 = vmatprep.subr.mxu0 0.0
  %2714 = vmatpush1.xpose.msra.mxu0 %v2711
  %2715 = vmatprep.subr.mxu0 0.0
  %2716 = vmatpush1.xpose.msra.mxu0 0.0
  %2717 = vmatprep.subr.mxu0 0.0
  %2718 = vmatpush1.xpose.msra.mxu0 0.0
  %2719 = vmatprep.subr.mxu0 0.0
  %2720 = vmatpush1.xpose.msra.mxu0 0.0
  %2721 = vmatprep.subr.mxu0 0.0
  %2722 = vmatpush1.xpose.msra.mxu0 0.0
  %2723 = vmatprep.subr.mxu0 0.0
  %2724 = vmatpush1.xpose.msra.mxu0 0.0
  %2725 = vmatprep.subr.mxu0 0.0
  %2726 = vmatpush1.xpose.msra.mxu0 0.0
  %2727 = vmatprep.subr.mxu0 0.0
  %2728 = vmatpush1.xpose.msra.mxu0 0.0
  %2729 = vmatprep.subr.mxu0 0.0
  %2730 = vmatpush1.xpose.msra.mxu0 0.0
  %2731 = vmatprep.subr.mxu0 0.0
  %2732 = vmatpush1.xpose.msra.mxu0 0.0
  %2733 = vmatprep.subr.mxu0 0.0
  %2734 = vmatpush1.xpose.msra.mxu0 0.0
  %2735 = vmatprep.subr.mxu0 0.0
  %2736 = vmatpush1.xpose.msra.mxu0 0.0
  %2737 = vmatprep.subr.mxu0 0.0
  %2738 = vmatpush1.xpose.msra.mxu0 0.0
  %2739 = vmatprep.subr.mxu0 0.0
  %2740 = vmatpush1.xpose.msra.mxu0 0.0
  %2741 = vmatprep.subr.mxu0 0.0
  %2742 = vmatpush1.xpose.msra.mxu0 0.0
  %2743 = vmatprep.subr.mxu0 0.0
  %2744 = vmatpush1.xpose.msra.mxu0 0.0
  %2745 = vmatprep.subr.mxu0 0.0
  %2746 = vmatpush1.xpose.msra.mxu0 0.0
  %2747 = vmatprep.subr.mxu0 0.0
  %2748 = vmatpush1.xpose.msra.mxu0 0.0
  %2749 = vmatprep.subr.mxu0 0.0
  %2750 = vmatpush1.xpose.msra.mxu0 0.0
  %2751 = vmatprep.subr.mxu0 0.0
  %2752 = vmatpush1.xpose.msra.mxu0 0.0
  %2753 = vmatprep.subr.mxu0 0.0
  %2754 = vmatpush1.xpose.msra.mxu0 0.0
  %2755 = vmatprep.subr.mxu0 0.0
  %2756 = vmatpush1.xpose.msra.mxu0 0.0
  %2757 = vmatprep.subr.mxu0 0.0
  %2758 = vmatpush1.xpose.msra.mxu0 0.0
  %2759 = vmatprep.subr.mxu0 0.0
  %2760 = vmatpush1.xpose.msra.mxu0 0.0
  %2761 = vmatprep.subr.mxu0 0.0
  %2762 = vmatpush1.xpose.msra.mxu0 0.0
  %2763 = vmatprep.subr.mxu0 0.0
  %2764 = vmatpush1.xpose.msra.mxu0 0.0
  %2765 = vmatprep.subr.mxu0 0.0
  %2766 = vmatpush1.xpose.msra.mxu0 0.0
  %2767 = vmatprep.subr.mxu0 0.0
  %2768 = vmatpush1.xpose.msra.mxu0 0.0
  %2769 = vmatprep.subr.mxu0 0.0
  %2770 = vmatpush1.xpose.msra.mxu0 0.0
  %2771 = vmatprep.subr.mxu0 0.0
  %2772 = vmatpush1.xpose.msra.mxu0 0.0
  %2773 = vmatprep.subr.mxu0 0.0
  %2774 = vmatpush1.xpose.msra.mxu0 0.0
  %2775 = vmatprep.subr.mxu0 0.0
  %2776 = vmatpush1.xpose.msra.mxu0 0.0
  %2777 = vmatprep.mubr.f32.mxu0 0.0
  %2778 = vmatmul.mubr.f32.gmra.mrb[0].mxu0 %v2709
  %v2779 = vpop.f32.mrb[0].mxu0
  %v2780 = vadd.f32 %v319, %v2779
  %v2781 = vpop.f32.mrb[0].mxu0
  %2782 = vdwg.mxu0
  %2784 = vrot.lane.b32.xlu0 %v2703, 120
  %v2785 = vpop.permute.xlu0 %2784
  %v2786 = vsel %vm329, %v2703, 0
  %v2788 = vsel %vm329, %v2785, 0
  %2790 = vmatprep.subr.mxu0 0.0
  %2791 = vmatpush1.xpose.msra.mxu0 %v2788
  %2792 = vmatprep.subr.mxu0 0.0
  %2793 = vmatpush1.xpose.msra.mxu0 0.0
  %2794 = vmatprep.subr.mxu0 0.0
  %2795 = vmatpush1.xpose.msra.mxu0 0.0
  %2796 = vmatprep.subr.mxu0 0.0
  %2797 = vmatpush1.xpose.msra.mxu0 0.0
  %2798 = vmatprep.subr.mxu0 0.0
  %2799 = vmatpush1.xpose.msra.mxu0 0.0
  %2800 = vmatprep.subr.mxu0 0.0
  %2801 = vmatpush1.xpose.msra.mxu0 0.0
  %2802 = vmatprep.subr.mxu0 0.0
  %2803 = vmatpush1.xpose.msra.mxu0 0.0
  %2804 = vmatprep.subr.mxu0 0.0
  %2805 = vmatpush1.xpose.msra.mxu0 0.0
  %2806 = vmatprep.subr.mxu0 0.0
  %2807 = vmatpush1.xpose.msra.mxu0 0.0
  %2808 = vmatprep.subr.mxu0 0.0
  %2809 = vmatpush1.xpose.msra.mxu0 0.0
  %2810 = vmatprep.subr.mxu0 0.0
  %2811 = vmatpush1.xpose.msra.mxu0 0.0
  %2812 = vmatprep.subr.mxu0 0.0
  %2813 = vmatpush1.xpose.msra.mxu0 0.0
  %2814 = vmatprep.subr.mxu0 0.0
  %2815 = vmatpush1.xpose.msra.mxu0 0.0
  %2816 = vmatprep.subr.mxu0 0.0
  %2817 = vmatpush1.xpose.msra.mxu0 0.0
  %2818 = vmatprep.subr.mxu0 0.0
  %2819 = vmatpush1.xpose.msra.mxu0 0.0
  %2820 = vmatprep.subr.mxu0 0.0
  %2821 = vmatpush1.xpose.msra.mxu0 0.0
  %2822 = vmatprep.subr.mxu0 0.0
  %2823 = vmatpush1.xpose.msra.mxu0 0.0
  %2824 = vmatprep.subr.mxu0 0.0
  %2825 = vmatpush1.xpose.msra.mxu0 0.0
  %2826 = vmatprep.subr.mxu0 0.0
  %2827 = vmatpush1.xpose.msra.mxu0 0.0
  %2828 = vmatprep.subr.mxu0 0.0
  %2829 = vmatpush1.xpose.msra.mxu0 0.0
  %2830 = vmatprep.subr.mxu0 0.0
  %2831 = vmatpush1.xpose.msra.mxu0 0.0
  %2832 = vmatprep.subr.mxu0 0.0
  %2833 = vmatpush1.xpose.msra.mxu0 0.0
  %2834 = vmatprep.subr.mxu0 0.0
  %2835 = vmatpush1.xpose.msra.mxu0 0.0
  %2836 = vmatprep.subr.mxu0 0.0
  %2837 = vmatpush1.xpose.msra.mxu0 0.0
  %2838 = vmatprep.subr.mxu0 0.0
  %2839 = vmatpush1.xpose.msra.mxu0 0.0
  %2840 = vmatprep.subr.mxu0 0.0
  %2841 = vmatpush1.xpose.msra.mxu0 0.0
  %2842 = vmatprep.subr.mxu0 0.0
  %2843 = vmatpush1.xpose.msra.mxu0 0.0
  %2844 = vmatprep.subr.mxu0 0.0
  %2845 = vmatpush1.xpose.msra.mxu0 0.0
  %2846 = vmatprep.subr.mxu0 0.0
  %2847 = vmatpush1.xpose.msra.mxu0 0.0
  %2848 = vmatprep.subr.mxu0 0.0
  %2849 = vmatpush1.xpose.msra.mxu0 0.0
  %2850 = vmatprep.subr.mxu0 0.0
  %2851 = vmatpush1.xpose.msra.mxu0 0.0
  %2852 = vmatprep.subr.mxu0 0.0
  %2853 = vmatpush1.xpose.msra.mxu0 0.0
  %2854 = vmatprep.mubr.f32.mxu0 0.0
  %2855 = vmatmul.mubr.f32.gmra.mrb[0].mxu0 %v2786
  %v2856 = vpop.f32.mrb[0].mxu0
  %v2857 = vadd.f32 %v323, %v2856
  %v2858 = vpop.f32.mrb[0].mxu0
  %2859 = vdwg.mxu0
  %v2860 = vsel %vm183, %v2780, -inf
  %2861 = vmax.xlane.f32.xlu0 %v2860
  %v2862 = vpop.xlane.xlu0 %2861
  %v2863 = vsel %vm183, %v2857, -inf
  %2864 = vmax.xlane.f32.xlu0 %v2863
  %v2865 = vpop.xlane.xlu0 %2864
  %v2866 = vsub.f32 %v2780, %v2862
  %v2867 = vsub.f32 %v2857, %v2865
  %v2868 = vmul.f32 %v2866, 1.442695
  %v2869 = vpow.pop %v2868
  %v2870 = vmul.f32 %v2867, 1.442695
  %v2871 = vpow.pop %v2870
  %v2872 = vsel %vm183, %v2869, 0.0
  %2873 = vadd.xlane.f32.xlu0 %v2872
  %v2874 = vpop.xlane.xlu0 %2873
  %v2875 = vsel %vm183, %v2871, 0.0
  %2876 = vadd.xlane.f32.xlu0 %v2875
  %v2877 = vpop.xlane.xlu0 %2876
  %v2878 = vrcp.pop %v2874
  %v2879 = vrcp.pop %v2877
  %v2880 = vmul.f32 %v2869, %v2878
  %v2881 = vmul.f32 %v2871, %v2879
  %2882 = vrot.lane.b32.xlu0 %v2698, 112
  %v2883 = vpop.permute.xlu0 %2882
  %v2886 = vsel %vm183, %v2880, 0
  %2888 = vmatprep.subr.mxu0 0.0
  %2889 = vmatpush1.msra.mxu0 %v2883
  %2890 = vmatprep.subr.mxu0 0.0
  %2891 = vmatpush1.msra.mxu0 0.0
  %2892 = vmatprep.subr.mxu0 0.0
  %2893 = vmatpush1.msra.mxu0 0.0
  %2894 = vmatprep.subr.mxu0 0.0
  %2895 = vmatpush1.msra.mxu0 0.0
  %2896 = vmatprep.subr.mxu0 0.0
  %2897 = vmatpush1.msra.mxu0 0.0
  %2898 = vmatprep.subr.mxu0 0.0
  %2899 = vmatpush1.msra.mxu0 0.0
  %2900 = vmatprep.subr.mxu0 0.0
  %2901 = vmatpush1.msra.mxu0 0.0
  %2902 = vmatprep.subr.mxu0 0.0
  %2903 = vmatpush1.msra.mxu0 0.0
  %2904 = vmatprep.subr.mxu0 0.0
  %2905 = vmatpush1.msra.mxu0 0.0
  %2906 = vmatprep.subr.mxu0 0.0
  %2907 = vmatpush1.msra.mxu0 0.0
  %2908 = vmatprep.subr.mxu0 0.0
  %2909 = vmatpush1.msra.mxu0 0.0
  %2910 = vmatprep.subr.mxu0 0.0
  %2911 = vmatpush1.msra.mxu0 0.0
  %2912 = vmatprep.subr.mxu0 0.0
  %2913 = vmatpush1.msra.mxu0 0.0
  %2914 = vmatprep.subr.mxu0 0.0
  %2915 = vmatpush1.msra.mxu0 0.0
  %2916 = vmatprep.subr.mxu0 0.0
  %2917 = vmatpush1.msra.mxu0 0.0
  %2918 = vmatprep.subr.mxu0 0.0
  %2919 = vmatpush1.msra.mxu0 0.0
  %2920 = vmatprep.subr.mxu0 0.0
  %2921 = vmatpush1.msra.mxu0 0.0
  %2922 = vmatprep.subr.mxu0 0.0
  %2923 = vmatpush1.msra.mxu0 0.0
  %2924 = vmatprep.subr.mxu0 0.0
  %2925 = vmatpush1.msra.mxu0 0.0
  %2926 = vmatprep.subr.mxu0 0.0
  %2927 = vmatpush1.msra.mxu0 0.0
  %2928 = vmatprep.subr.mxu0 0.0
  %2929 = vmatpush1.msra.mxu0 0.0
  %2930 = vmatprep.subr.mxu0 0.0
  %2931 = vmatpush1.msra.mxu0 0.0
  %2932 = vmatprep.subr.mxu0 0.0
  %2933 = vmatpush1.msra.mxu0 0.0
  %2934 = vmatprep.subr.mxu0 0.0
  %2935 = vmatpush1.msra.mxu0 0.0
  %2936 = vmatprep.subr.mxu0 0.0
  %2937 = vmatpush1.msra.mxu0 0.0
  %2938 = vmatprep.subr.mxu0 0.0
  %2939 = vmatpush1.msra.mxu0 0.0
  %2940 = vmatprep.subr.mxu0 0.0
  %2941 = vmatpush1.msra.mxu0 0.0
  %2942 = vmatprep.subr.mxu0 0.0
  %2943 = vmatpush1.msra.mxu0 0.0
  %2944 = vmatprep.subr.mxu0 0.0
  %2945 = vmatpush1.msra.mxu0 0.0
  %2946 = vmatprep.subr.mxu0 0.0
  %2947 = vmatpush1.msra.mxu0 0.0
  %2948 = vmatprep.subr.mxu0 0.0
  %2949 = vmatpush1.msra.mxu0 0.0
  %2950 = vmatprep.subr.mxu0 0.0
  %2951 = vmatpush1.msra.mxu0 0.0
  %2952 = vmatprep.mubr.f32.mxu0 0.0
  %2953 = vmatmul.mubr.f32.gmra.mrb[0].mxu0 %v2886
  %v2954 = vpop.f32.mrb[0].mxu0
  %v2955 = vadd.f32 0.0, %v2954
  %v2956 = vpop.f32.mrb[0].mxu0
  %2957 = vdwg.mxu0
  %2958 = vrot.lane.b32.xlu0 %v2703, 112
  %v2959 = vpop.permute.xlu0 %2958
  %v2962 = vsel %vm183, %v2881, 0
  %2964 = vmatprep.subr.mxu0 0.0
  %2965 = vmatpush1.msra.mxu0 %v2959
  %2966 = vmatprep.subr.mxu0 0.0
  %2967 = vmatpush1.msra.mxu0 0.0
  %2968 = vmatprep.subr.mxu0 0.0
  %2969 = vmatpush1.msra.mxu0 0.0
  %2970 = vmatprep.subr.mxu0 0.0
  %2971 = vmatpush1.msra.mxu0 0.0
  %2972 = vmatprep.subr.mxu0 0.0
  %2973 = vmatpush1.msra.mxu0 0.0
  %2974 = vmatprep.subr.mxu0 0.0
  %2975 = vmatpush1.msra.mxu0 0.0
  %2976 = vmatprep.subr.mxu0 0.0
  %2977 = vmatpush1.msra.mxu0 0.0
  %2978 = vmatprep.subr.mxu0 0.0
  %2979 = vmatpush1.msra.mxu0 0.0
  %2980 = vmatprep.subr.mxu0 0.0
  %2981 = vmatpush1.msra.mxu0 0.0
  %2982 = vmatprep.subr.mxu0 0.0
  %2983 = vmatpush1.msra.mxu0 0.0
  %2984 = vmatprep.subr.mxu0 0.0
  %2985 = vmatpush1.msra.mxu0 0.0
  %2986 = vmatprep.subr.mxu0 0.0
  %2987 = vmatpush1.msra.mxu0 0.0
  %2988 = vmatprep.subr.mxu0 0.0
  %2989 = vmatpush1.msra.mxu0 0.0
  %2990 = vmatprep.subr.mxu0 0.0
  %2991 = vmatpush1.msra.mxu0 0.0
  %2992 = vmatprep.subr.mxu0 0.0
  %2993 = vmatpush1.msra.mxu0 0.0
  %2994 = vmatprep.subr.mxu0 0.0
  %2995 = vmatpush1.msra.mxu0 0.0
  %2996 = vmatprep.subr.mxu0 0.0
  %2997 = vmatpush1.msra.mxu0 0.0
  %2998 = vmatprep.subr.mxu0 0.0
  %2999 = vmatpush1.msra.mxu0 0.0
  %3000 = vmatprep.subr.mxu0 0.0
  %3001 = vmatpush1.msra.mxu0 0.0
  %3002 = vmatprep.subr.mxu0 0.0
  %3003 = vmatpush1.msra.mxu0 0.0
  %3004 = vmatprep.subr.mxu0 0.0
  %3005 = vmatpush1.msra.mxu0 0.0
  %3006 = vmatprep.subr.mxu0 0.0
  %3007 = vmatpush1.msra.mxu0 0.0
  %3008 = vmatprep.subr.mxu0 0.0
  %3009 = vmatpush1.msra.mxu0 0.0
  %3010 = vmatprep.subr.mxu0 0.0
  %3011 = vmatpush1.msra.mxu0 0.0
  %3012 = vmatprep.subr.mxu0 0.0
  %3013 = vmatpush1.msra.mxu0 0.0
  %3014 = vmatprep.subr.mxu0 0.0
  %3015 = vmatpush1.msra.mxu0 0.0
  %3016 = vmatprep.subr.mxu0 0.0
  %3017 = vmatpush1.msra.mxu0 0.0
  %3018 = vmatprep.subr.mxu0 0.0
  %3019 = vmatpush1.msra.mxu0 0.0
  %3020 = vmatprep.subr.mxu0 0.0
  %3021 = vmatpush1.msra.mxu0 0.0
  %3022 = vmatprep.subr.mxu0 0.0
  %3023 = vmatpush1.msra.mxu0 0.0
  %3024 = vmatprep.subr.mxu0 0.0
  %3025 = vmatpush1.msra.mxu0 0.0
  %3026 = vmatprep.subr.mxu0 0.0
  %3027 = vmatpush1.msra.mxu0 0.0
  %3028 = vmatprep.mubr.f32.mxu0 0.0
  %3029 = vmatmul.mubr.f32.gmra.mrb[0].mxu0 %v2962
  %v3030 = vpop.f32.mrb[0].mxu0
  %v3031 = vadd.f32 0.0, %v3030
  %v3032 = vpop.f32.mrb[0].mxu0
  %3033 = vdwg.mxu0
  %v3035 = vsel %vm329, %v2955, 0
  %v3038 = vsel %vm329, %v3031, 0
  %v3041 = vsel %vm661, %v92, 0
  %3043 = vmatprep.subr.mxu0 0.0
  %3044 = vmatpush1.msra.mxu0 %v3041
  %3045 = vmatprep.subr.mxu0 0.0
  %3046 = vmatpush1.msra.mxu0 0.0
  %3047 = vmatprep.subr.mxu0 0.0
  %3048 = vmatpush1.msra.mxu0 0.0
  %3049 = vmatprep.subr.mxu0 0.0
  %3050 = vmatpush1.msra.mxu0 0.0
  %3051 = vmatprep.subr.mxu0 0.0
  %3052 = vmatpush1.msra.mxu0 0.0
  %3053 = vmatprep.subr.mxu0 0.0
  %3054 = vmatpush1.msra.mxu0 0.0
  %3055 = vmatprep.subr.mxu0 0.0
  %3056 = vmatpush1.msra.mxu0 0.0
  %3057 = vmatprep.subr.mxu0 0.0
  %3058 = vmatpush1.msra.mxu0 0.0
  %3059 = vmatprep.subr.mxu0 0.0
  %3060 = vmatpush1.msra.mxu0 0.0
  %3061 = vmatprep.subr.mxu0 0.0
  %3062 = vmatpush1.msra.mxu0 0.0
  %3063 = vmatprep.subr.mxu0 0.0
  %3064 = vmatpush1.msra.mxu0 0.0
  %3065 = vmatprep.subr.mxu0 0.0
  %3066 = vmatpush1.msra.mxu0 0.0
  %3067 = vmatprep.subr.mxu0 0.0
  %3068 = vmatpush1.msra.mxu0 0.0
  %3069 = vmatprep.subr.mxu0 0.0
  %3070 = vmatpush1.msra.mxu0 0.0
  %3071 = vmatprep.subr.mxu0 0.0
  %3072 = vmatpush1.msra.mxu0 0.0
  %3073 = vmatprep.subr.mxu0 0.0
  %3074 = vmatpush1.msra.mxu0 0.0
  %3075 = vmatprep.subr.mxu0 0.0
  %3076 = vmatpush1.msra.mxu0 0.0
  %3077 = vmatprep.subr.mxu0 0.0
  %3078 = vmatpush1.msra.mxu0 0.0
  %3079 = vmatprep.subr.mxu0 0.0
  %3080 = vmatpush1.msra.mxu0 0.0
  %3081 = vmatprep.subr.mxu0 0.0
  %3082 = vmatpush1.msra.mxu0 0.0
  %3083 = vmatprep.subr.mxu0 0.0
  %3084 = vmatpush1.msra.mxu0 0.0
  %3085 = vmatprep.subr.mxu0 0.0
  %3086 = vmatpush1.msra.mxu0 0.0
  %3087 = vmatprep.subr.mxu0 0.0
  %3088 = vmatpush1.msra.mxu0 0.0
  %3089 = vmatprep.subr.mxu0 0.0
  %3090 = vmatpush1.msra.mxu0 0.0
  %3091 = vmatprep.subr.mxu0 0.0
  %3092 = vmatpush1.msra.mxu0 0.0
  %3093 = vmatprep.subr.mxu0 0.0
  %3094 = vmatpush1.msra.mxu0 0.0
  %3095 = vmatprep.subr.mxu0 0.0
  %3096 = vmatpush1.msra.mxu0 0.0
  %3097 = vmatprep.subr.mxu0 0.0
  %3098 = vmatpush1.msra.mxu0 0.0
  %3099 = vmatprep.subr.mxu0 0.0
  %3100 = vmatpush1.msra.mxu0 0.0
  %3101 = vmatprep.subr.mxu0 0.0
  %3102 = vmatpush1.msra.mxu0 0.0
  %3103 = vmatprep.subr.mxu0 0.0
  %3104 = vmatpush1.msra.mxu0 0.0
  %3105 = vmatprep.subr.mxu0 0.0
  %3106 = vmatpush1.msra.mxu0 0.0
  %3107 = vmatprep.mubr.f32.mxu0 0.0
  %3108 = vmatmul.mubr.f32.gmra.mrb[0].mxu0 %v3035
  %v3109 = vpop.f32.mrb[0].mxu0
  %v3110 = vadd.f32 0.0, %v3109
  %v3111 = vpop.f32.mrb[0].mxu0
  %3112 = vmatprep.mubr.f32.mxu0 0.0
  %3113 = vmatmul.mubr.f32.gmra.mrb[0].mxu0 %v3038
  %v3114 = vpop.f32.mrb[0].mxu0
  %v3115 = vadd.f32 0.0, %v3114
  %v3116 = vpop.f32.mrb[0].mxu0
  %3117 = vdwg.mxu0
  %v3119 = vlaneseq
  %v3120 = vshrl.u32 %v3119, 7
  %v3121 = vsub.s32 0, %v3120
  %v3122 = vrot.slane %v94, %v3121
  %v3124 = vadd.f32 %v3122, %v3110
  %v3125 = vadd.f32 %v3122, %v3115
  %3126 = vrot.lane.b32.xlu0 %v2698, 124
  %v3127 = vpop.permute.xlu0 %3126
  %3128 = vrot.lane.b32.xlu0 %v2698, 116
  %v3129 = vpop.permute.xlu0 %3128
  %v3130 = vsel %vm329, %v3127, 0
  %v3132 = vsel %vm329, %v3129, 0
  %3134 = vmatprep.subr.mxu0 0.0
  %3135 = vmatpush1.xpose.msra.mxu0 %v3132
  %3136 = vmatprep.subr.mxu0 0.0
  %3137 = vmatpush1.xpose.msra.mxu0 0.0
  %3138 = vmatprep.subr.mxu0 0.0
  %3139 = vmatpush1.xpose.msra.mxu0 0.0
  %3140 = vmatprep.subr.mxu0 0.0
  %3141 = vmatpush1.xpose.msra.mxu0 0.0
  %3142 = vmatprep.subr.mxu0 0.0
  %3143 = vmatpush1.xpose.msra.mxu0 0.0
  %3144 = vmatprep.subr.mxu0 0.0
  %3145 = vmatpush1.xpose.msra.mxu0 0.0
  %3146 = vmatprep.subr.mxu0 0.0
  %3147 = vmatpush1.xpose.msra.mxu0 0.0
  %3148 = vmatprep.subr.mxu0 0.0
  %3149 = vmatpush1.xpose.msra.mxu0 0.0
  %3150 = vmatprep.subr.mxu0 0.0
  %3151 = vmatpush1.xpose.msra.mxu0 0.0
  %3152 = vmatprep.subr.mxu0 0.0
  %3153 = vmatpush1.xpose.msra.mxu0 0.0
  %3154 = vmatprep.subr.mxu0 0.0
  %3155 = vmatpush1.xpose.msra.mxu0 0.0
  %3156 = vmatprep.subr.mxu0 0.0
  %3157 = vmatpush1.xpose.msra.mxu0 0.0
  %3158 = vmatprep.subr.mxu0 0.0
  %3159 = vmatpush1.xpose.msra.mxu0 0.0
  %3160 = vmatprep.subr.mxu0 0.0
  %3161 = vmatpush1.xpose.msra.mxu0 0.0
  %3162 = vmatprep.subr.mxu0 0.0
  %3163 = vmatpush1.xpose.msra.mxu0 0.0
  %3164 = vmatprep.subr.mxu0 0.0
  %3165 = vmatpush1.xpose.msra.mxu0 0.0
  %3166 = vmatprep.subr.mxu0 0.0
  %3167 = vmatpush1.xpose.msra.mxu0 0.0
  %3168 = vmatprep.subr.mxu0 0.0
  %3169 = vmatpush1.xpose.msra.mxu0 0.0
  %3170 = vmatprep.subr.mxu0 0.0
  %3171 = vmatpush1.xpose.msra.mxu0 0.0
  %3172 = vmatprep.subr.mxu0 0.0
  %3173 = vmatpush1.xpose.msra.mxu0 0.0
  %3174 = vmatprep.subr.mxu0 0.0
  %3175 = vmatpush1.xpose.msra.mxu0 0.0
  %3176 = vmatprep.subr.mxu0 0.0
  %3177 = vmatpush1.xpose.msra.mxu0 0.0
  %3178 = vmatprep.subr.mxu0 0.0
  %3179 = vmatpush1.xpose.msra.mxu0 0.0
  %3180 = vmatprep.subr.mxu0 0.0
  %3181 = vmatpush1.xpose.msra.mxu0 0.0
  %3182 = vmatprep.subr.mxu0 0.0
  %3183 = vmatpush1.xpose.msra.mxu0 0.0
  %3184 = vmatprep.subr.mxu0 0.0
  %3185 = vmatpush1.xpose.msra.mxu0 0.0
  %3186 = vmatprep.subr.mxu0 0.0
  %3187 = vmatpush1.xpose.msra.mxu0 0.0
  %3188 = vmatprep.subr.mxu0 0.0
  %3189 = vmatpush1.xpose.msra.mxu0 0.0
  %3190 = vmatprep.subr.mxu0 0.0
  %3191 = vmatpush1.xpose.msra.mxu0 0.0
  %3192 = vmatprep.subr.mxu0 0.0
  %3193 = vmatpush1.xpose.msra.mxu0 0.0
  %3194 = vmatprep.subr.mxu0 0.0
  %3195 = vmatpush1.xpose.msra.mxu0 0.0
  %3196 = vmatprep.subr.mxu0 0.0
  %3197 = vmatpush1.xpose.msra.mxu0 0.0
  %3198 = vmatprep.mubr.f32.mxu0 0.0
  %3199 = vmatmul.mubr.f32.gmra.mrb[0].mxu0 %v3130
  %v3200 = vpop.f32.mrb[0].mxu0
  %v3201 = vadd.f32 %v319, %v3200
  %v3202 = vpop.f32.mrb[0].mxu0
  %3203 = vdwg.mxu0
  %3204 = vrot.lane.b32.xlu0 %v2703, 124
  %v3205 = vpop.permute.xlu0 %3204
  %3206 = vrot.lane.b32.xlu0 %v2703, 116
  %v3207 = vpop.permute.xlu0 %3206
  %v3208 = vsel %vm329, %v3205, 0
  %v3210 = vsel %vm329, %v3207, 0
  %3212 = vmatprep.subr.mxu0 0.0
  %3213 = vmatpush1.xpose.msra.mxu0 %v3210
  %3214 = vmatprep.subr.mxu0 0.0
  %3215 = vmatpush1.xpose.msra.mxu0 0.0
  %3216 = vmatprep.subr.mxu0 0.0
  %3217 = vmatpush1.xpose.msra.mxu0 0.0
  %3218 = vmatprep.subr.mxu0 0.0
  %3219 = vmatpush1.xpose.msra.mxu0 0.0
  %3220 = vmatprep.subr.mxu0 0.0
  %3221 = vmatpush1.xpose.msra.mxu0 0.0
  %3222 = vmatprep.subr.mxu0 0.0
  %3223 = vmatpush1.xpose.msra.mxu0 0.0
  %3224 = vmatprep.subr.mxu0 0.0
  %3225 = vmatpush1.xpose.msra.mxu0 0.0
  %3226 = vmatprep.subr.mxu0 0.0
  %3227 = vmatpush1.xpose.msra.mxu0 0.0
  %3228 = vmatprep.subr.mxu0 0.0
  %3229 = vmatpush1.xpose.msra.mxu0 0.0
  %3230 = vmatprep.subr.mxu0 0.0
  %3231 = vmatpush1.xpose.msra.mxu0 0.0
  %3232 = vmatprep.subr.mxu0 0.0
  %3233 = vmatpush1.xpose.msra.mxu0 0.0
  %3234 = vmatprep.subr.mxu0 0.0
  %3235 = vmatpush1.xpose.msra.mxu0 0.0
  %3236 = vmatprep.subr.mxu0 0.0
  %3237 = vmatpush1.xpose.msra.mxu0 0.0
  %3238 = vmatprep.subr.mxu0 0.0
  %3239 = vmatpush1.xpose.msra.mxu0 0.0
  %3240 = vmatprep.subr.mxu0 0.0
  %3241 = vmatpush1.xpose.msra.mxu0 0.0
  %3242 = vmatprep.subr.mxu0 0.0
  %3243 = vmatpush1.xpose.msra.mxu0 0.0
  %3244 = vmatprep.subr.mxu0 0.0
  %3245 = vmatpush1.xpose.msra.mxu0 0.0
  %3246 = vmatprep.subr.mxu0 0.0
  %3247 = vmatpush1.xpose.msra.mxu0 0.0
  %3248 = vmatprep.subr.mxu0 0.0
  %3249 = vmatpush1.xpose.msra.mxu0 0.0
  %3250 = vmatprep.subr.mxu0 0.0
  %3251 = vmatpush1.xpose.msra.mxu0 0.0
  %3252 = vmatprep.subr.mxu0 0.0
  %3253 = vmatpush1.xpose.msra.mxu0 0.0
  %3254 = vmatprep.subr.mxu0 0.0
  %3255 = vmatpush1.xpose.msra.mxu0 0.0
  %3256 = vmatprep.subr.mxu0 0.0
  %3257 = vmatpush1.xpose.msra.mxu0 0.0
  %3258 = vmatprep.subr.mxu0 0.0
  %3259 = vmatpush1.xpose.msra.mxu0 0.0
  %3260 = vmatprep.subr.mxu0 0.0
  %3261 = vmatpush1.xpose.msra.mxu0 0.0
  %3262 = vmatprep.subr.mxu0 0.0
  %3263 = vmatpush1.xpose.msra.mxu0 0.0
  %3264 = vmatprep.subr.mxu0 0.0
  %3265 = vmatpush1.xpose.msra.mxu0 0.0
  %3266 = vmatprep.subr.mxu0 0.0
  %3267 = vmatpush1.xpose.msra.mxu0 0.0
  %3268 = vmatprep.subr.mxu0 0.0
  %3269 = vmatpush1.xpose.msra.mxu0 0.0
  %3270 = vmatprep.subr.mxu0 0.0
  %3271 = vmatpush1.xpose.msra.mxu0 0.0
  %3272 = vmatprep.subr.mxu0 0.0
  %3273 = vmatpush1.xpose.msra.mxu0 0.0
  %3274 = vmatprep.subr.mxu0 0.0
  %3275 = vmatpush1.xpose.msra.mxu0 0.0
  %3276 = vmatprep.mubr.f32.mxu0 0.0
  %3277 = vmatmul.mubr.f32.gmra.mrb[0].mxu0 %v3208
  %v3278 = vpop.f32.mrb[0].mxu0
  %v3279 = vadd.f32 %v323, %v3278
  %v3280 = vpop.f32.mrb[0].mxu0
  %3281 = vdwg.mxu0
  %v3282 = vsel %vm183, %v3201, -inf
  %3283 = vmax.xlane.f32.xlu0 %v3282
  %v3284 = vpop.xlane.xlu0 %3283
  %v3285 = vsel %vm183, %v3279, -inf
  %3286 = vmax.xlane.f32.xlu0 %v3285
  %v3287 = vpop.xlane.xlu0 %3286
  %v3288 = vsub.f32 %v3201, %v3284
  %v3289 = vsub.f32 %v3279, %v3287
  %v3290 = vmul.f32 %v3288, 1.442695
  %v3291 = vpow.pop %v3290
  %v3292 = vmul.f32 %v3289, 1.442695
  %v3293 = vpow.pop %v3292
  %v3294 = vsel %vm183, %v3291, 0.0
  %3295 = vadd.xlane.f32.xlu0 %v3294
  %v3296 = vpop.xlane.xlu0 %3295
  %v3297 = vsel %vm183, %v3293, 0.0
  %3298 = vadd.xlane.f32.xlu0 %v3297
  %v3299 = vpop.xlane.xlu0 %3298
  %v3300 = vrcp.pop %v3296
  %v3301 = vrcp.pop %v3299
  %v3302 = vmul.f32 %v3291, %v3300
  %v3303 = vmul.f32 %v3293, %v3301
  %3304 = vrot.lane.b32.xlu0 %v2698, 108
  %v3305 = vpop.permute.xlu0 %3304
  %v3308 = vsel %vm183, %v3302, 0
  %3310 = vmatprep.subr.mxu0 0.0
  %3311 = vmatpush1.msra.mxu0 %v3305
  %3312 = vmatprep.subr.mxu0 0.0
  %3313 = vmatpush1.msra.mxu0 0.0
  %3314 = vmatprep.subr.mxu0 0.0
  %3315 = vmatpush1.msra.mxu0 0.0
  %3316 = vmatprep.subr.mxu0 0.0
  %3317 = vmatpush1.msra.mxu0 0.0
  %3318 = vmatprep.subr.mxu0 0.0
  %3319 = vmatpush1.msra.mxu0 0.0
  %3320 = vmatprep.subr.mxu0 0.0
  %3321 = vmatpush1.msra.mxu0 0.0
  %3322 = vmatprep.subr.mxu0 0.0
  %3323 = vmatpush1.msra.mxu0 0.0
  %3324 = vmatprep.subr.mxu0 0.0
  %3325 = vmatpush1.msra.mxu0 0.0
  %3326 = vmatprep.subr.mxu0 0.0
  %3327 = vmatpush1.msra.mxu0 0.0
  %3328 = vmatprep.subr.mxu0 0.0
  %3329 = vmatpush1.msra.mxu0 0.0
  %3330 = vmatprep.subr.mxu0 0.0
  %3331 = vmatpush1.msra.mxu0 0.0
  %3332 = vmatprep.subr.mxu0 0.0
  %3333 = vmatpush1.msra.mxu0 0.0
  %3334 = vmatprep.subr.mxu0 0.0
  %3335 = vmatpush1.msra.mxu0 0.0
  %3336 = vmatprep.subr.mxu0 0.0
  %3337 = vmatpush1.msra.mxu0 0.0
  %3338 = vmatprep.subr.mxu0 0.0
  %3339 = vmatpush1.msra.mxu0 0.0
  %3340 = vmatprep.subr.mxu0 0.0
  %3341 = vmatpush1.msra.mxu0 0.0
  %3342 = vmatprep.subr.mxu0 0.0
  %3343 = vmatpush1.msra.mxu0 0.0
  %3344 = vmatprep.subr.mxu0 0.0
  %3345 = vmatpush1.msra.mxu0 0.0
  %3346 = vmatprep.subr.mxu0 0.0
  %3347 = vmatpush1.msra.mxu0 0.0
  %3348 = vmatprep.subr.mxu0 0.0
  %3349 = vmatpush1.msra.mxu0 0.0
  %3350 = vmatprep.subr.mxu0 0.0
  %3351 = vmatpush1.msra.mxu0 0.0
  %3352 = vmatprep.subr.mxu0 0.0
  %3353 = vmatpush1.msra.mxu0 0.0
  %3354 = vmatprep.subr.mxu0 0.0
  %3355 = vmatpush1.msra.mxu0 0.0
  %3356 = vmatprep.subr.mxu0 0.0
  %3357 = vmatpush1.msra.mxu0 0.0
  %3358 = vmatprep.subr.mxu0 0.0
  %3359 = vmatpush1.msra.mxu0 0.0
  %3360 = vmatprep.subr.mxu0 0.0
  %3361 = vmatpush1.msra.mxu0 0.0
  %3362 = vmatprep.subr.mxu0 0.0
  %3363 = vmatpush1.msra.mxu0 0.0
  %3364 = vmatprep.subr.mxu0 0.0
  %3365 = vmatpush1.msra.mxu0 0.0
  %3366 = vmatprep.subr.mxu0 0.0
  %3367 = vmatpush1.msra.mxu0 0.0
  %3368 = vmatprep.subr.mxu0 0.0
  %3369 = vmatpush1.msra.mxu0 0.0
  %3370 = vmatprep.subr.mxu0 0.0
  %3371 = vmatpush1.msra.mxu0 0.0
  %3372 = vmatprep.subr.mxu0 0.0
  %3373 = vmatpush1.msra.mxu0 0.0
  %3374 = vmatprep.mubr.f32.mxu0 0.0
  %3375 = vmatmul.mubr.f32.gmra.mrb[0].mxu0 %v3308
  %v3376 = vpop.f32.mrb[0].mxu0
  %v3377 = vadd.f32 0.0, %v3376
  %v3378 = vpop.f32.mrb[0].mxu0
  %3379 = vdwg.mxu0
  %3380 = vrot.lane.b32.xlu0 %v2703, 108
  %v3381 = vpop.permute.xlu0 %3380
  %v3384 = vsel %vm183, %v3303, 0
  %3386 = vmatprep.subr.mxu0 0.0
  %3387 = vmatpush1.msra.mxu0 %v3381
  %3388 = vmatprep.subr.mxu0 0.0
  %3389 = vmatpush1.msra.mxu0 0.0
  %3390 = vmatprep.subr.mxu0 0.0
  %3391 = vmatpush1.msra.mxu0 0.0
  %3392 = vmatprep.subr.mxu0 0.0
  %3393 = vmatpush1.msra.mxu0 0.0
  %3394 = vmatprep.subr.mxu0 0.0
  %3395 = vmatpush1.msra.mxu0 0.0
  %3396 = vmatprep.subr.mxu0 0.0
  %3397 = vmatpush1.msra.mxu0 0.0
  %3398 = vmatprep.subr.mxu0 0.0
  %3399 = vmatpush1.msra.mxu0 0.0
  %3400 = vmatprep.subr.mxu0 0.0
  %3401 = vmatpush1.msra.mxu0 0.0
  %3402 = vmatprep.subr.mxu0 0.0
  %3403 = vmatpush1.msra.mxu0 0.0
  %3404 = vmatprep.subr.mxu0 0.0
  %3405 = vmatpush1.msra.mxu0 0.0
  %3406 = vmatprep.subr.mxu0 0.0
  %3407 = vmatpush1.msra.mxu0 0.0
  %3408 = vmatprep.subr.mxu0 0.0
  %3409 = vmatpush1.msra.mxu0 0.0
  %3410 = vmatprep.subr.mxu0 0.0
  %3411 = vmatpush1.msra.mxu0 0.0
  %3412 = vmatprep.subr.mxu0 0.0
  %3413 = vmatpush1.msra.mxu0 0.0
  %3414 = vmatprep.subr.mxu0 0.0
  %3415 = vmatpush1.msra.mxu0 0.0
  %3416 = vmatprep.subr.mxu0 0.0
  %3417 = vmatpush1.msra.mxu0 0.0
  %3418 = vmatprep.subr.mxu0 0.0
  %3419 = vmatpush1.msra.mxu0 0.0
  %3420 = vmatprep.subr.mxu0 0.0
  %3421 = vmatpush1.msra.mxu0 0.0
  %3422 = vmatprep.subr.mxu0 0.0
  %3423 = vmatpush1.msra.mxu0 0.0
  %3424 = vmatprep.subr.mxu0 0.0
  %3425 = vmatpush1.msra.mxu0 0.0
  %3426 = vmatprep.subr.mxu0 0.0
  %3427 = vmatpush1.msra.mxu0 0.0
  %3428 = vmatprep.subr.mxu0 0.0
  %3429 = vmatpush1.msra.mxu0 0.0
  %3430 = vmatprep.subr.mxu0 0.0
  %3431 = vmatpush1.msra.mxu0 0.0
  %3432 = vmatprep.subr.mxu0 0.0
  %3433 = vmatpush1.msra.mxu0 0.0
  %3434 = vmatprep.subr.mxu0 0.0
  %3435 = vmatpush1.msra.mxu0 0.0
  %3436 = vmatprep.subr.mxu0 0.0
  %3437 = vmatpush1.msra.mxu0 0.0
  %3438 = vmatprep.subr.mxu0 0.0
  %3439 = vmatpush1.msra.mxu0 0.0
  %3440 = vmatprep.subr.mxu0 0.0
  %3441 = vmatpush1.msra.mxu0 0.0
  %3442 = vmatprep.subr.mxu0 0.0
  %3443 = vmatpush1.msra.mxu0 0.0
  %3444 = vmatprep.subr.mxu0 0.0
  %3445 = vmatpush1.msra.mxu0 0.0
  %3446 = vmatprep.subr.mxu0 0.0
  %3447 = vmatpush1.msra.mxu0 0.0
  %3448 = vmatprep.subr.mxu0 0.0
  %3449 = vmatpush1.msra.mxu0 0.0
  %3450 = vmatprep.mubr.f32.mxu0 0.0
  %3451 = vmatmul.mubr.f32.gmra.mrb[0].mxu0 %v3384
  %v3452 = vpop.f32.mrb[0].mxu0
  %v3453 = vadd.f32 0.0, %v3452
  %v3454 = vpop.f32.mrb[0].mxu0
  %3455 = vdwg.mxu0
  %v3456 = vrot.slane %v92, 4
  %v3458 = vsel %vm329, %v3377, 0
  %v3461 = vsel %vm329, %v3453, 0
  %v3463 = vsel %vm661, %v3456, 0
  %3465 = vmatprep.subr.mxu0 0.0
  %3466 = vmatpush1.msra.mxu0 %v3463
  %3467 = vmatprep.subr.mxu0 0.0
  %3468 = vmatpush1.msra.mxu0 0.0
  %3469 = vmatprep.subr.mxu0 0.0
  %3470 = vmatpush1.msra.mxu0 0.0
  %3471 = vmatprep.subr.mxu0 0.0
  %3472 = vmatpush1.msra.mxu0 0.0
  %3473 = vmatprep.subr.mxu0 0.0
  %3474 = vmatpush1.msra.mxu0 0.0
  %3475 = vmatprep.subr.mxu0 0.0
  %3476 = vmatpush1.msra.mxu0 0.0
  %3477 = vmatprep.subr.mxu0 0.0
  %3478 = vmatpush1.msra.mxu0 0.0
  %3479 = vmatprep.subr.mxu0 0.0
  %3480 = vmatpush1.msra.mxu0 0.0
  %3481 = vmatprep.subr.mxu0 0.0
  %3482 = vmatpush1.msra.mxu0 0.0
  %3483 = vmatprep.subr.mxu0 0.0
  %3484 = vmatpush1.msra.mxu0 0.0
  %3485 = vmatprep.subr.mxu0 0.0
  %3486 = vmatpush1.msra.mxu0 0.0
  %3487 = vmatprep.subr.mxu0 0.0
  %3488 = vmatpush1.msra.mxu0 0.0
  %3489 = vmatprep.subr.mxu0 0.0
  %3490 = vmatpush1.msra.mxu0 0.0
  %3491 = vmatprep.subr.mxu0 0.0
  %3492 = vmatpush1.msra.mxu0 0.0
  %3493 = vmatprep.subr.mxu0 0.0
  %3494 = vmatpush1.msra.mxu0 0.0
  %3495 = vmatprep.subr.mxu0 0.0
  %3496 = vmatpush1.msra.mxu0 0.0
  %3497 = vmatprep.subr.mxu0 0.0
  %3498 = vmatpush1.msra.mxu0 0.0
  %3499 = vmatprep.subr.mxu0 0.0
  %3500 = vmatpush1.msra.mxu0 0.0
  %3501 = vmatprep.subr.mxu0 0.0
  %3502 = vmatpush1.msra.mxu0 0.0
  %3503 = vmatprep.subr.mxu0 0.0
  %3504 = vmatpush1.msra.mxu0 0.0
  %3505 = vmatprep.subr.mxu0 0.0
  %3506 = vmatpush1.msra.mxu0 0.0
  %3507 = vmatprep.subr.mxu0 0.0
  %3508 = vmatpush1.msra.mxu0 0.0
  %3509 = vmatprep.subr.mxu0 0.0
  %3510 = vmatpush1.msra.mxu0 0.0
  %3511 = vmatprep.subr.mxu0 0.0
  %3512 = vmatpush1.msra.mxu0 0.0
  %3513 = vmatprep.subr.mxu0 0.0
  %3514 = vmatpush1.msra.mxu0 0.0
  %3515 = vmatprep.subr.mxu0 0.0
  %3516 = vmatpush1.msra.mxu0 0.0
  %3517 = vmatprep.subr.mxu0 0.0
  %3518 = vmatpush1.msra.mxu0 0.0
  %3519 = vmatprep.subr.mxu0 0.0
  %3520 = vmatpush1.msra.mxu0 0.0
  %3521 = vmatprep.subr.mxu0 0.0
  %3522 = vmatpush1.msra.mxu0 0.0
  %3523 = vmatprep.subr.mxu0 0.0
  %3524 = vmatpush1.msra.mxu0 0.0
  %3525 = vmatprep.subr.mxu0 0.0
  %3526 = vmatpush1.msra.mxu0 0.0
  %3527 = vmatprep.subr.mxu0 0.0
  %3528 = vmatpush1.msra.mxu0 0.0
  %3529 = vmatprep.mubr.f32.mxu0 0.0
  %3530 = vmatmul.mubr.f32.gmra.mrb[0].mxu0 %v3458
  %v3531 = vpop.f32.mrb[0].mxu0
  %v3532 = vadd.f32 0.0, %v3531
  %v3533 = vpop.f32.mrb[0].mxu0
  %3534 = vmatprep.mubr.f32.mxu0 0.0
  %3535 = vmatmul.mubr.f32.gmra.mrb[0].mxu0 %v3461
  %v3536 = vpop.f32.mrb[0].mxu0
  %v3537 = vadd.f32 0.0, %v3536
  %v3538 = vpop.f32.mrb[0].mxu0
  %3539 = vdwg.mxu0
  %v3540 = vadd.f32 %v3124, %v3532
  %v3541 = vadd.f32 %v3125, %v3537
  %v3542 = vadd.f32 %v2575, %v3540
  %v3543 = vadd.f32 %v2576, %v3541
  %v3544 = vsel %vm183, %v3542, 0.0
  %3545 = vadd.xlane.f32.xlu0 %v3544
  %v3546 = vpop.xlane.xlu0 %3545
  %v3547 = vsel %vm183, %v3543, 0.0
  %3548 = vadd.xlane.f32.xlu0 %v3547
  %v3549 = vpop.xlane.xlu0 %3548
  %v3550 = vmul.f32 %v3546, %v190
  %v3551 = vmul.f32 %v3549, %v190
  %v3552 = vsub.f32 %v3542, %v3550
  %v3553 = vsub.f32 %v3543, %v3551
  %v3554 = vmul.f32 %v3552, %v3552
  %v3555 = vmul.f32 %v3553, %v3553
  %v3556 = vsel %vm183, %v3554, 0.0
  %3557 = vadd.xlane.f32.xlu0 %v3556
  %v3558 = vpop.xlane.xlu0 %3557
  %v3559 = vsel %vm183, %v3555, 0.0
  %3560 = vadd.xlane.f32.xlu0 %v3559
  %v3561 = vpop.xlane.xlu0 %3560
  %v3562 = vmul.f32 %v3558, %v190
  %v3563 = vmul.f32 %v3561, %v190
  %v3564 = vadd.f32 %v3562, 1e-05
  %v3565 = vadd.f32 %v3563, 1e-05
  %v3566 = vrsqrt.pop %v3564
  %v3567 = vrsqrt.pop %v3565
  %v3568 = vmul.f32 %v3552, %v3566
  %v3569 = vmul.f32 %v3553, %v3567
  %v3571 = vlaneseq
  %v3572 = vshrl.u32 %v3571, 7
  %v3573 = vsub.s32 0, %v3572
  %v3574 = vrot.slane %v96, %v3573
  %v3576 = vmul.f32 %v3568, %v3574
  %v3577 = vmul.f32 %v3569, %v3574
  %v3579 = vlaneseq
  %v3580 = vshrl.u32 %v3579, 7
  %v3581 = vsub.s32 0, %v3580
  %v3582 = vrot.slane %v98, %v3581
  %v3584 = vadd.f32 %v3576, %v3582
  %v3585 = vadd.f32 %v3577, %v3582
  %v3587 = vlaneseq
  %v3588 = vshrl.u32 %v3587, 7
  %v3589 = vsub.s32 0, %v3588
  %v3590 = vrot.slane %v102, %v3589
  %v3593 = vsel %vm183, %v3584, 0
  %v3596 = vsel %vm183, %v3585, 0
  %3598 = vmatprep.subr.mxu0 0.0
  %3599 = vmatpush1.msra.mxu0 %v100
  %3600 = vmatprep.subr.mxu0 0.0
  %3601 = vmatpush1.msra.mxu0 0.0
  %3602 = vmatprep.subr.mxu0 0.0
  %3603 = vmatpush1.msra.mxu0 0.0
  %3604 = vmatprep.subr.mxu0 0.0
  %3605 = vmatpush1.msra.mxu0 0.0
  %3606 = vmatprep.subr.mxu0 0.0
  %3607 = vmatpush1.msra.mxu0 0.0
  %3608 = vmatprep.subr.mxu0 0.0
  %3609 = vmatpush1.msra.mxu0 0.0
  %3610 = vmatprep.subr.mxu0 0.0
  %3611 = vmatpush1.msra.mxu0 0.0
  %3612 = vmatprep.subr.mxu0 0.0
  %3613 = vmatpush1.msra.mxu0 0.0
  %3614 = vmatprep.subr.mxu0 0.0
  %3615 = vmatpush1.msra.mxu0 0.0
  %3616 = vmatprep.subr.mxu0 0.0
  %3617 = vmatpush1.msra.mxu0 0.0
  %3618 = vmatprep.subr.mxu0 0.0
  %3619 = vmatpush1.msra.mxu0 0.0
  %3620 = vmatprep.subr.mxu0 0.0
  %3621 = vmatpush1.msra.mxu0 0.0
  %3622 = vmatprep.subr.mxu0 0.0
  %3623 = vmatpush1.msra.mxu0 0.0
  %3624 = vmatprep.subr.mxu0 0.0
  %3625 = vmatpush1.msra.mxu0 0.0
  %3626 = vmatprep.subr.mxu0 0.0
  %3627 = vmatpush1.msra.mxu0 0.0
  %3628 = vmatprep.subr.mxu0 0.0
  %3629 = vmatpush1.msra.mxu0 0.0
  %3630 = vmatprep.subr.mxu0 0.0
  %3631 = vmatpush1.msra.mxu0 0.0
  %3632 = vmatprep.subr.mxu0 0.0
  %3633 = vmatpush1.msra.mxu0 0.0
  %3634 = vmatprep.subr.mxu0 0.0
  %3635 = vmatpush1.msra.mxu0 0.0
  %3636 = vmatprep.subr.mxu0 0.0
  %3637 = vmatpush1.msra.mxu0 0.0
  %3638 = vmatprep.subr.mxu0 0.0
  %3639 = vmatpush1.msra.mxu0 0.0
  %3640 = vmatprep.subr.mxu0 0.0
  %3641 = vmatpush1.msra.mxu0 0.0
  %3642 = vmatprep.subr.mxu0 0.0
  %3643 = vmatpush1.msra.mxu0 0.0
  %3644 = vmatprep.subr.mxu0 0.0
  %3645 = vmatpush1.msra.mxu0 0.0
  %3646 = vmatprep.subr.mxu0 0.0
  %3647 = vmatpush1.msra.mxu0 0.0
  %3648 = vmatprep.subr.mxu0 0.0
  %3649 = vmatpush1.msra.mxu0 0.0
  %3650 = vmatprep.subr.mxu0 0.0
  %3651 = vmatpush1.msra.mxu0 0.0
  %3652 = vmatprep.subr.mxu0 0.0
  %3653 = vmatpush1.msra.mxu0 0.0
  %3654 = vmatprep.subr.mxu0 0.0
  %3655 = vmatpush1.msra.mxu0 0.0
  %3656 = vmatprep.subr.mxu0 0.0
  %3657 = vmatpush1.msra.mxu0 0.0
  %3658 = vmatprep.subr.mxu0 0.0
  %3659 = vmatpush1.msra.mxu0 0.0
  %3660 = vmatprep.subr.mxu0 0.0
  %3661 = vmatpush1.msra.mxu0 0.0
  %3662 = vmatprep.mubr.f32.mxu0 0.0
  %3663 = vmatmul.mubr.f32.gmra.mrb[0].mxu0 %v3593
  %v3664 = vpop.f32.mrb[0].mxu0
  %v3665 = vadd.f32 %v3590, %v3664
  %v3666 = vpop.f32.mrb[0].mxu0
  %3667 = vmatprep.mubr.f32.mxu0 0.0
  %3668 = vmatmul.mubr.f32.gmra.mrb[0].mxu0 %v3596
  %v3669 = vpop.f32.mrb[0].mxu0
  %v3670 = vadd.f32 %v3590, %v3669
  %v3671 = vpop.f32.mrb[0].mxu0
  %3672 = vdwg.mxu0
  %v3673 = vmax.f32 %v3665, 0.0
  %v3674 = vmax.f32 %v3670, 0.0
  %v3676 = vsel %vm183, %v3673, 0
  %v3679 = vsel %vm183, %v3674, 0
  %3681 = vmatprep.subr.mxu0 0.0
  %3682 = vmatpush1.msra.mxu0 %v104
  %3683 = vmatprep.subr.mxu0 0.0
  %3684 = vmatpush1.msra.mxu0 0.0
  %3685 = vmatprep.subr.mxu0 0.0
  %3686 = vmatpush1.msra.mxu0 0.0
  %3687 = vmatprep.subr.mxu0 0.0
  %3688 = vmatpush1.msra.mxu0 0.0
  %3689 = vmatprep.subr.mxu0 0.0
  %3690 = vmatpush1.msra.mxu0 0.0
  %3691 = vmatprep.subr.mxu0 0.0
  %3692 = vmatpush1.msra.mxu0 0.0
  %3693 = vmatprep.subr.mxu0 0.0
  %3694 = vmatpush1.msra.mxu0 0.0
  %3695 = vmatprep.subr.mxu0 0.0
  %3696 = vmatpush1.msra.mxu0 0.0
  %3697 = vmatprep.subr.mxu0 0.0
  %3698 = vmatpush1.msra.mxu0 0.0
  %3699 = vmatprep.subr.mxu0 0.0
  %3700 = vmatpush1.msra.mxu0 0.0
  %3701 = vmatprep.subr.mxu0 0.0
  %3702 = vmatpush1.msra.mxu0 0.0
  %3703 = vmatprep.subr.mxu0 0.0
  %3704 = vmatpush1.msra.mxu0 0.0
  %3705 = vmatprep.subr.mxu0 0.0
  %3706 = vmatpush1.msra.mxu0 0.0
  %3707 = vmatprep.subr.mxu0 0.0
  %3708 = vmatpush1.msra.mxu0 0.0
  %3709 = vmatprep.subr.mxu0 0.0
  %3710 = vmatpush1.msra.mxu0 0.0
  %3711 = vmatprep.subr.mxu0 0.0
  %3712 = vmatpush1.msra.mxu0 0.0
  %3713 = vmatprep.subr.mxu0 0.0
  %3714 = vmatpush1.msra.mxu0 0.0
  %3715 = vmatprep.subr.mxu0 0.0
  %3716 = vmatpush1.msra.mxu0 0.0
  %3717 = vmatprep.subr.mxu0 0.0
  %3718 = vmatpush1.msra.mxu0 0.0
  %3719 = vmatprep.subr.mxu0 0.0
  %3720 = vmatpush1.msra.mxu0 0.0
  %3721 = vmatprep.subr.mxu0 0.0
  %3722 = vmatpush1.msra.mxu0 0.0
  %3723 = vmatprep.subr.mxu0 0.0
  %3724 = vmatpush1.msra.mxu0 0.0
  %3725 = vmatprep.subr.mxu0 0.0
  %3726 = vmatpush1.msra.mxu0 0.0
  %3727 = vmatprep.subr.mxu0 0.0
  %3728 = vmatpush1.msra.mxu0 0.0
  %3729 = vmatprep.subr.mxu0 0.0
  %3730 = vmatpush1.msra.mxu0 0.0
  %3731 = vmatprep.subr.mxu0 0.0
  %3732 = vmatpush1.msra.mxu0 0.0
  %3733 = vmatprep.subr.mxu0 0.0
  %3734 = vmatpush1.msra.mxu0 0.0
  %3735 = vmatprep.subr.mxu0 0.0
  %3736 = vmatpush1.msra.mxu0 0.0
  %3737 = vmatprep.subr.mxu0 0.0
  %3738 = vmatpush1.msra.mxu0 0.0
  %3739 = vmatprep.subr.mxu0 0.0
  %3740 = vmatpush1.msra.mxu0 0.0
  %3741 = vmatprep.subr.mxu0 0.0
  %3742 = vmatpush1.msra.mxu0 0.0
  %3743 = vmatprep.subr.mxu0 0.0
  %3744 = vmatpush1.msra.mxu0 0.0
  %3745 = vmatprep.mubr.f32.mxu0 0.0
  %3746 = vmatmul.mubr.f32.gmra.mrb[0].mxu0 %v3676
  %v3747 = vpop.f32.mrb[0].mxu0
  %v3748 = vadd.f32 0.0, %v3747
  %v3749 = vpop.f32.mrb[0].mxu0
  %3750 = vmatprep.mubr.f32.mxu0 0.0
  %3751 = vmatmul.mubr.f32.gmra.mrb[0].mxu0 %v3679
  %v3752 = vpop.f32.mrb[0].mxu0
  %v3753 = vadd.f32 0.0, %v3752
  %v3754 = vpop.f32.mrb[0].mxu0
  %3755 = vdwg.mxu0
  %v3756 = vadd.f32 %v3542, %v3748
  %v3757 = vadd.f32 %v3543, %v3753
  %v3759 = vlaneseq
  %v3760 = vshrl.u32 %v3759, 7
  %v3761 = vsub.s32 0, %v3760
  %v3762 = vrot.slane %v106, %v3761
  %v3764 = vadd.f32 %v3756, %v3762
  %v3765 = vadd.f32 %v3757, %v3762
  %v3766 = vsel %vm183, %v3764, 0.0
  %3767 = vadd.xlane.f32.xlu0 %v3766
  %v3768 = vpop.xlane.xlu0 %3767
  %v3769 = vsel %vm183, %v3765, 0.0
  %3770 = vadd.xlane.f32.xlu0 %v3769
  %v3771 = vpop.xlane.xlu0 %3770
  %v3772 = vmul.f32 %v3768, %v190
  %v3773 = vmul.f32 %v3771, %v190
  %v3774 = vsub.f32 %v3764, %v3772
  %v3775 = vsub.f32 %v3765, %v3773
  %v3776 = vmul.f32 %v3774, %v3774
  %v3777 = vmul.f32 %v3775, %v3775
  %v3778 = vsel %vm183, %v3776, 0.0
  %3779 = vadd.xlane.f32.xlu0 %v3778
  %v3780 = vpop.xlane.xlu0 %3779
  %v3781 = vsel %vm183, %v3777, 0.0
  %3782 = vadd.xlane.f32.xlu0 %v3781
  %v3783 = vpop.xlane.xlu0 %3782
  %v3784 = vmul.f32 %v3780, %v190
  %v3785 = vmul.f32 %v3783, %v190
  %v3786 = vadd.f32 %v3784, 1e-05
  %v3787 = vadd.f32 %v3785, 1e-05
  %v3788 = vrsqrt.pop %v3786
  %v3789 = vrsqrt.pop %v3787
  %v3790 = vmul.f32 %v3774, %v3788
  %v3791 = vmul.f32 %v3775, %v3789
  %v3793 = vlaneseq
  %v3794 = vshrl.u32 %v3793, 7
  %v3795 = vsub.s32 0, %v3794
  %v3796 = vrot.slane %v108, %v3795
  %v3798 = vmul.f32 %v3790, %v3796
  %v3799 = vmul.f32 %v3791, %v3796
  %v3801 = vlaneseq
  %v3802 = vshrl.u32 %v3801, 7
  %v3803 = vsub.s32 0, %v3802
  %v3804 = vrot.slane %v110, %v3803
  %v3806 = vadd.f32 %v3798, %v3804
  %v3807 = vadd.f32 %v3799, %v3804
  %v3809 = vlaneseq
  %v3810 = vshrl.u32 %v3809, 7
  %v3811 = vsub.s32 0, %v3810
  %v3812 = vrot.slane %v114, %v3811
  %v3815 = vsel %vm183, %v3806, 0
  %v3818 = vsel %vm183, %v3807, 0
  %3820 = vmatprep.subr.mxu0 0.0
  %3821 = vmatpush1.msra.mxu0 %v112
  %3822 = vmatprep.subr.mxu0 0.0
  %3823 = vmatpush1.msra.mxu0 0.0
  %3824 = vmatprep.subr.mxu0 0.0
  %3825 = vmatpush1.msra.mxu0 0.0
  %3826 = vmatprep.subr.mxu0 0.0
  %3827 = vmatpush1.msra.mxu0 0.0
  %3828 = vmatprep.subr.mxu0 0.0
  %3829 = vmatpush1.msra.mxu0 0.0
  %3830 = vmatprep.subr.mxu0 0.0
  %3831 = vmatpush1.msra.mxu0 0.0
  %3832 = vmatprep.subr.mxu0 0.0
  %3833 = vmatpush1.msra.mxu0 0.0
  %3834 = vmatprep.subr.mxu0 0.0
  %3835 = vmatpush1.msra.mxu0 0.0
  %3836 = vmatprep.subr.mxu0 0.0
  %3837 = vmatpush1.msra.mxu0 0.0
  %3838 = vmatprep.subr.mxu0 0.0
  %3839 = vmatpush1.msra.mxu0 0.0
  %3840 = vmatprep.subr.mxu0 0.0
  %3841 = vmatpush1.msra.mxu0 0.0
  %3842 = vmatprep.subr.mxu0 0.0
  %3843 = vmatpush1.msra.mxu0 0.0
  %3844 = vmatprep.subr.mxu0 0.0
  %3845 = vmatpush1.msra.mxu0 0.0
  %3846 = vmatprep.subr.mxu0 0.0
  %3847 = vmatpush1.msra.mxu0 0.0
  %3848 = vmatprep.subr.mxu0 0.0
  %3849 = vmatpush1.msra.mxu0 0.0
  %3850 = vmatprep.subr.mxu0 0.0
  %3851 = vmatpush1.msra.mxu0 0.0
  %3852 = vmatprep.subr.mxu0 0.0
  %3853 = vmatpush1.msra.mxu0 0.0
  %3854 = vmatprep.subr.mxu0 0.0
  %3855 = vmatpush1.msra.mxu0 0.0
  %3856 = vmatprep.subr.mxu0 0.0
  %3857 = vmatpush1.msra.mxu0 0.0
  %3858 = vmatprep.subr.mxu0 0.0
  %3859 = vmatpush1.msra.mxu0 0.0
  %3860 = vmatprep.subr.mxu0 0.0
  %3861 = vmatpush1.msra.mxu0 0.0
  %3862 = vmatprep.subr.mxu0 0.0
  %3863 = vmatpush1.msra.mxu0 0.0
  %3864 = vmatprep.subr.mxu0 0.0
  %3865 = vmatpush1.msra.mxu0 0.0
  %3866 = vmatprep.subr.mxu0 0.0
  %3867 = vmatpush1.msra.mxu0 0.0
  %3868 = vmatprep.subr.mxu0 0.0
  %3869 = vmatpush1.msra.mxu0 0.0
  %3870 = vmatprep.subr.mxu0 0.0
  %3871 = vmatpush1.msra.mxu0 0.0
  %3872 = vmatprep.subr.mxu0 0.0
  %3873 = vmatpush1.msra.mxu0 0.0
  %3874 = vmatprep.subr.mxu0 0.0
  %3875 = vmatpush1.msra.mxu0 0.0
  %3876 = vmatprep.subr.mxu0 0.0
  %3877 = vmatpush1.msra.mxu0 0.0
  %3878 = vmatprep.subr.mxu0 0.0
  %3879 = vmatpush1.msra.mxu0 0.0
  %3880 = vmatprep.subr.mxu0 0.0
  %3881 = vmatpush1.msra.mxu0 0.0
  %3882 = vmatprep.subr.mxu0 0.0
  %3883 = vmatpush1.msra.mxu0 0.0
  %3884 = vmatprep.mubr.f32.mxu0 0.0
  %3885 = vmatmul.mubr.f32.gmra.mrb[0].mxu0 %v3815
  %v3886 = vpop.f32.mrb[0].mxu0
  %v3887 = vadd.f32 %v3812, %v3886
  %v3888 = vpop.f32.mrb[0].mxu0
  %3889 = vmatprep.mubr.f32.mxu0 0.0
  %3890 = vmatmul.mubr.f32.gmra.mrb[0].mxu0 %v3818
  %v3891 = vpop.f32.mrb[0].mxu0
  %v3892 = vadd.f32 %v3812, %v3891
  %v3893 = vpop.f32.mrb[0].mxu0
  %3894 = vdwg.mxu0
  %3896 = vrot.lane.b32.xlu0 %v3887, 120
  %v3897 = vpop.permute.xlu0 %3896
  %v3898 = vsel %vm329, %v3887, 0
  %v3900 = vsel %vm329, %v3897, 0
  %3902 = vmatprep.subr.mxu0 0.0
  %3903 = vmatpush1.xpose.msra.mxu0 %v3900
  %3904 = vmatprep.subr.mxu0 0.0
  %3905 = vmatpush1.xpose.msra.mxu0 0.0
  %3906 = vmatprep.subr.mxu0 0.0
  %3907 = vmatpush1.xpose.msra.mxu0 0.0
  %3908 = vmatprep.subr.mxu0 0.0
  %3909 = vmatpush1.xpose.msra.mxu0 0.0
  %3910 = vmatprep.subr.mxu0 0.0
  %3911 = vmatpush1.xpose.msra.mxu0 0.0
  %3912 = vmatprep.subr.mxu0 0.0
  %3913 = vmatpush1.xpose.msra.mxu0 0.0
  %3914 = vmatprep.subr.mxu0 0.0
  %3915 = vmatpush1.xpose.msra.mxu0 0.0
  %3916 = vmatprep.subr.mxu0 0.0
  %3917 = vmatpush1.xpose.msra.mxu0 0.0
  %3918 = vmatprep.subr.mxu0 0.0
  %3919 = vmatpush1.xpose.msra.mxu0 0.0
  %3920 = vmatprep.subr.mxu0 0.0
  %3921 = vmatpush1.xpose.msra.mxu0 0.0
  %3922 = vmatprep.subr.mxu0 0.0
  %3923 = vmatpush1.xpose.msra.mxu0 0.0
  %3924 = vmatprep.subr.mxu0 0.0
  %3925 = vmatpush1.xpose.msra.mxu0 0.0
  %3926 = vmatprep.subr.mxu0 0.0
  %3927 = vmatpush1.xpose.msra.mxu0 0.0
  %3928 = vmatprep.subr.mxu0 0.0
  %3929 = vmatpush1.xpose.msra.mxu0 0.0
  %3930 = vmatprep.subr.mxu0 0.0
  %3931 = vmatpush1.xpose.msra.mxu0 0.0
  %3932 = vmatprep.subr.mxu0 0.0
  %3933 = vmatpush1.xpose.msra.mxu0 0.0
  %3934 = vmatprep.subr.mxu0 0.0
  %3935 = vmatpush1.xpose.msra.mxu0 0.0
  %3936 = vmatprep.subr.mxu0 0.0
  %3937 = vmatpush1.xpose.msra.mxu0 0.0
  %3938 = vmatprep.subr.mxu0 0.0
  %3939 = vmatpush1.xpose.msra.mxu0 0.0
  %3940 = vmatprep.subr.mxu0 0.0
  %3941 = vmatpush1.xpose.msra.mxu0 0.0
  %3942 = vmatprep.subr.mxu0 0.0
  %3943 = vmatpush1.xpose.msra.mxu0 0.0
  %3944 = vmatprep.subr.mxu0 0.0
  %3945 = vmatpush1.xpose.msra.mxu0 0.0
  %3946 = vmatprep.subr.mxu0 0.0
  %3947 = vmatpush1.xpose.msra.mxu0 0.0
  %3948 = vmatprep.subr.mxu0 0.0
  %3949 = vmatpush1.xpose.msra.mxu0 0.0
  %3950 = vmatprep.subr.mxu0 0.0
  %3951 = vmatpush1.xpose.msra.mxu0 0.0
  %3952 = vmatprep.subr.mxu0 0.0
  %3953 = vmatpush1.xpose.msra.mxu0 0.0
  %3954 = vmatprep.subr.mxu0 0.0
  %3955 = vmatpush1.xpose.msra.mxu0 0.0
  %3956 = vmatprep.subr.mxu0 0.0
  %3957 = vmatpush1.xpose.msra.mxu0 0.0
  %3958 = vmatprep.subr.mxu0 0.0
  %3959 = vmatpush1.xpose.msra.mxu0 0.0
  %3960 = vmatprep.subr.mxu0 0.0
  %3961 = vmatpush1.xpose.msra.mxu0 0.0
  %3962 = vmatprep.subr.mxu0 0.0
  %3963 = vmatpush1.xpose.msra.mxu0 0.0
  %3964 = vmatprep.subr.mxu0 0.0
  %3965 = vmatpush1.xpose.msra.mxu0 0.0
  %3966 = vmatprep.mubr.f32.mxu0 0.0
  %3967 = vmatmul.mubr.f32.gmra.mrb[0].mxu0 %v3898
  %v3968 = vpop.f32.mrb[0].mxu0
  %v3969 = vadd.f32 %v319, %v3968
  %v3970 = vpop.f32.mrb[0].mxu0
  %3971 = vdwg.mxu0
  %3973 = vrot.lane.b32.xlu0 %v3892, 120
  %v3974 = vpop.permute.xlu0 %3973
  %v3975 = vsel %vm329, %v3892, 0
  %v3977 = vsel %vm329, %v3974, 0
  %3979 = vmatprep.subr.mxu0 0.0
  %3980 = vmatpush1.xpose.msra.mxu0 %v3977
  %3981 = vmatprep.subr.mxu0 0.0
  %3982 = vmatpush1.xpose.msra.mxu0 0.0
  %3983 = vmatprep.subr.mxu0 0.0
  %3984 = vmatpush1.xpose.msra.mxu0 0.0
  %3985 = vmatprep.subr.mxu0 0.0
  %3986 = vmatpush1.xpose.msra.mxu0 0.0
  %3987 = vmatprep.subr.mxu0 0.0
  %3988 = vmatpush1.xpose.msra.mxu0 0.0
  %3989 = vmatprep.subr.mxu0 0.0
  %3990 = vmatpush1.xpose.msra.mxu0 0.0
  %3991 = vmatprep.subr.mxu0 0.0
  %3992 = vmatpush1.xpose.msra.mxu0 0.0
  %3993 = vmatprep.subr.mxu0 0.0
  %3994 = vmatpush1.xpose.msra.mxu0 0.0
  %3995 = vmatprep.subr.mxu0 0.0
  %3996 = vmatpush1.xpose.msra.mxu0 0.0
  %3997 = vmatprep.subr.mxu0 0.0
  %3998 = vmatpush1.xpose.msra.mxu0 0.0
  %3999 = vmatprep.subr.mxu0 0.0
  %4000 = vmatpush1.xpose.msra.mxu0 0.0
  %4001 = vmatprep.subr.mxu0 0.0
  %4002 = vmatpush1.xpose.msra.mxu0 0.0
  %4003 = vmatprep.subr.mxu0 0.0
  %4004 = vmatpush1.xpose.msra.mxu0 0.0
  %4005 = vmatprep.subr.mxu0 0.0
  %4006 = vmatpush1.xpose.msra.mxu0 0.0
  %4007 = vmatprep.subr.mxu0 0.0
  %4008 = vmatpush1.xpose.msra.mxu0 0.0
  %4009 = vmatprep.subr.mxu0 0.0
  %4010 = vmatpush1.xpose.msra.mxu0 0.0
  %4011 = vmatprep.subr.mxu0 0.0
  %4012 = vmatpush1.xpose.msra.mxu0 0.0
  %4013 = vmatprep.subr.mxu0 0.0
  %4014 = vmatpush1.xpose.msra.mxu0 0.0
  %4015 = vmatprep.subr.mxu0 0.0
  %4016 = vmatpush1.xpose.msra.mxu0 0.0
  %4017 = vmatprep.subr.mxu0 0.0
  %4018 = vmatpush1.xpose.msra.mxu0 0.0
  %4019 = vmatprep.subr.mxu0 0.0
  %4020 = vmatpush1.xpose.msra.mxu0 0.0
  %4021 = vmatprep.subr.mxu0 0.0
  %4022 = vmatpush1.xpose.msra.mxu0 0.0
  %4023 = vmatprep.subr.mxu0 0.0
  %4024 = vmatpush1.xpose.msra.mxu0 0.0
  %4025 = vmatprep.subr.mxu0 0.0
  %4026 = vmatpush1.xpose.msra.mxu0 0.0
  %4027 = vmatprep.subr.mxu0 0.0
  %4028 = vmatpush1.xpose.msra.mxu0 0.0
  %4029 = vmatprep.subr.mxu0 0.0
  %4030 = vmatpush1.xpose.msra.mxu0 0.0
  %4031 = vmatprep.subr.mxu0 0.0
  %4032 = vmatpush1.xpose.msra.mxu0 0.0
  %4033 = vmatprep.subr.mxu0 0.0
  %4034 = vmatpush1.xpose.msra.mxu0 0.0
  %4035 = vmatprep.subr.mxu0 0.0
  %4036 = vmatpush1.xpose.msra.mxu0 0.0
  %4037 = vmatprep.subr.mxu0 0.0
  %4038 = vmatpush1.xpose.msra.mxu0 0.0
  %4039 = vmatprep.subr.mxu0 0.0
  %4040 = vmatpush1.xpose.msra.mxu0 0.0
  %4041 = vmatprep.subr.mxu0 0.0
  %4042 = vmatpush1.xpose.msra.mxu0 0.0
  %4043 = vmatprep.mubr.f32.mxu0 0.0
  %4044 = vmatmul.mubr.f32.gmra.mrb[0].mxu0 %v3975
  %v4045 = vpop.f32.mrb[0].mxu0
  %v4046 = vadd.f32 %v323, %v4045
  %v4047 = vpop.f32.mrb[0].mxu0
  %4048 = vdwg.mxu0
  %v4049 = vsel %vm183, %v3969, -inf
  %4050 = vmax.xlane.f32.xlu0 %v4049
  %v4051 = vpop.xlane.xlu0 %4050
  %v4052 = vsel %vm183, %v4046, -inf
  %4053 = vmax.xlane.f32.xlu0 %v4052
  %v4054 = vpop.xlane.xlu0 %4053
  %v4055 = vsub.f32 %v3969, %v4051
  %v4056 = vsub.f32 %v4046, %v4054
  %v4057 = vmul.f32 %v4055, 1.442695
  %v4058 = vpow.pop %v4057
  %v4059 = vmul.f32 %v4056, 1.442695
  %v4060 = vpow.pop %v4059
  %v4061 = vsel %vm183, %v4058, 0.0
  %4062 = vadd.xlane.f32.xlu0 %v4061
  %v4063 = vpop.xlane.xlu0 %4062
  %v4064 = vsel %vm183, %v4060, 0.0
  %4065 = vadd.xlane.f32.xlu0 %v4064
  %v4066 = vpop.xlane.xlu0 %4065
  %v4067 = vrcp.pop %v4063
  %v4068 = vrcp.pop %v4066
  %v4069 = vmul.f32 %v4058, %v4067
  %v4070 = vmul.f32 %v4060, %v4068
  %4071 = vrot.lane.b32.xlu0 %v3887, 112
  %v4072 = vpop.permute.xlu0 %4071
  %v4075 = vsel %vm183, %v4069, 0
  %4077 = vmatprep.subr.mxu0 0.0
  %4078 = vmatpush1.msra.mxu0 %v4072
  %4079 = vmatprep.subr.mxu0 0.0
  %4080 = vmatpush1.msra.mxu0 0.0
  %4081 = vmatprep.subr.mxu0 0.0
  %4082 = vmatpush1.msra.mxu0 0.0
  %4083 = vmatprep.subr.mxu0 0.0
  %4084 = vmatpush1.msra.mxu0 0.0
  %4085 = vmatprep.subr.mxu0 0.0
  %4086 = vmatpush1.msra.mxu0 0.0
  %4087 = vmatprep.subr.mxu0 0.0
  %4088 = vmatpush1.msra.mxu0 0.0
  %4089 = vmatprep.subr.mxu0 0.0
  %4090 = vmatpush1.msra.mxu0 0.0
  %4091 = vmatprep.subr.mxu0 0.0
  %4092 = vmatpush1.msra.mxu0 0.0
  %4093 = vmatprep.subr.mxu0 0.0
  %4094 = vmatpush1.msra.mxu0 0.0
  %4095 = vmatprep.subr.mxu0 0.0
  %4096 = vmatpush1.msra.mxu0 0.0
  %4097 = vmatprep.subr.mxu0 0.0
  %4098 = vmatpush1.msra.mxu0 0.0
  %4099 = vmatprep.subr.mxu0 0.0
  %4100 = vmatpush1.msra.mxu0 0.0
  %4101 = vmatprep.subr.mxu0 0.0
  %4102 = vmatpush1.msra.mxu0 0.0
  %4103 = vmatprep.subr.mxu0 0.0
  %4104 = vmatpush1.msra.mxu0 0.0
  %4105 = vmatprep.subr.mxu0 0.0
  %4106 = vmatpush1.msra.mxu0 0.0
  %4107 = vmatprep.subr.mxu0 0.0
  %4108 = vmatpush1.msra.mxu0 0.0
  %4109 = vmatprep.subr.mxu0 0.0
  %4110 = vmatpush1.msra.mxu0 0.0
  %4111 = vmatprep.subr.mxu0 0.0
  %4112 = vmatpush1.msra.mxu0 0.0
  %4113 = vmatprep.subr.mxu0 0.0
  %4114 = vmatpush1.msra.mxu0 0.0
  %4115 = vmatprep.subr.mxu0 0.0
  %4116 = vmatpush1.msra.mxu0 0.0
  %4117 = vmatprep.subr.mxu0 0.0
  %4118 = vmatpush1.msra.mxu0 0.0
  %4119 = vmatprep.subr.mxu0 0.0
  %4120 = vmatpush1.msra.mxu0 0.0
  %4121 = vmatprep.subr.mxu0 0.0
  %4122 = vmatpush1.msra.mxu0 0.0
  %4123 = vmatprep.subr.mxu0 0.0
  %4124 = vmatpush1.msra.mxu0 0.0
  %4125 = vmatprep.subr.mxu0 0.0
  %4126 = vmatpush1.msra.mxu0 0.0
  %4127 = vmatprep.subr.mxu0 0.0
  %4128 = vmatpush1.msra.mxu0 0.0
  %4129 = vmatprep.subr.mxu0 0.0
  %4130 = vmatpush1.msra.mxu0 0.0
  %4131 = vmatprep.subr.mxu0 0.0
  %4132 = vmatpush1.msra.mxu0 0.0
  %4133 = vmatprep.subr.mxu0 0.0
  %4134 = vmatpush1.msra.mxu0 0.0
  %4135 = vmatprep.subr.mxu0 0.0
  %4136 = vmatpush1.msra.mxu0 0.0
  %4137 = vmatprep.subr.mxu0 0.0
  %4138 = vmatpush1.msra.mxu0 0.0
  %4139 = vmatprep.subr.mxu0 0.0
  %4140 = vmatpush1.msra.mxu0 0.0
  %4141 = vmatprep.mubr.f32.mxu0 0.0
  %4142 = vmatmul.mubr.f32.gmra.mrb[0].mxu0 %v4075
  %v4143 = vpop.f32.mrb[0].mxu0
  %v4144 = vadd.f32 0.0, %v4143
  %v4145 = vpop.f32.mrb[0].mxu0
  %4146 = vdwg.mxu0
  %4147 = vrot.lane.b32.xlu0 %v3892, 112
  %v4148 = vpop.permute.xlu0 %4147
  %v4151 = vsel %vm183, %v4070, 0
  %4153 = vmatprep.subr.mxu0 0.0
  %4154 = vmatpush1.msra.mxu0 %v4148
  %4155 = vmatprep.subr.mxu0 0.0
  %4156 = vmatpush1.msra.mxu0 0.0
  %4157 = vmatprep.subr.mxu0 0.0
  %4158 = vmatpush1.msra.mxu0 0.0
  %4159 = vmatprep.subr.mxu0 0.0
  %4160 = vmatpush1.msra.mxu0 0.0
  %4161 = vmatprep.subr.mxu0 0.0
  %4162 = vmatpush1.msra.mxu0 0.0
  %4163 = vmatprep.subr.mxu0 0.0
  %4164 = vmatpush1.msra.mxu0 0.0
  %4165 = vmatprep.subr.mxu0 0.0
  %4166 = vmatpush1.msra.mxu0 0.0
  %4167 = vmatprep.subr.mxu0 0.0
  %4168 = vmatpush1.msra.mxu0 0.0
  %4169 = vmatprep.subr.mxu0 0.0
  %4170 = vmatpush1.msra.mxu0 0.0
  %4171 = vmatprep.subr.mxu0 0.0
  %4172 = vmatpush1.msra.mxu0 0.0
  %4173 = vmatprep.subr.mxu0 0.0
  %4174 = vmatpush1.msra.mxu0 0.0
  %4175 = vmatprep.subr.mxu0 0.0
  %4176 = vmatpush1.msra.mxu0 0.0
  %4177 = vmatprep.subr.mxu0 0.0
  %4178 = vmatpush1.msra.mxu0 0.0
  %4179 = vmatprep.subr.mxu0 0.0
  %4180 = vmatpush1.msra.mxu0 0.0
  %4181 = vmatprep.subr.mxu0 0.0
  %4182 = vmatpush1.msra.mxu0 0.0
  %4183 = vmatprep.subr.mxu0 0.0
  %4184 = vmatpush1.msra.mxu0 0.0
  %4185 = vmatprep.subr.mxu0 0.0
  %4186 = vmatpush1.msra.mxu0 0.0
  %4187 = vmatprep.subr.mxu0 0.0
  %4188 = vmatpush1.msra.mxu0 0.0
  %4189 = vmatprep.subr.mxu0 0.0
  %4190 = vmatpush1.msra.mxu0 0.0
  %4191 = vmatprep.subr.mxu0 0.0
  %4192 = vmatpush1.msra.mxu0 0.0
  %4193 = vmatprep.subr.mxu0 0.0
  %4194 = vmatpush1.msra.mxu0 0.0
  %4195 = vmatprep.subr.mxu0 0.0
  %4196 = vmatpush1.msra.mxu0 0.0
  %4197 = vmatprep.subr.mxu0 0.0
  %4198 = vmatpush1.msra.mxu0 0.0
  %4199 = vmatprep.subr.mxu0 0.0
  %4200 = vmatpush1.msra.mxu0 0.0
  %4201 = vmatprep.subr.mxu0 0.0
  %4202 = vmatpush1.msra.mxu0 0.0
  %4203 = vmatprep.subr.mxu0 0.0
  %4204 = vmatpush1.msra.mxu0 0.0
  %4205 = vmatprep.subr.mxu0 0.0
  %4206 = vmatpush1.msra.mxu0 0.0
  %4207 = vmatprep.subr.mxu0 0.0
  %4208 = vmatpush1.msra.mxu0 0.0
  %4209 = vmatprep.subr.mxu0 0.0
  %4210 = vmatpush1.msra.mxu0 0.0
  %4211 = vmatprep.subr.mxu0 0.0
  %4212 = vmatpush1.msra.mxu0 0.0
  %4213 = vmatprep.subr.mxu0 0.0
  %4214 = vmatpush1.msra.mxu0 0.0
  %4215 = vmatprep.subr.mxu0 0.0
  %4216 = vmatpush1.msra.mxu0 0.0
  %4217 = vmatprep.mubr.f32.mxu0 0.0
  %4218 = vmatmul.mubr.f32.gmra.mrb[0].mxu0 %v4151
  %v4219 = vpop.f32.mrb[0].mxu0
  %v4220 = vadd.f32 0.0, %v4219
  %v4221 = vpop.f32.mrb[0].mxu0
  %4222 = vdwg.mxu0
  %v4224 = vsel %vm329, %v4144, 0
  %v4227 = vsel %vm329, %v4220, 0
  %v4230 = vsel %vm661, %v116, 0
  %4232 = vmatprep.subr.mxu0 0.0
  %4233 = vmatpush1.msra.mxu0 %v4230
  %4234 = vmatprep.subr.mxu0 0.0
  %4235 = vmatpush1.msra.mxu0 0.0
  %4236 = vmatprep.subr.mxu0 0.0
  %4237 = vmatpush1.msra.mxu0 0.0
  %4238 = vmatprep.subr.mxu0 0.0
  %4239 = vmatpush1.msra.mxu0 0.0
  %4240 = vmatprep.subr.mxu0 0.0
  %4241 = vmatpush1.msra.mxu0 0.0
  %4242 = vmatprep.subr.mxu0 0.0
  %4243 = vmatpush1.msra.mxu0 0.0
  %4244 = vmatprep.subr.mxu0 0.0
  %4245 = vmatpush1.msra.mxu0 0.0
  %4246 = vmatprep.subr.mxu0 0.0
  %4247 = vmatpush1.msra.mxu0 0.0
  %4248 = vmatprep.subr.mxu0 0.0
  %4249 = vmatpush1.msra.mxu0 0.0
  %4250 = vmatprep.subr.mxu0 0.0
  %4251 = vmatpush1.msra.mxu0 0.0
  %4252 = vmatprep.subr.mxu0 0.0
  %4253 = vmatpush1.msra.mxu0 0.0
  %4254 = vmatprep.subr.mxu0 0.0
  %4255 = vmatpush1.msra.mxu0 0.0
  %4256 = vmatprep.subr.mxu0 0.0
  %4257 = vmatpush1.msra.mxu0 0.0
  %4258 = vmatprep.subr.mxu0 0.0
  %4259 = vmatpush1.msra.mxu0 0.0
  %4260 = vmatprep.subr.mxu0 0.0
  %4261 = vmatpush1.msra.mxu0 0.0
  %4262 = vmatprep.subr.mxu0 0.0
  %4263 = vmatpush1.msra.mxu0 0.0
  %4264 = vmatprep.subr.mxu0 0.0
  %4265 = vmatpush1.msra.mxu0 0.0
  %4266 = vmatprep.subr.mxu0 0.0
  %4267 = vmatpush1.msra.mxu0 0.0
  %4268 = vmatprep.subr.mxu0 0.0
  %4269 = vmatpush1.msra.mxu0 0.0
  %4270 = vmatprep.subr.mxu0 0.0
  %4271 = vmatpush1.msra.mxu0 0.0
  %4272 = vmatprep.subr.mxu0 0.0
  %4273 = vmatpush1.msra.mxu0 0.0
  %4274 = vmatprep.subr.mxu0 0.0
  %4275 = vmatpush1.msra.mxu0 0.0
  %4276 = vmatprep.subr.mxu0 0.0
  %4277 = vmatpush1.msra.mxu0 0.0
  %4278 = vmatprep.subr.mxu0 0.0
  %4279 = vmatpush1.msra.mxu0 0.0
  %4280 = vmatprep.subr.mxu0 0.0
  %4281 = vmatpush1.msra.mxu0 0.0
  %4282 = vmatprep.subr.mxu0 0.0
  %4283 = vmatpush1.msra.mxu0 0.0
  %4284 = vmatprep.subr.mxu0 0.0
  %4285 = vmatpush1.msra.mxu0 0.0
  %4286 = vmatprep.subr.mxu0 0.0
  %4287 = vmatpush1.msra.mxu0 0.0
  %4288 = vmatprep.subr.mxu0 0.0
  %4289 = vmatpush1.msra.mxu0 0.0
  %4290 = vmatprep.subr.mxu0 0.0
  %4291 = vmatpush1.msra.mxu0 0.0
  %4292 = vmatprep.subr.mxu0 0.0
  %4293 = vmatpush1.msra.mxu0 0.0
  %4294 = vmatprep.subr.mxu0 0.0
  %4295 = vmatpush1.msra.mxu0 0.0
  %4296 = vmatprep.mubr.f32.mxu0 0.0
  %4297 = vmatmul.mubr.f32.gmra.mrb[0].mxu0 %v4224
  %v4298 = vpop.f32.mrb[0].mxu0
  %v4299 = vadd.f32 0.0, %v4298
  %v4300 = vpop.f32.mrb[0].mxu0
  %4301 = vmatprep.mubr.f32.mxu0 0.0
  %4302 = vmatmul.mubr.f32.gmra.mrb[0].mxu0 %v4227
  %v4303 = vpop.f32.mrb[0].mxu0
  %v4304 = vadd.f32 0.0, %v4303
  %v4305 = vpop.f32.mrb[0].mxu0
  %4306 = vdwg.mxu0
  %v4308 = vlaneseq
  %v4309 = vshrl.u32 %v4308, 7
  %v4310 = vsub.s32 0, %v4309
  %v4311 = vrot.slane %v118, %v4310
  %v4313 = vadd.f32 %v4311, %v4299
  %v4314 = vadd.f32 %v4311, %v4304
  %4315 = vrot.lane.b32.xlu0 %v3887, 124
  %v4316 = vpop.permute.xlu0 %4315
  %4317 = vrot.lane.b32.xlu0 %v3887, 116
  %v4318 = vpop.permute.xlu0 %4317
  %v4319 = vsel %vm329, %v4316, 0
  %v4321 = vsel %vm329, %v4318, 0
  %4323 = vmatprep.subr.mxu0 0.0
  %4324 = vmatpush1.xpose.msra.mxu0 %v4321
  %4325 = vmatprep.subr.mxu0 0.0
  %4326 = vmatpush1.xpose.msra.mxu0 0.0
  %4327 = vmatprep.subr.mxu0 0.0
  %4328 = vmatpush1.xpose.msra.mxu0 0.0
  %4329 = vmatprep.subr.mxu0 0.0
  %4330 = vmatpush1.xpose.msra.mxu0 0.0
  %4331 = vmatprep.subr.mxu0 0.0
  %4332 = vmatpush1.xpose.msra.mxu0 0.0
  %4333 = vmatprep.subr.mxu0 0.0
  %4334 = vmatpush1.xpose.msra.mxu0 0.0
  %4335 = vmatprep.subr.mxu0 0.0
  %4336 = vmatpush1.xpose.msra.mxu0 0.0
  %4337 = vmatprep.subr.mxu0 0.0
  %4338 = vmatpush1.xpose.msra.mxu0 0.0
  %4339 = vmatprep.subr.mxu0 0.0
  %4340 = vmatpush1.xpose.msra.mxu0 0.0
  %4341 = vmatprep.subr.mxu0 0.0
  %4342 = vmatpush1.xpose.msra.mxu0 0.0
  %4343 = vmatprep.subr.mxu0 0.0
  %4344 = vmatpush1.xpose.msra.mxu0 0.0
  %4345 = vmatprep.subr.mxu0 0.0
  %4346 = vmatpush1.xpose.msra.mxu0 0.0
  %4347 = vmatprep.subr.mxu0 0.0
  %4348 = vmatpush1.xpose.msra.mxu0 0.0
  %4349 = vmatprep.subr.mxu0 0.0
  %4350 = vmatpush1.xpose.msra.mxu0 0.0
  %4351 = vmatprep.subr.mxu0 0.0
  %4352 = vmatpush1.xpose.msra.mxu0 0.0
  %4353 = vmatprep.subr.mxu0 0.0
  %4354 = vmatpush1.xpose.msra.mxu0 0.0
  %4355 = vmatprep.subr.mxu0 0.0
  %4356 = vmatpush1.xpose.msra.mxu0 0.0
  %4357 = vmatprep.subr.mxu0 0.0
  %4358 = vmatpush1.xpose.msra.mxu0 0.0
  %4359 = vmatprep.subr.mxu0 0.0
  %4360 = vmatpush1.xpose.msra.mxu0 0.0
  %4361 = vmatprep.subr.mxu0 0.0
  %4362 = vmatpush1.xpose.msra.mxu0 0.0
  %4363 = vmatprep.subr.mxu0 0.0
  %4364 = vmatpush1.xpose.msra.mxu0 0.0
  %4365 = vmatprep.subr.mxu0 0.0
  %4366 = vmatpush1.xpose.msra.mxu0 0.0
  %4367 = vmatprep.subr.mxu0 0.0
  %4368 = vmatpush1.xpose.msra.mxu0 0.0
  %4369 = vmatprep.subr.mxu0 0.0
  %4370 = vmatpush1.xpose.msra.mxu0 0.0
  %4371 = vmatprep.subr.mxu0 0.0
  %4372 = vmatpush1.xpose.msra.mxu0 0.0
  %4373 = vmatprep.subr.mxu0 0.0
  %4374 = vmatpush1.xpose.msra.mxu0 0.0
  %4375 = vmatprep.subr.mxu0 0.0
  %4376 = vmatpush1.xpose.msra.mxu0 0.0
  %4377 = vmatprep.subr.mxu0 0.0
  %4378 = vmatpush1.xpose.msra.mxu0 0.0
  %4379 = vmatprep.subr.mxu0 0.0
  %4380 = vmatpush1.xpose.msra.mxu0 0.0
  %4381 = vmatprep.subr.mxu0 0.0
  %4382 = vmatpush1.xpose.msra.mxu0 0.0
  %4383 = vmatprep.subr.mxu0 0.0
  %4384 = vmatpush1.xpose.msra.mxu0 0.0
  %4385 = vmatprep.subr.mxu0 0.0
  %4386 = vmatpush1.xpose.msra.mxu0 0.0
  %4387 = vmatprep.mubr.f32.mxu0 0.0
  %4388 = vmatmul.mubr.f32.gmra.mrb[0].mxu0 %v4319
  %v4389 = vpop.f32.mrb[0].mxu0
  %v4390 = vadd.f32 %v319, %v4389
  %v4391 = vpop.f32.mrb[0].mxu0
  %4392 = vdwg.mxu0
  %4393 = vrot.lane.b32.xlu0 %v3892, 124
  %v4394 = vpop.permute.xlu0 %4393
  %4395 = vrot.lane.b32.xlu0 %v3892, 116
  %v4396 = vpop.permute.xlu0 %4395
  %v4397 = vsel %vm329, %v4394, 0
  %v4399 = vsel %vm329, %v4396, 0
  %4401 = vmatprep.subr.mxu0 0.0
  %4402 = vmatpush1.xpose.msra.mxu0 %v4399
  %4403 = vmatprep.subr.mxu0 0.0
  %4404 = vmatpush1.xpose.msra.mxu0 0.0
  %4405 = vmatprep.subr.mxu0 0.0
  %4406 = vmatpush1.xpose.msra.mxu0 0.0
  %4407 = vmatprep.subr.mxu0 0.0
  %4408 = vmatpush1.xpose.msra.mxu0 0.0
  %4409 = vmatprep.subr.mxu0 0.0
  %4410 = vmatpush1.xpose.msra.mxu0 0.0
  %4411 = vmatprep.subr.mxu0 0.0
  %4412 = vmatpush1.xpose.msra.mxu0 0.0
  %4413 = vmatprep.subr.mxu0 0.0
  %4414 = vmatpush1.xpose.msra.mxu0 0.0
  %4415 = vmatprep.subr.mxu0 0.0
  %4416 = vmatpush1.xpose.msra.mxu0 0.0
  %4417 = vmatprep.subr.mxu0 0.0
  %4418 = vmatpush1.xpose.msra.mxu0 0.0
  %4419 = vmatprep.subr.mxu0 0.0
  %4420 = vmatpush1.xpose.msra.mxu0 0.0
  %4421 = vmatprep.subr.mxu0 0.0
  %4422 = vmatpush1.xpose.msra.mxu0 0.0
  %4423 = vmatprep.subr.mxu0 0.0
  %4424 = vmatpush1.xpose.msra.mxu0 0.0
  %4425 = vmatprep.subr.mxu0 0.0
  %4426 = vmatpush1.xpose.msra.mxu0 0.0
  %4427 = vmatprep.subr.mxu0 0.0
  %4428 = vmatpush1.xpose.msra.mxu0 0.0
  %4429 = vmatprep.subr.mxu0 0.0
  %4430 = vmatpush1.xpose.msra.mxu0 0.0
  %4431 = vmatprep.subr.mxu0 0.0
  %4432 = vmatpush1.xpose.msra.mxu0 0.0
  %4433 = vmatprep.subr.mxu0 0.0
  %4434 = vmatpush1.xpose.msra.mxu0 0.0
  %4435 = vmatprep.subr.mxu0 0.0
  %4436 = vmatpush1.xpose.msra.mxu0 0.0
  %4437 = vmatprep.subr.mxu0 0.0
  %4438 = vmatpush1.xpose.msra.mxu0 0.0
  %4439 = vmatprep.subr.mxu0 0.0
  %4440 = vmatpush1.xpose.msra.mxu0 0.0
  %4441 = vmatprep.subr.mxu0 0.0
  %4442 = vmatpush1.xpose.msra.mxu0 0.0
  %4443 = vmatprep.subr.mxu0 0.0
  %4444 = vmatpush1.xpose.msra.mxu0 0.0
  %4445 = vmatprep.subr.mxu0 0.0
  %4446 = vmatpush1.xpose.msra.mxu0 0.0
  %4447 = vmatprep.subr.mxu0 0.0
  %4448 = vmatpush1.xpose.msra.mxu0 0.0
  %4449 = vmatprep.subr.mxu0 0.0
  %4450 = vmatpush1.xpose.msra.mxu0 0.0
  %4451 = vmatprep.subr.mxu0 0.0
  %4452 = vmatpush1.xpose.msra.mxu0 0.0
  %4453 = vmatprep.subr.mxu0 0.0
  %4454 = vmatpush1.xpose.msra.mxu0 0.0
  %4455 = vmatprep.subr.mxu0 0.0
  %4456 = vmatpush1.xpose.msra.mxu0 0.0
  %4457 = vmatprep.subr.mxu0 0.0
  %4458 = vmatpush1.xpose.msra.mxu0 0.0
  %4459 = vmatprep.subr.mxu0 0.0
  %4460 = vmatpush1.xpose.msra.mxu0 0.0
  %4461 = vmatprep.subr.mxu0 0.0
  %4462 = vmatpush1.xpose.msra.mxu0 0.0
  %4463 = vmatprep.subr.mxu0 0.0
  %4464 = vmatpush1.xpose.msra.mxu0 0.0
  %4465 = vmatprep.mubr.f32.mxu0 0.0
  %4466 = vmatmul.mubr.f32.gmra.mrb[0].mxu0 %v4397
  %v4467 = vpop.f32.mrb[0].mxu0
  %v4468 = vadd.f32 %v323, %v4467
  %v4469 = vpop.f32.mrb[0].mxu0
  %4470 = vdwg.mxu0
  %v4471 = vsel %vm183, %v4390, -inf
  %4472 = vmax.xlane.f32.xlu0 %v4471
  %v4473 = vpop.xlane.xlu0 %4472
  %v4474 = vsel %vm183, %v4468, -inf
  %4475 = vmax.xlane.f32.xlu0 %v4474
  %v4476 = vpop.xlane.xlu0 %4475
  %v4477 = vsub.f32 %v4390, %v4473
  %v4478 = vsub.f32 %v4468, %v4476
  %v4479 = vmul.f32 %v4477, 1.442695
  %v4480 = vpow.pop %v4479
  %v4481 = vmul.f32 %v4478, 1.442695
  %v4482 = vpow.pop %v4481
  %v4483 = vsel %vm183, %v4480, 0.0
  %4484 = vadd.xlane.f32.xlu0 %v4483
  %v4485 = vpop.xlane.xlu0 %4484
  %v4486 = vsel %vm183, %v4482, 0.0
  %4487 = vadd.xlane.f32.xlu0 %v4486
  %v4488 = vpop.xlane.xlu0 %4487
  %v4489 = vrcp.pop %v4485
  %v4490 = vrcp.pop %v4488
  %v4491 = vmul.f32 %v4480, %v4489
  %v4492 = vmul.f32 %v4482, %v4490
  %4493 = vrot.lane.b32.xlu0 %v3887, 108
  %v4494 = vpop.permute.xlu0 %4493
  %v4497 = vsel %vm183, %v4491, 0
  %4499 = vmatprep.subr.mxu0 0.0
  %4500 = vmatpush1.msra.mxu0 %v4494
  %4501 = vmatprep.subr.mxu0 0.0
  %4502 = vmatpush1.msra.mxu0 0.0
  %4503 = vmatprep.subr.mxu0 0.0
  %4504 = vmatpush1.msra.mxu0 0.0
  %4505 = vmatprep.subr.mxu0 0.0
  %4506 = vmatpush1.msra.mxu0 0.0
  %4507 = vmatprep.subr.mxu0 0.0
  %4508 = vmatpush1.msra.mxu0 0.0
  %4509 = vmatprep.subr.mxu0 0.0
  %4510 = vmatpush1.msra.mxu0 0.0
  %4511 = vmatprep.subr.mxu0 0.0
  %4512 = vmatpush1.msra.mxu0 0.0
  %4513 = vmatprep.subr.mxu0 0.0
  %4514 = vmatpush1.msra.mxu0 0.0
  %4515 = vmatprep.subr.mxu0 0.0
  %4516 = vmatpush1.msra.mxu0 0.0
  %4517 = vmatprep.subr.mxu0 0.0
  %4518 = vmatpush1.msra.mxu0 0.0
  %4519 = vmatprep.subr.mxu0 0.0
  %4520 = vmatpush1.msra.mxu0 0.0
  %4521 = vmatprep.subr.mxu0 0.0
  %4522 = vmatpush1.msra.mxu0 0.0
  %4523 = vmatprep.subr.mxu0 0.0
  %4524 = vmatpush1.msra.mxu0 0.0
  %4525 = vmatprep.subr.mxu0 0.0
  %4526 = vmatpush1.msra.mxu0 0.0
  %4527 = vmatprep.subr.mxu0 0.0
  %4528 = vmatpush1.msra.mxu0 0.0
  %4529 = vmatprep.subr.mxu0 0.0
  %4530 = vmatpush1.msra.mxu0 0.0
  %4531 = vmatprep.subr.mxu0 0.0
  %4532 = vmatpush1.msra.mxu0 0.0
  %4533 = vmatprep.subr.mxu0 0.0
  %4534 = vmatpush1.msra.mxu0 0.0
  %4535 = vmatprep.subr.mxu0 0.0
  %4536 = vmatpush1.msra.mxu0 0.0
  %4537 = vmatprep.subr.mxu0 0.0
  %4538 = vmatpush1.msra.mxu0 0.0
  %4539 = vmatprep.subr.mxu0 0.0
  %4540 = vmatpush1.msra.mxu0 0.0
  %4541 = vmatprep.subr.mxu0 0.0
  %4542 = vmatpush1.msra.mxu0 0.0
  %4543 = vmatprep.subr.mxu0 0.0
  %4544 = vmatpush1.msra.mxu0 0.0
  %4545 = vmatprep.subr.mxu0 0.0
  %4546 = vmatpush1.msra.mxu0 0.0
  %4547 = vmatprep.subr.mxu0 0.0
  %4548 = vmatpush1.msra.mxu0 0.0
  %4549 = vmatprep.subr.mxu0 0.0
  %4550 = vmatpush1.msra.mxu0 0.0
  %4551 = vmatprep.subr.mxu0 0.0
  %4552 = vmatpush1.msra.mxu0 0.0
  %4553 = vmatprep.subr.mxu0 0.0
  %4554 = vmatpush1.msra.mxu0 0.0
  %4555 = vmatprep.subr.mxu0 0.0
  %4556 = vmatpush1.msra.mxu0 0.0
  %4557 = vmatprep.subr.mxu0 0.0
  %4558 = vmatpush1.msra.mxu0 0.0
  %4559 = vmatprep.subr.mxu0 0.0
  %4560 = vmatpush1.msra.mxu0 0.0
  %4561 = vmatprep.subr.mxu0 0.0
  %4562 = vmatpush1.msra.mxu0 0.0
  %4563 = vmatprep.mubr.f32.mxu0 0.0
  %4564 = vmatmul.mubr.f32.gmra.mrb[0].mxu0 %v4497
  %v4565 = vpop.f32.mrb[0].mxu0
  %v4566 = vadd.f32 0.0, %v4565
  %v4567 = vpop.f32.mrb[0].mxu0
  %4568 = vdwg.mxu0
  %4569 = vrot.lane.b32.xlu0 %v3892, 108
  %v4570 = vpop.permute.xlu0 %4569
  %v4573 = vsel %vm183, %v4492, 0
  %4575 = vmatprep.subr.mxu0 0.0
  %4576 = vmatpush1.msra.mxu0 %v4570
  %4577 = vmatprep.subr.mxu0 0.0
  %4578 = vmatpush1.msra.mxu0 0.0
  %4579 = vmatprep.subr.mxu0 0.0
  %4580 = vmatpush1.msra.mxu0 0.0
  %4581 = vmatprep.subr.mxu0 0.0
  %4582 = vmatpush1.msra.mxu0 0.0
  %4583 = vmatprep.subr.mxu0 0.0
  %4584 = vmatpush1.msra.mxu0 0.0
  %4585 = vmatprep.subr.mxu0 0.0
  %4586 = vmatpush1.msra.mxu0 0.0
  %4587 = vmatprep.subr.mxu0 0.0
  %4588 = vmatpush1.msra.mxu0 0.0
  %4589 = vmatprep.subr.mxu0 0.0
  %4590 = vmatpush1.msra.mxu0 0.0
  %4591 = vmatprep.subr.mxu0 0.0
  %4592 = vmatpush1.msra.mxu0 0.0
  %4593 = vmatprep.subr.mxu0 0.0
  %4594 = vmatpush1.msra.mxu0 0.0
  %4595 = vmatprep.subr.mxu0 0.0
  %4596 = vmatpush1.msra.mxu0 0.0
  %4597 = vmatprep.subr.mxu0 0.0
  %4598 = vmatpush1.msra.mxu0 0.0
  %4599 = vmatprep.subr.mxu0 0.0
  %4600 = vmatpush1.msra.mxu0 0.0
  %4601 = vmatprep.subr.mxu0 0.0
  %4602 = vmatpush1.msra.mxu0 0.0
  %4603 = vmatprep.subr.mxu0 0.0
  %4604 = vmatpush1.msra.mxu0 0.0
  %4605 = vmatprep.subr.mxu0 0.0
  %4606 = vmatpush1.msra.mxu0 0.0
  %4607 = vmatprep.subr.mxu0 0.0
  %4608 = vmatpush1.msra.mxu0 0.0
  %4609 = vmatprep.subr.mxu0 0.0
  %4610 = vmatpush1.msra.mxu0 0.0
  %4611 = vmatprep.subr.mxu0 0.0
  %4612 = vmatpush1.msra.mxu0 0.0
  %4613 = vmatprep.subr.mxu0 0.0
  %4614 = vmatpush1.msra.mxu0 0.0
  %4615 = vmatprep.subr.mxu0 0.0
  %4616 = vmatpush1.msra.mxu0 0.0
  %4617 = vmatprep.subr.mxu0 0.0
  %4618 = vmatpush1.msra.mxu0 0.0
  %4619 = vmatprep.subr.mxu0 0.0
  %4620 = vmatpush1.msra.mxu0 0.0
  %4621 = vmatprep.subr.mxu0 0.0
  %4622 = vmatpush1.msra.mxu0 0.0
  %4623 = vmatprep.subr.mxu0 0.0
  %4624 = vmatpush1.msra.mxu0 0.0
  %4625 = vmatprep.subr.mxu0 0.0
  %4626 = vmatpush1.msra.mxu0 0.0
  %4627 = vmatprep.subr.mxu0 0.0
  %4628 = vmatpush1.msra.mxu0 0.0
  %4629 = vmatprep.subr.mxu0 0.0
  %4630 = vmatpush1.msra.mxu0 0.0
  %4631 = vmatprep.subr.mxu0 0.0
  %4632 = vmatpush1.msra.mxu0 0.0
  %4633 = vmatprep.subr.mxu0 0.0
  %4634 = vmatpush1.msra.mxu0 0.0
  %4635 = vmatprep.subr.mxu0 0.0
  %4636 = vmatpush1.msra.mxu0 0.0
  %4637 = vmatprep.subr.mxu0 0.0
  %4638 = vmatpush1.msra.mxu0 0.0
  %4639 = vmatprep.mubr.f32.mxu0 0.0
  %4640 = vmatmul.mubr.f32.gmra.mrb[0].mxu0 %v4573
  %v4641 = vpop.f32.mrb[0].mxu0
  %v4642 = vadd.f32 0.0, %v4641
  %v4643 = vpop.f32.mrb[0].mxu0
  %4644 = vdwg.mxu0
  %v4645 = vrot.slane %v116, 4
  %v4647 = vsel %vm329, %v4566, 0
  %v4650 = vsel %vm329, %v4642, 0
  %v4652 = vsel %vm661, %v4645, 0
  %4654 = vmatprep.subr.mxu0 0.0
  %4655 = vmatpush1.msra.mxu0 %v4652
  %4656 = vmatprep.subr.mxu0 0.0
  %4657 = vmatpush1.msra.mxu0 0.0
  %4658 = vmatprep.subr.mxu0 0.0
  %4659 = vmatpush1.msra.mxu0 0.0
  %4660 = vmatprep.subr.mxu0 0.0
  %4661 = vmatpush1.msra.mxu0 0.0
  %4662 = vmatprep.subr.mxu0 0.0
  %4663 = vmatpush1.msra.mxu0 0.0
  %4664 = vmatprep.subr.mxu0 0.0
  %4665 = vmatpush1.msra.mxu0 0.0
  %4666 = vmatprep.subr.mxu0 0.0
  %4667 = vmatpush1.msra.mxu0 0.0
  %4668 = vmatprep.subr.mxu0 0.0
  %4669 = vmatpush1.msra.mxu0 0.0
  %4670 = vmatprep.subr.mxu0 0.0
  %4671 = vmatpush1.msra.mxu0 0.0
  %4672 = vmatprep.subr.mxu0 0.0
  %4673 = vmatpush1.msra.mxu0 0.0
  %4674 = vmatprep.subr.mxu0 0.0
  %4675 = vmatpush1.msra.mxu0 0.0
  %4676 = vmatprep.subr.mxu0 0.0
  %4677 = vmatpush1.msra.mxu0 0.0
  %4678 = vmatprep.subr.mxu0 0.0
  %4679 = vmatpush1.msra.mxu0 0.0
  %4680 = vmatprep.subr.mxu0 0.0
  %4681 = vmatpush1.msra.mxu0 0.0
  %4682 = vmatprep.subr.mxu0 0.0
  %4683 = vmatpush1.msra.mxu0 0.0
  %4684 = vmatprep.subr.mxu0 0.0
  %4685 = vmatpush1.msra.mxu0 0.0
  %4686 = vmatprep.subr.mxu0 0.0
  %4687 = vmatpush1.msra.mxu0 0.0
  %4688 = vmatprep.subr.mxu0 0.0
  %4689 = vmatpush1.msra.mxu0 0.0
  %4690 = vmatprep.subr.mxu0 0.0
  %4691 = vmatpush1.msra.mxu0 0.0
  %4692 = vmatprep.subr.mxu0 0.0
  %4693 = vmatpush1.msra.mxu0 0.0
  %4694 = vmatprep.subr.mxu0 0.0
  %4695 = vmatpush1.msra.mxu0 0.0
  %4696 = vmatprep.subr.mxu0 0.0
  %4697 = vmatpush1.msra.mxu0 0.0
  %4698 = vmatprep.subr.mxu0 0.0
  %4699 = vmatpush1.msra.mxu0 0.0
  %4700 = vmatprep.subr.mxu0 0.0
  %4701 = vmatpush1.msra.mxu0 0.0
  %4702 = vmatprep.subr.mxu0 0.0
  %4703 = vmatpush1.msra.mxu0 0.0
  %4704 = vmatprep.subr.mxu0 0.0
  %4705 = vmatpush1.msra.mxu0 0.0
  %4706 = vmatprep.subr.mxu0 0.0
  %4707 = vmatpush1.msra.mxu0 0.0
  %4708 = vmatprep.subr.mxu0 0.0
  %4709 = vmatpush1.msra.mxu0 0.0
  %4710 = vmatprep.subr.mxu0 0.0
  %4711 = vmatpush1.msra.mxu0 0.0
  %4712 = vmatprep.subr.mxu0 0.0
  %4713 = vmatpush1.msra.mxu0 0.0
  %4714 = vmatprep.subr.mxu0 0.0
  %4715 = vmatpush1.msra.mxu0 0.0
  %4716 = vmatprep.subr.mxu0 0.0
  %4717 = vmatpush1.msra.mxu0 0.0
  %4718 = vmatprep.mubr.f32.mxu0 0.0
  %4719 = vmatmul.mubr.f32.gmra.mrb[0].mxu0 %v4647
  %v4720 = vpop.f32.mrb[0].mxu0
  %v4721 = vadd.f32 0.0, %v4720
  %v4722 = vpop.f32.mrb[0].mxu0
  %4723 = vmatprep.mubr.f32.mxu0 0.0
  %4724 = vmatmul.mubr.f32.gmra.mrb[0].mxu0 %v4650
  %v4725 = vpop.f32.mrb[0].mxu0
  %v4726 = vadd.f32 0.0, %v4725
  %v4727 = vpop.f32.mrb[0].mxu0
  %4728 = vdwg.mxu0
  %v4729 = vadd.f32 %v4313, %v4721
  %v4730 = vadd.f32 %v4314, %v4726
  %v4731 = vadd.f32 %v3764, %v4729
  %v4732 = vadd.f32 %v3765, %v4730
  %v4733 = vsel %vm183, %v4731, 0.0
  %4734 = vadd.xlane.f32.xlu0 %v4733
  %v4735 = vpop.xlane.xlu0 %4734
  %v4736 = vsel %vm183, %v4732, 0.0
  %4737 = vadd.xlane.f32.xlu0 %v4736
  %v4738 = vpop.xlane.xlu0 %4737
  %v4739 = vmul.f32 %v4735, %v190
  %v4740 = vmul.f32 %v4738, %v190
  %v4741 = vsub.f32 %v4731, %v4739
  %v4742 = vsub.f32 %v4732, %v4740
  %v4743 = vmul.f32 %v4741, %v4741
  %v4744 = vmul.f32 %v4742, %v4742
  %v4745 = vsel %vm183, %v4743, 0.0
  %4746 = vadd.xlane.f32.xlu0 %v4745
  %v4747 = vpop.xlane.xlu0 %4746
  %v4748 = vsel %vm183, %v4744, 0.0
  %4749 = vadd.xlane.f32.xlu0 %v4748
  %v4750 = vpop.xlane.xlu0 %4749
  %v4751 = vmul.f32 %v4747, %v190
  %v4752 = vmul.f32 %v4750, %v190
  %v4753 = vadd.f32 %v4751, 1e-05
  %v4754 = vadd.f32 %v4752, 1e-05
  %v4755 = vrsqrt.pop %v4753
  %v4756 = vrsqrt.pop %v4754
  %v4757 = vmul.f32 %v4741, %v4755
  %v4758 = vmul.f32 %v4742, %v4756
  %v4760 = vlaneseq
  %v4761 = vshrl.u32 %v4760, 7
  %v4762 = vsub.s32 0, %v4761
  %v4763 = vrot.slane %v120, %v4762
  %v4765 = vmul.f32 %v4757, %v4763
  %v4766 = vmul.f32 %v4758, %v4763
  %v4768 = vlaneseq
  %v4769 = vshrl.u32 %v4768, 7
  %v4770 = vsub.s32 0, %v4769
  %v4771 = vrot.slane %v122, %v4770
  %v4773 = vadd.f32 %v4765, %v4771
  %v4774 = vadd.f32 %v4766, %v4771
  %v4776 = vlaneseq
  %v4777 = vshrl.u32 %v4776, 7
  %v4778 = vsub.s32 0, %v4777
  %v4779 = vrot.slane %v126, %v4778
  %v4782 = vsel %vm183, %v4773, 0
  %v4785 = vsel %vm183, %v4774, 0
  %4787 = vmatprep.subr.mxu0 0.0
  %4788 = vmatpush1.msra.mxu0 %v124
  %4789 = vmatprep.subr.mxu0 0.0
  %4790 = vmatpush1.msra.mxu0 0.0
  %4791 = vmatprep.subr.mxu0 0.0
  %4792 = vmatpush1.msra.mxu0 0.0
  %4793 = vmatprep.subr.mxu0 0.0
  %4794 = vmatpush1.msra.mxu0 0.0
  %4795 = vmatprep.subr.mxu0 0.0
  %4796 = vmatpush1.msra.mxu0 0.0
  %4797 = vmatprep.subr.mxu0 0.0
  %4798 = vmatpush1.msra.mxu0 0.0
  %4799 = vmatprep.subr.mxu0 0.0
  %4800 = vmatpush1.msra.mxu0 0.0
  %4801 = vmatprep.subr.mxu0 0.0
  %4802 = vmatpush1.msra.mxu0 0.0
  %4803 = vmatprep.subr.mxu0 0.0
  %4804 = vmatpush1.msra.mxu0 0.0
  %4805 = vmatprep.subr.mxu0 0.0
  %4806 = vmatpush1.msra.mxu0 0.0
  %4807 = vmatprep.subr.mxu0 0.0
  %4808 = vmatpush1.msra.mxu0 0.0
  %4809 = vmatprep.subr.mxu0 0.0
  %4810 = vmatpush1.msra.mxu0 0.0
  %4811 = vmatprep.subr.mxu0 0.0
  %4812 = vmatpush1.msra.mxu0 0.0
  %4813 = vmatprep.subr.mxu0 0.0
  %4814 = vmatpush1.msra.mxu0 0.0
  %4815 = vmatprep.subr.mxu0 0.0
  %4816 = vmatpush1.msra.mxu0 0.0
  %4817 = vmatprep.subr.mxu0 0.0
  %4818 = vmatpush1.msra.mxu0 0.0
  %4819 = vmatprep.subr.mxu0 0.0
  %4820 = vmatpush1.msra.mxu0 0.0
  %4821 = vmatprep.subr.mxu0 0.0
  %4822 = vmatpush1.msra.mxu0 0.0
  %4823 = vmatprep.subr.mxu0 0.0
  %4824 = vmatpush1.msra.mxu0 0.0
  %4825 = vmatprep.subr.mxu0 0.0
  %4826 = vmatpush1.msra.mxu0 0.0
  %4827 = vmatprep.subr.mxu0 0.0
  %4828 = vmatpush1.msra.mxu0 0.0
  %4829 = vmatprep.subr.mxu0 0.0
  %4830 = vmatpush1.msra.mxu0 0.0
  %4831 = vmatprep.subr.mxu0 0.0
  %4832 = vmatpush1.msra.mxu0 0.0
  %4833 = vmatprep.subr.mxu0 0.0
  %4834 = vmatpush1.msra.mxu0 0.0
  %4835 = vmatprep.subr.mxu0 0.0
  %4836 = vmatpush1.msra.mxu0 0.0
  %4837 = vmatprep.subr.mxu0 0.0
  %4838 = vmatpush1.msra.mxu0 0.0
  %4839 = vmatprep.subr.mxu0 0.0
  %4840 = vmatpush1.msra.mxu0 0.0
  %4841 = vmatprep.subr.mxu0 0.0
  %4842 = vmatpush1.msra.mxu0 0.0
  %4843 = vmatprep.subr.mxu0 0.0
  %4844 = vmatpush1.msra.mxu0 0.0
  %4845 = vmatprep.subr.mxu0 0.0
  %4846 = vmatpush1.msra.mxu0 0.0
  %4847 = vmatprep.subr.mxu0 0.0
  %4848 = vmatpush1.msra.mxu0 0.0
  %4849 = vmatprep.subr.mxu0 0.0
  %4850 = vmatpush1.msra.mxu0 0.0
  %4851 = vmatprep.mubr.f32.mxu0 0.0
  %4852 = vmatmul.mubr.f32.gmra.mrb[0].mxu0 %v4782
  %v4853 = vpop.f32.mrb[0].mxu0
  %v4854 = vadd.f32 %v4779, %v4853
  %v4855 = vpop.f32.mrb[0].mxu0
  %4856 = vmatprep.mubr.f32.mxu0 0.0
  %4857 = vmatmul.mubr.f32.gmra.mrb[0].mxu0 %v4785
  %v4858 = vpop.f32.mrb[0].mxu0
  %v4859 = vadd.f32 %v4779, %v4858
  %v4860 = vpop.f32.mrb[0].mxu0
  %4861 = vdwg.mxu0
  %v4862 = vmax.f32 %v4854, 0.0
  %v4863 = vmax.f32 %v4859, 0.0
  %v4865 = vsel %vm183, %v4862, 0
  %v4868 = vsel %vm183, %v4863, 0
  %4870 = vmatprep.subr.mxu0 0.0
  %4871 = vmatpush1.msra.mxu0 %v128
  %4872 = vmatprep.subr.mxu0 0.0
  %4873 = vmatpush1.msra.mxu0 0.0
  %4874 = vmatprep.subr.mxu0 0.0
  %4875 = vmatpush1.msra.mxu0 0.0
  %4876 = vmatprep.subr.mxu0 0.0
  %4877 = vmatpush1.msra.mxu0 0.0
  %4878 = vmatprep.subr.mxu0 0.0
  %4879 = vmatpush1.msra.mxu0 0.0
  %4880 = vmatprep.subr.mxu0 0.0
  %4881 = vmatpush1.msra.mxu0 0.0
  %4882 = vmatprep.subr.mxu0 0.0
  %4883 = vmatpush1.msra.mxu0 0.0
  %4884 = vmatprep.subr.mxu0 0.0
  %4885 = vmatpush1.msra.mxu0 0.0
  %4886 = vmatprep.subr.mxu0 0.0
  %4887 = vmatpush1.msra.mxu0 0.0
  %4888 = vmatprep.subr.mxu0 0.0
  %4889 = vmatpush1.msra.mxu0 0.0
  %4890 = vmatprep.subr.mxu0 0.0
  %4891 = vmatpush1.msra.mxu0 0.0
  %4892 = vmatprep.subr.mxu0 0.0
  %4893 = vmatpush1.msra.mxu0 0.0
  %4894 = vmatprep.subr.mxu0 0.0
  %4895 = vmatpush1.msra.mxu0 0.0
  %4896 = vmatprep.subr.mxu0 0.0
  %4897 = vmatpush1.msra.mxu0 0.0
  %4898 = vmatprep.subr.mxu0 0.0
  %4899 = vmatpush1.msra.mxu0 0.0
  %4900 = vmatprep.subr.mxu0 0.0
  %4901 = vmatpush1.msra.mxu0 0.0
  %4902 = vmatprep.subr.mxu0 0.0
  %4903 = vmatpush1.msra.mxu0 0.0
  %4904 = vmatprep.subr.mxu0 0.0
  %4905 = vmatpush1.msra.mxu0 0.0
  %4906 = vmatprep.subr.mxu0 0.0
  %4907 = vmatpush1.msra.mxu0 0.0
  %4908 = vmatprep.subr.mxu0 0.0
  %4909 = vmatpush1.msra.mxu0 0.0
  %4910 = vmatprep.subr.mxu0 0.0
  %4911 = vmatpush1.msra.mxu0 0.0
  %4912 = vmatprep.subr.mxu0 0.0
  %4913 = vmatpush1.msra.mxu0 0.0
  %4914 = vmatprep.subr.mxu0 0.0
  %4915 = vmatpush1.msra.mxu0 0.0
  %4916 = vmatprep.subr.mxu0 0.0
  %4917 = vmatpush1.msra.mxu0 0.0
  %4918 = vmatprep.subr.mxu0 0.0
  %4919 = vmatpush1.msra.mxu0 0.0
  %4920 = vmatprep.subr.mxu0 0.0
  %4921 = vmatpush1.msra.mxu0 0.0
  %4922 = vmatprep.subr.mxu0 0.0
  %4923 = vmatpush1.msra.mxu0 0.0
  %4924 = vmatprep.subr.mxu0 0.0
  %4925 = vmatpush1.msra.mxu0 0.0
  %4926 = vmatprep.subr.mxu0 0.0
  %4927 = vmatpush1.msra.mxu0 0.0
  %4928 = vmatprep.subr.mxu0 0.0
  %4929 = vmatpush1.msra.mxu0 0.0
  %4930 = vmatprep.subr.mxu0 0.0
  %4931 = vmatpush1.msra.mxu0 0.0
  %4932 = vmatprep.subr.mxu0 0.0
  %4933 = vmatpush1.msra.mxu0 0.0
  %4934 = vmatprep.mubr.f32.mxu0 0.0
  %4935 = vmatmul.mubr.f32.gmra.mrb[0].mxu0 %v4865
  %v4936 = vpop.f32.mrb[0].mxu0
  %v4937 = vadd.f32 0.0, %v4936
  %v4938 = vpop.f32.mrb[0].mxu0
  %4939 = vmatprep.mubr.f32.mxu0 0.0
  %4940 = vmatmul.mubr.f32.gmra.mrb[0].mxu0 %v4868
  %v4941 = vpop.f32.mrb[0].mxu0
  %v4942 = vadd.f32 0.0, %v4941
  %v4943 = vpop.f32.mrb[0].mxu0
  %4944 = vdwg.mxu0
  %v4945 = vadd.f32 %v4731, %v4937
  %v4946 = vadd.f32 %v4732, %v4942
  %v4948 = vlaneseq
  %v4949 = vshrl.u32 %v4948, 7
  %v4950 = vsub.s32 0, %v4949
  %v4951 = vrot.slane %v130, %v4950
  %v4953 = vadd.f32 %v4945, %v4951
  %v4954 = vadd.f32 %v4946, %v4951
  %v4955 = vsel %vm183, %v4953, 0.0
  %4956 = vadd.xlane.f32.xlu0 %v4955
  %v4957 = vpop.xlane.xlu0 %4956
  %v4958 = vsel %vm183, %v4954, 0.0
  %4959 = vadd.xlane.f32.xlu0 %v4958
  %v4960 = vpop.xlane.xlu0 %4959
  %v4961 = vmul.f32 %v4957, %v190
  %v4962 = vmul.f32 %v4960, %v190
  %v4963 = vsub.f32 %v4953, %v4961
  %v4964 = vsub.f32 %v4954, %v4962
  %v4965 = vmul.f32 %v4963, %v4963
  %v4966 = vmul.f32 %v4964, %v4964
  %v4967 = vsel %vm183, %v4965, 0.0
  %4968 = vadd.xlane.f32.xlu0 %v4967
  %v4969 = vpop.xlane.xlu0 %4968
  %v4970 = vsel %vm183, %v4966, 0.0
  %4971 = vadd.xlane.f32.xlu0 %v4970
  %v4972 = vpop.xlane.xlu0 %4971
  %v4973 = vmul.f32 %v4969, %v190
  %v4974 = vmul.f32 %v4972, %v190
  %v4975 = vadd.f32 %v4973, 1e-05
  %v4976 = vadd.f32 %v4974, 1e-05
  %v4977 = vrsqrt.pop %v4975
  %v4978 = vrsqrt.pop %v4976
  %v4979 = vmul.f32 %v4963, %v4977
  %v4980 = vmul.f32 %v4964, %v4978
  %v4982 = vlaneseq
  %v4983 = vshrl.u32 %v4982, 7
  %v4984 = vsub.s32 0, %v4983
  %v4985 = vrot.slane %v132, %v4984
  %v4987 = vmul.f32 %v4979, %v4985
  %v4988 = vmul.f32 %v4980, %v4985
  %v4990 = vlaneseq
  %v4991 = vshrl.u32 %v4990, 7
  %v4992 = vsub.s32 0, %v4991
  %v4993 = vrot.slane %v134, %v4992
  %v4995 = vadd.f32 %v4987, %v4993
  %v4996 = vadd.f32 %v4988, %v4993
  %v4998 = vlaneseq
  %v4999 = vshrl.u32 %v4998, 7
  %v5000 = vsub.s32 0, %v4999
  %v5001 = vrot.slane %v138, %v5000
  %v5004 = vsel %vm183, %v4995, 0
  %v5007 = vsel %vm183, %v4996, 0
  %5009 = vmatprep.subr.mxu0 0.0
  %5010 = vmatpush1.msra.mxu0 %v136
  %5011 = vmatprep.subr.mxu0 0.0
  %5012 = vmatpush1.msra.mxu0 0.0
  %5013 = vmatprep.subr.mxu0 0.0
  %5014 = vmatpush1.msra.mxu0 0.0
  %5015 = vmatprep.subr.mxu0 0.0
  %5016 = vmatpush1.msra.mxu0 0.0
  %5017 = vmatprep.subr.mxu0 0.0
  %5018 = vmatpush1.msra.mxu0 0.0
  %5019 = vmatprep.subr.mxu0 0.0
  %5020 = vmatpush1.msra.mxu0 0.0
  %5021 = vmatprep.subr.mxu0 0.0
  %5022 = vmatpush1.msra.mxu0 0.0
  %5023 = vmatprep.subr.mxu0 0.0
  %5024 = vmatpush1.msra.mxu0 0.0
  %5025 = vmatprep.subr.mxu0 0.0
  %5026 = vmatpush1.msra.mxu0 0.0
  %5027 = vmatprep.subr.mxu0 0.0
  %5028 = vmatpush1.msra.mxu0 0.0
  %5029 = vmatprep.subr.mxu0 0.0
  %5030 = vmatpush1.msra.mxu0 0.0
  %5031 = vmatprep.subr.mxu0 0.0
  %5032 = vmatpush1.msra.mxu0 0.0
  %5033 = vmatprep.subr.mxu0 0.0
  %5034 = vmatpush1.msra.mxu0 0.0
  %5035 = vmatprep.subr.mxu0 0.0
  %5036 = vmatpush1.msra.mxu0 0.0
  %5037 = vmatprep.subr.mxu0 0.0
  %5038 = vmatpush1.msra.mxu0 0.0
  %5039 = vmatprep.subr.mxu0 0.0
  %5040 = vmatpush1.msra.mxu0 0.0
  %5041 = vmatprep.subr.mxu0 0.0
  %5042 = vmatpush1.msra.mxu0 0.0
  %5043 = vmatprep.subr.mxu0 0.0
  %5044 = vmatpush1.msra.mxu0 0.0
  %5045 = vmatprep.subr.mxu0 0.0
  %5046 = vmatpush1.msra.mxu0 0.0
  %5047 = vmatprep.subr.mxu0 0.0
  %5048 = vmatpush1.msra.mxu0 0.0
  %5049 = vmatprep.subr.mxu0 0.0
  %5050 = vmatpush1.msra.mxu0 0.0
  %5051 = vmatprep.subr.mxu0 0.0
  %5052 = vmatpush1.msra.mxu0 0.0
  %5053 = vmatprep.subr.mxu0 0.0
  %5054 = vmatpush1.msra.mxu0 0.0
  %5055 = vmatprep.subr.mxu0 0.0
  %5056 = vmatpush1.msra.mxu0 0.0
  %5057 = vmatprep.subr.mxu0 0.0
  %5058 = vmatpush1.msra.mxu0 0.0
  %5059 = vmatprep.subr.mxu0 0.0
  %5060 = vmatpush1.msra.mxu0 0.0
  %5061 = vmatprep.subr.mxu0 0.0
  %5062 = vmatpush1.msra.mxu0 0.0
  %5063 = vmatprep.subr.mxu0 0.0
  %5064 = vmatpush1.msra.mxu0 0.0
  %5065 = vmatprep.subr.mxu0 0.0
  %5066 = vmatpush1.msra.mxu0 0.0
  %5067 = vmatprep.subr.mxu0 0.0
  %5068 = vmatpush1.msra.mxu0 0.0
  %5069 = vmatprep.subr.mxu0 0.0
  %5070 = vmatpush1.msra.mxu0 0.0
  %5071 = vmatprep.subr.mxu0 0.0
  %5072 = vmatpush1.msra.mxu0 0.0
  %5073 = vmatprep.mubr.f32.mxu0 0.0
  %5074 = vmatmul.mubr.f32.gmra.mrb[0].mxu0 %v5004
  %v5075 = vpop.f32.mrb[0].mxu0
  %v5076 = vadd.f32 %v5001, %v5075
  %v5077 = vpop.f32.mrb[0].mxu0
  %5078 = vmatprep.mubr.f32.mxu0 0.0
  %5079 = vmatmul.mubr.f32.gmra.mrb[0].mxu0 %v5007
  %v5080 = vpop.f32.mrb[0].mxu0
  %v5081 = vadd.f32 %v5001, %v5080
  %v5082 = vpop.f32.mrb[0].mxu0
  %5083 = vdwg.mxu0
  %5085 = vrot.lane.b32.xlu0 %v5076, 120
  %v5086 = vpop.permute.xlu0 %5085
  %v5087 = vsel %vm329, %v5076, 0
  %v5089 = vsel %vm329, %v5086, 0
  %5091 = vmatprep.subr.mxu0 0.0
  %5092 = vmatpush1.xpose.msra.mxu0 %v5089
  %5093 = vmatprep.subr.mxu0 0.0
  %5094 = vmatpush1.xpose.msra.mxu0 0.0
  %5095 = vmatprep.subr.mxu0 0.0
  %5096 = vmatpush1.xpose.msra.mxu0 0.0
  %5097 = vmatprep.subr.mxu0 0.0
  %5098 = vmatpush1.xpose.msra.mxu0 0.0
  %5099 = vmatprep.subr.mxu0 0.0
  %5100 = vmatpush1.xpose.msra.mxu0 0.0
  %5101 = vmatprep.subr.mxu0 0.0
  %5102 = vmatpush1.xpose.msra.mxu0 0.0
  %5103 = vmatprep.subr.mxu0 0.0
  %5104 = vmatpush1.xpose.msra.mxu0 0.0
  %5105 = vmatprep.subr.mxu0 0.0
  %5106 = vmatpush1.xpose.msra.mxu0 0.0
  %5107 = vmatprep.subr.mxu0 0.0
  %5108 = vmatpush1.xpose.msra.mxu0 0.0
  %5109 = vmatprep.subr.mxu0 0.0
  %5110 = vmatpush1.xpose.msra.mxu0 0.0
  %5111 = vmatprep.subr.mxu0 0.0
  %5112 = vmatpush1.xpose.msra.mxu0 0.0
  %5113 = vmatprep.subr.mxu0 0.0
  %5114 = vmatpush1.xpose.msra.mxu0 0.0
  %5115 = vmatprep.subr.mxu0 0.0
  %5116 = vmatpush1.xpose.msra.mxu0 0.0
  %5117 = vmatprep.subr.mxu0 0.0
  %5118 = vmatpush1.xpose.msra.mxu0 0.0
  %5119 = vmatprep.subr.mxu0 0.0
  %5120 = vmatpush1.xpose.msra.mxu0 0.0
  %5121 = vmatprep.subr.mxu0 0.0
  %5122 = vmatpush1.xpose.msra.mxu0 0.0
  %5123 = vmatprep.subr.mxu0 0.0
  %5124 = vmatpush1.xpose.msra.mxu0 0.0
  %5125 = vmatprep.subr.mxu0 0.0
  %5126 = vmatpush1.xpose.msra.mxu0 0.0
  %5127 = vmatprep.subr.mxu0 0.0
  %5128 = vmatpush1.xpose.msra.mxu0 0.0
  %5129 = vmatprep.subr.mxu0 0.0
  %5130 = vmatpush1.xpose.msra.mxu0 0.0
  %5131 = vmatprep.subr.mxu0 0.0
  %5132 = vmatpush1.xpose.msra.mxu0 0.0
  %5133 = vmatprep.subr.mxu0 0.0
  %5134 = vmatpush1.xpose.msra.mxu0 0.0
  %5135 = vmatprep.subr.mxu0 0.0
  %5136 = vmatpush1.xpose.msra.mxu0 0.0
  %5137 = vmatprep.subr.mxu0 0.0
  %5138 = vmatpush1.xpose.msra.mxu0 0.0
  %5139 = vmatprep.subr.mxu0 0.0
  %5140 = vmatpush1.xpose.msra.mxu0 0.0
  %5141 = vmatprep.subr.mxu0 0.0
  %5142 = vmatpush1.xpose.msra.mxu0 0.0
  %5143 = vmatprep.subr.mxu0 0.0
  %5144 = vmatpush1.xpose.msra.mxu0 0.0
  %5145 = vmatprep.subr.mxu0 0.0
  %5146 = vmatpush1.xpose.msra.mxu0 0.0
  %5147 = vmatprep.subr.mxu0 0.0
  %5148 = vmatpush1.xpose.msra.mxu0 0.0
  %5149 = vmatprep.subr.mxu0 0.0
  %5150 = vmatpush1.xpose.msra.mxu0 0.0
  %5151 = vmatprep.subr.mxu0 0.0
  %5152 = vmatpush1.xpose.msra.mxu0 0.0
  %5153 = vmatprep.subr.mxu0 0.0
  %5154 = vmatpush1.xpose.msra.mxu0 0.0
  %5155 = vmatprep.mubr.f32.mxu0 0.0
  %5156 = vmatmul.mubr.f32.gmra.mrb[0].mxu0 %v5087
  %v5157 = vpop.f32.mrb[0].mxu0
  %v5158 = vadd.f32 %v319, %v5157
  %v5159 = vpop.f32.mrb[0].mxu0
  %5160 = vdwg.mxu0
  %5162 = vrot.lane.b32.xlu0 %v5081, 120
  %v5163 = vpop.permute.xlu0 %5162
  %v5164 = vsel %vm329, %v5081, 0
  %v5166 = vsel %vm329, %v5163, 0
  %5168 = vmatprep.subr.mxu0 0.0
  %5169 = vmatpush1.xpose.msra.mxu0 %v5166
  %5170 = vmatprep.subr.mxu0 0.0
  %5171 = vmatpush1.xpose.msra.mxu0 0.0
  %5172 = vmatprep.subr.mxu0 0.0
  %5173 = vmatpush1.xpose.msra.mxu0 0.0
  %5174 = vmatprep.subr.mxu0 0.0
  %5175 = vmatpush1.xpose.msra.mxu0 0.0
  %5176 = vmatprep.subr.mxu0 0.0
  %5177 = vmatpush1.xpose.msra.mxu0 0.0
  %5178 = vmatprep.subr.mxu0 0.0
  %5179 = vmatpush1.xpose.msra.mxu0 0.0
  %5180 = vmatprep.subr.mxu0 0.0
  %5181 = vmatpush1.xpose.msra.mxu0 0.0
  %5182 = vmatprep.subr.mxu0 0.0
  %5183 = vmatpush1.xpose.msra.mxu0 0.0
  %5184 = vmatprep.subr.mxu0 0.0
  %5185 = vmatpush1.xpose.msra.mxu0 0.0
  %5186 = vmatprep.subr.mxu0 0.0
  %5187 = vmatpush1.xpose.msra.mxu0 0.0
  %5188 = vmatprep.subr.mxu0 0.0
  %5189 = vmatpush1.xpose.msra.mxu0 0.0
  %5190 = vmatprep.subr.mxu0 0.0
  %5191 = vmatpush1.xpose.msra.mxu0 0.0
  %5192 = vmatprep.subr.mxu0 0.0
  %5193 = vmatpush1.xpose.msra.mxu0 0.0
  %5194 = vmatprep.subr.mxu0 0.0
  %5195 = vmatpush1.xpose.msra.mxu0 0.0
  %5196 = vmatprep.subr.mxu0 0.0
  %5197 = vmatpush1.xpose.msra.mxu0 0.0
  %5198 = vmatprep.subr.mxu0 0.0
  %5199 = vmatpush1.xpose.msra.mxu0 0.0
  %5200 = vmatprep.subr.mxu0 0.0
  %5201 = vmatpush1.xpose.msra.mxu0 0.0
  %5202 = vmatprep.subr.mxu0 0.0
  %5203 = vmatpush1.xpose.msra.mxu0 0.0
  %5204 = vmatprep.subr.mxu0 0.0
  %5205 = vmatpush1.xpose.msra.mxu0 0.0
  %5206 = vmatprep.subr.mxu0 0.0
  %5207 = vmatpush1.xpose.msra.mxu0 0.0
  %5208 = vmatprep.subr.mxu0 0.0
  %5209 = vmatpush1.xpose.msra.mxu0 0.0
  %5210 = vmatprep.subr.mxu0 0.0
  %5211 = vmatpush1.xpose.msra.mxu0 0.0
  %5212 = vmatprep.subr.mxu0 0.0
  %5213 = vmatpush1.xpose.msra.mxu0 0.0
  %5214 = vmatprep.subr.mxu0 0.0
  %5215 = vmatpush1.xpose.msra.mxu0 0.0
  %5216 = vmatprep.subr.mxu0 0.0
  %5217 = vmatpush1.xpose.msra.mxu0 0.0
  %5218 = vmatprep.subr.mxu0 0.0
  %5219 = vmatpush1.xpose.msra.mxu0 0.0
  %5220 = vmatprep.subr.mxu0 0.0
  %5221 = vmatpush1.xpose.msra.mxu0 0.0
  %5222 = vmatprep.subr.mxu0 0.0
  %5223 = vmatpush1.xpose.msra.mxu0 0.0
  %5224 = vmatprep.subr.mxu0 0.0
  %5225 = vmatpush1.xpose.msra.mxu0 0.0
  %5226 = vmatprep.subr.mxu0 0.0
  %5227 = vmatpush1.xpose.msra.mxu0 0.0
  %5228 = vmatprep.subr.mxu0 0.0
  %5229 = vmatpush1.xpose.msra.mxu0 0.0
  %5230 = vmatprep.subr.mxu0 0.0
  %5231 = vmatpush1.xpose.msra.mxu0 0.0
  %5232 = vmatprep.mubr.f32.mxu0 0.0
  %5233 = vmatmul.mubr.f32.gmra.mrb[0].mxu0 %v5164
  %v5234 = vpop.f32.mrb[0].mxu0
  %v5235 = vadd.f32 %v323, %v5234
  %v5236 = vpop.f32.mrb[0].mxu0
  %5237 = vdwg.mxu0
  %v5238 = vsel %vm183, %v5158, -inf
  %5239 = vmax.xlane.f32.xlu0 %v5238
  %v5240 = vpop.xlane.xlu0 %5239
  %v5241 = vsel %vm183, %v5235, -inf
  %5242 = vmax.xlane.f32.xlu0 %v5241
  %v5243 = vpop.xlane.xlu0 %5242
  %v5244 = vsub.f32 %v5158, %v5240
  %v5245 = vsub.f32 %v5235, %v5243
  %v5246 = vmul.f32 %v5244, 1.442695
  %v5247 = vpow.pop %v5246
  %v5248 = vmul.f32 %v5245, 1.442695
  %v5249 = vpow.pop %v5248
  %v5250 = vsel %vm183, %v5247, 0.0
  %5251 = vadd.xlane.f32.xlu0 %v5250
  %v5252 = vpop.xlane.xlu0 %5251
  %v5253 = vsel %vm183, %v5249, 0.0
  %5254 = vadd.xlane.f32.xlu0 %v5253
  %v5255 = vpop.xlane.xlu0 %5254
  %v5256 = vrcp.pop %v5252
  %v5257 = vrcp.pop %v5255
  %v5258 = vmul.f32 %v5247, %v5256
  %v5259 = vmul.f32 %v5249, %v5257
  %5260 = vrot.lane.b32.xlu0 %v5076, 112
  %v5261 = vpop.permute.xlu0 %5260
  %v5264 = vsel %vm183, %v5258, 0
  %5266 = vmatprep.subr.mxu0 0.0
  %5267 = vmatpush1.msra.mxu0 %v5261
  %5268 = vmatprep.subr.mxu0 0.0
  %5269 = vmatpush1.msra.mxu0 0.0
  %5270 = vmatprep.subr.mxu0 0.0
  %5271 = vmatpush1.msra.mxu0 0.0
  %5272 = vmatprep.subr.mxu0 0.0
  %5273 = vmatpush1.msra.mxu0 0.0
  %5274 = vmatprep.subr.mxu0 0.0
  %5275 = vmatpush1.msra.mxu0 0.0
  %5276 = vmatprep.subr.mxu0 0.0
  %5277 = vmatpush1.msra.mxu0 0.0
  %5278 = vmatprep.subr.mxu0 0.0
  %5279 = vmatpush1.msra.mxu0 0.0
  %5280 = vmatprep.subr.mxu0 0.0
  %5281 = vmatpush1.msra.mxu0 0.0
  %5282 = vmatprep.subr.mxu0 0.0
  %5283 = vmatpush1.msra.mxu0 0.0
  %5284 = vmatprep.subr.mxu0 0.0
  %5285 = vmatpush1.msra.mxu0 0.0
  %5286 = vmatprep.subr.mxu0 0.0
  %5287 = vmatpush1.msra.mxu0 0.0
  %5288 = vmatprep.subr.mxu0 0.0
  %5289 = vmatpush1.msra.mxu0 0.0
  %5290 = vmatprep.subr.mxu0 0.0
  %5291 = vmatpush1.msra.mxu0 0.0
  %5292 = vmatprep.subr.mxu0 0.0
  %5293 = vmatpush1.msra.mxu0 0.0
  %5294 = vmatprep.subr.mxu0 0.0
  %5295 = vmatpush1.msra.mxu0 0.0
  %5296 = vmatprep.subr.mxu0 0.0
  %5297 = vmatpush1.msra.mxu0 0.0
  %5298 = vmatprep.subr.mxu0 0.0
  %5299 = vmatpush1.msra.mxu0 0.0
  %5300 = vmatprep.subr.mxu0 0.0
  %5301 = vmatpush1.msra.mxu0 0.0
  %5302 = vmatprep.subr.mxu0 0.0
  %5303 = vmatpush1.msra.mxu0 0.0
  %5304 = vmatprep.subr.mxu0 0.0
  %5305 = vmatpush1.msra.mxu0 0.0
  %5306 = vmatprep.subr.mxu0 0.0
  %5307 = vmatpush1.msra.mxu0 0.0
  %5308 = vmatprep.subr.mxu0 0.0
  %5309 = vmatpush1.msra.mxu0 0.0
  %5310 = vmatprep.subr.mxu0 0.0
  %5311 = vmatpush1.msra.mxu0 0.0
  %5312 = vmatprep.subr.mxu0 0.0
  %5313 = vmatpush1.msra.mxu0 0.0
  %5314 = vmatprep.subr.mxu0 0.0
  %5315 = vmatpush1.msra.mxu0 0.0
  %5316 = vmatprep.subr.mxu0 0.0
  %5317 = vmatpush1.msra.mxu0 0.0
  %5318 = vmatprep.subr.mxu0 0.0
  %5319 = vmatpush1.msra.mxu0 0.0
  %5320 = vmatprep.subr.mxu0 0.0
  %5321 = vmatpush1.msra.mxu0 0.0
  %5322 = vmatprep.subr.mxu0 0.0
  %5323 = vmatpush1.msra.mxu0 0.0
  %5324 = vmatprep.subr.mxu0 0.0
  %5325 = vmatpush1.msra.mxu0 0.0
  %5326 = vmatprep.subr.mxu0 0.0
  %5327 = vmatpush1.msra.mxu0 0.0
  %5328 = vmatprep.subr.mxu0 0.0
  %5329 = vmatpush1.msra.mxu0 0.0
  %5330 = vmatprep.mubr.f32.mxu0 0.0
  %5331 = vmatmul.mubr.f32.gmra.mrb[0].mxu0 %v5264
  %v5332 = vpop.f32.mrb[0].mxu0
  %v5333 = vadd.f32 0.0, %v5332
  %v5334 = vpop.f32.mrb[0].mxu0
  %5335 = vdwg.mxu0
  %5336 = vrot.lane.b32.xlu0 %v5081, 112
  %v5337 = vpop.permute.xlu0 %5336
  %v5340 = vsel %vm183, %v5259, 0
  %5342 = vmatprep.subr.mxu0 0.0
  %5343 = vmatpush1.msra.mxu0 %v5337
  %5344 = vmatprep.subr.mxu0 0.0
  %5345 = vmatpush1.msra.mxu0 0.0
  %5346 = vmatprep.subr.mxu0 0.0
  %5347 = vmatpush1.msra.mxu0 0.0
  %5348 = vmatprep.subr.mxu0 0.0
  %5349 = vmatpush1.msra.mxu0 0.0
  %5350 = vmatprep.subr.mxu0 0.0
  %5351 = vmatpush1.msra.mxu0 0.0
  %5352 = vmatprep.subr.mxu0 0.0
  %5353 = vmatpush1.msra.mxu0 0.0
  %5354 = vmatprep.subr.mxu0 0.0
  %5355 = vmatpush1.msra.mxu0 0.0
  %5356 = vmatprep.subr.mxu0 0.0
  %5357 = vmatpush1.msra.mxu0 0.0
  %5358 = vmatprep.subr.mxu0 0.0
  %5359 = vmatpush1.msra.mxu0 0.0
  %5360 = vmatprep.subr.mxu0 0.0
  %5361 = vmatpush1.msra.mxu0 0.0
  %5362 = vmatprep.subr.mxu0 0.0
  %5363 = vmatpush1.msra.mxu0 0.0
  %5364 = vmatprep.subr.mxu0 0.0
  %5365 = vmatpush1.msra.mxu0 0.0
  %5366 = vmatprep.subr.mxu0 0.0
  %5367 = vmatpush1.msra.mxu0 0.0
  %5368 = vmatprep.subr.mxu0 0.0
  %5369 = vmatpush1.msra.mxu0 0.0
  %5370 = vmatprep.subr.mxu0 0.0
  %5371 = vmatpush1.msra.mxu0 0.0
  %5372 = vmatprep.subr.mxu0 0.0
  %5373 = vmatpush1.msra.mxu0 0.0
  %5374 = vmatprep.subr.mxu0 0.0
  %5375 = vmatpush1.msra.mxu0 0.0
  %5376 = vmatprep.subr.mxu0 0.0
  %5377 = vmatpush1.msra.mxu0 0.0
  %5378 = vmatprep.subr.mxu0 0.0
  %5379 = vmatpush1.msra.mxu0 0.0
  %5380 = vmatprep.subr.mxu0 0.0
  %5381 = vmatpush1.msra.mxu0 0.0
  %5382 = vmatprep.subr.mxu0 0.0
  %5383 = vmatpush1.msra.mxu0 0.0
  %5384 = vmatprep.subr.mxu0 0.0
  %5385 = vmatpush1.msra.mxu0 0.0
  %5386 = vmatprep.subr.mxu0 0.0
  %5387 = vmatpush1.msra.mxu0 0.0
  %5388 = vmatprep.subr.mxu0 0.0
  %5389 = vmatpush1.msra.mxu0 0.0
  %5390 = vmatprep.subr.mxu0 0.0
  %5391 = vmatpush1.msra.mxu0 0.0
  %5392 = vmatprep.subr.mxu0 0.0
  %5393 = vmatpush1.msra.mxu0 0.0
  %5394 = vmatprep.subr.mxu0 0.0
  %5395 = vmatpush1.msra.mxu0 0.0
  %5396 = vmatprep.subr.mxu0 0.0
  %5397 = vmatpush1.msra.mxu0 0.0
  %5398 = vmatprep.subr.mxu0 0.0
  %5399 = vmatpush1.msra.mxu0 0.0
  %5400 = vmatprep.subr.mxu0 0.0
  %5401 = vmatpush1.msra.mxu0 0.0
  %5402 = vmatprep.subr.mxu0 0.0
  %5403 = vmatpush1.msra.mxu0 0.0
  %5404 = vmatprep.subr.mxu0 0.0
  %5405 = vmatpush1.msra.mxu0 0.0
  %5406 = vmatprep.mubr.f32.mxu0 0.0
  %5407 = vmatmul.mubr.f32.gmra.mrb[0].mxu0 %v5340
  %v5408 = vpop.f32.mrb[0].mxu0
  %v5409 = vadd.f32 0.0, %v5408
  %v5410 = vpop.f32.mrb[0].mxu0
  %5411 = vdwg.mxu0
  %v5413 = vsel %vm329, %v5333, 0
  %v5416 = vsel %vm329, %v5409, 0
  %v5419 = vsel %vm661, %v140, 0
  %5421 = vmatprep.subr.mxu0 0.0
  %5422 = vmatpush1.msra.mxu0 %v5419
  %5423 = vmatprep.subr.mxu0 0.0
  %5424 = vmatpush1.msra.mxu0 0.0
  %5425 = vmatprep.subr.mxu0 0.0
  %5426 = vmatpush1.msra.mxu0 0.0
  %5427 = vmatprep.subr.mxu0 0.0
  %5428 = vmatpush1.msra.mxu0 0.0
  %5429 = vmatprep.subr.mxu0 0.0
  %5430 = vmatpush1.msra.mxu0 0.0
  %5431 = vmatprep.subr.mxu0 0.0
  %5432 = vmatpush1.msra.mxu0 0.0
  %5433 = vmatprep.subr.mxu0 0.0
  %5434 = vmatpush1.msra.mxu0 0.0
  %5435 = vmatprep.subr.mxu0 0.0
  %5436 = vmatpush1.msra.mxu0 0.0
  %5437 = vmatprep.subr.mxu0 0.0
  %5438 = vmatpush1.msra.mxu0 0.0
  %5439 = vmatprep.subr.mxu0 0.0
  %5440 = vmatpush1.msra.mxu0 0.0
  %5441 = vmatprep.subr.mxu0 0.0
  %5442 = vmatpush1.msra.mxu0 0.0
  %5443 = vmatprep.subr.mxu0 0.0
  %5444 = vmatpush1.msra.mxu0 0.0
  %5445 = vmatprep.subr.mxu0 0.0
  %5446 = vmatpush1.msra.mxu0 0.0
  %5447 = vmatprep.subr.mxu0 0.0
  %5448 = vmatpush1.msra.mxu0 0.0
  %5449 = vmatprep.subr.mxu0 0.0
  %5450 = vmatpush1.msra.mxu0 0.0
  %5451 = vmatprep.subr.mxu0 0.0
  %5452 = vmatpush1.msra.mxu0 0.0
  %5453 = vmatprep.subr.mxu0 0.0
  %5454 = vmatpush1.msra.mxu0 0.0
  %5455 = vmatprep.subr.mxu0 0.0
  %5456 = vmatpush1.msra.mxu0 0.0
  %5457 = vmatprep.subr.mxu0 0.0
  %5458 = vmatpush1.msra.mxu0 0.0
  %5459 = vmatprep.subr.mxu0 0.0
  %5460 = vmatpush1.msra.mxu0 0.0
  %5461 = vmatprep.subr.mxu0 0.0
  %5462 = vmatpush1.msra.mxu0 0.0
  %5463 = vmatprep.subr.mxu0 0.0
  %5464 = vmatpush1.msra.mxu0 0.0
  %5465 = vmatprep.subr.mxu0 0.0
  %5466 = vmatpush1.msra.mxu0 0.0
  %5467 = vmatprep.subr.mxu0 0.0
  %5468 = vmatpush1.msra.mxu0 0.0
  %5469 = vmatprep.subr.mxu0 0.0
  %5470 = vmatpush1.msra.mxu0 0.0
  %5471 = vmatprep.subr.mxu0 0.0
  %5472 = vmatpush1.msra.mxu0 0.0
  %5473 = vmatprep.subr.mxu0 0.0
  %5474 = vmatpush1.msra.mxu0 0.0
  %5475 = vmatprep.subr.mxu0 0.0
  %5476 = vmatpush1.msra.mxu0 0.0
  %5477 = vmatprep.subr.mxu0 0.0
  %5478 = vmatpush1.msra.mxu0 0.0
  %5479 = vmatprep.subr.mxu0 0.0
  %5480 = vmatpush1.msra.mxu0 0.0
  %5481 = vmatprep.subr.mxu0 0.0
  %5482 = vmatpush1.msra.mxu0 0.0
  %5483 = vmatprep.subr.mxu0 0.0
  %5484 = vmatpush1.msra.mxu0 0.0
  %5485 = vmatprep.mubr.f32.mxu0 0.0
  %5486 = vmatmul.mubr.f32.gmra.mrb[0].mxu0 %v5413
  %v5487 = vpop.f32.mrb[0].mxu0
  %v5488 = vadd.f32 0.0, %v5487
  %v5489 = vpop.f32.mrb[0].mxu0
  %5490 = vmatprep.mubr.f32.mxu0 0.0
  %5491 = vmatmul.mubr.f32.gmra.mrb[0].mxu0 %v5416
  %v5492 = vpop.f32.mrb[0].mxu0
  %v5493 = vadd.f32 0.0, %v5492
  %v5494 = vpop.f32.mrb[0].mxu0
  %5495 = vdwg.mxu0
  %v5497 = vlaneseq
  %v5498 = vshrl.u32 %v5497, 7
  %v5499 = vsub.s32 0, %v5498
  %v5500 = vrot.slane %v142, %v5499
  %v5502 = vadd.f32 %v5500, %v5488
  %v5503 = vadd.f32 %v5500, %v5493
  %5504 = vrot.lane.b32.xlu0 %v5076, 124
  %v5505 = vpop.permute.xlu0 %5504
  %5506 = vrot.lane.b32.xlu0 %v5076, 116
  %v5507 = vpop.permute.xlu0 %5506
  %v5508 = vsel %vm329, %v5505, 0
  %v5510 = vsel %vm329, %v5507, 0
  %5512 = vmatprep.subr.mxu0 0.0
  %5513 = vmatpush1.xpose.msra.mxu0 %v5510
  %5514 = vmatprep.subr.mxu0 0.0
  %5515 = vmatpush1.xpose.msra.mxu0 0.0
  %5516 = vmatprep.subr.mxu0 0.0
  %5517 = vmatpush1.xpose.msra.mxu0 0.0
  %5518 = vmatprep.subr.mxu0 0.0
  %5519 = vmatpush1.xpose.msra.mxu0 0.0
  %5520 = vmatprep.subr.mxu0 0.0
  %5521 = vmatpush1.xpose.msra.mxu0 0.0
  %5522 = vmatprep.subr.mxu0 0.0
  %5523 = vmatpush1.xpose.msra.mxu0 0.0
  %5524 = vmatprep.subr.mxu0 0.0
  %5525 = vmatpush1.xpose.msra.mxu0 0.0
  %5526 = vmatprep.subr.mxu0 0.0
  %5527 = vmatpush1.xpose.msra.mxu0 0.0
  %5528 = vmatprep.subr.mxu0 0.0
  %5529 = vmatpush1.xpose.msra.mxu0 0.0
  %5530 = vmatprep.subr.mxu0 0.0
  %5531 = vmatpush1.xpose.msra.mxu0 0.0
  %5532 = vmatprep.subr.mxu0 0.0
  %5533 = vmatpush1.xpose.msra.mxu0 0.0
  %5534 = vmatprep.subr.mxu0 0.0
  %5535 = vmatpush1.xpose.msra.mxu0 0.0
  %5536 = vmatprep.subr.mxu0 0.0
  %5537 = vmatpush1.xpose.msra.mxu0 0.0
  %5538 = vmatprep.subr.mxu0 0.0
  %5539 = vmatpush1.xpose.msra.mxu0 0.0
  %5540 = vmatprep.subr.mxu0 0.0
  %5541 = vmatpush1.xpose.msra.mxu0 0.0
  %5542 = vmatprep.subr.mxu0 0.0
  %5543 = vmatpush1.xpose.msra.mxu0 0.0
  %5544 = vmatprep.subr.mxu0 0.0
  %5545 = vmatpush1.xpose.msra.mxu0 0.0
  %5546 = vmatprep.subr.mxu0 0.0
  %5547 = vmatpush1.xpose.msra.mxu0 0.0
  %5548 = vmatprep.subr.mxu0 0.0
  %5549 = vmatpush1.xpose.msra.mxu0 0.0
  %5550 = vmatprep.subr.mxu0 0.0
  %5551 = vmatpush1.xpose.msra.mxu0 0.0
  %5552 = vmatprep.subr.mxu0 0.0
  %5553 = vmatpush1.xpose.msra.mxu0 0.0
  %5554 = vmatprep.subr.mxu0 0.0
  %5555 = vmatpush1.xpose.msra.mxu0 0.0
  %5556 = vmatprep.subr.mxu0 0.0
  %5557 = vmatpush1.xpose.msra.mxu0 0.0
  %5558 = vmatprep.subr.mxu0 0.0
  %5559 = vmatpush1.xpose.msra.mxu0 0.0
  %5560 = vmatprep.subr.mxu0 0.0
  %5561 = vmatpush1.xpose.msra.mxu0 0.0
  %5562 = vmatprep.subr.mxu0 0.0
  %5563 = vmatpush1.xpose.msra.mxu0 0.0
  %5564 = vmatprep.subr.mxu0 0.0
  %5565 = vmatpush1.xpose.msra.mxu0 0.0
  %5566 = vmatprep.subr.mxu0 0.0
  %5567 = vmatpush1.xpose.msra.mxu0 0.0
  %5568 = vmatprep.subr.mxu0 0.0
  %5569 = vmatpush1.xpose.msra.mxu0 0.0
  %5570 = vmatprep.subr.mxu0 0.0
  %5571 = vmatpush1.xpose.msra.mxu0 0.0
  %5572 = vmatprep.subr.mxu0 0.0
  %5573 = vmatpush1.xpose.msra.mxu0 0.0
  %5574 = vmatprep.subr.mxu0 0.0
  %5575 = vmatpush1.xpose.msra.mxu0 0.0
  %5576 = vmatprep.mubr.f32.mxu0 0.0
  %5577 = vmatmul.mubr.f32.gmra.mrb[0].mxu0 %v5508
  %v5578 = vpop.f32.mrb[0].mxu0
  %v5579 = vadd.f32 %v319, %v5578
  %v5580 = vpop.f32.mrb[0].mxu0
  %5581 = vdwg.mxu0
  %5582 = vrot.lane.b32.xlu0 %v5081, 124
  %v5583 = vpop.permute.xlu0 %5582
  %5584 = vrot.lane.b32.xlu0 %v5081, 116
  %v5585 = vpop.permute.xlu0 %5584
  %v5586 = vsel %vm329, %v5583, 0
  %v5588 = vsel %vm329, %v5585, 0
  %5590 = vmatprep.subr.mxu0 0.0
  %5591 = vmatpush1.xpose.msra.mxu0 %v5588
  %5592 = vmatprep.subr.mxu0 0.0
  %5593 = vmatpush1.xpose.msra.mxu0 0.0
  %5594 = vmatprep.subr.mxu0 0.0
  %5595 = vmatpush1.xpose.msra.mxu0 0.0
  %5596 = vmatprep.subr.mxu0 0.0
  %5597 = vmatpush1.xpose.msra.mxu0 0.0
  %5598 = vmatprep.subr.mxu0 0.0
  %5599 = vmatpush1.xpose.msra.mxu0 0.0
  %5600 = vmatprep.subr.mxu0 0.0
  %5601 = vmatpush1.xpose.msra.mxu0 0.0
  %5602 = vmatprep.subr.mxu0 0.0
  %5603 = vmatpush1.xpose.msra.mxu0 0.0
  %5604 = vmatprep.subr.mxu0 0.0
  %5605 = vmatpush1.xpose.msra.mxu0 0.0
  %5606 = vmatprep.subr.mxu0 0.0
  %5607 = vmatpush1.xpose.msra.mxu0 0.0
  %5608 = vmatprep.subr.mxu0 0.0
  %5609 = vmatpush1.xpose.msra.mxu0 0.0
  %5610 = vmatprep.subr.mxu0 0.0
  %5611 = vmatpush1.xpose.msra.mxu0 0.0
  %5612 = vmatprep.subr.mxu0 0.0
  %5613 = vmatpush1.xpose.msra.mxu0 0.0
  %5614 = vmatprep.subr.mxu0 0.0
  %5615 = vmatpush1.xpose.msra.mxu0 0.0
  %5616 = vmatprep.subr.mxu0 0.0
  %5617 = vmatpush1.xpose.msra.mxu0 0.0
  %5618 = vmatprep.subr.mxu0 0.0
  %5619 = vmatpush1.xpose.msra.mxu0 0.0
  %5620 = vmatprep.subr.mxu0 0.0
  %5621 = vmatpush1.xpose.msra.mxu0 0.0
  %5622 = vmatprep.subr.mxu0 0.0
  %5623 = vmatpush1.xpose.msra.mxu0 0.0
  %5624 = vmatprep.subr.mxu0 0.0
  %5625 = vmatpush1.xpose.msra.mxu0 0.0
  %5626 = vmatprep.subr.mxu0 0.0
  %5627 = vmatpush1.xpose.msra.mxu0 0.0
  %5628 = vmatprep.subr.mxu0 0.0
  %5629 = vmatpush1.xpose.msra.mxu0 0.0
  %5630 = vmatprep.subr.mxu0 0.0
  %5631 = vmatpush1.xpose.msra.mxu0 0.0
  %5632 = vmatprep.subr.mxu0 0.0
  %5633 = vmatpush1.xpose.msra.mxu0 0.0
  %5634 = vmatprep.subr.mxu0 0.0
  %5635 = vmatpush1.xpose.msra.mxu0 0.0
  %5636 = vmatprep.subr.mxu0 0.0
  %5637 = vmatpush1.xpose.msra.mxu0 0.0
  %5638 = vmatprep.subr.mxu0 0.0
  %5639 = vmatpush1.xpose.msra.mxu0 0.0
  %5640 = vmatprep.subr.mxu0 0.0
  %5641 = vmatpush1.xpose.msra.mxu0 0.0
  %5642 = vmatprep.subr.mxu0 0.0
  %5643 = vmatpush1.xpose.msra.mxu0 0.0
  %5644 = vmatprep.subr.mxu0 0.0
  %5645 = vmatpush1.xpose.msra.mxu0 0.0
  %5646 = vmatprep.subr.mxu0 0.0
  %5647 = vmatpush1.xpose.msra.mxu0 0.0
  %5648 = vmatprep.subr.mxu0 0.0
  %5649 = vmatpush1.xpose.msra.mxu0 0.0
  %5650 = vmatprep.subr.mxu0 0.0
  %5651 = vmatpush1.xpose.msra.mxu0 0.0
  %5652 = vmatprep.subr.mxu0 0.0
  %5653 = vmatpush1.xpose.msra.mxu0 0.0
  %5654 = vmatprep.mubr.f32.mxu0 0.0
  %5655 = vmatmul.mubr.f32.gmra.mrb[0].mxu0 %v5586
  %v5656 = vpop.f32.mrb[0].mxu0
  %v5657 = vadd.f32 %v323, %v5656
  %v5658 = vpop.f32.mrb[0].mxu0
  %5659 = vdwg.mxu0
  %v5660 = vsel %vm183, %v5579, -inf
  %5661 = vmax.xlane.f32.xlu0 %v5660
  %v5662 = vpop.xlane.xlu0 %5661
  %v5663 = vsel %vm183, %v5657, -inf
  %5664 = vmax.xlane.f32.xlu0 %v5663
  %v5665 = vpop.xlane.xlu0 %5664
  %v5666 = vsub.f32 %v5579, %v5662
  %v5667 = vsub.f32 %v5657, %v5665
  %v5668 = vmul.f32 %v5666, 1.442695
  %v5669 = vpow.pop %v5668
  %v5670 = vmul.f32 %v5667, 1.442695
  %v5671 = vpow.pop %v5670
  %v5672 = vsel %vm183, %v5669, 0.0
  %5673 = vadd.xlane.f32.xlu0 %v5672
  %v5674 = vpop.xlane.xlu0 %5673
  %v5675 = vsel %vm183, %v5671, 0.0
  %5676 = vadd.xlane.f32.xlu0 %v5675
  %v5677 = vpop.xlane.xlu0 %5676
  %v5678 = vrcp.pop %v5674
  %v5679 = vrcp.pop %v5677
  %v5680 = vmul.f32 %v5669, %v5678
  %v5681 = vmul.f32 %v5671, %v5679
  %5682 = vrot.lane.b32.xlu0 %v5076, 108
  %v5683 = vpop.permute.xlu0 %5682
  %v5686 = vsel %vm183, %v5680, 0
  %5688 = vmatprep.subr.mxu0 0.0
  %5689 = vmatpush1.msra.mxu0 %v5683
  %5690 = vmatprep.subr.mxu0 0.0
  %5691 = vmatpush1.msra.mxu0 0.0
  %5692 = vmatprep.subr.mxu0 0.0
  %5693 = vmatpush1.msra.mxu0 0.0
  %5694 = vmatprep.subr.mxu0 0.0
  %5695 = vmatpush1.msra.mxu0 0.0
  %5696 = vmatprep.subr.mxu0 0.0
  %5697 = vmatpush1.msra.mxu0 0.0
  %5698 = vmatprep.subr.mxu0 0.0
  %5699 = vmatpush1.msra.mxu0 0.0
  %5700 = vmatprep.subr.mxu0 0.0
  %5701 = vmatpush1.msra.mxu0 0.0
  %5702 = vmatprep.subr.mxu0 0.0
  %5703 = vmatpush1.msra.mxu0 0.0
  %5704 = vmatprep.subr.mxu0 0.0
  %5705 = vmatpush1.msra.mxu0 0.0
  %5706 = vmatprep.subr.mxu0 0.0
  %5707 = vmatpush1.msra.mxu0 0.0
  %5708 = vmatprep.subr.mxu0 0.0
  %5709 = vmatpush1.msra.mxu0 0.0
  %5710 = vmatprep.subr.mxu0 0.0
  %5711 = vmatpush1.msra.mxu0 0.0
  %5712 = vmatprep.subr.mxu0 0.0
  %5713 = vmatpush1.msra.mxu0 0.0
  %5714 = vmatprep.subr.mxu0 0.0
  %5715 = vmatpush1.msra.mxu0 0.0
  %5716 = vmatprep.subr.mxu0 0.0
  %5717 = vmatpush1.msra.mxu0 0.0
  %5718 = vmatprep.subr.mxu0 0.0
  %5719 = vmatpush1.msra.mxu0 0.0
  %5720 = vmatprep.subr.mxu0 0.0
  %5721 = vmatpush1.msra.mxu0 0.0
  %5722 = vmatprep.subr.mxu0 0.0
  %5723 = vmatpush1.msra.mxu0 0.0
  %5724 = vmatprep.subr.mxu0 0.0
  %5725 = vmatpush1.msra.mxu0 0.0
  %5726 = vmatprep.subr.mxu0 0.0
  %5727 = vmatpush1.msra.mxu0 0.0
  %5728 = vmatprep.subr.mxu0 0.0
  %5729 = vmatpush1.msra.mxu0 0.0
  %5730 = vmatprep.subr.mxu0 0.0
  %5731 = vmatpush1.msra.mxu0 0.0
  %5732 = vmatprep.subr.mxu0 0.0
  %5733 = vmatpush1.msra.mxu0 0.0
  %5734 = vmatprep.subr.mxu0 0.0
  %5735 = vmatpush1.msra.mxu0 0.0
  %5736 = vmatprep.subr.mxu0 0.0
  %5737 = vmatpush1.msra.mxu0 0.0
  %5738 = vmatprep.subr.mxu0 0.0
  %5739 = vmatpush1.msra.mxu0 0.0
  %5740 = vmatprep.subr.mxu0 0.0
  %5741 = vmatpush1.msra.mxu0 0.0
  %5742 = vmatprep.subr.mxu0 0.0
  %5743 = vmatpush1.msra.mxu0 0.0
  %5744 = vmatprep.subr.mxu0 0.0
  %5745 = vmatpush1.msra.mxu0 0.0
  %5746 = vmatprep.subr.mxu0 0.0
  %5747 = vmatpush1.msra.mxu0 0.0
  %5748 = vmatprep.subr.mxu0 0.0
  %5749 = vmatpush1.msra.mxu0 0.0
  %5750 = vmatprep.subr.mxu0 0.0
  %5751 = vmatpush1.msra.mxu0 0.0
  %5752 = vmatprep.mubr.f32.mxu0 0.0
  %5753 = vmatmul.mubr.f32.gmra.mrb[0].mxu0 %v5686
  %v5754 = vpop.f32.mrb[0].mxu0
  %v5755 = vadd.f32 0.0, %v5754
  %v5756 = vpop.f32.mrb[0].mxu0
  %5757 = vdwg.mxu0
  %5758 = vrot.lane.b32.xlu0 %v5081, 108
  %v5759 = vpop.permute.xlu0 %5758
  %v5762 = vsel %vm183, %v5681, 0
  %5764 = vmatprep.subr.mxu0 0.0
  %5765 = vmatpush1.msra.mxu0 %v5759
  %5766 = vmatprep.subr.mxu0 0.0
  %5767 = vmatpush1.msra.mxu0 0.0
  %5768 = vmatprep.subr.mxu0 0.0
  %5769 = vmatpush1.msra.mxu0 0.0
  %5770 = vmatprep.subr.mxu0 0.0
  %5771 = vmatpush1.msra.mxu0 0.0
  %5772 = vmatprep.subr.mxu0 0.0
  %5773 = vmatpush1.msra.mxu0 0.0
  %5774 = vmatprep.subr.mxu0 0.0
  %5775 = vmatpush1.msra.mxu0 0.0
  %5776 = vmatprep.subr.mxu0 0.0
  %5777 = vmatpush1.msra.mxu0 0.0
  %5778 = vmatprep.subr.mxu0 0.0
  %5779 = vmatpush1.msra.mxu0 0.0
  %5780 = vmatprep.subr.mxu0 0.0
  %5781 = vmatpush1.msra.mxu0 0.0
  %5782 = vmatprep.subr.mxu0 0.0
  %5783 = vmatpush1.msra.mxu0 0.0
  %5784 = vmatprep.subr.mxu0 0.0
  %5785 = vmatpush1.msra.mxu0 0.0
  %5786 = vmatprep.subr.mxu0 0.0
  %5787 = vmatpush1.msra.mxu0 0.0
  %5788 = vmatprep.subr.mxu0 0.0
  %5789 = vmatpush1.msra.mxu0 0.0
  %5790 = vmatprep.subr.mxu0 0.0
  %5791 = vmatpush1.msra.mxu0 0.0
  %5792 = vmatprep.subr.mxu0 0.0
  %5793 = vmatpush1.msra.mxu0 0.0
  %5794 = vmatprep.subr.mxu0 0.0
  %5795 = vmatpush1.msra.mxu0 0.0
  %5796 = vmatprep.subr.mxu0 0.0
  %5797 = vmatpush1.msra.mxu0 0.0
  %5798 = vmatprep.subr.mxu0 0.0
  %5799 = vmatpush1.msra.mxu0 0.0
  %5800 = vmatprep.subr.mxu0 0.0
  %5801 = vmatpush1.msra.mxu0 0.0
  %5802 = vmatprep.subr.mxu0 0.0
  %5803 = vmatpush1.msra.mxu0 0.0
  %5804 = vmatprep.subr.mxu0 0.0
  %5805 = vmatpush1.msra.mxu0 0.0
  %5806 = vmatprep.subr.mxu0 0.0
  %5807 = vmatpush1.msra.mxu0 0.0
  %5808 = vmatprep.subr.mxu0 0.0
  %5809 = vmatpush1.msra.mxu0 0.0
  %5810 = vmatprep.subr.mxu0 0.0
  %5811 = vmatpush1.msra.mxu0 0.0
  %5812 = vmatprep.subr.mxu0 0.0
  %5813 = vmatpush1.msra.mxu0 0.0
  %5814 = vmatprep.subr.mxu0 0.0
  %5815 = vmatpush1.msra.mxu0 0.0
  %5816 = vmatprep.subr.mxu0 0.0
  %5817 = vmatpush1.msra.mxu0 0.0
  %5818 = vmatprep.subr.mxu0 0.0
  %5819 = vmatpush1.msra.mxu0 0.0
  %5820 = vmatprep.subr.mxu0 0.0
  %5821 = vmatpush1.msra.mxu0 0.0
  %5822 = vmatprep.subr.mxu0 0.0
  %5823 = vmatpush1.msra.mxu0 0.0
  %5824 = vmatprep.subr.mxu0 0.0
  %5825 = vmatpush1.msra.mxu0 0.0
  %5826 = vmatprep.subr.mxu0 0.0
  %5827 = vmatpush1.msra.mxu0 0.0
  %5828 = vmatprep.mubr.f32.mxu0 0.0
  %5829 = vmatmul.mubr.f32.gmra.mrb[0].mxu0 %v5762
  %v5830 = vpop.f32.mrb[0].mxu0
  %v5831 = vadd.f32 0.0, %v5830
  %v5832 = vpop.f32.mrb[0].mxu0
  %5833 = vdwg.mxu0
  %v5834 = vrot.slane %v140, 4
  %v5836 = vsel %vm329, %v5755, 0
  %v5839 = vsel %vm329, %v5831, 0
  %v5841 = vsel %vm661, %v5834, 0
  %5843 = vmatprep.subr.mxu0 0.0
  %5844 = vmatpush1.msra.mxu0 %v5841
  %5845 = vmatprep.subr.mxu0 0.0
  %5846 = vmatpush1.msra.mxu0 0.0
  %5847 = vmatprep.subr.mxu0 0.0
  %5848 = vmatpush1.msra.mxu0 0.0
  %5849 = vmatprep.subr.mxu0 0.0
  %5850 = vmatpush1.msra.mxu0 0.0
  %5851 = vmatprep.subr.mxu0 0.0
  %5852 = vmatpush1.msra.mxu0 0.0
  %5853 = vmatprep.subr.mxu0 0.0
  %5854 = vmatpush1.msra.mxu0 0.0
  %5855 = vmatprep.subr.mxu0 0.0
  %5856 = vmatpush1.msra.mxu0 0.0
  %5857 = vmatprep.subr.mxu0 0.0
  %5858 = vmatpush1.msra.mxu0 0.0
  %5859 = vmatprep.subr.mxu0 0.0
  %5860 = vmatpush1.msra.mxu0 0.0
  %5861 = vmatprep.subr.mxu0 0.0
  %5862 = vmatpush1.msra.mxu0 0.0
  %5863 = vmatprep.subr.mxu0 0.0
  %5864 = vmatpush1.msra.mxu0 0.0
  %5865 = vmatprep.subr.mxu0 0.0
  %5866 = vmatpush1.msra.mxu0 0.0
  %5867 = vmatprep.subr.mxu0 0.0
  %5868 = vmatpush1.msra.mxu0 0.0
  %5869 = vmatprep.subr.mxu0 0.0
  %5870 = vmatpush1.msra.mxu0 0.0
  %5871 = vmatprep.subr.mxu0 0.0
  %5872 = vmatpush1.msra.mxu0 0.0
  %5873 = vmatprep.subr.mxu0 0.0
  %5874 = vmatpush1.msra.mxu0 0.0
  %5875 = vmatprep.subr.mxu0 0.0
  %5876 = vmatpush1.msra.mxu0 0.0
  %5877 = vmatprep.subr.mxu0 0.0
  %5878 = vmatpush1.msra.mxu0 0.0
  %5879 = vmatprep.subr.mxu0 0.0
  %5880 = vmatpush1.msra.mxu0 0.0
  %5881 = vmatprep.subr.mxu0 0.0
  %5882 = vmatpush1.msra.mxu0 0.0
  %5883 = vmatprep.subr.mxu0 0.0
  %5884 = vmatpush1.msra.mxu0 0.0
  %5885 = vmatprep.subr.mxu0 0.0
  %5886 = vmatpush1.msra.mxu0 0.0
  %5887 = vmatprep.subr.mxu0 0.0
  %5888 = vmatpush1.msra.mxu0 0.0
  %5889 = vmatprep.subr.mxu0 0.0
  %5890 = vmatpush1.msra.mxu0 0.0
  %5891 = vmatprep.subr.mxu0 0.0
  %5892 = vmatpush1.msra.mxu0 0.0
  %5893 = vmatprep.subr.mxu0 0.0
  %5894 = vmatpush1.msra.mxu0 0.0
  %5895 = vmatprep.subr.mxu0 0.0
  %5896 = vmatpush1.msra.mxu0 0.0
  %5897 = vmatprep.subr.mxu0 0.0
  %5898 = vmatpush1.msra.mxu0 0.0
  %5899 = vmatprep.subr.mxu0 0.0
  %5900 = vmatpush1.msra.mxu0 0.0
  %5901 = vmatprep.subr.mxu0 0.0
  %5902 = vmatpush1.msra.mxu0 0.0
  %5903 = vmatprep.subr.mxu0 0.0
  %5904 = vmatpush1.msra.mxu0 0.0
  %5905 = vmatprep.subr.mxu0 0.0
  %5906 = vmatpush1.msra.mxu0 0.0
  %5907 = vmatprep.mubr.f32.mxu0 0.0
  %5908 = vmatmul.mubr.f32.gmra.mrb[0].mxu0 %v5836
  %v5909 = vpop.f32.mrb[0].mxu0
  %v5910 = vadd.f32 0.0, %v5909
  %v5911 = vpop.f32.mrb[0].mxu0
  %5912 = vmatprep.mubr.f32.mxu0 0.0
  %5913 = vmatmul.mubr.f32.gmra.mrb[0].mxu0 %v5839
  %v5914 = vpop.f32.mrb[0].mxu0
  %v5915 = vadd.f32 0.0, %v5914
  %v5916 = vpop.f32.mrb[0].mxu0
  %5917 = vdwg.mxu0
  %v5918 = vadd.f32 %v5502, %v5910
  %v5919 = vadd.f32 %v5503, %v5915
  %v5920 = vadd.f32 %v4953, %v5918
  %v5921 = vadd.f32 %v4954, %v5919
  %v5922 = vsel %vm183, %v5920, 0.0
  %5923 = vadd.xlane.f32.xlu0 %v5922
  %v5924 = vpop.xlane.xlu0 %5923
  %v5925 = vsel %vm183, %v5921, 0.0
  %5926 = vadd.xlane.f32.xlu0 %v5925
  %v5927 = vpop.xlane.xlu0 %5926
  %v5928 = vmul.f32 %v5924, %v190
  %v5929 = vmul.f32 %v5927, %v190
  %v5930 = vsub.f32 %v5920, %v5928
  %v5931 = vsub.f32 %v5921, %v5929
  %v5932 = vmul.f32 %v5930, %v5930
  %v5933 = vmul.f32 %v5931, %v5931
  %v5934 = vsel %vm183, %v5932, 0.0
  %5935 = vadd.xlane.f32.xlu0 %v5934
  %v5936 = vpop.xlane.xlu0 %5935
  %v5937 = vsel %vm183, %v5933, 0.0
  %5938 = vadd.xlane.f32.xlu0 %v5937
  %v5939 = vpop.xlane.xlu0 %5938
  %v5940 = vmul.f32 %v5936, %v190
  %v5941 = vmul.f32 %v5939, %v190
  %v5942 = vadd.f32 %v5940, 1e-05
  %v5943 = vadd.f32 %v5941, 1e-05
  %v5944 = vrsqrt.pop %v5942
  %v5945 = vrsqrt.pop %v5943
  %v5946 = vmul.f32 %v5930, %v5944
  %v5947 = vmul.f32 %v5931, %v5945
  %v5949 = vlaneseq
  %v5950 = vshrl.u32 %v5949, 7
  %v5951 = vsub.s32 0, %v5950
  %v5952 = vrot.slane %v144, %v5951
  %v5954 = vmul.f32 %v5946, %v5952
  %v5955 = vmul.f32 %v5947, %v5952
  %v5957 = vlaneseq
  %v5958 = vshrl.u32 %v5957, 7
  %v5959 = vsub.s32 0, %v5958
  %v5960 = vrot.slane %v146, %v5959
  %v5962 = vadd.f32 %v5954, %v5960
  %v5963 = vadd.f32 %v5955, %v5960
  %v5965 = vlaneseq
  %v5966 = vshrl.u32 %v5965, 7
  %v5967 = vsub.s32 0, %v5966
  %v5968 = vrot.slane %v150, %v5967
  %v5971 = vsel %vm183, %v5962, 0
  %v5974 = vsel %vm183, %v5963, 0
  %5976 = vmatprep.subr.mxu0 0.0
  %5977 = vmatpush1.msra.mxu0 %v148
  %5978 = vmatprep.subr.mxu0 0.0
  %5979 = vmatpush1.msra.mxu0 0.0
  %5980 = vmatprep.subr.mxu0 0.0
  %5981 = vmatpush1.msra.mxu0 0.0
  %5982 = vmatprep.subr.mxu0 0.0
  %5983 = vmatpush1.msra.mxu0 0.0
  %5984 = vmatprep.subr.mxu0 0.0
  %5985 = vmatpush1.msra.mxu0 0.0
  %5986 = vmatprep.subr.mxu0 0.0
  %5987 = vmatpush1.msra.mxu0 0.0
  %5988 = vmatprep.subr.mxu0 0.0
  %5989 = vmatpush1.msra.mxu0 0.0
  %5990 = vmatprep.subr.mxu0 0.0
  %5991 = vmatpush1.msra.mxu0 0.0
  %5992 = vmatprep.subr.mxu0 0.0
  %5993 = vmatpush1.msra.mxu0 0.0
  %5994 = vmatprep.subr.mxu0 0.0
  %5995 = vmatpush1.msra.mxu0 0.0
  %5996 = vmatprep.subr.mxu0 0.0
  %5997 = vmatpush1.msra.mxu0 0.0
  %5998 = vmatprep.subr.mxu0 0.0
  %5999 = vmatpush1.msra.mxu0 0.0
  %6000 = vmatprep.subr.mxu0 0.0
  %6001 = vmatpush1.msra.mxu0 0.0
  %6002 = vmatprep.subr.mxu0 0.0
  %6003 = vmatpush1.msra.mxu0 0.0
  %6004 = vmatprep.subr.mxu0 0.0
  %6005 = vmatpush1.msra.mxu0 0.0
  %6006 = vmatprep.subr.mxu0 0.0
  %6007 = vmatpush1.msra.mxu0 0.0
  %6008 = vmatprep.subr.mxu0 0.0
  %6009 = vmatpush1.msra.mxu0 0.0
  %6010 = vmatprep.subr.mxu0 0.0
  %6011 = vmatpush1.msra.mxu0 0.0
  %6012 = vmatprep.subr.mxu0 0.0
  %6013 = vmatpush1.msra.mxu0 0.0
  %6014 = vmatprep.subr.mxu0 0.0
  %6015 = vmatpush1.msra.mxu0 0.0
  %6016 = vmatprep.subr.mxu0 0.0
  %6017 = vmatpush1.msra.mxu0 0.0
  %6018 = vmatprep.subr.mxu0 0.0
  %6019 = vmatpush1.msra.mxu0 0.0
  %6020 = vmatprep.subr.mxu0 0.0
  %6021 = vmatpush1.msra.mxu0 0.0
  %6022 = vmatprep.subr.mxu0 0.0
  %6023 = vmatpush1.msra.mxu0 0.0
  %6024 = vmatprep.subr.mxu0 0.0
  %6025 = vmatpush1.msra.mxu0 0.0
  %6026 = vmatprep.subr.mxu0 0.0
  %6027 = vmatpush1.msra.mxu0 0.0
  %6028 = vmatprep.subr.mxu0 0.0
  %6029 = vmatpush1.msra.mxu0 0.0
  %6030 = vmatprep.subr.mxu0 0.0
  %6031 = vmatpush1.msra.mxu0 0.0
  %6032 = vmatprep.subr.mxu0 0.0
  %6033 = vmatpush1.msra.mxu0 0.0
  %6034 = vmatprep.subr.mxu0 0.0
  %6035 = vmatpush1.msra.mxu0 0.0
  %6036 = vmatprep.subr.mxu0 0.0
  %6037 = vmatpush1.msra.mxu0 0.0
  %6038 = vmatprep.subr.mxu0 0.0
  %6039 = vmatpush1.msra.mxu0 0.0
  %6040 = vmatprep.mubr.f32.mxu0 0.0
  %6041 = vmatmul.mubr.f32.gmra.mrb[0].mxu0 %v5971
  %v6042 = vpop.f32.mrb[0].mxu0
  %v6043 = vadd.f32 %v5968, %v6042
  %v6044 = vpop.f32.mrb[0].mxu0
  %6045 = vmatprep.mubr.f32.mxu0 0.0
  %6046 = vmatmul.mubr.f32.gmra.mrb[0].mxu0 %v5974
  %v6047 = vpop.f32.mrb[0].mxu0
  %v6048 = vadd.f32 %v5968, %v6047
  %v6049 = vpop.f32.mrb[0].mxu0
  %6050 = vdwg.mxu0
  %v6051 = vmax.f32 %v6043, 0.0
  %v6052 = vmax.f32 %v6048, 0.0
  %v6054 = vsel %vm183, %v6051, 0
  %v6057 = vsel %vm183, %v6052, 0
  %6059 = vmatprep.subr.mxu0 0.0
  %6060 = vmatpush1.msra.mxu0 %v152
  %6061 = vmatprep.subr.mxu0 0.0
  %6062 = vmatpush1.msra.mxu0 0.0
  %6063 = vmatprep.subr.mxu0 0.0
  %6064 = vmatpush1.msra.mxu0 0.0
  %6065 = vmatprep.subr.mxu0 0.0
  %6066 = vmatpush1.msra.mxu0 0.0
  %6067 = vmatprep.subr.mxu0 0.0
  %6068 = vmatpush1.msra.mxu0 0.0
  %6069 = vmatprep.subr.mxu0 0.0
  %6070 = vmatpush1.msra.mxu0 0.0
  %6071 = vmatprep.subr.mxu0 0.0
  %6072 = vmatpush1.msra.mxu0 0.0
  %6073 = vmatprep.subr.mxu0 0.0
  %6074 = vmatpush1.msra.mxu0 0.0
  %6075 = vmatprep.subr.mxu0 0.0
  %6076 = vmatpush1.msra.mxu0 0.0
  %6077 = vmatprep.subr.mxu0 0.0
  %6078 = vmatpush1.msra.mxu0 0.0
  %6079 = vmatprep.subr.mxu0 0.0
  %6080 = vmatpush1.msra.mxu0 0.0
  %6081 = vmatprep.subr.mxu0 0.0
  %6082 = vmatpush1.msra.mxu0 0.0
  %6083 = vmatprep.subr.mxu0 0.0
  %6084 = vmatpush1.msra.mxu0 0.0
  %6085 = vmatprep.subr.mxu0 0.0
  %6086 = vmatpush1.msra.mxu0 0.0
  %6087 = vmatprep.subr.mxu0 0.0
  %6088 = vmatpush1.msra.mxu0 0.0
  %6089 = vmatprep.subr.mxu0 0.0
  %6090 = vmatpush1.msra.mxu0 0.0
  %6091 = vmatprep.subr.mxu0 0.0
  %6092 = vmatpush1.msra.mxu0 0.0
  %6093 = vmatprep.subr.mxu0 0.0
  %6094 = vmatpush1.msra.mxu0 0.0
  %6095 = vmatprep.subr.mxu0 0.0
  %6096 = vmatpush1.msra.mxu0 0.0
  %6097 = vmatprep.subr.mxu0 0.0
  %6098 = vmatpush1.msra.mxu0 0.0
  %6099 = vmatprep.subr.mxu0 0.0
  %6100 = vmatpush1.msra.mxu0 0.0
  %6101 = vmatprep.subr.mxu0 0.0
  %6102 = vmatpush1.msra.mxu0 0.0
  %6103 = vmatprep.subr.mxu0 0.0
  %6104 = vmatpush1.msra.mxu0 0.0
  %6105 = vmatprep.subr.mxu0 0.0
  %6106 = vmatpush1.msra.mxu0 0.0
  %6107 = vmatprep.subr.mxu0 0.0
  %6108 = vmatpush1.msra.mxu0 0.0
  %6109 = vmatprep.subr.mxu0 0.0
  %6110 = vmatpush1.msra.mxu0 0.0
  %6111 = vmatprep.subr.mxu0 0.0
  %6112 = vmatpush1.msra.mxu0 0.0
  %6113 = vmatprep.subr.mxu0 0.0
  %6114 = vmatpush1.msra.mxu0 0.0
  %6115 = vmatprep.subr.mxu0 0.0
  %6116 = vmatpush1.msra.mxu0 0.0
  %6117 = vmatprep.subr.mxu0 0.0
  %6118 = vmatpush1.msra.mxu0 0.0
  %6119 = vmatprep.subr.mxu0 0.0
  %6120 = vmatpush1.msra.mxu0 0.0
  %6121 = vmatprep.subr.mxu0 0.0
  %6122 = vmatpush1.msra.mxu0 0.0
  %6123 = vmatprep.mubr.f32.mxu0 0.0
  %6124 = vmatmul.mubr.f32.gmra.mrb[0].mxu0 %v6054
  %v6125 = vpop.f32.mrb[0].mxu0
  %v6126 = vadd.f32 0.0, %v6125
  %v6127 = vpop.f32.mrb[0].mxu0
  %6128 = vmatprep.mubr.f32.mxu0 0.0
  %6129 = vmatmul.mubr.f32.gmra.mrb[0].mxu0 %v6057
  %v6130 = vpop.f32.mrb[0].mxu0
  %v6131 = vadd.f32 0.0, %v6130
  %v6132 = vpop.f32.mrb[0].mxu0
  %6133 = vdwg.mxu0
  %v6134 = vadd.f32 %v5920, %v6126
  %v6135 = vadd.f32 %v5921, %v6131
  %v6137 = vlaneseq
  %v6138 = vshrl.u32 %v6137, 7
  %v6139 = vsub.s32 0, %v6138
  %v6140 = vrot.slane %v154, %v6139
  %v6142 = vadd.f32 %v6134, %v6140
  %v6143 = vadd.f32 %v6135, %v6140
  %v6144 = vsel %vm183, %v6142, 0.0
  %6145 = vadd.xlane.f32.xlu0 %v6144
  %v6146 = vpop.xlane.xlu0 %6145
  %v6147 = vsel %vm183, %v6143, 0.0
  %6148 = vadd.xlane.f32.xlu0 %v6147
  %v6149 = vpop.xlane.xlu0 %6148
  %v6150 = vmul.f32 %v6146, %v190
  %v6151 = vmul.f32 %v6149, %v190
  %v6152 = vsub.f32 %v6142, %v6150
  %v6153 = vsub.f32 %v6143, %v6151
  %v6154 = vmul.f32 %v6152, %v6152
  %v6155 = vmul.f32 %v6153, %v6153
  %v6156 = vsel %vm183, %v6154, 0.0
  %6157 = vadd.xlane.f32.xlu0 %v6156
  %v6158 = vpop.xlane.xlu0 %6157
  %v6159 = vsel %vm183, %v6155, 0.0
  %6160 = vadd.xlane.f32.xlu0 %v6159
  %v6161 = vpop.xlane.xlu0 %6160
  %v6162 = vmul.f32 %v6158, %v190
  %v6163 = vmul.f32 %v6161, %v190
  %v6164 = vadd.f32 %v6162, 1e-05
  %v6165 = vadd.f32 %v6163, 1e-05
  %v6166 = vrsqrt.pop %v6164
  %v6167 = vrsqrt.pop %v6165
  %v6168 = vmul.f32 %v6152, %v6166
  %v6169 = vmul.f32 %v6153, %v6167
  %v6171 = vlaneseq
  %v6172 = vshrl.u32 %v6171, 7
  %v6173 = vsub.s32 0, %v6172
  %v6174 = vrot.slane %v156, %v6173
  %v6176 = vmul.f32 %v6168, %v6174
  %v6177 = vmul.f32 %v6169, %v6174
  %v6179 = vlaneseq
  %v6180 = vshrl.u32 %v6179, 7
  %v6181 = vsub.s32 0, %v6180
  %v6182 = vrot.slane %v158, %v6181
  %v6184 = vadd.f32 %v6176, %v6182
  %v6185 = vadd.f32 %v6177, %v6182
  %v6187 = vlaneseq
  %v6188 = vshrl.u32 %v6187, 7
  %v6189 = vsub.s32 0, %v6188
  %v6190 = vrot.slane %v162, %v6189
  %v6193 = vsel %vm183, %v6184, 0
  %v6196 = vsel %vm183, %v6185, 0
  %6198 = vmatprep.subr.mxu0 0.0
  %6199 = vmatpush1.msra.mxu0 %v160
  %6200 = vmatprep.subr.mxu0 0.0
  %6201 = vmatpush1.msra.mxu0 0.0
  %6202 = vmatprep.subr.mxu0 0.0
  %6203 = vmatpush1.msra.mxu0 0.0
  %6204 = vmatprep.subr.mxu0 0.0
  %6205 = vmatpush1.msra.mxu0 0.0
  %6206 = vmatprep.subr.mxu0 0.0
  %6207 = vmatpush1.msra.mxu0 0.0
  %6208 = vmatprep.subr.mxu0 0.0
  %6209 = vmatpush1.msra.mxu0 0.0
  %6210 = vmatprep.subr.mxu0 0.0
  %6211 = vmatpush1.msra.mxu0 0.0
  %6212 = vmatprep.subr.mxu0 0.0
  %6213 = vmatpush1.msra.mxu0 0.0
  %6214 = vmatprep.subr.mxu0 0.0
  %6215 = vmatpush1.msra.mxu0 0.0
  %6216 = vmatprep.subr.mxu0 0.0
  %6217 = vmatpush1.msra.mxu0 0.0
  %6218 = vmatprep.subr.mxu0 0.0
  %6219 = vmatpush1.msra.mxu0 0.0
  %6220 = vmatprep.subr.mxu0 0.0
  %6221 = vmatpush1.msra.mxu0 0.0
  %6222 = vmatprep.subr.mxu0 0.0
  %6223 = vmatpush1.msra.mxu0 0.0
  %6224 = vmatprep.subr.mxu0 0.0
  %6225 = vmatpush1.msra.mxu0 0.0
  %6226 = vmatprep.subr.mxu0 0.0
  %6227 = vmatpush1.msra.mxu0 0.0
  %6228 = vmatprep.subr.mxu0 0.0
  %6229 = vmatpush1.msra.mxu0 0.0
  %6230 = vmatprep.subr.mxu0 0.0
  %6231 = vmatpush1.msra.mxu0 0.0
  %6232 = vmatprep.subr.mxu0 0.0
  %6233 = vmatpush1.msra.mxu0 0.0
  %6234 = vmatprep.subr.mxu0 0.0
  %6235 = vmatpush1.msra.mxu0 0.0
  %6236 = vmatprep.subr.mxu0 0.0
  %6237 = vmatpush1.msra.mxu0 0.0
  %6238 = vmatprep.subr.mxu0 0.0
  %6239 = vmatpush1.msra.mxu0 0.0
  %6240 = vmatprep.subr.mxu0 0.0
  %6241 = vmatpush1.msra.mxu0 0.0
  %6242 = vmatprep.subr.mxu0 0.0
  %6243 = vmatpush1.msra.mxu0 0.0
  %6244 = vmatprep.subr.mxu0 0.0
  %6245 = vmatpush1.msra.mxu0 0.0
  %6246 = vmatprep.subr.mxu0 0.0
  %6247 = vmatpush1.msra.mxu0 0.0
  %6248 = vmatprep.subr.mxu0 0.0
  %6249 = vmatpush1.msra.mxu0 0.0
  %6250 = vmatprep.subr.mxu0 0.0
  %6251 = vmatpush1.msra.mxu0 0.0
  %6252 = vmatprep.subr.mxu0 0.0
  %6253 = vmatpush1.msra.mxu0 0.0
  %6254 = vmatprep.subr.mxu0 0.0
  %6255 = vmatpush1.msra.mxu0 0.0
  %6256 = vmatprep.subr.mxu0 0.0
  %6257 = vmatpush1.msra.mxu0 0.0
  %6258 = vmatprep.subr.mxu0 0.0
  %6259 = vmatpush1.msra.mxu0 0.0
  %6260 = vmatprep.subr.mxu0 0.0
  %6261 = vmatpush1.msra.mxu0 0.0
  %6262 = vmatprep.mubr.f32.mxu0 0.0
  %6263 = vmatmul.mubr.f32.gmra.mrb[0].mxu0 %v6193
  %v6264 = vpop.f32.mrb[0].mxu0
  %v6265 = vadd.f32 %v6190, %v6264
  %v6266 = vpop.f32.mrb[0].mxu0
  %6267 = vmatprep.mubr.f32.mxu0 0.0
  %6268 = vmatmul.mubr.f32.gmra.mrb[0].mxu0 %v6196
  %v6269 = vpop.f32.mrb[0].mxu0
  %v6270 = vadd.f32 %v6190, %v6269
  %v6271 = vpop.f32.mrb[0].mxu0
  %6272 = vdwg.mxu0
  %6274 = vrot.lane.b32.xlu0 %v6265, 120
  %v6275 = vpop.permute.xlu0 %6274
  %v6276 = vsel %vm329, %v6265, 0
  %v6278 = vsel %vm329, %v6275, 0
  %6280 = vmatprep.subr.mxu0 0.0
  %6281 = vmatpush1.xpose.msra.mxu0 %v6278
  %6282 = vmatprep.subr.mxu0 0.0
  %6283 = vmatpush1.xpose.msra.mxu0 0.0
  %6284 = vmatprep.subr.mxu0 0.0
  %6285 = vmatpush1.xpose.msra.mxu0 0.0
  %6286 = vmatprep.subr.mxu0 0.0
  %6287 = vmatpush1.xpose.msra.mxu0 0.0
  %6288 = vmatprep.subr.mxu0 0.0
  %6289 = vmatpush1.xpose.msra.mxu0 0.0
  %6290 = vmatprep.subr.mxu0 0.0
  %6291 = vmatpush1.xpose.msra.mxu0 0.0
  %6292 = vmatprep.subr.mxu0 0.0
  %6293 = vmatpush1.xpose.msra.mxu0 0.0
  %6294 = vmatprep.subr.mxu0 0.0
  %6295 = vmatpush1.xpose.msra.mxu0 0.0
  %6296 = vmatprep.subr.mxu0 0.0
  %6297 = vmatpush1.xpose.msra.mxu0 0.0
  %6298 = vmatprep.subr.mxu0 0.0
  %6299 = vmatpush1.xpose.msra.mxu0 0.0
  %6300 = vmatprep.subr.mxu0 0.0
  %6301 = vmatpush1.xpose.msra.mxu0 0.0
  %6302 = vmatprep.subr.mxu0 0.0
  %6303 = vmatpush1.xpose.msra.mxu0 0.0
  %6304 = vmatprep.subr.mxu0 0.0
  %6305 = vmatpush1.xpose.msra.mxu0 0.0
  %6306 = vmatprep.subr.mxu0 0.0
  %6307 = vmatpush1.xpose.msra.mxu0 0.0
  %6308 = vmatprep.subr.mxu0 0.0
  %6309 = vmatpush1.xpose.msra.mxu0 0.0
  %6310 = vmatprep.subr.mxu0 0.0
  %6311 = vmatpush1.xpose.msra.mxu0 0.0
  %6312 = vmatprep.subr.mxu0 0.0
  %6313 = vmatpush1.xpose.msra.mxu0 0.0
  %6314 = vmatprep.subr.mxu0 0.0
  %6315 = vmatpush1.xpose.msra.mxu0 0.0
  %6316 = vmatprep.subr.mxu0 0.0
  %6317 = vmatpush1.xpose.msra.mxu0 0.0
  %6318 = vmatprep.subr.mxu0 0.0
  %6319 = vmatpush1.xpose.msra.mxu0 0.0
  %6320 = vmatprep.subr.mxu0 0.0
  %6321 = vmatpush1.xpose.msra.mxu0 0.0
  %6322 = vmatprep.subr.mxu0 0.0
  %6323 = vmatpush1.xpose.msra.mxu0 0.0
  %6324 = vmatprep.subr.mxu0 0.0
  %6325 = vmatpush1.xpose.msra.mxu0 0.0
  %6326 = vmatprep.subr.mxu0 0.0
  %6327 = vmatpush1.xpose.msra.mxu0 0.0
  %6328 = vmatprep.subr.mxu0 0.0
  %6329 = vmatpush1.xpose.msra.mxu0 0.0
  %6330 = vmatprep.subr.mxu0 0.0
  %6331 = vmatpush1.xpose.msra.mxu0 0.0
  %6332 = vmatprep.subr.mxu0 0.0
  %6333 = vmatpush1.xpose.msra.mxu0 0.0
  %6334 = vmatprep.subr.mxu0 0.0
  %6335 = vmatpush1.xpose.msra.mxu0 0.0
  %6336 = vmatprep.subr.mxu0 0.0
  %6337 = vmatpush1.xpose.msra.mxu0 0.0
  %6338 = vmatprep.subr.mxu0 0.0
  %6339 = vmatpush1.xpose.msra.mxu0 0.0
  %6340 = vmatprep.subr.mxu0 0.0
  %6341 = vmatpush1.xpose.msra.mxu0 0.0
  %6342 = vmatprep.subr.mxu0 0.0
  %6343 = vmatpush1.xpose.msra.mxu0 0.0
  %6344 = vmatprep.mubr.f32.mxu0 0.0
  %6345 = vmatmul.mubr.f32.gmra.mrb[0].mxu0 %v6276
  %v6346 = vpop.f32.mrb[0].mxu0
  %v6347 = vadd.f32 %v319, %v6346
  %v6348 = vpop.f32.mrb[0].mxu0
  %6349 = vdwg.mxu0
  %6351 = vrot.lane.b32.xlu0 %v6270, 120
  %v6352 = vpop.permute.xlu0 %6351
  %v6353 = vsel %vm329, %v6270, 0
  %v6355 = vsel %vm329, %v6352, 0
  %6357 = vmatprep.subr.mxu0 0.0
  %6358 = vmatpush1.xpose.msra.mxu0 %v6355
  %6359 = vmatprep.subr.mxu0 0.0
  %6360 = vmatpush1.xpose.msra.mxu0 0.0
  %6361 = vmatprep.subr.mxu0 0.0
  %6362 = vmatpush1.xpose.msra.mxu0 0.0
  %6363 = vmatprep.subr.mxu0 0.0
  %6364 = vmatpush1.xpose.msra.mxu0 0.0
  %6365 = vmatprep.subr.mxu0 0.0
  %6366 = vmatpush1.xpose.msra.mxu0 0.0
  %6367 = vmatprep.subr.mxu0 0.0
  %6368 = vmatpush1.xpose.msra.mxu0 0.0
  %6369 = vmatprep.subr.mxu0 0.0
  %6370 = vmatpush1.xpose.msra.mxu0 0.0
  %6371 = vmatprep.subr.mxu0 0.0
  %6372 = vmatpush1.xpose.msra.mxu0 0.0
  %6373 = vmatprep.subr.mxu0 0.0
  %6374 = vmatpush1.xpose.msra.mxu0 0.0
  %6375 = vmatprep.subr.mxu0 0.0
  %6376 = vmatpush1.xpose.msra.mxu0 0.0
  %6377 = vmatprep.subr.mxu0 0.0
  %6378 = vmatpush1.xpose.msra.mxu0 0.0
  %6379 = vmatprep.subr.mxu0 0.0
  %6380 = vmatpush1.xpose.msra.mxu0 0.0
  %6381 = vmatprep.subr.mxu0 0.0
  %6382 = vmatpush1.xpose.msra.mxu0 0.0
  %6383 = vmatprep.subr.mxu0 0.0
  %6384 = vmatpush1.xpose.msra.mxu0 0.0
  %6385 = vmatprep.subr.mxu0 0.0
  %6386 = vmatpush1.xpose.msra.mxu0 0.0
  %6387 = vmatprep.subr.mxu0 0.0
  %6388 = vmatpush1.xpose.msra.mxu0 0.0
  %6389 = vmatprep.subr.mxu0 0.0
  %6390 = vmatpush1.xpose.msra.mxu0 0.0
  %6391 = vmatprep.subr.mxu0 0.0
  %6392 = vmatpush1.xpose.msra.mxu0 0.0
  %6393 = vmatprep.subr.mxu0 0.0
  %6394 = vmatpush1.xpose.msra.mxu0 0.0
  %6395 = vmatprep.subr.mxu0 0.0
  %6396 = vmatpush1.xpose.msra.mxu0 0.0
  %6397 = vmatprep.subr.mxu0 0.0
  %6398 = vmatpush1.xpose.msra.mxu0 0.0
  %6399 = vmatprep.subr.mxu0 0.0
  %6400 = vmatpush1.xpose.msra.mxu0 0.0
  %6401 = vmatprep.subr.mxu0 0.0
  %6402 = vmatpush1.xpose.msra.mxu0 0.0
  %6403 = vmatprep.subr.mxu0 0.0
  %6404 = vmatpush1.xpose.msra.mxu0 0.0
  %6405 = vmatprep.subr.mxu0 0.0
  %6406 = vmatpush1.xpose.msra.mxu0 0.0
  %6407 = vmatprep.subr.mxu0 0.0
  %6408 = vmatpush1.xpose.msra.mxu0 0.0
  %6409 = vmatprep.subr.mxu0 0.0
  %6410 = vmatpush1.xpose.msra.mxu0 0.0
  %6411 = vmatprep.subr.mxu0 0.0
  %6412 = vmatpush1.xpose.msra.mxu0 0.0
  %6413 = vmatprep.subr.mxu0 0.0
  %6414 = vmatpush1.xpose.msra.mxu0 0.0
  %6415 = vmatprep.subr.mxu0 0.0
  %6416 = vmatpush1.xpose.msra.mxu0 0.0
  %6417 = vmatprep.subr.mxu0 0.0
  %6418 = vmatpush1.xpose.msra.mxu0 0.0
  %6419 = vmatprep.subr.mxu0 0.0
  %6420 = vmatpush1.xpose.msra.mxu0 0.0
  %6421 = vmatprep.mubr.f32.mxu0 0.0
  %6422 = vmatmul.mubr.f32.gmra.mrb[0].mxu0 %v6353
  %v6423 = vpop.f32.mrb[0].mxu0
  %v6424 = vadd.f32 %v323, %v6423
  %v6425 = vpop.f32.mrb[0].mxu0
  %6426 = vdwg.mxu0
  %v6427 = vsel %vm183, %v6347, -inf
  %6428 = vmax.xlane.f32.xlu0 %v6427
  %v6429 = vpop.xlane.xlu0 %6428
  %v6430 = vsel %vm183, %v6424, -inf
  %6431 = vmax.xlane.f32.xlu0 %v6430
  %v6432 = vpop.xlane.xlu0 %6431
  %v6433 = vsub.f32 %v6347, %v6429
  %v6434 = vsub.f32 %v6424, %v6432
  %v6435 = vmul.f32 %v6433, 1.442695
  %v6436 = vpow.pop %v6435
  %v6437 = vmul.f32 %v6434, 1.442695
  %v6438 = vpow.pop %v6437
  %v6439 = vsel %vm183, %v6436, 0.0
  %6440 = vadd.xlane.f32.xlu0 %v6439
  %v6441 = vpop.xlane.xlu0 %6440
  %v6442 = vsel %vm183, %v6438, 0.0
  %6443 = vadd.xlane.f32.xlu0 %v6442
  %v6444 = vpop.xlane.xlu0 %6443
  %v6445 = vrcp.pop %v6441
  %v6446 = vrcp.pop %v6444
  %v6447 = vmul.f32 %v6436, %v6445
  %v6448 = vmul.f32 %v6438, %v6446
  %6449 = vrot.lane.b32.xlu0 %v6265, 112
  %v6450 = vpop.permute.xlu0 %6449
  %v6453 = vsel %vm183, %v6447, 0
  %6455 = vmatprep.subr.mxu0 0.0
  %6456 = vmatpush1.msra.mxu0 %v6450
  %6457 = vmatprep.subr.mxu0 0.0
  %6458 = vmatpush1.msra.mxu0 0.0
  %6459 = vmatprep.subr.mxu0 0.0
  %6460 = vmatpush1.msra.mxu0 0.0
  %6461 = vmatprep.subr.mxu0 0.0
  %6462 = vmatpush1.msra.mxu0 0.0
  %6463 = vmatprep.subr.mxu0 0.0
  %6464 = vmatpush1.msra.mxu0 0.0
  %6465 = vmatprep.subr.mxu0 0.0
  %6466 = vmatpush1.msra.mxu0 0.0
  %6467 = vmatprep.subr.mxu0 0.0
  %6468 = vmatpush1.msra.mxu0 0.0
  %6469 = vmatprep.subr.mxu0 0.0
  %6470 = vmatpush1.msra.mxu0 0.0
  %6471 = vmatprep.subr.mxu0 0.0
  %6472 = vmatpush1.msra.mxu0 0.0
  %6473 = vmatprep.subr.mxu0 0.0
  %6474 = vmatpush1.msra.mxu0 0.0
  %6475 = vmatprep.subr.mxu0 0.0
  %6476 = vmatpush1.msra.mxu0 0.0
  %6477 = vmatprep.subr.mxu0 0.0
  %6478 = vmatpush1.msra.mxu0 0.0
  %6479 = vmatprep.subr.mxu0 0.0
  %6480 = vmatpush1.msra.mxu0 0.0
  %6481 = vmatprep.subr.mxu0 0.0
  %6482 = vmatpush1.msra.mxu0 0.0
  %6483 = vmatprep.subr.mxu0 0.0
  %6484 = vmatpush1.msra.mxu0 0.0
  %6485 = vmatprep.subr.mxu0 0.0
  %6486 = vmatpush1.msra.mxu0 0.0
  %6487 = vmatprep.subr.mxu0 0.0
  %6488 = vmatpush1.msra.mxu0 0.0
  %6489 = vmatprep.subr.mxu0 0.0
  %6490 = vmatpush1.msra.mxu0 0.0
  %6491 = vmatprep.subr.mxu0 0.0
  %6492 = vmatpush1.msra.mxu0 0.0
  %6493 = vmatprep.subr.mxu0 0.0
  %6494 = vmatpush1.msra.mxu0 0.0
  %6495 = vmatprep.subr.mxu0 0.0
  %6496 = vmatpush1.msra.mxu0 0.0
  %6497 = vmatprep.subr.mxu0 0.0
  %6498 = vmatpush1.msra.mxu0 0.0
  %6499 = vmatprep.subr.mxu0 0.0
  %6500 = vmatpush1.msra.mxu0 0.0
  %6501 = vmatprep.subr.mxu0 0.0
  %6502 = vmatpush1.msra.mxu0 0.0
  %6503 = vmatprep.subr.mxu0 0.0
  %6504 = vmatpush1.msra.mxu0 0.0
  %6505 = vmatprep.subr.mxu0 0.0
  %6506 = vmatpush1.msra.mxu0 0.0
  %6507 = vmatprep.subr.mxu0 0.0
  %6508 = vmatpush1.msra.mxu0 0.0
  %6509 = vmatprep.subr.mxu0 0.0
  %6510 = vmatpush1.msra.mxu0 0.0
  %6511 = vmatprep.subr.mxu0 0.0
  %6512 = vmatpush1.msra.mxu0 0.0
  %6513 = vmatprep.subr.mxu0 0.0
  %6514 = vmatpush1.msra.mxu0 0.0
  %6515 = vmatprep.subr.mxu0 0.0
  %6516 = vmatpush1.msra.mxu0 0.0
  %6517 = vmatprep.subr.mxu0 0.0
  %6518 = vmatpush1.msra.mxu0 0.0
  %6519 = vmatprep.mubr.f32.mxu0 0.0
  %6520 = vmatmul.mubr.f32.gmra.mrb[0].mxu0 %v6453
  %v6521 = vpop.f32.mrb[0].mxu0
  %v6522 = vadd.f32 0.0, %v6521
  %v6523 = vpop.f32.mrb[0].mxu0
  %6524 = vdwg.mxu0
  %6525 = vrot.lane.b32.xlu0 %v6270, 112
  %v6526 = vpop.permute.xlu0 %6525
  %v6529 = vsel %vm183, %v6448, 0
  %6531 = vmatprep.subr.mxu0 0.0
  %6532 = vmatpush1.msra.mxu0 %v6526
  %6533 = vmatprep.subr.mxu0 0.0
  %6534 = vmatpush1.msra.mxu0 0.0
  %6535 = vmatprep.subr.mxu0 0.0
  %6536 = vmatpush1.msra.mxu0 0.0
  %6537 = vmatprep.subr.mxu0 0.0
  %6538 = vmatpush1.msra.mxu0 0.0
  %6539 = vmatprep.subr.mxu0 0.0
  %6540 = vmatpush1.msra.mxu0 0.0
  %6541 = vmatprep.subr.mxu0 0.0
  %6542 = vmatpush1.msra.mxu0 0.0
  %6543 = vmatprep.subr.mxu0 0.0
  %6544 = vmatpush1.msra.mxu0 0.0
  %6545 = vmatprep.subr.mxu0 0.0
  %6546 = vmatpush1.msra.mxu0 0.0
  %6547 = vmatprep.subr.mxu0 0.0
  %6548 = vmatpush1.msra.mxu0 0.0
  %6549 = vmatprep.subr.mxu0 0.0
  %6550 = vmatpush1.msra.mxu0 0.0
  %6551 = vmatprep.subr.mxu0 0.0
  %6552 = vmatpush1.msra.mxu0 0.0
  %6553 = vmatprep.subr.mxu0 0.0
  %6554 = vmatpush1.msra.mxu0 0.0
  %6555 = vmatprep.subr.mxu0 0.0
  %6556 = vmatpush1.msra.mxu0 0.0
  %6557 = vmatprep.subr.mxu0 0.0
  %6558 = vmatpush1.msra.mxu0 0.0
  %6559 = vmatprep.subr.mxu0 0.0
  %6560 = vmatpush1.msra.mxu0 0.0
  %6561 = vmatprep.subr.mxu0 0.0
  %6562 = vmatpush1.msra.mxu0 0.0
  %6563 = vmatprep.subr.mxu0 0.0
  %6564 = vmatpush1.msra.mxu0 0.0
  %6565 = vmatprep.subr.mxu0 0.0
  %6566 = vmatpush1.msra.mxu0 0.0
  %6567 = vmatprep.subr.mxu0 0.0
  %6568 = vmatpush1.msra.mxu0 0.0
  %6569 = vmatprep.subr.mxu0 0.0
  %6570 = vmatpush1.msra.mxu0 0.0
  %6571 = vmatprep.subr.mxu0 0.0
  %6572 = vmatpush1.msra.mxu0 0.0
  %6573 = vmatprep.subr.mxu0 0.0
  %6574 = vmatpush1.msra.mxu0 0.0
  %6575 = vmatprep.subr.mxu0 0.0
  %6576 = vmatpush1.msra.mxu0 0.0
  %6577 = vmatprep.subr.mxu0 0.0
  %6578 = vmatpush1.msra.mxu0 0.0
  %6579 = vmatprep.subr.mxu0 0.0
  %6580 = vmatpush1.msra.mxu0 0.0
  %6581 = vmatprep.subr.mxu0 0.0
  %6582 = vmatpush1.msra.mxu0 0.0
  %6583 = vmatprep.subr.mxu0 0.0
  %6584 = vmatpush1.msra.mxu0 0.0
  %6585 = vmatprep.subr.mxu0 0.0
  %6586 = vmatpush1.msra.mxu0 0.0
  %6587 = vmatprep.subr.mxu0 0.0
  %6588 = vmatpush1.msra.mxu0 0.0
  %6589 = vmatprep.subr.mxu0 0.0
  %6590 = vmatpush1.msra.mxu0 0.0
  %6591 = vmatprep.subr.mxu0 0.0
  %6592 = vmatpush1.msra.mxu0 0.0
  %6593 = vmatprep.subr.mxu0 0.0
  %6594 = vmatpush1.msra.mxu0 0.0
  %6595 = vmatprep.mubr.f32.mxu0 0.0
  %6596 = vmatmul.mubr.f32.gmra.mrb[0].mxu0 %v6529
  %v6597 = vpop.f32.mrb[0].mxu0
  %v6598 = vadd.f32 0.0, %v6597
  %v6599 = vpop.f32.mrb[0].mxu0
  %6600 = vdwg.mxu0
  %v6602 = vsel %vm329, %v6522, 0
  %v6605 = vsel %vm329, %v6598, 0
  %v6608 = vsel %vm661, %v164, 0
  %6610 = vmatprep.subr.mxu0 0.0
  %6611 = vmatpush1.msra.mxu0 %v6608
  %6612 = vmatprep.subr.mxu0 0.0
  %6613 = vmatpush1.msra.mxu0 0.0
  %6614 = vmatprep.subr.mxu0 0.0
  %6615 = vmatpush1.msra.mxu0 0.0
  %6616 = vmatprep.subr.mxu0 0.0
  %6617 = vmatpush1.msra.mxu0 0.0
  %6618 = vmatprep.subr.mxu0 0.0
  %6619 = vmatpush1.msra.mxu0 0.0
  %6620 = vmatprep.subr.mxu0 0.0
  %6621 = vmatpush1.msra.mxu0 0.0
  %6622 = vmatprep.subr.mxu0 0.0
  %6623 = vmatpush1.msra.mxu0 0.0
  %6624 = vmatprep.subr.mxu0 0.0
  %6625 = vmatpush1.msra.mxu0 0.0
  %6626 = vmatprep.subr.mxu0 0.0
  %6627 = vmatpush1.msra.mxu0 0.0
  %6628 = vmatprep.subr.mxu0 0.0
  %6629 = vmatpush1.msra.mxu0 0.0
  %6630 = vmatprep.subr.mxu0 0.0
  %6631 = vmatpush1.msra.mxu0 0.0
  %6632 = vmatprep.subr.mxu0 0.0
  %6633 = vmatpush1.msra.mxu0 0.0
  %6634 = vmatprep.subr.mxu0 0.0
  %6635 = vmatpush1.msra.mxu0 0.0
  %6636 = vmatprep.subr.mxu0 0.0
  %6637 = vmatpush1.msra.mxu0 0.0
  %6638 = vmatprep.subr.mxu0 0.0
  %6639 = vmatpush1.msra.mxu0 0.0
  %6640 = vmatprep.subr.mxu0 0.0
  %6641 = vmatpush1.msra.mxu0 0.0
  %6642 = vmatprep.subr.mxu0 0.0
  %6643 = vmatpush1.msra.mxu0 0.0
  %6644 = vmatprep.subr.mxu0 0.0
  %6645 = vmatpush1.msra.mxu0 0.0
  %6646 = vmatprep.subr.mxu0 0.0
  %6647 = vmatpush1.msra.mxu0 0.0
  %6648 = vmatprep.subr.mxu0 0.0
  %6649 = vmatpush1.msra.mxu0 0.0
  %6650 = vmatprep.subr.mxu0 0.0
  %6651 = vmatpush1.msra.mxu0 0.0
  %6652 = vmatprep.subr.mxu0 0.0
  %6653 = vmatpush1.msra.mxu0 0.0
  %6654 = vmatprep.subr.mxu0 0.0
  %6655 = vmatpush1.msra.mxu0 0.0
  %6656 = vmatprep.subr.mxu0 0.0
  %6657 = vmatpush1.msra.mxu0 0.0
  %6658 = vmatprep.subr.mxu0 0.0
  %6659 = vmatpush1.msra.mxu0 0.0
  %6660 = vmatprep.subr.mxu0 0.0
  %6661 = vmatpush1.msra.mxu0 0.0
  %6662 = vmatprep.subr.mxu0 0.0
  %6663 = vmatpush1.msra.mxu0 0.0
  %6664 = vmatprep.subr.mxu0 0.0
  %6665 = vmatpush1.msra.mxu0 0.0
  %6666 = vmatprep.subr.mxu0 0.0
  %6667 = vmatpush1.msra.mxu0 0.0
  %6668 = vmatprep.subr.mxu0 0.0
  %6669 = vmatpush1.msra.mxu0 0.0
  %6670 = vmatprep.subr.mxu0 0.0
  %6671 = vmatpush1.msra.mxu0 0.0
  %6672 = vmatprep.subr.mxu0 0.0
  %6673 = vmatpush1.msra.mxu0 0.0
  %6674 = vmatprep.mubr.f32.mxu0 0.0
  %6675 = vmatmul.mubr.f32.gmra.mrb[0].mxu0 %v6602
  %v6676 = vpop.f32.mrb[0].mxu0
  %v6677 = vadd.f32 0.0, %v6676
  %v6678 = vpop.f32.mrb[0].mxu0
  %6679 = vmatprep.mubr.f32.mxu0 0.0
  %6680 = vmatmul.mubr.f32.gmra.mrb[0].mxu0 %v6605
  %v6681 = vpop.f32.mrb[0].mxu0
  %v6682 = vadd.f32 0.0, %v6681
  %v6683 = vpop.f32.mrb[0].mxu0
  %6684 = vdwg.mxu0
  %v6686 = vlaneseq
  %v6687 = vshrl.u32 %v6686, 7
  %v6688 = vsub.s32 0, %v6687
  %v6689 = vrot.slane %v166, %v6688
  %v6691 = vadd.f32 %v6689, %v6677
  %v6692 = vadd.f32 %v6689, %v6682
  %6693 = vrot.lane.b32.xlu0 %v6265, 124
  %v6694 = vpop.permute.xlu0 %6693
  %6695 = vrot.lane.b32.xlu0 %v6265, 116
  %v6696 = vpop.permute.xlu0 %6695
  %v6697 = vsel %vm329, %v6694, 0
  %v6699 = vsel %vm329, %v6696, 0
  %6701 = vmatprep.subr.mxu0 0.0
  %6702 = vmatpush1.xpose.msra.mxu0 %v6699
  %6703 = vmatprep.subr.mxu0 0.0
  %6704 = vmatpush1.xpose.msra.mxu0 0.0
  %6705 = vmatprep.subr.mxu0 0.0
  %6706 = vmatpush1.xpose.msra.mxu0 0.0
  %6707 = vmatprep.subr.mxu0 0.0
  %6708 = vmatpush1.xpose.msra.mxu0 0.0
  %6709 = vmatprep.subr.mxu0 0.0
  %6710 = vmatpush1.xpose.msra.mxu0 0.0
  %6711 = vmatprep.subr.mxu0 0.0
  %6712 = vmatpush1.xpose.msra.mxu0 0.0
  %6713 = vmatprep.subr.mxu0 0.0
  %6714 = vmatpush1.xpose.msra.mxu0 0.0
  %6715 = vmatprep.subr.mxu0 0.0
  %6716 = vmatpush1.xpose.msra.mxu0 0.0
  %6717 = vmatprep.subr.mxu0 0.0
  %6718 = vmatpush1.xpose.msra.mxu0 0.0
  %6719 = vmatprep.subr.mxu0 0.0
  %6720 = vmatpush1.xpose.msra.mxu0 0.0
  %6721 = vmatprep.subr.mxu0 0.0
  %6722 = vmatpush1.xpose.msra.mxu0 0.0
  %6723 = vmatprep.subr.mxu0 0.0
  %6724 = vmatpush1.xpose.msra.mxu0 0.0
  %6725 = vmatprep.subr.mxu0 0.0
  %6726 = vmatpush1.xpose.msra.mxu0 0.0
  %6727 = vmatprep.subr.mxu0 0.0
  %6728 = vmatpush1.xpose.msra.mxu0 0.0
  %6729 = vmatprep.subr.mxu0 0.0
  %6730 = vmatpush1.xpose.msra.mxu0 0.0
  %6731 = vmatprep.subr.mxu0 0.0
  %6732 = vmatpush1.xpose.msra.mxu0 0.0
  %6733 = vmatprep.subr.mxu0 0.0
  %6734 = vmatpush1.xpose.msra.mxu0 0.0
  %6735 = vmatprep.subr.mxu0 0.0
  %6736 = vmatpush1.xpose.msra.mxu0 0.0
  %6737 = vmatprep.subr.mxu0 0.0
  %6738 = vmatpush1.xpose.msra.mxu0 0.0
  %6739 = vmatprep.subr.mxu0 0.0
  %6740 = vmatpush1.xpose.msra.mxu0 0.0
  %6741 = vmatprep.subr.mxu0 0.0
  %6742 = vmatpush1.xpose.msra.mxu0 0.0
  %6743 = vmatprep.subr.mxu0 0.0
  %6744 = vmatpush1.xpose.msra.mxu0 0.0
  %6745 = vmatprep.subr.mxu0 0.0
  %6746 = vmatpush1.xpose.msra.mxu0 0.0
  %6747 = vmatprep.subr.mxu0 0.0
  %6748 = vmatpush1.xpose.msra.mxu0 0.0
  %6749 = vmatprep.subr.mxu0 0.0
  %6750 = vmatpush1.xpose.msra.mxu0 0.0
  %6751 = vmatprep.subr.mxu0 0.0
  %6752 = vmatpush1.xpose.msra.mxu0 0.0
  %6753 = vmatprep.subr.mxu0 0.0
  %6754 = vmatpush1.xpose.msra.mxu0 0.0
  %6755 = vmatprep.subr.mxu0 0.0
  %6756 = vmatpush1.xpose.msra.mxu0 0.0
  %6757 = vmatprep.subr.mxu0 0.0
  %6758 = vmatpush1.xpose.msra.mxu0 0.0
  %6759 = vmatprep.subr.mxu0 0.0
  %6760 = vmatpush1.xpose.msra.mxu0 0.0
  %6761 = vmatprep.subr.mxu0 0.0
  %6762 = vmatpush1.xpose.msra.mxu0 0.0
  %6763 = vmatprep.subr.mxu0 0.0
  %6764 = vmatpush1.xpose.msra.mxu0 0.0
  %6765 = vmatprep.mubr.f32.mxu0 0.0
  %6766 = vmatmul.mubr.f32.gmra.mrb[0].mxu0 %v6697
  %v6767 = vpop.f32.mrb[0].mxu0
  %v6768 = vadd.f32 %v319, %v6767
  %v6769 = vpop.f32.mrb[0].mxu0
  %6770 = vdwg.mxu0
  %6771 = vrot.lane.b32.xlu0 %v6270, 124
  %v6772 = vpop.permute.xlu0 %6771
  %6773 = vrot.lane.b32.xlu0 %v6270, 116
  %v6774 = vpop.permute.xlu0 %6773
  %v6775 = vsel %vm329, %v6772, 0
  %v6777 = vsel %vm329, %v6774, 0
  %6779 = vmatprep.subr.mxu0 0.0
  %6780 = vmatpush1.xpose.msra.mxu0 %v6777
  %6781 = vmatprep.subr.mxu0 0.0
  %6782 = vmatpush1.xpose.msra.mxu0 0.0
  %6783 = vmatprep.subr.mxu0 0.0
  %6784 = vmatpush1.xpose.msra.mxu0 0.0
  %6785 = vmatprep.subr.mxu0 0.0
  %6786 = vmatpush1.xpose.msra.mxu0 0.0
  %6787 = vmatprep.subr.mxu0 0.0
  %6788 = vmatpush1.xpose.msra.mxu0 0.0
  %6789 = vmatprep.subr.mxu0 0.0
  %6790 = vmatpush1.xpose.msra.mxu0 0.0
  %6791 = vmatprep.subr.mxu0 0.0
  %6792 = vmatpush1.xpose.msra.mxu0 0.0
  %6793 = vmatprep.subr.mxu0 0.0
  %6794 = vmatpush1.xpose.msra.mxu0 0.0
  %6795 = vmatprep.subr.mxu0 0.0
  %6796 = vmatpush1.xpose.msra.mxu0 0.0
  %6797 = vmatprep.subr.mxu0 0.0
  %6798 = vmatpush1.xpose.msra.mxu0 0.0
  %6799 = vmatprep.subr.mxu0 0.0
  %6800 = vmatpush1.xpose.msra.mxu0 0.0
  %6801 = vmatprep.subr.mxu0 0.0
  %6802 = vmatpush1.xpose.msra.mxu0 0.0
  %6803 = vmatprep.subr.mxu0 0.0
  %6804 = vmatpush1.xpose.msra.mxu0 0.0
  %6805 = vmatprep.subr.mxu0 0.0
  %6806 = vmatpush1.xpose.msra.mxu0 0.0
  %6807 = vmatprep.subr.mxu0 0.0
  %6808 = vmatpush1.xpose.msra.mxu0 0.0
  %6809 = vmatprep.subr.mxu0 0.0
  %6810 = vmatpush1.xpose.msra.mxu0 0.0
  %6811 = vmatprep.subr.mxu0 0.0
  %6812 = vmatpush1.xpose.msra.mxu0 0.0
  %6813 = vmatprep.subr.mxu0 0.0
  %6814 = vmatpush1.xpose.msra.mxu0 0.0
  %6815 = vmatprep.subr.mxu0 0.0
  %6816 = vmatpush1.xpose.msra.mxu0 0.0
  %6817 = vmatprep.subr.mxu0 0.0
  %6818 = vmatpush1.xpose.msra.mxu0 0.0
  %6819 = vmatprep.subr.mxu0 0.0
  %6820 = vmatpush1.xpose.msra.mxu0 0.0
  %6821 = vmatprep.subr.mxu0 0.0
  %6822 = vmatpush1.xpose.msra.mxu0 0.0
  %6823 = vmatprep.subr.mxu0 0.0
  %6824 = vmatpush1.xpose.msra.mxu0 0.0
  %6825 = vmatprep.subr.mxu0 0.0
  %6826 = vmatpush1.xpose.msra.mxu0 0.0
  %6827 = vmatprep.subr.mxu0 0.0
  %6828 = vmatpush1.xpose.msra.mxu0 0.0
  %6829 = vmatprep.subr.mxu0 0.0
  %6830 = vmatpush1.xpose.msra.mxu0 0.0
  %6831 = vmatprep.subr.mxu0 0.0
  %6832 = vmatpush1.xpose.msra.mxu0 0.0
  %6833 = vmatprep.subr.mxu0 0.0
  %6834 = vmatpush1.xpose.msra.mxu0 0.0
  %6835 = vmatprep.subr.mxu0 0.0
  %6836 = vmatpush1.xpose.msra.mxu0 0.0
  %6837 = vmatprep.subr.mxu0 0.0
  %6838 = vmatpush1.xpose.msra.mxu0 0.0
  %6839 = vmatprep.subr.mxu0 0.0
  %6840 = vmatpush1.xpose.msra.mxu0 0.0
  %6841 = vmatprep.subr.mxu0 0.0
  %6842 = vmatpush1.xpose.msra.mxu0 0.0
  %6843 = vmatprep.mubr.f32.mxu0 0.0
  %6844 = vmatmul.mubr.f32.gmra.mrb[0].mxu0 %v6775
  %v6845 = vpop.f32.mrb[0].mxu0
  %v6846 = vadd.f32 %v323, %v6845
  %v6847 = vpop.f32.mrb[0].mxu0
  %6848 = vdwg.mxu0
  %v6849 = vsel %vm183, %v6768, -inf
  %6850 = vmax.xlane.f32.xlu0 %v6849
  %v6851 = vpop.xlane.xlu0 %6850
  %v6852 = vsel %vm183, %v6846, -inf
  %6853 = vmax.xlane.f32.xlu0 %v6852
  %v6854 = vpop.xlane.xlu0 %6853
  %v6855 = vsub.f32 %v6768, %v6851
  %v6856 = vsub.f32 %v6846, %v6854
  %v6857 = vmul.f32 %v6855, 1.442695
  %v6858 = vpow.pop %v6857
  %v6859 = vmul.f32 %v6856, 1.442695
  %v6860 = vpow.pop %v6859
  %v6861 = vsel %vm183, %v6858, 0.0
  %6862 = vadd.xlane.f32.xlu0 %v6861
  %v6863 = vpop.xlane.xlu0 %6862
  %v6864 = vsel %vm183, %v6860, 0.0
  %6865 = vadd.xlane.f32.xlu0 %v6864
  %v6866 = vpop.xlane.xlu0 %6865
  %v6867 = vrcp.pop %v6863
  %v6868 = vrcp.pop %v6866
  %v6869 = vmul.f32 %v6858, %v6867
  %v6870 = vmul.f32 %v6860, %v6868
  %6871 = vrot.lane.b32.xlu0 %v6265, 108
  %v6872 = vpop.permute.xlu0 %6871
  %v6875 = vsel %vm183, %v6869, 0
  %6877 = vmatprep.subr.mxu0 0.0
  %6878 = vmatpush1.msra.mxu0 %v6872
  %6879 = vmatprep.subr.mxu0 0.0
  %6880 = vmatpush1.msra.mxu0 0.0
  %6881 = vmatprep.subr.mxu0 0.0
  %6882 = vmatpush1.msra.mxu0 0.0
  %6883 = vmatprep.subr.mxu0 0.0
  %6884 = vmatpush1.msra.mxu0 0.0
  %6885 = vmatprep.subr.mxu0 0.0
  %6886 = vmatpush1.msra.mxu0 0.0
  %6887 = vmatprep.subr.mxu0 0.0
  %6888 = vmatpush1.msra.mxu0 0.0
  %6889 = vmatprep.subr.mxu0 0.0
  %6890 = vmatpush1.msra.mxu0 0.0
  %6891 = vmatprep.subr.mxu0 0.0
  %6892 = vmatpush1.msra.mxu0 0.0
  %6893 = vmatprep.subr.mxu0 0.0
  %6894 = vmatpush1.msra.mxu0 0.0
  %6895 = vmatprep.subr.mxu0 0.0
  %6896 = vmatpush1.msra.mxu0 0.0
  %6897 = vmatprep.subr.mxu0 0.0
  %6898 = vmatpush1.msra.mxu0 0.0
  %6899 = vmatprep.subr.mxu0 0.0
  %6900 = vmatpush1.msra.mxu0 0.0
  %6901 = vmatprep.subr.mxu0 0.0
  %6902 = vmatpush1.msra.mxu0 0.0
  %6903 = vmatprep.subr.mxu0 0.0
  %6904 = vmatpush1.msra.mxu0 0.0
  %6905 = vmatprep.subr.mxu0 0.0
  %6906 = vmatpush1.msra.mxu0 0.0
  %6907 = vmatprep.subr.mxu0 0.0
  %6908 = vmatpush1.msra.mxu0 0.0
  %6909 = vmatprep.subr.mxu0 0.0
  %6910 = vmatpush1.msra.mxu0 0.0
  %6911 = vmatprep.subr.mxu0 0.0
  %6912 = vmatpush1.msra.mxu0 0.0
  %6913 = vmatprep.subr.mxu0 0.0
  %6914 = vmatpush1.msra.mxu0 0.0
  %6915 = vmatprep.subr.mxu0 0.0
  %6916 = vmatpush1.msra.mxu0 0.0
  %6917 = vmatprep.subr.mxu0 0.0
  %6918 = vmatpush1.msra.mxu0 0.0
  %6919 = vmatprep.subr.mxu0 0.0
  %6920 = vmatpush1.msra.mxu0 0.0
  %6921 = vmatprep.subr.mxu0 0.0
  %6922 = vmatpush1.msra.mxu0 0.0
  %6923 = vmatprep.subr.mxu0 0.0
  %6924 = vmatpush1.msra.mxu0 0.0
  %6925 = vmatprep.subr.mxu0 0.0
  %6926 = vmatpush1.msra.mxu0 0.0
  %6927 = vmatprep.subr.mxu0 0.0
  %6928 = vmatpush1.msra.mxu0 0.0
  %6929 = vmatprep.subr.mxu0 0.0
  %6930 = vmatpush1.msra.mxu0 0.0
  %6931 = vmatprep.subr.mxu0 0.0
  %6932 = vmatpush1.msra.mxu0 0.0
  %6933 = vmatprep.subr.mxu0 0.0
  %6934 = vmatpush1.msra.mxu0 0.0
  %6935 = vmatprep.subr.mxu0 0.0
  %6936 = vmatpush1.msra.mxu0 0.0
  %6937 = vmatprep.subr.mxu0 0.0
  %6938 = vmatpush1.msra.mxu0 0.0
  %6939 = vmatprep.subr.mxu0 0.0
  %6940 = vmatpush1.msra.mxu0 0.0
  %6941 = vmatprep.mubr.f32.mxu0 0.0
  %6942 = vmatmul.mubr.f32.gmra.mrb[0].mxu0 %v6875
  %v6943 = vpop.f32.mrb[0].mxu0
  %v6944 = vadd.f32 0.0, %v6943
  %v6945 = vpop.f32.mrb[0].mxu0
  %6946 = vdwg.mxu0
  %6947 = vrot.lane.b32.xlu0 %v6270, 108
  %v6948 = vpop.permute.xlu0 %6947
  %v6951 = vsel %vm183, %v6870, 0
  %6953 = vmatprep.subr.mxu0 0.0
  %6954 = vmatpush1.msra.mxu0 %v6948
  %6955 = vmatprep.subr.mxu0 0.0
  %6956 = vmatpush1.msra.mxu0 0.0
  %6957 = vmatprep.subr.mxu0 0.0
  %6958 = vmatpush1.msra.mxu0 0.0
  %6959 = vmatprep.subr.mxu0 0.0
  %6960 = vmatpush1.msra.mxu0 0.0
  %6961 = vmatprep.subr.mxu0 0.0
  %6962 = vmatpush1.msra.mxu0 0.0
  %6963 = vmatprep.subr.mxu0 0.0
  %6964 = vmatpush1.msra.mxu0 0.0
  %6965 = vmatprep.subr.mxu0 0.0
  %6966 = vmatpush1.msra.mxu0 0.0
  %6967 = vmatprep.subr.mxu0 0.0
  %6968 = vmatpush1.msra.mxu0 0.0
  %6969 = vmatprep.subr.mxu0 0.0
  %6970 = vmatpush1.msra.mxu0 0.0
  %6971 = vmatprep.subr.mxu0 0.0
  %6972 = vmatpush1.msra.mxu0 0.0
  %6973 = vmatprep.subr.mxu0 0.0
  %6974 = vmatpush1.msra.mxu0 0.0
  %6975 = vmatprep.subr.mxu0 0.0
  %6976 = vmatpush1.msra.mxu0 0.0
  %6977 = vmatprep.subr.mxu0 0.0
  %6978 = vmatpush1.msra.mxu0 0.0
  %6979 = vmatprep.subr.mxu0 0.0
  %6980 = vmatpush1.msra.mxu0 0.0
  %6981 = vmatprep.subr.mxu0 0.0
  %6982 = vmatpush1.msra.mxu0 0.0
  %6983 = vmatprep.subr.mxu0 0.0
  %6984 = vmatpush1.msra.mxu0 0.0
  %6985 = vmatprep.subr.mxu0 0.0
  %6986 = vmatpush1.msra.mxu0 0.0
  %6987 = vmatprep.subr.mxu0 0.0
  %6988 = vmatpush1.msra.mxu0 0.0
  %6989 = vmatprep.subr.mxu0 0.0
  %6990 = vmatpush1.msra.mxu0 0.0
  %6991 = vmatprep.subr.mxu0 0.0
  %6992 = vmatpush1.msra.mxu0 0.0
  %6993 = vmatprep.subr.mxu0 0.0
  %6994 = vmatpush1.msra.mxu0 0.0
  %6995 = vmatprep.subr.mxu0 0.0
  %6996 = vmatpush1.msra.mxu0 0.0
  %6997 = vmatprep.subr.mxu0 0.0
  %6998 = vmatpush1.msra.mxu0 0.0
  %6999 = vmatprep.subr.mxu0 0.0
  %7000 = vmatpush1.msra.mxu0 0.0
  %7001 = vmatprep.subr.mxu0 0.0
  %7002 = vmatpush1.msra.mxu0 0.0
  %7003 = vmatprep.subr.mxu0 0.0
  %7004 = vmatpush1.msra.mxu0 0.0
  %7005 = vmatprep.subr.mxu0 0.0
  %7006 = vmatpush1.msra.mxu0 0.0
  %7007 = vmatprep.subr.mxu0 0.0
  %7008 = vmatpush1.msra.mxu0 0.0
  %7009 = vmatprep.subr.mxu0 0.0
  %7010 = vmatpush1.msra.mxu0 0.0
  %7011 = vmatprep.subr.mxu0 0.0
  %7012 = vmatpush1.msra.mxu0 0.0
  %7013 = vmatprep.subr.mxu0 0.0
  %7014 = vmatpush1.msra.mxu0 0.0
  %7015 = vmatprep.subr.mxu0 0.0
  %7016 = vmatpush1.msra.mxu0 0.0
  %7017 = vmatprep.mubr.f32.mxu0 0.0
  %7018 = vmatmul.mubr.f32.gmra.mrb[0].mxu0 %v6951
  %v7019 = vpop.f32.mrb[0].mxu0
  %v7020 = vadd.f32 0.0, %v7019
  %v7021 = vpop.f32.mrb[0].mxu0
  %7022 = vdwg.mxu0
  %v7023 = vrot.slane %v164, 4
  %v7025 = vsel %vm329, %v6944, 0
  %v7028 = vsel %vm329, %v7020, 0
  %v7030 = vsel %vm661, %v7023, 0
  %7032 = vmatprep.subr.mxu0 0.0
  %7033 = vmatpush1.msra.mxu0 %v7030
  %7034 = vmatprep.subr.mxu0 0.0
  %7035 = vmatpush1.msra.mxu0 0.0
  %7036 = vmatprep.subr.mxu0 0.0
  %7037 = vmatpush1.msra.mxu0 0.0
  %7038 = vmatprep.subr.mxu0 0.0
  %7039 = vmatpush1.msra.mxu0 0.0
  %7040 = vmatprep.subr.mxu0 0.0
  %7041 = vmatpush1.msra.mxu0 0.0
  %7042 = vmatprep.subr.mxu0 0.0
  %7043 = vmatpush1.msra.mxu0 0.0
  %7044 = vmatprep.subr.mxu0 0.0
  %7045 = vmatpush1.msra.mxu0 0.0
  %7046 = vmatprep.subr.mxu0 0.0
  %7047 = vmatpush1.msra.mxu0 0.0
  %7048 = vmatprep.subr.mxu0 0.0
  %7049 = vmatpush1.msra.mxu0 0.0
  %7050 = vmatprep.subr.mxu0 0.0
  %7051 = vmatpush1.msra.mxu0 0.0
  %7052 = vmatprep.subr.mxu0 0.0
  %7053 = vmatpush1.msra.mxu0 0.0
  %7054 = vmatprep.subr.mxu0 0.0
  %7055 = vmatpush1.msra.mxu0 0.0
  %7056 = vmatprep.subr.mxu0 0.0
  %7057 = vmatpush1.msra.mxu0 0.0
  %7058 = vmatprep.subr.mxu0 0.0
  %7059 = vmatpush1.msra.mxu0 0.0
  %7060 = vmatprep.subr.mxu0 0.0
  %7061 = vmatpush1.msra.mxu0 0.0
  %7062 = vmatprep.subr.mxu0 0.0
  %7063 = vmatpush1.msra.mxu0 0.0
  %7064 = vmatprep.subr.mxu0 0.0
  %7065 = vmatpush1.msra.mxu0 0.0
  %7066 = vmatprep.subr.mxu0 0.0
  %7067 = vmatpush1.msra.mxu0 0.0
  %7068 = vmatprep.subr.mxu0 0.0
  %7069 = vmatpush1.msra.mxu0 0.0
  %7070 = vmatprep.subr.mxu0 0.0
  %7071 = vmatpush1.msra.mxu0 0.0
  %7072 = vmatprep.subr.mxu0 0.0
  %7073 = vmatpush1.msra.mxu0 0.0
  %7074 = vmatprep.subr.mxu0 0.0
  %7075 = vmatpush1.msra.mxu0 0.0
  %7076 = vmatprep.subr.mxu0 0.0
  %7077 = vmatpush1.msra.mxu0 0.0
  %7078 = vmatprep.subr.mxu0 0.0
  %7079 = vmatpush1.msra.mxu0 0.0
  %7080 = vmatprep.subr.mxu0 0.0
  %7081 = vmatpush1.msra.mxu0 0.0
  %7082 = vmatprep.subr.mxu0 0.0
  %7083 = vmatpush1.msra.mxu0 0.0
  %7084 = vmatprep.subr.mxu0 0.0
  %7085 = vmatpush1.msra.mxu0 0.0
  %7086 = vmatprep.subr.mxu0 0.0
  %7087 = vmatpush1.msra.mxu0 0.0
  %7088 = vmatprep.subr.mxu0 0.0
  %7089 = vmatpush1.msra.mxu0 0.0
  %7090 = vmatprep.subr.mxu0 0.0
  %7091 = vmatpush1.msra.mxu0 0.0
  %7092 = vmatprep.subr.mxu0 0.0
  %7093 = vmatpush1.msra.mxu0 0.0
  %7094 = vmatprep.subr.mxu0 0.0
  %7095 = vmatpush1.msra.mxu0 0.0
  %7096 = vmatprep.mubr.f32.mxu0 0.0
  %7097 = vmatmul.mubr.f32.gmra.mrb[0].mxu0 %v7025
  %v7098 = vpop.f32.mrb[0].mxu0
  %v7099 = vadd.f32 0.0, %v7098
  %v7100 = vpop.f32.mrb[0].mxu0
  %7101 = vmatprep.mubr.f32.mxu0 0.0
  %7102 = vmatmul.mubr.f32.gmra.mrb[0].mxu0 %v7028
  %v7103 = vpop.f32.mrb[0].mxu0
  %v7104 = vadd.f32 0.0, %v7103
  %v7105 = vpop.f32.mrb[0].mxu0
  %7106 = vdwg.mxu0
  %v7107 = vadd.f32 %v6691, %v7099
  %v7108 = vadd.f32 %v6692, %v7104
  %v7109 = vadd.f32 %v6142, %v7107
  %v7110 = vadd.f32 %v6143, %v7108
  %v7111 = vsel %vm183, %v7109, 0.0
  %7112 = vadd.xlane.f32.xlu0 %v7111
  %v7113 = vpop.xlane.xlu0 %7112
  %v7114 = vsel %vm183, %v7110, 0.0
  %7115 = vadd.xlane.f32.xlu0 %v7114
  %v7116 = vpop.xlane.xlu0 %7115
  %v7117 = vmul.f32 %v7113, %v190
  %v7118 = vmul.f32 %v7116, %v190
  %v7119 = vsub.f32 %v7109, %v7117
  %v7120 = vsub.f32 %v7110, %v7118
  %v7121 = vmul.f32 %v7119, %v7119
  %v7122 = vmul.f32 %v7120, %v7120
  %v7123 = vsel %vm183, %v7121, 0.0
  %7124 = vadd.xlane.f32.xlu0 %v7123
  %v7125 = vpop.xlane.xlu0 %7124
  %v7126 = vsel %vm183, %v7122, 0.0
  %7127 = vadd.xlane.f32.xlu0 %v7126
  %v7128 = vpop.xlane.xlu0 %7127
  %v7129 = vmul.f32 %v7125, %v190
  %v7130 = vmul.f32 %v7128, %v190
  %v7131 = vadd.f32 %v7129, 1e-05
  %v7132 = vadd.f32 %v7130, 1e-05
  %v7133 = vrsqrt.pop %v7131
  %v7134 = vrsqrt.pop %v7132
  %v7135 = vmul.f32 %v7119, %v7133
  %v7136 = vmul.f32 %v7120, %v7134
  %v7138 = vlaneseq
  %v7139 = vshrl.u32 %v7138, 7
  %v7140 = vsub.s32 0, %v7139
  %v7141 = vrot.slane %v168, %v7140
  %v7143 = vmul.f32 %v7135, %v7141
  %v7144 = vmul.f32 %v7136, %v7141
  %v7146 = vlaneseq
  %v7147 = vshrl.u32 %v7146, 7
  %v7148 = vsub.s32 0, %v7147
  %v7149 = vrot.slane %v170, %v7148
  %v7151 = vadd.f32 %v7143, %v7149
  %v7152 = vadd.f32 %v7144, %v7149
  %v7154 = vlaneseq
  %v7155 = vshrl.u32 %v7154, 7
  %v7156 = vsub.s32 0, %v7155
  %v7157 = vrot.slane %v174, %v7156
  %v7160 = vsel %vm183, %v7151, 0
  %v7163 = vsel %vm183, %v7152, 0
  %7165 = vmatprep.subr.mxu0 0.0
  %7166 = vmatpush1.msra.mxu0 %v172
  %7167 = vmatprep.subr.mxu0 0.0
  %7168 = vmatpush1.msra.mxu0 0.0
  %7169 = vmatprep.subr.mxu0 0.0
  %7170 = vmatpush1.msra.mxu0 0.0
  %7171 = vmatprep.subr.mxu0 0.0
  %7172 = vmatpush1.msra.mxu0 0.0
  %7173 = vmatprep.subr.mxu0 0.0
  %7174 = vmatpush1.msra.mxu0 0.0
  %7175 = vmatprep.subr.mxu0 0.0
  %7176 = vmatpush1.msra.mxu0 0.0
  %7177 = vmatprep.subr.mxu0 0.0
  %7178 = vmatpush1.msra.mxu0 0.0
  %7179 = vmatprep.subr.mxu0 0.0
  %7180 = vmatpush1.msra.mxu0 0.0
  %7181 = vmatprep.subr.mxu0 0.0
  %7182 = vmatpush1.msra.mxu0 0.0
  %7183 = vmatprep.subr.mxu0 0.0
  %7184 = vmatpush1.msra.mxu0 0.0
  %7185 = vmatprep.subr.mxu0 0.0
  %7186 = vmatpush1.msra.mxu0 0.0
  %7187 = vmatprep.subr.mxu0 0.0
  %7188 = vmatpush1.msra.mxu0 0.0
  %7189 = vmatprep.subr.mxu0 0.0
  %7190 = vmatpush1.msra.mxu0 0.0
  %7191 = vmatprep.subr.mxu0 0.0
  %7192 = vmatpush1.msra.mxu0 0.0
  %7193 = vmatprep.subr.mxu0 0.0
  %7194 = vmatpush1.msra.mxu0 0.0
  %7195 = vmatprep.subr.mxu0 0.0
  %7196 = vmatpush1.msra.mxu0 0.0
  %7197 = vmatprep.subr.mxu0 0.0
  %7198 = vmatpush1.msra.mxu0 0.0
  %7199 = vmatprep.subr.mxu0 0.0
  %7200 = vmatpush1.msra.mxu0 0.0
  %7201 = vmatprep.subr.mxu0 0.0
  %7202 = vmatpush1.msra.mxu0 0.0
  %7203 = vmatprep.subr.mxu0 0.0
  %7204 = vmatpush1.msra.mxu0 0.0
  %7205 = vmatprep.subr.mxu0 0.0
  %7206 = vmatpush1.msra.mxu0 0.0
  %7207 = vmatprep.subr.mxu0 0.0
  %7208 = vmatpush1.msra.mxu0 0.0
  %7209 = vmatprep.subr.mxu0 0.0
  %7210 = vmatpush1.msra.mxu0 0.0
  %7211 = vmatprep.subr.mxu0 0.0
  %7212 = vmatpush1.msra.mxu0 0.0
  %7213 = vmatprep.subr.mxu0 0.0
  %7214 = vmatpush1.msra.mxu0 0.0
  %7215 = vmatprep.subr.mxu0 0.0
  %7216 = vmatpush1.msra.mxu0 0.0
  %7217 = vmatprep.subr.mxu0 0.0
  %7218 = vmatpush1.msra.mxu0 0.0
  %7219 = vmatprep.subr.mxu0 0.0
  %7220 = vmatpush1.msra.mxu0 0.0
  %7221 = vmatprep.subr.mxu0 0.0
  %7222 = vmatpush1.msra.mxu0 0.0
  %7223 = vmatprep.subr.mxu0 0.0
  %7224 = vmatpush1.msra.mxu0 0.0
  %7225 = vmatprep.subr.mxu0 0.0
  %7226 = vmatpush1.msra.mxu0 0.0
  %7227 = vmatprep.subr.mxu0 0.0
  %7228 = vmatpush1.msra.mxu0 0.0
  %7229 = vmatprep.mubr.f32.mxu0 0.0
  %7230 = vmatmul.mubr.f32.gmra.mrb[0].mxu0 %v7160
  %v7231 = vpop.f32.mrb[0].mxu0
  %v7232 = vadd.f32 %v7157, %v7231
  %v7233 = vpop.f32.mrb[0].mxu0
  %7234 = vmatprep.mubr.f32.mxu0 0.0
  %7235 = vmatmul.mubr.f32.gmra.mrb[0].mxu0 %v7163
  %v7236 = vpop.f32.mrb[0].mxu0
  %v7237 = vadd.f32 %v7157, %v7236
  %v7238 = vpop.f32.mrb[0].mxu0
  %7239 = vdwg.mxu0
  %v7240 = vmax.f32 %v7232, 0.0
  %v7241 = vmax.f32 %v7237, 0.0
  %v7243 = vsel %vm183, %v7240, 0
  %v7246 = vsel %vm183, %v7241, 0
  %7248 = vmatprep.subr.mxu0 0.0
  %7249 = vmatpush1.msra.mxu0 %v176
  %7250 = vmatprep.subr.mxu0 0.0
  %7251 = vmatpush1.msra.mxu0 0.0
  %7252 = vmatprep.subr.mxu0 0.0
  %7253 = vmatpush1.msra.mxu0 0.0
  %7254 = vmatprep.subr.mxu0 0.0
  %7255 = vmatpush1.msra.mxu0 0.0
  %7256 = vmatprep.subr.mxu0 0.0
  %7257 = vmatpush1.msra.mxu0 0.0
  %7258 = vmatprep.subr.mxu0 0.0
  %7259 = vmatpush1.msra.mxu0 0.0
  %7260 = vmatprep.subr.mxu0 0.0
  %7261 = vmatpush1.msra.mxu0 0.0
  %7262 = vmatprep.subr.mxu0 0.0
  %7263 = vmatpush1.msra.mxu0 0.0
  %7264 = vmatprep.subr.mxu0 0.0
  %7265 = vmatpush1.msra.mxu0 0.0
  %7266 = vmatprep.subr.mxu0 0.0
  %7267 = vmatpush1.msra.mxu0 0.0
  %7268 = vmatprep.subr.mxu0 0.0
  %7269 = vmatpush1.msra.mxu0 0.0
  %7270 = vmatprep.subr.mxu0 0.0
  %7271 = vmatpush1.msra.mxu0 0.0
  %7272 = vmatprep.subr.mxu0 0.0
  %7273 = vmatpush1.msra.mxu0 0.0
  %7274 = vmatprep.subr.mxu0 0.0
  %7275 = vmatpush1.msra.mxu0 0.0
  %7276 = vmatprep.subr.mxu0 0.0
  %7277 = vmatpush1.msra.mxu0 0.0
  %7278 = vmatprep.subr.mxu0 0.0
  %7279 = vmatpush1.msra.mxu0 0.0
  %7280 = vmatprep.subr.mxu0 0.0
  %7281 = vmatpush1.msra.mxu0 0.0
  %7282 = vmatprep.subr.mxu0 0.0
  %7283 = vmatpush1.msra.mxu0 0.0
  %7284 = vmatprep.subr.mxu0 0.0
  %7285 = vmatpush1.msra.mxu0 0.0
  %7286 = vmatprep.subr.mxu0 0.0
  %7287 = vmatpush1.msra.mxu0 0.0
  %7288 = vmatprep.subr.mxu0 0.0
  %7289 = vmatpush1.msra.mxu0 0.0
  %7290 = vmatprep.subr.mxu0 0.0
  %7291 = vmatpush1.msra.mxu0 0.0
  %7292 = vmatprep.subr.mxu0 0.0
  %7293 = vmatpush1.msra.mxu0 0.0
  %7294 = vmatprep.subr.mxu0 0.0
  %7295 = vmatpush1.msra.mxu0 0.0
  %7296 = vmatprep.subr.mxu0 0.0
  %7297 = vmatpush1.msra.mxu0 0.0
  %7298 = vmatprep.subr.mxu0 0.0
  %7299 = vmatpush1.msra.mxu0 0.0
  %7300 = vmatprep.subr.mxu0 0.0
  %7301 = vmatpush1.msra.mxu0 0.0
  %7302 = vmatprep.subr.mxu0 0.0
  %7303 = vmatpush1.msra.mxu0 0.0
  %7304 = vmatprep.subr.mxu0 0.0
  %7305 = vmatpush1.msra.mxu0 0.0
  %7306 = vmatprep.subr.mxu0 0.0
  %7307 = vmatpush1.msra.mxu0 0.0
  %7308 = vmatprep.subr.mxu0 0.0
  %7309 = vmatpush1.msra.mxu0 0.0
  %7310 = vmatprep.subr.mxu0 0.0
  %7311 = vmatpush1.msra.mxu0 0.0
  %7312 = vmatprep.mubr.f32.mxu0 0.0
  %7313 = vmatmul.mubr.f32.gmra.mrb[0].mxu0 %v7243
  %v7314 = vpop.f32.mrb[0].mxu0
  %v7315 = vadd.f32 0.0, %v7314
  %v7316 = vpop.f32.mrb[0].mxu0
  %7317 = vmatprep.mubr.f32.mxu0 0.0
  %7318 = vmatmul.mubr.f32.gmra.mrb[0].mxu0 %v7246
  %v7319 = vpop.f32.mrb[0].mxu0
  %v7320 = vadd.f32 0.0, %v7319
  %v7321 = vpop.f32.mrb[0].mxu0
  %7322 = vdwg.mxu0
  %v7323 = vadd.f32 %v7109, %v7315
  %v7324 = vadd.f32 %v7110, %v7320
  %v7326 = vlaneseq
  %v7327 = vshrl.u32 %v7326, 7
  %v7328 = vsub.s32 0, %v7327
  %v7329 = vrot.slane %v178, %v7328
  %v7331 = vadd.f32 %v7323, %v7329
  %v7332 = vadd.f32 %v7324, %v7329
  %7333 = vst.msk [vmem:[%s14] sm:$0xff] %vm183, %v7331
  %7334 = vst.msk [vmem:[%s14 + $0x8] sm:$0xff] %vm183, %v7332
  // Predicated region
  $region58: #{transformer_encoder.1} parent=0 // pred_check
    _
  $region59: #{transformer_encoder.1} parent=0 // pred_check_branch
    %7336 = sbr.rel (0) target = $region61
  $region60: #{transformer_encoder.1} parent=0 // pred_region
    _
  $region61: #{transformer_encoder.1} parent=0 // pred_fallthru
    _
  // Predicated region
  $region62: #{transformer_encoder.1} parent=0 // pred_check
    _
  $region63: #{transformer_encoder.1} parent=0 // pred_check_branch
    %7338 = sbr.rel (0) target = $region65
  $region64: #{transformer_encoder.1} parent=0 // pred_region
    _
  $region65: #{transformer_encoder.1} parent=0 // pred_fallthru
    _

</llo_original>
